<compile_context>
chip_gen: v6e
topology: v6e:2x2x1
jax: 0.10.0
libtpu: 0.0.40
codegen_flags: <defaults>
</compile_context>

<pallas_src>
import math
from functools import partial

import jax
import jax.numpy as jnp
from jax.experimental import pallas as pl
from jax.experimental.pallas import tpu as pltpu


# ----------------------------------------------------------------------------
# Generation-aware configuration + tiling helpers
# ----------------------------------------------------------------------------
def _round_up(x, m):
    return ((x + m - 1) // m) * m


def _tpu_defaults():
    """Pick VMEM budget / tile targets / residual dtype from the device."""
    kind = ""
    try:
        kind = jax.devices()[0].device_kind.lower()
    except Exception:
        pass
    vmem_cap = None
    try:
        vmem_cap = pltpu.get_tpu_info().vmem_capacity_bytes
    except Exception:
        pass
    small_vmem = vmem_cap is not None and vmem_cap <= 80 * 1024 * 1024
    if small_vmem or "v7" in kind:
        # v7x: 64 MiB physical VMEM per core -> conservative tiles.
        return dict(vmem_limit=48 * 1024 * 1024, row_tile=256, depth_tile=512,
                    residual_dtype=jnp.float32)
    if "v5e" in kind or "v5 lite" in kind or "v5lite" in kind:
        # v5e: 128 MiB VMEM, lowest HBM BW -> big tiles + bf16 residual stream.
        return dict(vmem_limit=100 * 1024 * 1024, row_tile=512, depth_tile=1024,
                    residual_dtype=jnp.bfloat16)
    if "v5" in kind or "v6" in kind:
        # v5p / v6e: 128 MiB VMEM -> big tiles, f32 residual.
        return dict(vmem_limit=100 * 1024 * 1024, row_tile=512, depth_tile=1024,
                    residual_dtype=jnp.float32)
    # Unknown generation: stay v7x-safe.
    return dict(vmem_limit=48 * 1024 * 1024, row_tile=256, depth_tile=512,
                residual_dtype=jnp.float32)


def _tile_rows(m, target):
    """Row tile + padded row count: tm = target (or whole-m rounded to 8)."""
    target = max(8, (target // 8) * 8)
    tm = target if m >= target else _round_up(m, 8)
    return tm, _round_up(m, tm)


def _pad_rows(x, m_pad):
    m = x.shape[0]
    if m_pad == m:
        return x
    return jnp.pad(x, ((0, m_pad - m), (0, 0)))


def _cparams(sem, vmem_limit):
    return pltpu.CompilerParams(dimension_semantics=sem,
                                vmem_limit_bytes=vmem_limit)


# ----------------------------------------------------------------------------
# Pallas kernels
# ----------------------------------------------------------------------------
def _matmul_bias_kernel(x_ref, w_ref, b_ref, o_ref):
    # o = x @ w + b ; bf16 MXU operands, f32 accumulation.
    y = jnp.dot(x_ref[...].astype(jnp.bfloat16), w_ref[...],
                preferred_element_type=jnp.float32) + b_ref[...]
    o_ref[...] = y.astype(o_ref.dtype)


def _ln_matmul_kernel(x_ref, g_ref, beta_ref, w_ref, bias_ref, o_ref, *, gelu):
    # fused LayerNorm (f32 stats) -> linear (bf16 MXU) [-> GELU]
    x = x_ref[...].astype(jnp.float32)
    mu = jnp.mean(x, axis=-1, keepdims=True)
    c = x - mu
    var = jnp.mean(c * c, axis=-1, keepdims=True)
    h = c * jax.lax.rsqrt(var + 1e-6) * g_ref[...] + beta_ref[...]
    y = jnp.dot(h.astype(jnp.bfloat16), w_ref[...],
                preferred_element_type=jnp.float32) + bias_ref[...]
    if gelu:
        # TODO(synk): PyTorch nn.GELU is exact-erf; tanh approximation used here.
        y = jax.nn.gelu(y, approximate=True)
    o_ref[...] = y.astype(o_ref.dtype)


def _proj_scale_residual_kernel(h_ref, x_ref, w_ref, b_ref, ls_ref, o_ref):
    # o = x + ls * (h @ w + b)       (LayerScale + residual add, f32 math)
    y = jnp.dot(h_ref[...].astype(jnp.bfloat16), w_ref[...],
                preferred_element_type=jnp.float32) + b_ref[...]
    o_ref[...] = (x_ref[...].astype(jnp.float32) + ls_ref[...] * y).astype(o_ref.dtype)


def _attn_kernel(q_ref, k_ref, v_ref, o_ref, m_sc, l_sc, acc_sc,
                 *, scale, seq_valid, kv_tile, mask_padding):
    """Flash attention for one (batch*head, q-tile): online softmax over kv tiles."""
    j = pl.program_id(2)

    @pl.when(j == 0)
    def _():
        m_sc[...] = jnp.full_like(m_sc, -jnp.inf)
        l_sc[...] = jnp.zeros_like(l_sc)
        acc_sc[...] = jnp.zeros_like(acc_sc)

    # softmax scale folded into q (tq*hd elements instead of tq*tk)
    q = q_ref[0] * scale                 # (tq, hd) bf16
    k = k_ref[0]                         # (tk, hd) bf16
    v = v_ref[0]                         # (tk, hd) bf16

    s = jax.lax.dot_general(q, k, (((1,), (1,)), ((), ())),
                            preferred_element_type=jnp.float32)
    if mask_padding:
        # Compiled out when seq_pad == seq_valid.  kv tile 0 always contains
        # key 0, so m_sc is finite before any fully-padded tile is reached.
        # TODO(synk): could additionally guard with a last-kv-tile predicate.
        kv_idx = jax.lax.broadcasted_iota(jnp.int32, s.shape, 1) + j * kv_tile
        s = jnp.where(kv_idx < seq_valid, s, -1e30)

    m_prev = m_sc[...]
    m_new = jnp.maximum(m_prev, jnp.max(s, axis=-1, keepdims=True))
    alpha = jnp.exp(m_prev - m_new)
    p = jnp.exp(s - m_new)
    l_sc[...] = alpha * l_sc[...] + jnp.sum(p, axis=-1, keepdims=True)
    acc_sc[...] = alpha * acc_sc[...] + jnp.dot(
        p.astype(jnp.bfloat16), v, preferred_element_type=jnp.float32)
    m_sc[...] = m_new

    @pl.when(j == pl.num_programs(2) - 1)
    def _():
        inv_l = pl.reciprocal(l_sc[...], approx=True)
        o_ref[0] = (acc_sc[...] * inv_l).astype(o_ref.dtype)


def _depth_bins_kernel(logit_ref, bins_ref, o_ref):
    """BNHead depth tail (classify=True, UD bins, 'linear' norm): relu+eps,
    normalize with approx reciprocal, bin-weighted sum (VPU reduction)."""
    logits = jnp.maximum(logit_ref[...], 0.0) + 0.1
    norm = logits * pl.reciprocal(jnp.sum(logits, axis=-1, keepdims=True),
                                  approx=True)
    o_ref[...] = jnp.sum(norm * bins_ref[...], axis=-1, keepdims=True)


# ----------------------------------------------------------------------------
# Pallas wrappers (grid + BlockSpecs, row padding to the tile multiple)
# ----------------------------------------------------------------------------
def pallas_linear(x, w, b, *, out_dtype, tile, vmem_limit):
    m, k = x.shape
    n = w.shape[1]
    tm, m_pad = _tile_rows(m, tile)
    xp = _pad_rows(x, m_pad)
    out = pl.pallas_call(
        _matmul_bias_kernel,
        out_shape=jax.ShapeDtypeStruct((m_pad, n), out_dtype),
        grid=(m_pad // tm,),
        in_specs=[
            pl.BlockSpec((tm, k), lambda i: (i, 0)),
            pl.BlockSpec((k, n), lambda i: (0, 0)),     # weight resident
            pl.BlockSpec((1, n), lambda i: (0, 0)),
        ],
        out_specs=pl.BlockSpec((tm, n), lambda i: (i, 0)),
        compiler_params=_cparams(("parallel",), vmem_limit),
    )(xp, w, b.reshape(1, n))
    return out if m_pad == m else out[:m]


def pallas_ln_linear(x, g, beta, w, bias, *, gelu, out_dtype, tile, vmem_limit):
    m, d = x.shape
    n = w.shape[1]
    tm, m_pad = _tile_rows(m, tile)
    xp = _pad_rows(x, m_pad)
    out = pl.pallas_call(
        partial(_ln_matmul_kernel, gelu=gelu),
        out_shape=jax.ShapeDtypeStruct((m_pad, n), out_dtype),
        grid=(m_pad // tm,),
        in_specs=[
            pl.BlockSpec((tm, d), lambda i: (i, 0)),
            pl.BlockSpec((1, d), lambda i: (0, 0)),
            pl.BlockSpec((1, d), lambda i: (0, 0)),
            pl.BlockSpec((d, n), lambda i: (0, 0)),
            pl.BlockSpec((1, n), lambda i: (0, 0)),
        ],
        out_specs=pl.BlockSpec((tm, n), lambda i: (i, 0)),
        compiler_params=_cparams(("parallel",), vmem_limit),
    )(xp, g, beta, w, bias)
    return out if m_pad == m else out[:m]


def pallas_proj_residual(h, x, w, b, ls, *, out_dtype, tile, vmem_limit):
    m, k = h.shape
    d = x.shape[1]
    tm, m_pad = _tile_rows(m, tile)
    hp = _pad_rows(h, m_pad)
    xp = _pad_rows(x, m_pad)
    out = pl.pallas_call(
        _proj_scale_residual_kernel,
        out_shape=jax.ShapeDtypeStruct((m_pad, d), out_dtype),
        grid=(m_pad // tm,),
        in_specs=[
            pl.BlockSpec((tm, k), lambda i: (i, 0)),
            pl.BlockSpec((tm, d), lambda i: (i, 0)),
            pl.BlockSpec((k, d), lambda i: (0, 0)),
            pl.BlockSpec((1, d), lambda i: (0, 0)),
            pl.BlockSpec((1, d), lambda i: (0, 0)),
        ],
        out_specs=pl.BlockSpec((tm, d), lambda i: (i, 0)),
        compiler_params=_cparams(("parallel",), vmem_limit),
    )(hp, xp, w, b, ls)
    return out if m_pad == m else out[:m]


def pallas_attention(q, k, v, *, seq_valid, vmem_limit, tq=256, tk=256):
    bh, seq_pad, hd = q.shape
    tq = min(tq, seq_pad)
    tk = min(tk, seq_pad)
    n_q = seq_pad // tq
    n_kv = seq_pad // tk
    scale = float(hd) ** -0.5
    kernel = partial(_attn_kernel, scale=scale, seq_valid=seq_valid,
                     kv_tile=tk, mask_padding=(seq_valid < seq_pad))
    return pl.pallas_call(
        kernel,
        out_shape=jax.ShapeDtypeStruct((bh, seq_pad, hd), jnp.bfloat16),
        grid=(bh, n_q, n_kv),
        in_specs=[
            pl.BlockSpec((1, tq, hd), lambda b, i, j: (b, i, 0)),
            pl.BlockSpec((1, tk, hd), lambda b, i, j: (b, j, 0)),
            pl.BlockSpec((1, tk, hd), lambda b, i, j: (b, j, 0)),
        ],
        out_specs=pl.BlockSpec((1, tq, hd), lambda b, i, j: (b, i, 0)),
        scratch_shapes=[
            pltpu.VMEM((tq, 1), jnp.float32),      # running max
            pltpu.VMEM((tq, 1), jnp.float32),      # running denom
            pltpu.VMEM((tq, hd), jnp.float32),     # running numerator
        ],
        compiler_params=_cparams(("parallel", "parallel", "arbitrary"),
                                 vmem_limit),
    )(q, k, v)


def pallas_depth_bins(logits, bins, *, tile, vmem_limit):
    m, n_bins = logits.shape
    tm, m_pad = _tile_rows(m, tile)
    lp = _pad_rows(logits, m_pad)
    out = pl.pallas_call(
        _depth_bins_kernel,
        out_shape=jax.ShapeDtypeStruct((m_pad, 1), jnp.float32),
        grid=(m_pad // tm,),
        in_specs=[
            pl.BlockSpec((tm, n_bins), lambda i: (i, 0)),
            pl.BlockSpec((1, n_bins), lambda i: (0, 0)),
        ],
        out_specs=pl.BlockSpec((tm, 1), lambda i: (i, 0)),
        compiler_params=_cparams(("parallel",), vmem_limit),
    )(lp, bins.reshape(1, n_bins))
    return out if m_pad == m else out[:m]


# ----------------------------------------------------------------------------
# Model glue (plain JAX): backbone + heads
# ----------------------------------------------------------------------------
def center_pad(x, multiple):
    """DINOv2 CenterPadding forward-pre-hook (pads H, W to a multiple, centered)."""
    def pads(size):
        new = int(math.ceil(size / multiple) * multiple)
        p = new - size
        return p // 2, p - p // 2
    return jnp.pad(x, ((0, 0), (0, 0), pads(x.shape[2]), pads(x.shape[3])))


def vit_block_forward(x2, p, *, batch, seq_pad, seq_valid, num_heads, cfg):
    """One DINOv2 block split into row-tiled Pallas kernels."""
    m, d = x2.shape
    hd = d // num_heads
    tile, vmem = cfg["row_tile"], cfg["vmem_limit"]

    # LN1 + QKV (bf16 intermediate)
    qkv = pallas_ln_linear(x2, p["ln1_g"], p["ln1_b"], p["w_qkv"], p["b_qkv"],
                           gelu=False, out_dtype=jnp.bfloat16,
                           tile=tile, vmem_limit=vmem)
    qkv = qkv.reshape(batch, seq_pad, 3, num_heads, hd).transpose(2, 0, 3, 1, 4)
    q = qkv[0].reshape(batch * num_heads, seq_pad, hd)
    k = qkv[1].reshape(batch * num_heads, seq_pad, hd)
    v = qkv[2].reshape(batch * num_heads, seq_pad, hd)

    attn = pallas_attention(q, k, v, seq_valid=seq_valid, vmem_limit=vmem)
    attn = attn.reshape(batch, num_heads, seq_pad, hd)
    attn = attn.transpose(0, 2, 1, 3).reshape(m, d)

    # proj + LayerScale1 + residual
    x2 = pallas_proj_residual(attn, x2, p["w_proj"], p["b_proj"], p["ls1"],
                              out_dtype=cfg["residual_dtype"],
                              tile=tile, vmem_limit=vmem)
    # LN2 + FC1 + GELU (bf16 intermediate)
    h = pallas_ln_linear(x2, p["ln2_g"], p["ln2_b"], p["w_fc1"], p["b_fc1"],
                         gelu=True, out_dtype=jnp.bfloat16,
                         tile=tile, vmem_limit=vmem)
    # FC2 + LayerScale2 + residual
    x2 = pallas_proj_residual(h, x2, p["w_fc2"], p["b_fc2"], p["ls2"],
                              out_dtype=cfg["residual_dtype"],
                              tile=tile, vmem_limit=vmem)
    return x2


def backbone_forward(img, params, *, patch_size, num_heads, out_indices, cfg):
    """get_intermediate_layers(n=out_indices, reshape=True,
    return_class_token=True, norm=False)."""
    img = center_pad(img, patch_size)
    b, c, hh, ww = img.shape
    h, w = hh // patch_size, ww // patch_size

    # patchify conv == matmul (Conv2d kernel=stride=patch_size)
    xp = img.reshape(b, c, h, patch_size, w, patch_size)
    xp = xp.transpose(0, 2, 4, 1, 3, 5).reshape(b * h * w, c * patch_size * patch_size)
    tokens = pallas_linear(xp.astype(jnp.bfloat16), params["patch_w"],
                           params["patch_b"], out_dtype=jnp.float32,
                           tile=cfg["row_tile"], vmem_limit=cfg["vmem_limit"])

    d = tokens.shape[-1]
    tokens = tokens.reshape(b, h * w, d)
    cls = jnp.broadcast_to(params["cls_token"], (b, 1, d))
    # TODO(synk): real DINOv2 interpolates pos_embed for off-grid resolutions.
    x = jnp.concatenate([cls, tokens], axis=1) + params["pos_embed"]   # (B, 1+hw, D)

    seq = 1 + h * w
    # pad the sequence to a multiple of the row-tile target so every per-block
    # matmul tiles at tm=row_tile and attention tiles at 256 with no remainder.
    seq_pad = _round_up(seq, cfg["row_tile"])
    x = jnp.pad(x, ((0, 0), (0, seq_pad - seq), (0, 0)))
    x2 = x.reshape(b * seq_pad, d).astype(cfg["residual_dtype"])

    outputs = []
    for i, blk in enumerate(params["blocks"]):
        x2 = vit_block_forward(x2, blk, batch=b, seq_pad=seq_pad,
                               seq_valid=seq, num_heads=num_heads, cfg=cfg)
        if i in out_indices:
            xi = x2.reshape(b, seq_pad, d)
            cls_tok = xi[:, 0]                                            # (B, D)
            patch = xi[:, 1:seq].reshape(b, h, w, d).transpose(0, 3, 1, 2)
            outputs.append((patch, cls_tok))
    return tuple(outputs)


def depth_head_forward(feats, p, *, min_depth, max_depth, cfg, upsample=4):
    """DINOv2 linear depth BNHead (classify=True, UD bins, linear norm,
    upsample=4).  The 1x1 conv commutes with the bilinear upsample (both are
    linear, per-pixel / per-channel), so the conv runs at low resolution and
    only the n_bins logit maps are upsampled."""
    per_layer = []
    for patch, cls in feats:
        b, d, h, w = patch.shape
        cls_map = jnp.broadcast_to(cls[:, :, None, None], (b, d, h, w))
        per_layer.append(jnp.concatenate([patch, cls_map], axis=1))       # (B, 2D, h, w)
    x = jnp.concatenate(per_layer, axis=1)                                # (B, 8D, h, w)
    b, cc, h, w = x.shape
    n_bins = p["w"].shape[1]

    xm = x.transpose(0, 2, 3, 1).reshape(b * h * w, cc).astype(jnp.bfloat16)
    logits = pallas_linear(xm, p["w"], p["b"], out_dtype=jnp.float32,
                           tile=cfg["row_tile"], vmem_limit=cfg["vmem_limit"])
    logits = logits.reshape(b, h, w, n_bins)
    hh, ww = h * upsample, w * upsample
    logits = jax.image.resize(logits, (b, hh, ww, n_bins),
                              method="bilinear")          # align_corners=False

    bins = jnp.linspace(min_depth, max_depth, n_bins, dtype=jnp.float32)
    depth = pallas_depth_bins(logits.reshape(b * hh * ww, n_bins), bins,
                              tile=cfg["depth_tile"],
                              vmem_limit=cfg["vmem_limit"])               # (B*H*W, 1)
    return depth.reshape(b, hh, ww, 1).transpose(0, 3, 1, 2)


def seg_head_forward(feats, p, *, num_classes, cfg):
    """DINOv2 linear seg BNHead.  With return_class_token=True the head's
    _transform_inputs flattens (patch, cls) pairs and in_index=[0,1,2,3]
    selects [patch0, cls0, patch1, cls1] (faithful to the source)."""
    flat = []
    for patch, cls in feats:
        flat.extend([patch, cls])
    sel = flat[:4]
    b, d, h, w = sel[0].shape
    maps = []
    for f in sel:
        if f.ndim == 2:  # cls token (B, D) -> 1x1 map, bilinear up == broadcast
            f = jnp.broadcast_to(f[:, :, None, None], (b, f.shape[1], h, w))
        maps.append(f)
    x = jnp.concatenate(maps, axis=1)                                     # (B, 4D, h, w)
    cc = x.shape[1]

    # fold eval-mode SyncBatchNorm (running stats) into the 1x1 conv
    w_f32 = p["w"].astype(jnp.float32)
    inv = p["bn_gamma"] / jnp.sqrt(p["bn_var"] + 1e-5)
    w_eff = (w_f32 * inv[:, None]).astype(jnp.bfloat16)
    b_eff = p["b"] + jnp.dot(p["bn_beta"] - p["bn_mean"] * inv, w_f32)

    xm = x.transpose(0, 2, 3, 1).reshape(b * h * w, cc).astype(jnp.bfloat16)
    logits = pallas_linear(xm, w_eff, b_eff, out_dtype=jnp.float32,
                           tile=cfg["row_tile"], vmem_limit=cfg["vmem_limit"])
    return logits.reshape(b, h, w, num_classes).transpose(0, 3, 1, 2)


def mtl_dinov2_forward(img, params, *, patch_size, num_heads, out_indices, head_tasks):
    """MTLDinoV2.forward(img, img_metas, return_loss=False) inference path:
    extract_feat -> per-task decoder forward_test -> dict of predictions."""
    cfg = _tpu_defaults()
    feats = backbone_forward(img, params, patch_size=patch_size,
                             num_heads=num_heads, out_indices=out_indices, cfg=cfg)
    preds = {}
    for task, tcfg in head_tasks.items():
        if task == "depth":
            preds[task] = depth_head_forward(
                feats, params["depth_head"],
                min_depth=tcfg["min_depth"], max_depth=tcfg["max_depth"], cfg=cfg)
        elif task == "seg":
            preds[task] = seg_head_forward(
                feats, params["seg_head"], num_classes=tcfg["num_classes"], cfg=cfg)
        else:
            raise NotImplementedError(task)
    # TODO(synk): encode_decode's rescale loop in the source iterates over
    # head_tasks.items() and indexes self.decoders with the (key, value) tuple
    # (a bug that raises at runtime); the rescale/clamp step is omitted here.
    return preds


# ----------------------------------------------------------------------------
# Deterministic synthetic parameter init (shapes from the module's __init__)
# ----------------------------------------------------------------------------
def init_params(key, *, embed_dim, depth, patch_size, in_chans, num_patches,
                mlp_ratio, n_bins, num_classes, ls_init=1e-5):
    keys = iter(jax.random.split(key, 16 * depth + 16))

    def nrm(shape, std=0.02, dtype=jnp.bfloat16):
        return (std * jax.random.normal(next(keys), shape,
                                        dtype=jnp.float32)).astype(dtype)

    hidden = int(embed_dim * mlp_ratio)
    params = {
        "cls_token": nrm((1, 1, embed_dim), dtype=jnp.float32),
        "pos_embed": nrm((1, 1 + num_patches, embed_dim), dtype=jnp.float32),
        "patch_w": nrm((in_chans * patch_size * patch_size, embed_dim)),
        "patch_b": jnp.zeros((1, embed_dim), jnp.float32),
        "blocks": [],
    }
    for _ in range(depth):
        params["blocks"].append({
            "ln1_g": jnp.ones((1, embed_dim), jnp.float32),
            "ln1_b": jnp.zeros((1, embed_dim), jnp.float32),
            "w_qkv": nrm((embed_dim, 3 * embed_dim)),
            "b_qkv": jnp.zeros((1, 3 * embed_dim), jnp.float32),
            "w_proj": nrm((embed_dim, embed_dim)),
            "b_proj": jnp.zeros((1, embed_dim), jnp.float32),
            "ls1": jnp.full((1, embed_dim), ls_init, jnp.float32),
            "ln2_g": jnp.ones((1, embed_dim), jnp.float32),
            "ln2_b": jnp.zeros((1, embed_dim), jnp.float32),
            "w_fc1": nrm((embed_dim, hidden)),
            "b_fc1": jnp.zeros((1, hidden), jnp.float32),
            "w_fc2": nrm((hidden, embed_dim)),
            "b_fc2": jnp.zeros((1, embed_dim), jnp.float32),
            "ls2": jnp.full((1, embed_dim), ls_init, jnp.float32),
        })
    params["depth_head"] = {
        "w": nrm((embed_dim * 4 * 2, n_bins)),      # Conv2d(channels, n_bins, 1)
        "b": jnp.zeros((n_bins,), jnp.float32),
    }
    params["seg_head"] = {
        "w": nrm((embed_dim * 4, num_classes)),     # conv_seg 1x1
        "b": jnp.zeros((num_classes,), jnp.float32),
        "bn_gamma": jnp.ones((embed_dim * 4,), jnp.float32),
        "bn_beta": jnp.zeros((embed_dim * 4,), jnp.float32),
        "bn_mean": jnp.zeros((embed_dim * 4,), jnp.float32),
        "bn_var": jnp.ones((embed_dim * 4,), jnp.float32),
    }
    return params


# ----------------------------------------------------------------------------
if __name__ == "__main__":
    # small, "vit_base"-structured config (12 blocks -> out_index [5,7,9,11])
    B, C, H, W = 2, 3, 16, 16
    patch_size = 4
    embed_dim = 32
    depth = 12
    num_heads = 4
    mlp_ratio = 4.0
    out_indices = (5, 7, 9, 11)
    n_bins = 256
    head_tasks = {
        "depth": {"min_depth": 0.001, "max_depth": 10.0},
        "seg": {"num_classes": 10},
    }

    key = jax.random.PRNGKey(0)
    kp, ki = jax.random.split(key)
    num_patches = (H // patch_size) * (W // patch_size)
    params = init_params(
        kp, embed_dim=embed_dim, depth=depth, patch_size=patch_size,
        in_chans=C, num_patches=num_patches, mlp_ratio=mlp_ratio,
        n_bins=n_bins, num_classes=head_tasks["seg"]["num_classes"])
    img = jax.random.normal(ki, (B, C, H, W), dtype=jnp.float32)

    fwd = jax.jit(partial(
        mtl_dinov2_forward, patch_size=patch_size, num_heads=num_heads,
        out_indices=out_indices, head_tasks=head_tasks))

    preds = fwd(img, params)
    preds = jax.block_until_ready(preds)

    h, w = H // patch_size, W // patch_size
    assert preds["depth"].shape == (B, 1, 4 * h, 4 * w)
    assert preds["seg"].shape == (B, head_tasks["seg"]["num_classes"], h, w)
    assert bool(jnp.all(jnp.isfinite(preds["depth"])))
    assert bool(jnp.all(jnp.isfinite(preds["seg"])))
    # depth values lie inside [min_depth, max_depth] up to the approximate
    # reciprocal's relative error in the bin normalization
    tol = 0.05
    assert bool(jnp.all(preds["depth"] >= head_tasks["depth"]["min_depth"] - tol))
    assert bool(jnp.all(preds["depth"] <= head_tasks["depth"]["max_depth"] + tol))

    print("KERNEL_OK")
</pallas_src>

<mosaic_0001>
module attributes {stable_mosaic.version = 11 : i64} {
  func.func @_matmul_bias_kernel(%arg0: i32, %arg1: memref<32x48xbf16, #tpu.memory_space<vmem>>, %arg2: memref<48x32xbf16, #tpu.memory_space<vmem>>, %arg3: memref<1x32xf32, #tpu.memory_space<vmem>>, %arg4: memref<32x32xf32, #tpu.memory_space<vmem>>) attributes {dimension_semantics = [#tpu.dimension_semantics<parallel>], iteration_bounds = array<i64: 1>, scalar_prefetch = 0 : i64, scratch_operands = 0 : i64, tpu.core_type = #tpu.core_type<tc>, window_params = [{transform_indices = @transform_0, window_bounds = array<i64: 32, 48>}, {pipeline_mode = #tpu.pipeline_mode<synchronous>, transform_indices = @transform_1, window_bounds = array<i64: 48, 32>}, {pipeline_mode = #tpu.pipeline_mode<synchronous>, transform_indices = @transform_2, window_bounds = array<i64: 1, 32>}, {transform_indices = @transform_3, window_bounds = array<i64: 32, 32>}]} {
    %c0 = arith.constant 0 : index
    %c0_0 = arith.constant 0 : index
    %0 = vector.load %arg1[%c0, %c0_0] : memref<32x48xbf16, #tpu.memory_space<vmem>>, vector<32x48xbf16>
    %c0_1 = arith.constant 0 : index
    %c0_2 = arith.constant 0 : index
    %1 = vector.load %arg2[%c0_1, %c0_2] : memref<48x32xbf16, #tpu.memory_space<vmem>>, vector<48x32xbf16>
    %cst = arith.constant dense<0.000000e+00> : vector<32x32xf32>
    %2 = tpu.matmul %0, %1, %cst {dimension_numbers = #tpu.dot_dimension_numbers<[1], [0], [0], [1], [0, 0, 1, 1], [], []>} : vector<32x48xbf16>, vector<48x32xbf16>, vector<32x32xf32> -> vector<32x32xf32>
    %c0_3 = arith.constant 0 : index
    %c0_4 = arith.constant 0 : index
    %3 = vector.load %arg3[%c0_3, %c0_4] : memref<1x32xf32, #tpu.memory_space<vmem>>, vector<1x32xf32>
    %4 = vector.broadcast %3 : vector<1x32xf32> to vector<32x32xf32>
    %5 = arith.addf %2, %4 : vector<32x32xf32>
    %c0_5 = arith.constant 0 : index
    %c0_6 = arith.constant 0 : index
    %6 = vector.load %arg4[%c0_5, %c0_6] : memref<32x32xf32, #tpu.memory_space<vmem>>, vector<32x32xf32>
    tpu.vector_store %arg4[%c0_5, %c0_6], %5 {strides = array<i32>} : memref<32x32xf32, #tpu.memory_space<vmem>>, vector<32x32xf32>,
    return
  }
  func.func @transform_0(%arg0: i32) -> (i32, i32) {
    %c0_i32 = arith.constant 0 : i32
    %c0_i32_0 = arith.constant 0 : i32
    return %arg0, %c0_i32 : i32, i32
  }
  func.func @transform_1(%arg0: i32) -> (i32, i32) {
    %c0_i32 = arith.constant 0 : i32
    %c0_i32_0 = arith.constant 0 : i32
    %c0_i32_1 = arith.constant 0 : i32
    return %c0_i32, %c0_i32_0 : i32, i32
  }
  func.func @transform_2(%arg0: i32) -> (i32, i32) {
    %c0_i32 = arith.constant 0 : i32
    %c0_i32_0 = arith.constant 0 : i32
    %c0_i32_1 = arith.constant 0 : i32
    return %c0_i32, %c0_i32_0 : i32, i32
  }
  func.func @transform_3(%arg0: i32) -> (i32, i32) {
    %c0_i32 = arith.constant 0 : i32
    %c0_i32_0 = arith.constant 0 : i32
    return %arg0, %c0_i32 : i32, i32
  }
}

module attributes {stable_mosaic.version = 11 : i64} {
  func.func @_ln_matmul_kernel(%arg0: i32, %arg1: memref<256x32xf32, #tpu.memory_space<vmem>>, %arg2: memref<1x32xf32, #tpu.memory_space<vmem>>, %arg3: memref<1x32xf32, #tpu.memory_space<vmem>>, %arg4: memref<32x96xbf16, #tpu.memory_space<vmem>>, %arg5: memref<1x96xf32, #tpu.memory_space<vmem>>, %arg6: memref<256x96xbf16, #tpu.memory_space<vmem>>) attributes {dimension_semantics = [#tpu.dimension_semantics<parallel>], iteration_bounds = array<i64: 2>, scalar_prefetch = 0 : i64, scratch_operands = 0 : i64, tpu.core_type = #tpu.core_type<tc>, window_params = [{transform_indices = @transform_0, window_bounds = array<i64: 256, 32>}, {pipeline_mode = #tpu.pipeline_mode<synchronous>, transform_indices = @transform_1, window_bounds = array<i64: 1, 32>}, {pipeline_mode = #tpu.pipeline_mode<synchronous>, transform_indices = @transform_2, window_bounds = array<i64: 1, 32>}, {pipeline_mode = #tpu.pipeline_mode<synchronous>, transform_indices = @transform_3, window_bounds = array<i64: 32, 96>}, {pipeline_mode = #tpu.pipeline_mode<synchronous>, transform_indices = @transform_4, window_bounds = array<i64: 1, 96>}, {transform_indices = @transform_5, window_bounds = array<i64: 256, 96>}]} {
    %c0 = arith.constant 0 : index
    %c0_0 = arith.constant 0 : index
    %0 = vector.load %arg1[%c0, %c0_0] : memref<256x32xf32, #tpu.memory_space<vmem>>, vector<256x32xf32>
    %cst = arith.constant dense<0.000000e+00> : vector<256xf32>
    %1 = vector.multi_reduction <add>, %0, %cst [1] : vector<256x32xf32> to vector<256xf32>
    %2 = vector.shape_cast %1 : vector<256xf32> to vector<256x1xf32>
    %cst_1 = arith.constant 3.200000e+01 : f32
    %3 = vector.broadcast %cst_1 : f32 to vector<256x1xf32>
    %4 = arith.divf %2, %3 : vector<256x1xf32>
    %5 = vector.broadcast %4 : vector<256x1xf32> to vector<256x32xf32>
    %6 = arith.subf %0, %5 : vector<256x32xf32>
    %7 = arith.mulf %6, %6 : vector<256x32xf32>
    %cst_2 = arith.constant dense<0.000000e+00> : vector<256xf32>
    %8 = vector.multi_reduction <add>, %7, %cst_2 [1] : vector<256x32xf32> to vector<256xf32>
    %9 = vector.shape_cast %8 : vector<256xf32> to vector<256x1xf32>
    %cst_3 = arith.constant 3.200000e+01 : f32
    %10 = vector.broadcast %cst_3 : f32 to vector<256x1xf32>
    %11 = arith.divf %9, %10 : vector<256x1xf32>
    %cst_4 = arith.constant 9.99999997E-7 : f32
    %12 = vector.broadcast %cst_4 : f32 to vector<256x1xf32>
    %13 = arith.addf %11, %12 : vector<256x1xf32>
    %14 = math.rsqrt %13 : vector<256x1xf32>
    %15 = vector.broadcast %14 : vector<256x1xf32> to vector<256x32xf32>
    %16 = arith.mulf %6, %15 : vector<256x32xf32>
    %c0_5 = arith.constant 0 : index
    %c0_6 = arith.constant 0 : index
    %17 = vector.load %arg2[%c0_5, %c0_6] : memref<1x32xf32, #tpu.memory_space<vmem>>, vector<1x32xf32>
    %18 = vector.broadcast %17 : vector<1x32xf32> to vector<256x32xf32>
    %19 = arith.mulf %16, %18 : vector<256x32xf32>
    %c0_7 = arith.constant 0 : index
    %c0_8 = arith.constant 0 : index
    %20 = vector.load %arg3[%c0_7, %c0_8] : memref<1x32xf32, #tpu.memory_space<vmem>>, vector<1x32xf32>
    %21 = vector.broadcast %20 : vector<1x32xf32> to vector<256x32xf32>
    %22 = arith.addf %19, %21 : vector<256x32xf32>
    %23 = arith.truncf %22 : vector<256x32xf32> to vector<256x32xbf16>
    %c0_9 = arith.constant 0 : index
    %c0_10 = arith.constant 0 : index
    %24 = vector.load %arg4[%c0_9, %c0_10] : memref<32x96xbf16, #tpu.memory_space<vmem>>, vector<32x96xbf16>
    %cst_11 = arith.constant dense<0.000000e+00> : vector<256x96xf32>
    %25 = tpu.matmul %23, %24, %cst_11 {dimension_numbers = #tpu.dot_dimension_numbers<[1], [0], [0], [1], [0, 0, 1, 1], [], []>} : vector<256x32xbf16>, vector<32x96xbf16>, vector<256x96xf32> -> vector<256x96xf32>
    %c0_12 = arith.constant 0 : index
    %c0_13 = arith.constant 0 : index
    %26 = vector.load %arg5[%c0_12, %c0_13] : memref<1x96xf32, #tpu.memory_space<vmem>>, vector<1x96xf32>
    %27 = vector.broadcast %26 : vector<1x96xf32> to vector<256x96xf32>
    %28 = arith.addf %25, %27 : vector<256x96xf32>
    %29 = arith.truncf %28 : vector<256x96xf32> to vector<256x96xbf16>
    %c0_14 = arith.constant 0 : index
    %c0_15 = arith.constant 0 : index
    %30 = vector.load %arg6[%c0_14, %c0_15] : memref<256x96xbf16, #tpu.memory_space<vmem>>, vector<256x96xbf16>
    tpu.vector_store %arg6[%c0_14, %c0_15], %29 {strides = array<i32>} : memref<256x96xbf16, #tpu.memory_space<vmem>>, vector<256x96xbf16>,
    return
  }
  func.func @transform_0(%arg0: i32) -> (i32, i32) {
    %c0_i32 = arith.constant 0 : i32
    %c0_i32_0 = arith.constant 0 : i32
    return %arg0, %c0_i32 : i32, i32
  }
  func.func @transform_1(%arg0: i32) -> (i32, i32) {
    %c0_i32 = arith.constant 0 : i32
    %c0_i32_0 = arith.constant 0 : i32
    %c0_i32_1 = arith.constant 0 : i32
    return %c0_i32, %c0_i32_0 : i32, i32
  }
  func.func @transform_2(%arg0: i32) -> (i32, i32) {
    %c0_i32 = arith.constant 0 : i32
    %c0_i32_0 = arith.constant 0 : i32
    %c0_i32_1 = arith.constant 0 : i32
    return %c0_i32, %c0_i32_0 : i32, i32
  }
  func.func @transform_3(%arg0: i32) -> (i32, i32) {
    %c0_i32 = arith.constant 0 : i32
    %c0_i32_0 = arith.constant 0 : i32
    %c0_i32_1 = arith.constant 0 : i32
    return %c0_i32, %c0_i32_0 : i32, i32
  }
  func.func @transform_4(%arg0: i32) -> (i32, i32) {
    %c0_i32 = arith.constant 0 : i32
    %c0_i32_0 = arith.constant 0 : i32
    %c0_i32_1 = arith.constant 0 : i32
    return %c0_i32, %c0_i32_0 : i32, i32
  }
  func.func @transform_5(%arg0: i32) -> (i32, i32) {
    %c0_i32 = arith.constant 0 : i32
    %c0_i32_0 = arith.constant 0 : i32
    return %arg0, %c0_i32 : i32, i32
  }
}

module attributes {stable_mosaic.version = 11 : i64} {
  func.func @_attn_kernel(%arg0: i32, %arg1: i32, %arg2: i32, %arg3: memref<1x256x8xbf16, #tpu.memory_space<vmem>>, %arg4: memref<1x256x8xbf16, #tpu.memory_space<vmem>>, %arg5: memref<1x256x8xbf16, #tpu.memory_space<vmem>>, %arg6: memref<1x256x8xbf16, #tpu.memory_space<vmem>>, %arg7: memref<256x1xf32, #tpu.memory_space<vmem>>, %arg8: memref<256x1xf32, #tpu.memory_space<vmem>>, %arg9: memref<256x8xf32, #tpu.memory_space<vmem>>) attributes {dimension_semantics = [#tpu.dimension_semantics<parallel>, #tpu.dimension_semantics<parallel>, #tpu.dimension_semantics<arbitrary>], iteration_bounds = array<i64: 8, 1, 1>, scalar_prefetch = 0 : i64, scratch_operands = 3 : i64, tpu.core_type = #tpu.core_type<tc>, window_params = [{transform_indices = @transform_0, window_bounds = array<i64: 1, 256, 8>}, {transform_indices = @transform_1, window_bounds = array<i64: 1, 256, 8>}, {transform_indices = @transform_2, window_bounds = array<i64: 1, 256, 8>}, {transform_indices = @transform_3, window_bounds = array<i64: 1, 256, 8>}]} {
    %c0_i32 = arith.constant 0 : i32
    %0 = arith.cmpi eq, %arg2, %c0_i32 : i32
    %1 = arith.extui %0 : i1 to i32
    %c0_i32_0 = arith.constant 0 : i32
    %2 = arith.cmpi ne, %1, %c0_i32_0 : i32
    scf.if %2 {
      %cst_28 = arith.constant 0xFF800000 : f32
      %46 = vector.broadcast %cst_28 : f32 to vector<256x1xf32>
      %c0_29 = arith.constant 0 : index
      %c0_30 = arith.constant 0 : index
      %47 = vector.load %arg7[%c0_29, %c0_30] : memref<256x1xf32, #tpu.memory_space<vmem>>, vector<256x1xf32>
      tpu.vector_store %arg7[%c0_29, %c0_30], %46 {strides = array<i32>} : memref<256x1xf32, #tpu.memory_space<vmem>>, vector<256x1xf32>,
      %cst_31 = arith.constant 0.000000e+00 : f32
      %48 = vector.broadcast %cst_31 : f32 to vector<256x1xf32>
      %c0_32 = arith.constant 0 : index
      %c0_33 = arith.constant 0 : index
      %49 = vector.load %arg8[%c0_32, %c0_33] : memref<256x1xf32, #tpu.memory_space<vmem>>, vector<256x1xf32>
      tpu.vector_store %arg8[%c0_32, %c0_33], %48 {strides = array<i32>} : memref<256x1xf32, #tpu.memory_space<vmem>>, vector<256x1xf32>,
      %cst_34 = arith.constant 0.000000e+00 : f32
      %50 = vector.broadcast %cst_34 : f32 to vector<256x8xf32>
      %c0_35 = arith.constant 0 : index
      %c0_36 = arith.constant 0 : index
      %51 = vector.load %arg9[%c0_35, %c0_36] : memref<256x8xf32, #tpu.memory_space<vmem>>, vector<256x8xf32>
      tpu.vector_store %arg9[%c0_35, %c0_36], %50 {strides = array<i32>} : memref<256x8xf32, #tpu.memory_space<vmem>>, vector<256x8xf32>,
    } else {
    }
    %c0 = arith.constant 0 : index
    %c0_1 = arith.constant 0 : index
    %c0_2 = arith.constant 0 : index
    %3 = vector.load %arg3[%c0, %c0_1, %c0_2] : memref<1x256x8xbf16, #tpu.memory_space<vmem>>, vector<1x256x8xbf16>
    %4 = vector.shape_cast %3 : vector<1x256x8xbf16> to vector<256x8xbf16>
    %cst = arith.constant 3.535160e-01 : bf16
    %5 = vector.broadcast %cst : bf16 to vector<256x8xbf16>
    %6 = arith.mulf %4, %5 : vector<256x8xbf16>
    %c0_3 = arith.constant 0 : index
    %c0_4 = arith.constant 0 : index
    %c0_5 = arith.constant 0 : index
    %7 = vector.load %arg4[%c0_3, %c0_4, %c0_5] : memref<1x256x8xbf16, #tpu.memory_space<vmem>>, vector<1x256x8xbf16>
    %8 = vector.shape_cast %7 : vector<1x256x8xbf16> to vector<256x8xbf16>
    %c0_6 = arith.constant 0 : index
    %c0_7 = arith.constant 0 : index
    %c0_8 = arith.constant 0 : index
    %9 = vector.load %arg5[%c0_6, %c0_7, %c0_8] : memref<1x256x8xbf16, #tpu.memory_space<vmem>>, vector<1x256x8xbf16>
    %10 = vector.shape_cast %9 : vector<1x256x8xbf16> to vector<256x8xbf16>
    %cst_9 = arith.constant dense<0.000000e+00> : vector<256x256xf32>
    %11 = tpu.matmul %6, %8, %cst_9 {dimension_numbers = #tpu.dot_dimension_numbers<[1], [1], [0], [0], [0, 0, 1, 0], [], []>} : vector<256x8xbf16>, vector<256x8xbf16>, vector<256x256xf32> -> vector<256x256xf32>
    %12 = tpu.iota {dimensions = array<i32: 1>} : vector<256x256xi32>
    %c256_i32 = arith.constant 256 : i32
    %13 = arith.muli %arg2, %c256_i32 : i32
    %14 = vector.broadcast %13 : i32 to vector<256x256xi32>
    %15 = arith.addi %12, %14 : vector<256x256xi32>
    %c17_i32 = arith.constant 17 : i32
    %16 = vector.broadcast %c17_i32 : i32 to vector<256x256xi32>
    %17 = arith.cmpi slt, %15, %16 : vector<256x256xi32>
    %cst_10 = arith.constant -1.000000e+30 : f32
    %18 = vector.broadcast %cst_10 : f32 to vector<256x256xf32>
    %19 = arith.select %17, %11, %18 : vector<256x256xi1>, vector<256x256xf32>
    %c0_11 = arith.constant 0 : index
    %c0_12 = arith.constant 0 : index
    %20 = vector.load %arg7[%c0_11, %c0_12] : memref<256x1xf32, #tpu.memory_space<vmem>>, vector<256x1xf32>
    %cst_13 = arith.constant dense<0xFF800000> : vector<256xf32>
    %21 = vector.multi_reduction <maximumf>, %19, %cst_13 [1] : vector<256x256xf32> to vector<256xf32>
    %22 = vector.shape_cast %21 : vector<256xf32> to vector<256x1xf32>
    %23 = arith.maximumf %20, %22 : vector<256x1xf32>
    %24 = arith.subf %20, %23 : vector<256x1xf32>
    %25 = math.exp %24 : vector<256x1xf32>
    %26 = vector.broadcast %23 : vector<256x1xf32> to vector<256x256xf32>
    %27 = arith.subf %19, %26 : vector<256x256xf32>
    %28 = math.exp %27 : vector<256x256xf32>
    %c0_14 = arith.constant 0 : index
    %c0_15 = arith.constant 0 : index
    %29 = vector.load %arg8[%c0_14, %c0_15] : memref<256x1xf32, #tpu.memory_space<vmem>>, vector<256x1xf32>
    %30 = arith.mulf %25, %29 : vector<256x1xf32>
    %cst_16 = arith.constant dense<0.000000e+00> : vector<256xf32>
    %31 = vector.multi_reduction <add>, %28, %cst_16 [1] : vector<256x256xf32> to vector<256xf32>
    %32 = vector.shape_cast %31 : vector<256xf32> to vector<256x1xf32>
    %33 = arith.addf %30, %32 : vector<256x1xf32>
    %c0_17 = arith.constant 0 : index
    %c0_18 = arith.constant 0 : index
    %34 = vector.load %arg8[%c0_17, %c0_18] : memref<256x1xf32, #tpu.memory_space<vmem>>, vector<256x1xf32>
    tpu.vector_store %arg8[%c0_17, %c0_18], %33 {strides = array<i32>} : memref<256x1xf32, #tpu.memory_space<vmem>>, vector<256x1xf32>,
    %c0_19 = arith.constant 0 : index
    %c0_20 = arith.constant 0 : index
    %35 = vector.load %arg9[%c0_19, %c0_20] : memref<256x8xf32, #tpu.memory_space<vmem>>, vector<256x8xf32>
    %36 = vector.broadcast %25 : vector<256x1xf32> to vector<256x8xf32>
    %37 = arith.mulf %36, %35 : vector<256x8xf32>
    %38 = arith.truncf %28 : vector<256x256xf32> to vector<256x256xbf16>
    %cst_21 = arith.constant dense<0.000000e+00> : vector<256x8xf32>
    %39 = tpu.matmul %38, %10, %cst_21 {dimension_numbers = #tpu.dot_dimension_numbers<[1], [0], [0], [1], [0, 0, 1, 1], [], []>} : vector<256x256xbf16>, vector<256x8xbf16>, vector<256x8xf32> -> vector<256x8xf32>
    %40 = arith.addf %37, %39 : vector<256x8xf32>
    %c0_22 = arith.constant 0 : index
    %c0_23 = arith.constant 0 : index
    %41 = vector.load %arg9[%c0_22, %c0_23] : memref<256x8xf32, #tpu.memory_space<vmem>>, vector<256x8xf32>
    tpu.vector_store %arg9[%c0_22, %c0_23], %40 {strides = array<i32>} : memref<256x8xf32, #tpu.memory_space<vmem>>, vector<256x8xf32>,
    %c0_24 = arith.constant 0 : index
    %c0_25 = arith.constant 0 : index
    %42 = vector.load %arg7[%c0_24, %c0_25] : memref<256x1xf32, #tpu.memory_space<vmem>>, vector<256x1xf32>
    tpu.vector_store %arg7[%c0_24, %c0_25], %23 {strides = array<i32>} : memref<256x1xf32, #tpu.memory_space<vmem>>, vector<256x1xf32>,
    %c0_i32_26 = arith.constant 0 : i32
    %43 = arith.cmpi eq, %arg2, %c0_i32_26 : i32
    %44 = arith.extui %43 : i1 to i32
    %c0_i32_27 = arith.constant 0 : i32
    %45 = arith.cmpi ne, %44, %c0_i32_27 : i32
    scf.if %45 {
      %c0_28 = arith.constant 0 : index
      %c0_29 = arith.constant 0 : index
      %46 = vector.load %arg8[%c0_28, %c0_29] : memref<256x1xf32, #tpu.memory_space<vmem>>, vector<256x1xf32>
      %47 = tpu.reciprocal %46 {approx = true} : vector<256x1xf32> -> vector<256x1xf32>
      %c0_30 = arith.constant 0 : index
      %c0_31 = arith.constant 0 : index
      %48 = vector.load %arg9[%c0_30, %c0_31] : memref<256x8xf32, #tpu.memory_space<vmem>>, vector<256x8xf32>
      %49 = vector.broadcast %47 : vector<256x1xf32> to vector<256x8xf32>
      %50 = arith.mulf %48, %49 : vector<256x8xf32>
      %51 = arith.truncf %50 : vector<256x8xf32> to vector<256x8xbf16>
      %c0_32 = arith.constant 0 : index
      %c0_33 = arith.constant 0 : index
      %c0_34 = arith.constant 0 : index
      %52 = vector.load %arg6[%c0_32, %c0_33, %c0_34] : memref<1x256x8xbf16, #tpu.memory_space<vmem>>, vector<1x256x8xbf16>
      %53 = vector.shape_cast %52 : vector<1x256x8xbf16> to vector<256x8xbf16>
      %54 = vector.shape_cast %51 : vector<256x8xbf16> to vector<1x256x8xbf16>
      tpu.vector_store %arg6[%c0_32, %c0_33, %c0_34], %54 {strides = array<i32>} : memref<1x256x8xbf16, #tpu.memory_space<vmem>>, vector<1x256x8xbf16>,
    } else {
    }
    return
  }
  func.func @transform_0(%arg0: i32, %arg1: i32, %arg2: i32) -> (i32, i32, i32) {
    %c0_i32 = arith.constant 0 : i32
    %c0_i32_0 = arith.constant 0 : i32
    return %arg0, %arg1, %c0_i32 : i32, i32, i32
  }
  func.func @transform_1(%arg0: i32, %arg1: i32, %arg2: i32) -> (i32, i32, i32) {
    %c0_i32 = arith.constant 0 : i32
    %c0_i32_0 = arith.constant 0 : i32
    return %arg0, %arg2, %c0_i32 : i32, i32, i32
  }
  func.func @transform_2(%arg0: i32, %arg1: i32, %arg2: i32) -> (i32, i32, i32) {
    %c0_i32 = arith.constant 0 : i32
    %c0_i32_0 = arith.constant 0 : i32
    return %arg0, %arg2, %c0_i32 : i32, i32, i32
  }
  func.func @transform_3(%arg0: i32, %arg1: i32, %arg2: i32) -> (i32, i32, i32) {
    %c0_i32 = arith.constant 0 : i32
    %c0_i32_0 = arith.constant 0 : i32
    return %arg0, %arg1, %c0_i32 : i32, i32, i32
  }
}

module attributes {stable_mosaic.version = 11 : i64} {
  func.func @_proj_scale_residual_kernel(%arg0: i32, %arg1: memref<256x32xbf16, #tpu.memory_space<vmem>>, %arg2: memref<256x32xf32, #tpu.memory_space<vmem>>, %arg3: memref<32x32xbf16, #tpu.memory_space<vmem>>, %arg4: memref<1x32xf32, #tpu.memory_space<vmem>>, %arg5: memref<1x32xf32, #tpu.memory_space<vmem>>, %arg6: memref<256x32xf32, #tpu.memory_space<vmem>>) attributes {dimension_semantics = [#tpu.dimension_semantics<parallel>], iteration_bounds = array<i64: 2>, scalar_prefetch = 0 : i64, scratch_operands = 0 : i64, tpu.core_type = #tpu.core_type<tc>, window_params = [{transform_indices = @transform_0, window_bounds = array<i64: 256, 32>}, {transform_indices = @transform_1, window_bounds = array<i64: 256, 32>}, {pipeline_mode = #tpu.pipeline_mode<synchronous>, transform_indices = @transform_2, window_bounds = array<i64: 32, 32>}, {pipeline_mode = #tpu.pipeline_mode<synchronous>, transform_indices = @transform_3, window_bounds = array<i64: 1, 32>}, {pipeline_mode = #tpu.pipeline_mode<synchronous>, transform_indices = @transform_4, window_bounds = array<i64: 1, 32>}, {transform_indices = @transform_5, window_bounds = array<i64: 256, 32>}]} {
    %c0 = arith.constant 0 : index
    %c0_0 = arith.constant 0 : index
    %0 = vector.load %arg1[%c0, %c0_0] : memref<256x32xbf16, #tpu.memory_space<vmem>>, vector<256x32xbf16>
    %c0_1 = arith.constant 0 : index
    %c0_2 = arith.constant 0 : index
    %1 = vector.load %arg3[%c0_1, %c0_2] : memref<32x32xbf16, #tpu.memory_space<vmem>>, vector<32x32xbf16>
    %cst = arith.constant dense<0.000000e+00> : vector<256x32xf32>
    %2 = tpu.matmul %0, %1, %cst {dimension_numbers = #tpu.dot_dimension_numbers<[1], [0], [0], [1], [0, 0, 1, 1], [], []>} : vector<256x32xbf16>, vector<32x32xbf16>, vector<256x32xf32> -> vector<256x32xf32>
    %c0_3 = arith.constant 0 : index
    %c0_4 = arith.constant 0 : index
    %3 = vector.load %arg4[%c0_3, %c0_4] : memref<1x32xf32, #tpu.memory_space<vmem>>, vector<1x32xf32>
    %4 = vector.broadcast %3 : vector<1x32xf32> to vector<256x32xf32>
    %5 = arith.addf %2, %4 : vector<256x32xf32>
    %c0_5 = arith.constant 0 : index
    %c0_6 = arith.constant 0 : index
    %6 = vector.load %arg2[%c0_5, %c0_6] : memref<256x32xf32, #tpu.memory_space<vmem>>, vector<256x32xf32>
    %c0_7 = arith.constant 0 : index
    %c0_8 = arith.constant 0 : index
    %7 = vector.load %arg5[%c0_7, %c0_8] : memref<1x32xf32, #tpu.memory_space<vmem>>, vector<1x32xf32>
    %8 = vector.broadcast %7 : vector<1x32xf32> to vector<256x32xf32>
    %9 = arith.mulf %8, %5 : vector<256x32xf32>
    %10 = arith.addf %6, %9 : vector<256x32xf32>
    %c0_9 = arith.constant 0 : index
    %c0_10 = arith.constant 0 : index
    %11 = vector.load %arg6[%c0_9, %c0_10] : memref<256x32xf32, #tpu.memory_space<vmem>>, vector<256x32xf32>
    tpu.vector_store %arg6[%c0_9, %c0_10], %10 {strides = array<i32>} : memref<256x32xf32, #tpu.memory_space<vmem>>, vector<256x32xf32>,
    return
  }
  func.func @transform_0(%arg0: i32) -> (i32, i32) {
    %c0_i32 = arith.constant 0 : i32
    %c0_i32_0 = arith.constant 0 : i32
    return %arg0, %c0_i32 : i32, i32
  }
  func.func @transform_1(%arg0: i32) -> (i32, i32) {
    %c0_i32 = arith.constant 0 : i32
    %c0_i32_0 = arith.constant 0 : i32
    return %arg0, %c0_i32 : i32, i32
  }
  func.func @transform_2(%arg0: i32) -> (i32, i32) {
    %c0_i32 = arith.constant 0 : i32
    %c0_i32_0 = arith.constant 0 : i32
    %c0_i32_1 = arith.constant 0 : i32
    return %c0_i32, %c0_i32_0 : i32, i32
  }
  func.func @transform_3(%arg0: i32) -> (i32, i32) {
    %c0_i32 = arith.constant 0 : i32
    %c0_i32_0 = arith.constant 0 : i32
    %c0_i32_1 = arith.constant 0 : i32
    return %c0_i32, %c0_i32_0 : i32, i32
  }
  func.func @transform_4(%arg0: i32) -> (i32, i32) {
    %c0_i32 = arith.constant 0 : i32
    %c0_i32_0 = arith.constant 0 : i32
    %c0_i32_1 = arith.constant 0 : i32
    return %c0_i32, %c0_i32_0 : i32, i32
  }
  func.func @transform_5(%arg0: i32) -> (i32, i32) {
    %c0_i32 = arith.constant 0 : i32
    %c0_i32_0 = arith.constant 0 : i32
    return %arg0, %c0_i32 : i32, i32
  }
}

module attributes {stable_mosaic.version = 11 : i64} {
  func.func @_ln_matmul_kernel(%arg0: i32, %arg1: memref<256x32xf32, #tpu.memory_space<vmem>>, %arg2: memref<1x32xf32, #tpu.memory_space<vmem>>, %arg3: memref<1x32xf32, #tpu.memory_space<vmem>>, %arg4: memref<32x128xbf16, #tpu.memory_space<vmem>>, %arg5: memref<1x128xf32, #tpu.memory_space<vmem>>, %arg6: memref<256x128xbf16, #tpu.memory_space<vmem>>) attributes {dimension_semantics = [#tpu.dimension_semantics<parallel>], iteration_bounds = array<i64: 2>, scalar_prefetch = 0 : i64, scratch_operands = 0 : i64, tpu.core_type = #tpu.core_type<tc>, window_params = [{transform_indices = @transform_0, window_bounds = array<i64: 256, 32>}, {pipeline_mode = #tpu.pipeline_mode<synchronous>, transform_indices = @transform_1, window_bounds = array<i64: 1, 32>}, {pipeline_mode = #tpu.pipeline_mode<synchronous>, transform_indices = @transform_2, window_bounds = array<i64: 1, 32>}, {pipeline_mode = #tpu.pipeline_mode<synchronous>, transform_indices = @transform_3, window_bounds = array<i64: 32, 128>}, {pipeline_mode = #tpu.pipeline_mode<synchronous>, transform_indices = @transform_4, window_bounds = array<i64: 1, 128>}, {transform_indices = @transform_5, window_bounds = array<i64: 256, 128>}]} {
    %c0 = arith.constant 0 : index
    %c0_0 = arith.constant 0 : index
    %0 = vector.load %arg1[%c0, %c0_0] : memref<256x32xf32, #tpu.memory_space<vmem>>, vector<256x32xf32>
    %cst = arith.constant dense<0.000000e+00> : vector<256xf32>
    %1 = vector.multi_reduction <add>, %0, %cst [1] : vector<256x32xf32> to vector<256xf32>
    %2 = vector.shape_cast %1 : vector<256xf32> to vector<256x1xf32>
    %cst_1 = arith.constant 3.200000e+01 : f32
    %3 = vector.broadcast %cst_1 : f32 to vector<256x1xf32>
    %4 = arith.divf %2, %3 : vector<256x1xf32>
    %5 = vector.broadcast %4 : vector<256x1xf32> to vector<256x32xf32>
    %6 = arith.subf %0, %5 : vector<256x32xf32>
    %7 = arith.mulf %6, %6 : vector<256x32xf32>
    %cst_2 = arith.constant dense<0.000000e+00> : vector<256xf32>
    %8 = vector.multi_reduction <add>, %7, %cst_2 [1] : vector<256x32xf32> to vector<256xf32>
    %9 = vector.shape_cast %8 : vector<256xf32> to vector<256x1xf32>
    %cst_3 = arith.constant 3.200000e+01 : f32
    %10 = vector.broadcast %cst_3 : f32 to vector<256x1xf32>
    %11 = arith.divf %9, %10 : vector<256x1xf32>
    %cst_4 = arith.constant 9.99999997E-7 : f32
    %12 = vector.broadcast %cst_4 : f32 to vector<256x1xf32>
    %13 = arith.addf %11, %12 : vector<256x1xf32>
    %14 = math.rsqrt %13 : vector<256x1xf32>
    %15 = vector.broadcast %14 : vector<256x1xf32> to vector<256x32xf32>
    %16 = arith.mulf %6, %15 : vector<256x32xf32>
    %c0_5 = arith.constant 0 : index
    %c0_6 = arith.constant 0 : index
    %17 = vector.load %arg2[%c0_5, %c0_6] : memref<1x32xf32, #tpu.memory_space<vmem>>, vector<1x32xf32>
    %18 = vector.broadcast %17 : vector<1x32xf32> to vector<256x32xf32>
    %19 = arith.mulf %16, %18 : vector<256x32xf32>
    %c0_7 = arith.constant 0 : index
    %c0_8 = arith.constant 0 : index
    %20 = vector.load %arg3[%c0_7, %c0_8] : memref<1x32xf32, #tpu.memory_space<vmem>>, vector<1x32xf32>
    %21 = vector.broadcast %20 : vector<1x32xf32> to vector<256x32xf32>
    %22 = arith.addf %19, %21 : vector<256x32xf32>
    %23 = arith.truncf %22 : vector<256x32xf32> to vector<256x32xbf16>
    %c0_9 = arith.constant 0 : index
    %c0_10 = arith.constant 0 : index
    %24 = vector.load %arg4[%c0_9, %c0_10] : memref<32x128xbf16, #tpu.memory_space<vmem>>, vector<32x128xbf16>
    %cst_11 = arith.constant dense<0.000000e+00> : vector<256x128xf32>
    %25 = tpu.matmul %23, %24, %cst_11 {dimension_numbers = #tpu.dot_dimension_numbers<[1], [0], [0], [1], [0, 0, 1, 1], [], []>} : vector<256x32xbf16>, vector<32x128xbf16>, vector<256x128xf32> -> vector<256x128xf32>
    %c0_12 = arith.constant 0 : index
    %c0_13 = arith.constant 0 : index
    %26 = vector.load %arg5[%c0_12, %c0_13] : memref<1x128xf32, #tpu.memory_space<vmem>>, vector<1x128xf32>
    %27 = vector.broadcast %26 : vector<1x128xf32> to vector<256x128xf32>
    %28 = arith.addf %25, %27 : vector<256x128xf32>
    %29 = arith.mulf %28, %28 : vector<256x128xf32>
    %30 = arith.mulf %28, %29 : vector<256x128xf32>
    %cst_14 = arith.constant 4.471500e-02 : f32
    %31 = vector.broadcast %cst_14 : f32 to vector<256x128xf32>
    %32 = arith.mulf %31, %30 : vector<256x128xf32>
    %33 = arith.addf %28, %32 : vector<256x128xf32>
    %cst_15 = arith.constant 0.797884583 : f32
    %34 = vector.broadcast %cst_15 : f32 to vector<256x128xf32>
    %35 = arith.mulf %34, %33 : vector<256x128xf32>
    %36 = math.tanh %35 : vector<256x128xf32>
    %cst_16 = arith.constant 1.000000e+00 : f32
    %37 = vector.broadcast %cst_16 : f32 to vector<256x128xf32>
    %38 = arith.addf %37, %36 : vector<256x128xf32>
    %cst_17 = arith.constant 5.000000e-01 : f32
    %39 = vector.broadcast %cst_17 : f32 to vector<256x128xf32>
    %40 = arith.mulf %39, %38 : vector<256x128xf32>
    %41 = arith.mulf %28, %40 : vector<256x128xf32>
    %42 = arith.truncf %41 : vector<256x128xf32> to vector<256x128xbf16>
    %c0_18 = arith.constant 0 : index
    %c0_19 = arith.constant 0 : index
    %43 = vector.load %arg6[%c0_18, %c0_19] : memref<256x128xbf16, #tpu.memory_space<vmem>>, vector<256x128xbf16>
    tpu.vector_store %arg6[%c0_18, %c0_19], %42 {strides = array<i32>} : memref<256x128xbf16, #tpu.memory_space<vmem>>, vector<256x128xbf16>,
    return
  }
  func.func @transform_0(%arg0: i32) -> (i32, i32) {
    %c0_i32 = arith.constant 0 : i32
    %c0_i32_0 = arith.constant 0 : i32
    return %arg0, %c0_i32 : i32, i32
  }
  func.func @transform_1(%arg0: i32) -> (i32, i32) {
    %c0_i32 = arith.constant 0 : i32
    %c0_i32_0 = arith.constant 0 : i32
    %c0_i32_1 = arith.constant 0 : i32
    return %c0_i32, %c0_i32_0 : i32, i32
  }
  func.func @transform_2(%arg0: i32) -> (i32, i32) {
    %c0_i32 = arith.constant 0 : i32
    %c0_i32_0 = arith.constant 0 : i32
    %c0_i32_1 = arith.constant 0 : i32
    return %c0_i32, %c0_i32_0 : i32, i32
  }
  func.func @transform_3(%arg0: i32) -> (i32, i32) {
    %c0_i32 = arith.constant 0 : i32
    %c0_i32_0 = arith.constant 0 : i32
    %c0_i32_1 = arith.constant 0 : i32
    return %c0_i32, %c0_i32_0 : i32, i32
  }
  func.func @transform_4(%arg0: i32) -> (i32, i32) {
    %c0_i32 = arith.constant 0 : i32
    %c0_i32_0 = arith.constant 0 : i32
    %c0_i32_1 = arith.constant 0 : i32
    return %c0_i32, %c0_i32_0 : i32, i32
  }
  func.func @transform_5(%arg0: i32) -> (i32, i32) {
    %c0_i32 = arith.constant 0 : i32
    %c0_i32_0 = arith.constant 0 : i32
    return %arg0, %c0_i32 : i32, i32
  }
}

module attributes {stable_mosaic.version = 11 : i64} {
  func.func @_proj_scale_residual_kernel(%arg0: i32, %arg1: memref<256x128xbf16, #tpu.memory_space<vmem>>, %arg2: memref<256x32xf32, #tpu.memory_space<vmem>>, %arg3: memref<128x32xbf16, #tpu.memory_space<vmem>>, %arg4: memref<1x32xf32, #tpu.memory_space<vmem>>, %arg5: memref<1x32xf32, #tpu.memory_space<vmem>>, %arg6: memref<256x32xf32, #tpu.memory_space<vmem>>) attributes {dimension_semantics = [#tpu.dimension_semantics<parallel>], iteration_bounds = array<i64: 2>, scalar_prefetch = 0 : i64, scratch_operands = 0 : i64, tpu.core_type = #tpu.core_type<tc>, window_params = [{transform_indices = @transform_0, window_bounds = array<i64: 256, 128>}, {transform_indices = @transform_1, window_bounds = array<i64: 256, 32>}, {pipeline_mode = #tpu.pipeline_mode<synchronous>, transform_indices = @transform_2, window_bounds = array<i64: 128, 32>}, {pipeline_mode = #tpu.pipeline_mode<synchronous>, transform_indices = @transform_3, window_bounds = array<i64: 1, 32>}, {pipeline_mode = #tpu.pipeline_mode<synchronous>, transform_indices = @transform_4, window_bounds = array<i64: 1, 32>}, {transform_indices = @transform_5, window_bounds = array<i64: 256, 32>}]} {
    %c0 = arith.constant 0 : index
    %c0_0 = arith.constant 0 : index
    %0 = vector.load %arg1[%c0, %c0_0] : memref<256x128xbf16, #tpu.memory_space<vmem>>, vector<256x128xbf16>
    %c0_1 = arith.constant 0 : index
    %c0_2 = arith.constant 0 : index
    %1 = vector.load %arg3[%c0_1, %c0_2] : memref<128x32xbf16, #tpu.memory_space<vmem>>, vector<128x32xbf16>
    %cst = arith.constant dense<0.000000e+00> : vector<256x32xf32>
    %2 = tpu.matmul %0, %1, %cst {dimension_numbers = #tpu.dot_dimension_numbers<[1], [0], [0], [1], [0, 0, 1, 1], [], []>} : vector<256x128xbf16>, vector<128x32xbf16>, vector<256x32xf32> -> vector<256x32xf32>
    %c0_3 = arith.constant 0 : index
    %c0_4 = arith.constant 0 : index
    %3 = vector.load %arg4[%c0_3, %c0_4] : memref<1x32xf32, #tpu.memory_space<vmem>>, vector<1x32xf32>
    %4 = vector.broadcast %3 : vector<1x32xf32> to vector<256x32xf32>
    %5 = arith.addf %2, %4 : vector<256x32xf32>
    %c0_5 = arith.constant 0 : index
    %c0_6 = arith.constant 0 : index
    %6 = vector.load %arg2[%c0_5, %c0_6] : memref<256x32xf32, #tpu.memory_space<vmem>>, vector<256x32xf32>
    %c0_7 = arith.constant 0 : index
    %c0_8 = arith.constant 0 : index
    %7 = vector.load %arg5[%c0_7, %c0_8] : memref<1x32xf32, #tpu.memory_space<vmem>>, vector<1x32xf32>
    %8 = vector.broadcast %7 : vector<1x32xf32> to vector<256x32xf32>
    %9 = arith.mulf %8, %5 : vector<256x32xf32>
    %10 = arith.addf %6, %9 : vector<256x32xf32>
    %c0_9 = arith.constant 0 : index
    %c0_10 = arith.constant 0 : index
    %11 = vector.load %arg6[%c0_9, %c0_10] : memref<256x32xf32, #tpu.memory_space<vmem>>, vector<256x32xf32>
    tpu.vector_store %arg6[%c0_9, %c0_10], %10 {strides = array<i32>} : memref<256x32xf32, #tpu.memory_space<vmem>>, vector<256x32xf32>,
    return
  }
  func.func @transform_0(%arg0: i32) -> (i32, i32) {
    %c0_i32 = arith.constant 0 : i32
    %c0_i32_0 = arith.constant 0 : i32
    return %arg0, %c0_i32 : i32, i32
  }
  func.func @transform_1(%arg0: i32) -> (i32, i32) {
    %c0_i32 = arith.constant 0 : i32
    %c0_i32_0 = arith.constant 0 : i32
    return %arg0, %c0_i32 : i32, i32
  }
  func.func @transform_2(%arg0: i32) -> (i32, i32) {
    %c0_i32 = arith.constant 0 : i32
    %c0_i32_0 = arith.constant 0 : i32
    %c0_i32_1 = arith.constant 0 : i32
    return %c0_i32, %c0_i32_0 : i32, i32
  }
  func.func @transform_3(%arg0: i32) -> (i32, i32) {
    %c0_i32 = arith.constant 0 : i32
    %c0_i32_0 = arith.constant 0 : i32
    %c0_i32_1 = arith.constant 0 : i32
    return %c0_i32, %c0_i32_0 : i32, i32
  }
  func.func @transform_4(%arg0: i32) -> (i32, i32) {
    %c0_i32 = arith.constant 0 : i32
    %c0_i32_0 = arith.constant 0 : i32
    %c0_i32_1 = arith.constant 0 : i32
    return %c0_i32, %c0_i32_0 : i32, i32
  }
  func.func @transform_5(%arg0: i32) -> (i32, i32) {
    %c0_i32 = arith.constant 0 : i32
    %c0_i32_0 = arith.constant 0 : i32
    return %arg0, %c0_i32 : i32, i32
  }
}

module attributes {stable_mosaic.version = 11 : i64} {
  func.func @_matmul_bias_kernel(%arg0: i32, %arg1: memref<32x256xbf16, #tpu.memory_space<vmem>>, %arg2: memref<256x256xbf16, #tpu.memory_space<vmem>>, %arg3: memref<1x256xf32, #tpu.memory_space<vmem>>, %arg4: memref<32x256xf32, #tpu.memory_space<vmem>>) attributes {dimension_semantics = [#tpu.dimension_semantics<parallel>], iteration_bounds = array<i64: 1>, scalar_prefetch = 0 : i64, scratch_operands = 0 : i64, tpu.core_type = #tpu.core_type<tc>, window_params = [{transform_indices = @transform_0, window_bounds = array<i64: 32, 256>}, {pipeline_mode = #tpu.pipeline_mode<synchronous>, transform_indices = @transform_1, window_bounds = array<i64: 256, 256>}, {pipeline_mode = #tpu.pipeline_mode<synchronous>, transform_indices = @transform_2, window_bounds = array<i64: 1, 256>}, {transform_indices = @transform_3, window_bounds = array<i64: 32, 256>}]} {
    %c0 = arith.constant 0 : index
    %c0_0 = arith.constant 0 : index
    %0 = vector.load %arg1[%c0, %c0_0] : memref<32x256xbf16, #tpu.memory_space<vmem>>, vector<32x256xbf16>
    %c0_1 = arith.constant 0 : index
    %c0_2 = arith.constant 0 : index
    %1 = vector.load %arg2[%c0_1, %c0_2] : memref<256x256xbf16, #tpu.memory_space<vmem>>, vector<256x256xbf16>
    %cst = arith.constant dense<0.000000e+00> : vector<32x256xf32>
    %2 = tpu.matmul %0, %1, %cst {dimension_numbers = #tpu.dot_dimension_numbers<[1], [0], [0], [1], [0, 0, 1, 1], [], []>} : vector<32x256xbf16>, vector<256x256xbf16>, vector<32x256xf32> -> vector<32x256xf32>
    %c0_3 = arith.constant 0 : index
    %c0_4 = arith.constant 0 : index
    %3 = vector.load %arg3[%c0_3, %c0_4] : memref<1x256xf32, #tpu.memory_space<vmem>>, vector<1x256xf32>
    %4 = vector.broadcast %3 : vector<1x256xf32> to vector<32x256xf32>
    %5 = arith.addf %2, %4 : vector<32x256xf32>
    %c0_5 = arith.constant 0 : index
    %c0_6 = arith.constant 0 : index
    %6 = vector.load %arg4[%c0_5, %c0_6] : memref<32x256xf32, #tpu.memory_space<vmem>>, vector<32x256xf32>
    tpu.vector_store %arg4[%c0_5, %c0_6], %5 {strides = array<i32>} : memref<32x256xf32, #tpu.memory_space<vmem>>, vector<32x256xf32>,
    return
  }
  func.func @transform_0(%arg0: i32) -> (i32, i32) {
    %c0_i32 = arith.constant 0 : i32
    %c0_i32_0 = arith.constant 0 : i32
    return %arg0, %c0_i32 : i32, i32
  }
  func.func @transform_1(%arg0: i32) -> (i32, i32) {
    %c0_i32 = arith.constant 0 : i32
    %c0_i32_0 = arith.constant 0 : i32
    %c0_i32_1 = arith.constant 0 : i32
    return %c0_i32, %c0_i32_0 : i32, i32
  }
  func.func @transform_2(%arg0: i32) -> (i32, i32) {
    %c0_i32 = arith.constant 0 : i32
    %c0_i32_0 = arith.constant 0 : i32
    %c0_i32_1 = arith.constant 0 : i32
    return %c0_i32, %c0_i32_0 : i32, i32
  }
  func.func @transform_3(%arg0: i32) -> (i32, i32) {
    %c0_i32 = arith.constant 0 : i32
    %c0_i32_0 = arith.constant 0 : i32
    return %arg0, %c0_i32 : i32, i32
  }
}

module attributes {stable_mosaic.version = 11 : i64} {
  func.func @_depth_bins_kernel(%arg0: i32, %arg1: memref<512x256xf32, #tpu.memory_space<vmem>>, %arg2: memref<1x256xf32, #tpu.memory_space<vmem>>, %arg3: memref<512x1xf32, #tpu.memory_space<vmem>>) attributes {dimension_semantics = [#tpu.dimension_semantics<parallel>], iteration_bounds = array<i64: 1>, scalar_prefetch = 0 : i64, scratch_operands = 0 : i64, tpu.core_type = #tpu.core_type<tc>, window_params = [{transform_indices = @transform_0, window_bounds = array<i64: 512, 256>}, {pipeline_mode = #tpu.pipeline_mode<synchronous>, transform_indices = @transform_1, window_bounds = array<i64: 1, 256>}, {transform_indices = @transform_2, window_bounds = array<i64: 512, 1>}]} {
    %c0 = arith.constant 0 : index
    %c0_0 = arith.constant 0 : index
    %0 = vector.load %arg1[%c0, %c0_0] : memref<512x256xf32, #tpu.memory_space<vmem>>, vector<512x256xf32>
    %cst = arith.constant 0.000000e+00 : f32
    %1 = vector.broadcast %cst : f32 to vector<512x256xf32>
    %2 = arith.maximumf %0, %1 : vector<512x256xf32>
    %cst_1 = arith.constant 1.000000e-01 : f32
    %3 = vector.broadcast %cst_1 : f32 to vector<512x256xf32>
    %4 = arith.addf %2, %3 : vector<512x256xf32>
    %cst_2 = arith.constant dense<0.000000e+00> : vector<512xf32>
    %5 = vector.multi_reduction <add>, %4, %cst_2 [1] : vector<512x256xf32> to vector<512xf32>
    %6 = vector.shape_cast %5 : vector<512xf32> to vector<512x1xf32>
    %7 = tpu.reciprocal %6 {approx = true} : vector<512x1xf32> -> vector<512x1xf32>
    %8 = vector.broadcast %7 : vector<512x1xf32> to vector<512x256xf32>
    %9 = arith.mulf %4, %8 : vector<512x256xf32>
    %c0_3 = arith.constant 0 : index
    %c0_4 = arith.constant 0 : index
    %10 = vector.load %arg2[%c0_3, %c0_4] : memref<1x256xf32, #tpu.memory_space<vmem>>, vector<1x256xf32>
    %11 = vector.broadcast %10 : vector<1x256xf32> to vector<512x256xf32>
    %12 = arith.mulf %9, %11 : vector<512x256xf32>
    %cst_5 = arith.constant dense<0.000000e+00> : vector<512xf32>
    %13 = vector.multi_reduction <add>, %12, %cst_5 [1] : vector<512x256xf32> to vector<512xf32>
    %14 = vector.shape_cast %13 : vector<512xf32> to vector<512x1xf32>
    %c0_6 = arith.constant 0 : index
    %c0_7 = arith.constant 0 : index
    %15 = vector.load %arg3[%c0_6, %c0_7] : memref<512x1xf32, #tpu.memory_space<vmem>>, vector<512x1xf32>
    tpu.vector_store %arg3[%c0_6, %c0_7], %14 {strides = array<i32>} : memref<512x1xf32, #tpu.memory_space<vmem>>, vector<512x1xf32>,
    return
  }
  func.func @transform_0(%arg0: i32) -> (i32, i32) {
    %c0_i32 = arith.constant 0 : i32
    %c0_i32_0 = arith.constant 0 : i32
    return %arg0, %c0_i32 : i32, i32
  }
  func.func @transform_1(%arg0: i32) -> (i32, i32) {
    %c0_i32 = arith.constant 0 : i32
    %c0_i32_0 = arith.constant 0 : i32
    %c0_i32_1 = arith.constant 0 : i32
    return %c0_i32, %c0_i32_0 : i32, i32
  }
  func.func @transform_2(%arg0: i32) -> (i32, i32) {
    %c0_i32 = arith.constant 0 : i32
    %c0_i32_0 = arith.constant 0 : i32
    return %arg0, %c0_i32 : i32, i32
  }
}

module attributes {stable_mosaic.version = 11 : i64} {
  func.func @_matmul_bias_kernel(%arg0: i32, %arg1: memref<32x128xbf16, #tpu.memory_space<vmem>>, %arg2: memref<128x10xbf16, #tpu.memory_space<vmem>>, %arg3: memref<1x10xf32, #tpu.memory_space<vmem>>, %arg4: memref<32x10xf32, #tpu.memory_space<vmem>>) attributes {dimension_semantics = [#tpu.dimension_semantics<parallel>], iteration_bounds = array<i64: 1>, scalar_prefetch = 0 : i64, scratch_operands = 0 : i64, tpu.core_type = #tpu.core_type<tc>, window_params = [{transform_indices = @transform_0, window_bounds = array<i64: 32, 128>}, {pipeline_mode = #tpu.pipeline_mode<synchronous>, transform_indices = @transform_1, window_bounds = array<i64: 128, 10>}, {pipeline_mode = #tpu.pipeline_mode<synchronous>, transform_indices = @transform_2, window_bounds = array<i64: 1, 10>}, {transform_indices = @transform_3, window_bounds = array<i64: 32, 10>}]} {
    %c0 = arith.constant 0 : index
    %c0_0 = arith.constant 0 : index
    %0 = vector.load %arg1[%c0, %c0_0] : memref<32x128xbf16, #tpu.memory_space<vmem>>, vector<32x128xbf16>
    %c0_1 = arith.constant 0 : index
    %c0_2 = arith.constant 0 : index
    %1 = vector.load %arg2[%c0_1, %c0_2] : memref<128x10xbf16, #tpu.memory_space<vmem>>, vector<128x10xbf16>
    %cst = arith.constant dense<0.000000e+00> : vector<32x10xf32>
    %2 = tpu.matmul %0, %1, %cst {dimension_numbers = #tpu.dot_dimension_numbers<[1], [0], [0], [1], [0, 0, 1, 1], [], []>} : vector<32x128xbf16>, vector<128x10xbf16>, vector<32x10xf32> -> vector<32x10xf32>
    %c0_3 = arith.constant 0 : index
    %c0_4 = arith.constant 0 : index
    %3 = vector.load %arg3[%c0_3, %c0_4] : memref<1x10xf32, #tpu.memory_space<vmem>>, vector<1x10xf32>
    %4 = vector.broadcast %3 : vector<1x10xf32> to vector<32x10xf32>
    %5 = arith.addf %2, %4 : vector<32x10xf32>
    %c0_5 = arith.constant 0 : index
    %c0_6 = arith.constant 0 : index
    %6 = vector.load %arg4[%c0_5, %c0_6] : memref<32x10xf32, #tpu.memory_space<vmem>>, vector<32x10xf32>
    tpu.vector_store %arg4[%c0_5, %c0_6], %5 {strides = array<i32>} : memref<32x10xf32, #tpu.memory_space<vmem>>, vector<32x10xf32>,
    return
  }
  func.func @transform_0(%arg0: i32) -> (i32, i32) {
    %c0_i32 = arith.constant 0 : i32
    %c0_i32_0 = arith.constant 0 : i32
    return %arg0, %c0_i32 : i32, i32
  }
  func.func @transform_1(%arg0: i32) -> (i32, i32) {
    %c0_i32 = arith.constant 0 : i32
    %c0_i32_0 = arith.constant 0 : i32
    %c0_i32_1 = arith.constant 0 : i32
    return %c0_i32, %c0_i32_0 : i32, i32
  }
  func.func @transform_2(%arg0: i32) -> (i32, i32) {
    %c0_i32 = arith.constant 0 : i32
    %c0_i32_0 = arith.constant 0 : i32
    %c0_i32_1 = arith.constant 0 : i32
    return %c0_i32, %c0_i32_0 : i32, i32
  }
  func.func @transform_3(%arg0: i32) -> (i32, i32) {
    %c0_i32 = arith.constant 0 : i32
    %c0_i32_0 = arith.constant 0 : i32
    return %arg0, %c0_i32 : i32, i32
  }
}

</mosaic_0001>

<llo_original>
// kernel: mtl_dinov2_forward.64
$region0: #{mtl_dinov2_forward.64}
  #allocation0 [shape = 'u32[]', space=smem, size = 0x4, offset = 0x4, fixed_abs, tag = 'smem constant byte address 0x4 - core index']
  #allocation1 [shape = 'u32[144,128]{1,0:T(1,128)}', space=vmem, size = 0x12000, scoped, tag = 'internal scratch']
  %s0 = inlined_call_operand.vmem [shape: bf16[32,48], index: 0, kind: input, shape index: {}]
  %s1 = inlined_call_operand.vmem [shape: bf16[48,32], index: 1, kind: input, shape index: {}]
  %s2 = inlined_call_operand.vmem [shape: f32[1,32], index: 2, kind: input, shape index: {}]
  %s3 = inlined_call_operand.vmem [shape: f32[32,32], index: 3, kind: output, shape index: {}]
  %s4 = sld [smem:[#allocation0]]
  $region22: #{mtl_dinov2_forward.64} parent=0
    _
  %s6 = ssub.s32 1, %s4
  %s7 = scalar_select 0, %s6, %s4
  // Predicated region
  $region2: #{mtl_dinov2_forward.64} parent=0 // pred_check
    _
  $region3: #{mtl_dinov2_forward.64} parent=0 // pred_check_branch
    %9 = sbr.rel (0) target = $region5
  $region4: #{mtl_dinov2_forward.64} parent=0 // pred_region
    _
  $region5: #{mtl_dinov2_forward.64} parent=0 // pred_fallthru
    _
  // Predicated region
  $region6: #{mtl_dinov2_forward.64} parent=0 // pred_check
    _
  $region7: #{mtl_dinov2_forward.64} parent=0 // pred_check_branch
    %11 = sbr.rel (0) target = $region9
  $region8: #{mtl_dinov2_forward.64} parent=0 // pred_region
    _
  $region9: #{mtl_dinov2_forward.64} parent=0 // pred_fallthru
    _
  // Predicated region
  $region10: #{mtl_dinov2_forward.64} parent=0 // pred_check
    _
  $region11: #{mtl_dinov2_forward.64} parent=0 // pred_check_branch
    %13 = sbr.rel (0) target = $region13
  $region12: #{mtl_dinov2_forward.64} parent=0 // pred_region
    _
  $region13: #{mtl_dinov2_forward.64} parent=0 // pred_fallthru
    _
  %v15 = vld [vmem:[%s0] sm:$0xf]
  %v16 = vld [vmem:[%s0 + $0x4] sm:$0xf]
  %v17 = vld [vmem:[%s0 + $0x8] sm:$0xf]
  %v18 = vld [vmem:[%s0 + $0xc] sm:$0xf]
  %v19 = vld [vmem:[%s1] sm:$0xf]
  %v20 = vld [vmem:[%s1 + $0x4] sm:$0xf]
  %v21 = vld [vmem:[%s1 + $0x8] sm:$0xf]
  %v22 = vld [vmem:[%s1 + $0xc] sm:$0xf]
  %v23 = vld [vmem:[%s1 + $0x10] sm:$0xf]
  %v24 = vld [vmem:[%s1 + $0x14] sm:$0xf]
  %v25 = vld [vmem:[%s2] sm:$0x1]
  %v27 = vlaneseq
  %v28 = vshrl.u32 %v27, 7
  %v29 = vsub.s32 0, %v28
  %v30 = vrot.slane %v25, %v29
  %v36 = vunpack.c.l.b16 %v15
  %v37 = vunpack.c.l.b16 %v16
  %v38 = vunpack.c.l.b16 %v17
  %v39 = vunpack.c.l.b16 %v18
  %v40 = vpack.c.b16 %v37, %v36
  %v41 = vpack.c.b16 %v39, %v38
  %v48 = vunpack.c.l.b16 %v19
  %v49 = vunpack.c.l.b16 %v20
  %v50 = vunpack.c.l.b16 %v21
  %v51 = vunpack.c.l.b16 %v22
  %v52 = vunpack.c.l.b16 %v23
  %v53 = vunpack.c.l.b16 %v24
  %v54 = vpack.c.b16 %v49, %v48
  %v55 = vpack.c.b16 %v51, %v50
  %v56 = vpack.c.b16 %v53, %v52
  %vm60 = vcmask 392192
  %v62 = vsel %vm60, %v40, 0
  %v65 = vsel %vm60, %v41, 0
  %67 = vmatprep.subr.bf16.mxu0 0
  %68 = vmatpush1.bf16.msra.mxu0 0
  %69 = vmatprep.subr.bf16.mxu0 0
  %70 = vmatpush1.bf16.msra.mxu0 0
  %71 = vmatprep.subr.bf16.mxu0 0
  %72 = vmatpush1.bf16.msra.mxu0 0
  %73 = vmatprep.subr.bf16.mxu0 0
  %74 = vmatpush1.bf16.msra.mxu0 0
  %75 = vmatprep.subr.bf16.mxu0 0
  %76 = vmatpush1.bf16.msra.mxu0 0
  %77 = vmatprep.subr.bf16.mxu0 0
  %78 = vmatpush1.bf16.msra.mxu0 %v56
  %79 = vmatprep.subr.bf16.mxu0 0
  %80 = vmatpush1.bf16.msra.mxu0 %v55
  %81 = vmatprep.subr.bf16.mxu0 0
  %82 = vmatpush1.bf16.msra.mxu0 %v54
  %83 = vmatprep.subr.bf16.mxu0 0
  %84 = vmatpush2.bf16.msra.mxu0 0
  %85 = vmatprep.subr.bf16.mxu0 0
  %86 = vmatpush2.bf16.msra.mxu0 0
  %87 = vmatprep.subr.bf16.mxu0 0
  %88 = vmatpush2.bf16.msra.mxu0 0
  %89 = vmatprep.subr.bf16.mxu0 0
  %90 = vmatpush2.bf16.msra.mxu0 0
  %91 = vmatprep.subr.bf16.mxu0 0
  %92 = vmatpush2.bf16.msra.mxu0 0
  %93 = vmatprep.subr.bf16.mxu0 0
  %94 = vmatpush2.bf16.msra.mxu0 0
  %95 = vmatprep.subr.bf16.mxu0 0
  %96 = vmatpush2.bf16.msra.mxu0 0
  %97 = vmatprep.subr.bf16.mxu0 0
  %98 = vmatpush2.bf16.msra.mxu0 0
  %99 = vmatprep.mubr.bf16.mxu0 0
  %100 = vmatmul.mubr.bf16.gmra.mxu0 %v62
  %v101 = vpop.f32.mrf.mxu0
  %v102 = vadd.f32 %v30, %v101
  %v103 = vpop.f32.mrf.mxu0
  %v104 = vpop.f32.mrf.mxu0
  %v105 = vadd.f32 %v30, %v104
  %v106 = vpop.f32.mrf.mxu0
  %107 = vmatprep.mubr.bf16.mxu0 0
  %108 = vmatmul.mubr.bf16.gmra.mxu0 %v65
  %v109 = vpop.f32.mrf.mxu0
  %v110 = vadd.f32 %v30, %v109
  %v111 = vpop.f32.mrf.mxu0
  %v112 = vpop.f32.mrf.mxu0
  %v113 = vadd.f32 %v30, %v112
  %v114 = vpop.f32.mrf.mxu0
  %115 = vdwg.mxu0
  %vm116 = vcmask 261120
  %117 = vst.msk [vmem:[%s3] sm:$0xff] %vm116, %v102
  %118 = vst.msk [vmem:[%s3 + $0x8] sm:$0xff] %vm116, %v105
  %119 = vst.msk [vmem:[%s3 + $0x10] sm:$0xff] %vm116, %v110
  %120 = vst.msk [vmem:[%s3 + $0x18] sm:$0xff] %vm116, %v113
  // Predicated region
  $region14: #{mtl_dinov2_forward.64} parent=0 // pred_check
    _
  $region15: #{mtl_dinov2_forward.64} parent=0 // pred_check_branch
    %122 = sbr.rel (0) target = $region17
  $region16: #{mtl_dinov2_forward.64} parent=0 // pred_region
    _
  $region17: #{mtl_dinov2_forward.64} parent=0 // pred_fallthru
    _
  // Predicated region
  $region18: #{mtl_dinov2_forward.64} parent=0 // pred_check
    _
  $region19: #{mtl_dinov2_forward.64} parent=0 // pred_check_branch
    %124 = sbr.rel (0) target = $region21
  $region20: #{mtl_dinov2_forward.64} parent=0 // pred_region
    _
  $region21: #{mtl_dinov2_forward.64} parent=0 // pred_fallthru
    _

// kernel: mtl_dinov2_forward.65
$region0: #{mtl_dinov2_forward.65}
  #allocation0 [shape = 'u32[]', space=smem, size = 0x4, offset = 0x4, fixed_abs, tag = 'smem constant byte address 0x4 - core index']
  #allocation1 [shape = 'u32[144,128]{1,0:T(1,128)}', space=vmem, size = 0x12000, scoped, tag = 'internal scratch']
  %s0 = inlined_call_operand.vmem [shape: f32[512,32], index: 0, kind: input, shape index: {}]
  %s1 = inlined_call_operand.vmem [shape: f32[1,32], index: 1, kind: input, shape index: {}]
  %s2 = inlined_call_operand.vmem [shape: f32[1,32], index: 2, kind: input, shape index: {}]
  %s3 = inlined_call_operand.vmem [shape: bf16[32,96], index: 3, kind: input, shape index: {}]
  %s4 = inlined_call_operand.vmem [shape: f32[1,96], index: 4, kind: input, shape index: {}]
  %s5 = inlined_call_operand.vmem [shape: bf16[512,96], index: 5, kind: output, shape index: {}]
  %s6 = sld [smem:[#allocation0]]
  $region53: #{mtl_dinov2_forward.65} parent=0
    _
  %s8 = ssub.s32 1, %s6
  %s9 = scalar_select 0, %s8, %s6
  loop: start=0, step=1, limit=4
  $region2: #{mtl_dinov2_forward.65} parent=0 // loop_pre_header
    _
  $region3: #{mtl_dinov2_forward.65} parent=0 // loop_header
    %s11 = sphi 0, %s15
    %p12 = scmp.ge.s32.totalorder %s11, 4
    %s21 = sphi 0, %s23
    %s24 = sphi 0, %s21
    %s25 = sphi 0, %s24
    %s41 = sphi 0, %s25
    %s45 = sphi 0, %s45
    %s47 = sphi 0, %s45
    %s48 = sphi 0, %s47
    %s62 = sphi 0, %s48
    %s66 = sphi 0, %s66
    %s68 = sphi 0, %s66
    %s69 = sphi 0, %s68
    %s83 = sphi 0, %s69
    %s87 = sphi 0, %s87
    %s89 = sphi 0, %s87
    %s90 = sphi 0, %s89
    %s104 = sphi 0, %s90
    %s108 = sphi 0, %s108
    %s110 = sphi 0, %s108
    %s111 = sphi 0, %s110
    %s125 = sphi 0, %s111
    %s131 = sphi 0, %s133
    %s134 = sphi 0, %s131
    %s135 = sphi 0, %s134
    %s151 = sphi 0, %s135
  $region4: #{mtl_dinov2_forward.65} parent=0 // loop_header_branch
    %14 = sbr.rel (%p12) target = $region8
  $region5: #{mtl_dinov2_forward.65} parent=0 // loop_body
    %s16 = ssub.s32 %s11, 1
    %s17 = ssub.s32 %s11, 2
    %s18 = sadd.s32 %s11, 1
    %s19 = ssub.s32 %s11, %s18
    %p20 = scmp.eq.s32.totalorder %s19, 0
    %s22 = sadd.s32 %s21, 1
    %s23 = scalar_select %p20, %s21, %s22
    %p26 = pneg %p20
    %p27 = scmp.eq.s32.totalorder %s11, 1
    %p28 = por %p26, %p27
    %p29 = scmp.ne.s32.totalorder %s21, %s24
    %p30 = scmp.eq.s32.totalorder %s11, 0
    %p31 = por %p29, %p30
    %p32 = scmp.ne.s32.totalorder %s21, %s24
    %p33 = scmp.eq.s32.totalorder %s16, 1
    %p34 = por %p32, %p33
    %p35 = scmp.ne.s32.totalorder %s24, %s25
    %p36 = scmp.eq.s32.totalorder %s16, 0
    %p37 = por %p35, %p36
    %p38 = scmp.ne.s32.totalorder %s24, %s25
    %p39 = scmp.eq.s32.totalorder %s17, 1
    %p40 = por %p38, %p39
    %p42 = scmp.ne.s32.totalorder %s25, %s41
    %p43 = scmp.eq.s32.totalorder %s17, 0
    %p44 = por %p42, %p43
    %s46 = sadd.s32 %s45, 1
    %p49 = scmp.eq.s32.totalorder %s11, 1
    %p50 = scmp.ne.s32.totalorder %s45, %s47
    %p51 = scmp.eq.s32.totalorder %s11, 0
    %p52 = por %p50, %p51
    %p53 = scmp.ne.s32.totalorder %s45, %s47
    %p54 = scmp.eq.s32.totalorder %s16, 1
    %p55 = por %p53, %p54
    %p56 = scmp.ne.s32.totalorder %s47, %s48
    %p57 = scmp.eq.s32.totalorder %s16, 0
    %p58 = por %p56, %p57
    %p59 = scmp.ne.s32.totalorder %s47, %s48
    %p60 = scmp.eq.s32.totalorder %s17, 1
    %p61 = por %p59, %p60
    %p63 = scmp.ne.s32.totalorder %s48, %s62
    %p64 = scmp.eq.s32.totalorder %s17, 0
    %p65 = por %p63, %p64
    %s67 = sadd.s32 %s66, 1
    %p70 = scmp.eq.s32.totalorder %s11, 1
    %p71 = scmp.ne.s32.totalorder %s66, %s68
    %p72 = scmp.eq.s32.totalorder %s11, 0
    %p73 = por %p71, %p72
    %p74 = scmp.ne.s32.totalorder %s66, %s68
    %p75 = scmp.eq.s32.totalorder %s16, 1
    %p76 = por %p74, %p75
    %p77 = scmp.ne.s32.totalorder %s68, %s69
    %p78 = scmp.eq.s32.totalorder %s16, 0
    %p79 = por %p77, %p78
    %p80 = scmp.ne.s32.totalorder %s68, %s69
    %p81 = scmp.eq.s32.totalorder %s17, 1
    %p82 = por %p80, %p81
    %p84 = scmp.ne.s32.totalorder %s69, %s83
    %p85 = scmp.eq.s32.totalorder %s17, 0
    %p86 = por %p84, %p85
    %s88 = sadd.s32 %s87, 1
    %p91 = scmp.eq.s32.totalorder %s11, 1
    %p92 = scmp.ne.s32.totalorder %s87, %s89
    %p93 = scmp.eq.s32.totalorder %s11, 0
    %p94 = por %p92, %p93
    %p95 = scmp.ne.s32.totalorder %s87, %s89
    %p96 = scmp.eq.s32.totalorder %s16, 1
    %p97 = por %p95, %p96
    %p98 = scmp.ne.s32.totalorder %s89, %s90
    %p99 = scmp.eq.s32.totalorder %s16, 0
    %p100 = por %p98, %p99
    %p101 = scmp.ne.s32.totalorder %s89, %s90
    %p102 = scmp.eq.s32.totalorder %s17, 1
    %p103 = por %p101, %p102
    %p105 = scmp.ne.s32.totalorder %s90, %s104
    %p106 = scmp.eq.s32.totalorder %s17, 0
    %p107 = por %p105, %p106
    %s109 = sadd.s32 %s108, 1
    %p112 = scmp.eq.s32.totalorder %s11, 1
    %p113 = scmp.ne.s32.totalorder %s108, %s110
    %p114 = scmp.eq.s32.totalorder %s11, 0
    %p115 = por %p113, %p114
    %p116 = scmp.ne.s32.totalorder %s108, %s110
    %p117 = scmp.eq.s32.totalorder %s16, 1
    %p118 = por %p116, %p117
    %p119 = scmp.ne.s32.totalorder %s110, %s111
    %p120 = scmp.eq.s32.totalorder %s16, 0
    %p121 = por %p119, %p120
    %p122 = scmp.ne.s32.totalorder %s110, %s111
    %p123 = scmp.eq.s32.totalorder %s17, 1
    %p124 = por %p122, %p123
    %p126 = scmp.ne.s32.totalorder %s111, %s125
    %p127 = scmp.eq.s32.totalorder %s17, 0
    %p128 = por %p126, %p127
    %s129 = ssub.s32 %s11, %s18
    %p130 = scmp.eq.s32.totalorder %s129, 0
    %s132 = sadd.s32 %s131, 1
    %s133 = scalar_select %p130, %s131, %s132
    %p136 = pneg %p130
    %p137 = scmp.eq.s32.totalorder %s11, 1
    %p138 = por %p136, %p137
    %p139 = scmp.ne.s32.totalorder %s131, %s134
    %p140 = scmp.eq.s32.totalorder %s11, 0
    %p141 = por %p139, %p140
    %p142 = scmp.ne.s32.totalorder %s131, %s134
    %p143 = scmp.eq.s32.totalorder %s16, 1
    %p144 = por %p142, %p143
    %p145 = scmp.ne.s32.totalorder %s134, %s135
    %p146 = scmp.eq.s32.totalorder %s16, 0
    %p147 = por %p145, %p146
    %p148 = scmp.ne.s32.totalorder %s134, %s135
    %p149 = scmp.eq.s32.totalorder %s17, 1
    %p150 = por %p148, %p149
    %p152 = scmp.ne.s32.totalorder %s135, %s151
    %p153 = scmp.eq.s32.totalorder %s17, 0
    %p154 = por %p152, %p153
    %p155 = scmp.le.s32.totalorder 1, %s11
    %p156 = scmp.lt.s32.totalorder %s11, 3
    %p157 = pnand %p155, %p156
    %p158 = pneg %p157
    // Predicated region
    $region9: #{mtl_dinov2_forward.65} parent=5 // pred_check
      _
    $region10: #{mtl_dinov2_forward.65} parent=5 // pred_check_branch
      %160 = sbr.rel (%p157) target = $region12
    $region11: #{mtl_dinov2_forward.65} parent=5 // pred_region
      %s161 = ssub.s32 %s11, 1
      // Predicated region
      $region13: #{mtl_dinov2_forward.65} parent=11 // pred_check
        %p162 = pneg %p58
      $region14: #{mtl_dinov2_forward.65} parent=11 // pred_check_branch
        %164 = sbr.rel (%p162) target = $region16
      $region15: #{mtl_dinov2_forward.65} parent=11 // pred_region
        _
      $region16: #{mtl_dinov2_forward.65} parent=11 // pred_fallthru
        _
      // Predicated region
      $region17: #{mtl_dinov2_forward.65} parent=11 // pred_check
        %p165 = pneg %p79
      $region18: #{mtl_dinov2_forward.65} parent=11 // pred_check_branch
        %167 = sbr.rel (%p165) target = $region20
      $region19: #{mtl_dinov2_forward.65} parent=11 // pred_region
        _
      $region20: #{mtl_dinov2_forward.65} parent=11 // pred_fallthru
        _
      // Predicated region
      $region21: #{mtl_dinov2_forward.65} parent=11 // pred_check
        %p168 = pneg %p100
      $region22: #{mtl_dinov2_forward.65} parent=11 // pred_check_branch
        %170 = sbr.rel (%p168) target = $region24
      $region23: #{mtl_dinov2_forward.65} parent=11 // pred_region
        _
      $region24: #{mtl_dinov2_forward.65} parent=11 // pred_fallthru
        _
      // Predicated region
      $region25: #{mtl_dinov2_forward.65} parent=11 // pred_check
        %p171 = pneg %p121
      $region26: #{mtl_dinov2_forward.65} parent=11 // pred_check_branch
        %173 = sbr.rel (%p171) target = $region28
      $region27: #{mtl_dinov2_forward.65} parent=11 // pred_region
        _
      $region28: #{mtl_dinov2_forward.65} parent=11 // pred_fallthru
        _
    $region12: #{mtl_dinov2_forward.65} parent=5 // pred_fallthru
      _
    %p174 = scmp.lt.s32.totalorder %s11, 2
    // Predicated region
    $region29: #{mtl_dinov2_forward.65} parent=5 // pred_check
      %p175 = pneg %p174
    $region30: #{mtl_dinov2_forward.65} parent=5 // pred_check_branch
      %177 = sbr.rel (%p175) target = $region32
    $region31: #{mtl_dinov2_forward.65} parent=5 // pred_region
      // Predicated region
      $region33: #{mtl_dinov2_forward.65} parent=31 // pred_check
        %p178 = pneg %p31
      $region34: #{mtl_dinov2_forward.65} parent=31 // pred_check_branch
        %180 = sbr.rel (%p178) target = $region36
      $region35: #{mtl_dinov2_forward.65} parent=31 // pred_region
        %s181 = smul.u32 32, %s11
        %p182 = scmp.lt.s32.totalorder %s181, 63
        %s183 = scalar_select %p182, %s181, 63
        %s184 = smul.addr %s183, 8
        %s185 = scalar_lea.vmem %s0, %s184
        %s186 = smul.u32 32, %s11
      $region36: #{mtl_dinov2_forward.65} parent=31 // pred_fallthru
        _
    $region32: #{mtl_dinov2_forward.65} parent=5 // pred_fallthru
      _
    %p187 = scmp.le.s32.totalorder 1, %s11
    %p188 = scmp.lt.s32.totalorder %s11, 3
    %p189 = pnand %p187, %p188
    %p190 = pneg %p189
    // Predicated region
    $region37: #{mtl_dinov2_forward.65} parent=5 // pred_check
      _
    $region38: #{mtl_dinov2_forward.65} parent=5 // pred_check_branch
      %192 = sbr.rel (%p189) target = $region40
    $region39: #{mtl_dinov2_forward.65} parent=5 // pred_region
      %s193 = ssub.s32 %s11, 1
      %s194 = smul.u32 32, %s16
      %p195 = scmp.lt.s32.totalorder %s194, 63
      %s196 = scalar_select %p195, %s194, 63
      %s197 = smul.addr %s196, 8
      %s198 = scalar_lea.vmem %s0, %s197
      %p199 = pneg %p37
      %p200 = pneg %p34
      %p201 = pneg %p58
      %p202 = pneg %p55
      %p203 = pneg %p79
      %p204 = pneg %p76
      %p205 = pneg %p100
      %p206 = pneg %p97
      %p207 = pneg %p121
      %p208 = pneg %p118
      %p209 = pneg %p147
      %p210 = pneg %p144
      %s211 = smul.u32 32, %s16
      %p212 = scmp.lt.s32.totalorder %s211, 63
      %s213 = scalar_select %p212, %s211, 63
      %s214 = smul.addr %s213, 4
      %s215 = scalar_lea.vmem %s5, %s214
      %s216 = smul.u32 32, %s16
      %p217 = scmp.lt.s32.totalorder %s216, 63
      %s218 = scalar_select %p217, %s216, 63
      %s219 = smul.addr %s218, 8
      %s220 = scalar_lea.vmem %s0, %s219
      %s221 = smul.u32 32, %s16
      %s222 = smul.u32 32, %s16
      %p223 = scmp.lt.s32.totalorder %s222, 63
      %s224 = scalar_select %p223, %s222, 63
      %s225 = smul.addr %s224, 4
      %s226 = scalar_lea.vmem %s5, %s225
      %s227 = smul.u32 32, %s16
      %v229 = vld [vmem:[%s220] sm:$0xff]
      %v230 = vld [vmem:[%s220 + $0x8] sm:$0xff]
      %v231 = vld [vmem:[%s220 + $0x10] sm:$0xff]
      %v232 = vld [vmem:[%s220 + $0x18] sm:$0xff]
      %v233 = vld [vmem:[%s220 + $0x20] sm:$0xff]
      %v234 = vld [vmem:[%s220 + $0x28] sm:$0xff]
      %v235 = vld [vmem:[%s220 + $0x30] sm:$0xff]
      %v236 = vld [vmem:[%s220 + $0x38] sm:$0xff]
      %v237 = vld [vmem:[%s220 + $0x40] sm:$0xff]
      %v238 = vld [vmem:[%s220 + $0x48] sm:$0xff]
      %v239 = vld [vmem:[%s220 + $0x50] sm:$0xff]
      %v240 = vld [vmem:[%s220 + $0x58] sm:$0xff]
      %v241 = vld [vmem:[%s220 + $0x60] sm:$0xff]
      %v242 = vld [vmem:[%s220 + $0x68] sm:$0xff]
      %v243 = vld [vmem:[%s220 + $0x70] sm:$0xff]
      %v244 = vld [vmem:[%s220 + $0x78] sm:$0xff]
      %v245 = vld [vmem:[%s220 + $0x80] sm:$0xff]
      %v246 = vld [vmem:[%s220 + $0x88] sm:$0xff]
      %v247 = vld [vmem:[%s220 + $0x90] sm:$0xff]
      %v248 = vld [vmem:[%s220 + $0x98] sm:$0xff]
      %v249 = vld [vmem:[%s220 + $0xa0] sm:$0xff]
      %v250 = vld [vmem:[%s220 + $0xa8] sm:$0xff]
      %v251 = vld [vmem:[%s220 + $0xb0] sm:$0xff]
      %v252 = vld [vmem:[%s220 + $0xb8] sm:$0xff]
      %v253 = vld [vmem:[%s220 + $0xc0] sm:$0xff]
      %v254 = vld [vmem:[%s220 + $0xc8] sm:$0xff]
      %v255 = vld [vmem:[%s220 + $0xd0] sm:$0xff]
      %v256 = vld [vmem:[%s220 + $0xd8] sm:$0xff]
      %v257 = vld [vmem:[%s220 + $0xe0] sm:$0xff]
      %v258 = vld [vmem:[%s220 + $0xe8] sm:$0xff]
      %v259 = vld [vmem:[%s220 + $0xf0] sm:$0xff]
      %v260 = vld [vmem:[%s220 + $0xf8] sm:$0xff]
      %vm261 = vcmask 261120
      %v262 = vsel %vm261, %v229, 0.0
      %263 = vadd.xlane.f32.xlu0 %v262
      %v264 = vpop.xlane.xlu0 %263
      %v265 = vsel %vm261, %v230, 0.0
      %266 = vadd.xlane.f32.xlu0 %v265
      %v267 = vpop.xlane.xlu0 %266
      %v268 = vsel %vm261, %v231, 0.0
      %269 = vadd.xlane.f32.xlu0 %v268
      %v270 = vpop.xlane.xlu0 %269
      %v271 = vsel %vm261, %v232, 0.0
      %272 = vadd.xlane.f32.xlu0 %v271
      %v273 = vpop.xlane.xlu0 %272
      %v274 = vsel %vm261, %v233, 0.0
      %275 = vadd.xlane.f32.xlu0 %v274
      %v276 = vpop.xlane.xlu0 %275
      %v277 = vsel %vm261, %v234, 0.0
      %278 = vadd.xlane.f32.xlu0 %v277
      %v279 = vpop.xlane.xlu0 %278
      %v280 = vsel %vm261, %v235, 0.0
      %281 = vadd.xlane.f32.xlu0 %v280
      %v282 = vpop.xlane.xlu0 %281
      %v283 = vsel %vm261, %v236, 0.0
      %284 = vadd.xlane.f32.xlu0 %v283
      %v285 = vpop.xlane.xlu0 %284
      %v286 = vsel %vm261, %v237, 0.0
      %287 = vadd.xlane.f32.xlu0 %v286
      %v288 = vpop.xlane.xlu0 %287
      %v289 = vsel %vm261, %v238, 0.0
      %290 = vadd.xlane.f32.xlu0 %v289
      %v291 = vpop.xlane.xlu0 %290
      %v292 = vsel %vm261, %v239, 0.0
      %293 = vadd.xlane.f32.xlu0 %v292
      %v294 = vpop.xlane.xlu0 %293
      %v295 = vsel %vm261, %v240, 0.0
      %296 = vadd.xlane.f32.xlu0 %v295
      %v297 = vpop.xlane.xlu0 %296
      %v298 = vsel %vm261, %v241, 0.0
      %299 = vadd.xlane.f32.xlu0 %v298
      %v300 = vpop.xlane.xlu0 %299
      %v301 = vsel %vm261, %v242, 0.0
      %302 = vadd.xlane.f32.xlu0 %v301
      %v303 = vpop.xlane.xlu0 %302
      %v304 = vsel %vm261, %v243, 0.0
      %305 = vadd.xlane.f32.xlu0 %v304
      %v306 = vpop.xlane.xlu0 %305
      %v307 = vsel %vm261, %v244, 0.0
      %308 = vadd.xlane.f32.xlu0 %v307
      %v309 = vpop.xlane.xlu0 %308
      %v310 = vsel %vm261, %v245, 0.0
      %311 = vadd.xlane.f32.xlu0 %v310
      %v312 = vpop.xlane.xlu0 %311
      %v313 = vsel %vm261, %v246, 0.0
      %314 = vadd.xlane.f32.xlu0 %v313
      %v315 = vpop.xlane.xlu0 %314
      %v316 = vsel %vm261, %v247, 0.0
      %317 = vadd.xlane.f32.xlu0 %v316
      %v318 = vpop.xlane.xlu0 %317
      %v319 = vsel %vm261, %v248, 0.0
      %320 = vadd.xlane.f32.xlu0 %v319
      %v321 = vpop.xlane.xlu0 %320
      %v322 = vsel %vm261, %v249, 0.0
      %323 = vadd.xlane.f32.xlu0 %v322
      %v324 = vpop.xlane.xlu0 %323
      %v325 = vsel %vm261, %v250, 0.0
      %326 = vadd.xlane.f32.xlu0 %v325
      %v327 = vpop.xlane.xlu0 %326
      %v328 = vsel %vm261, %v251, 0.0
      %329 = vadd.xlane.f32.xlu0 %v328
      %v330 = vpop.xlane.xlu0 %329
      %v331 = vsel %vm261, %v252, 0.0
      %332 = vadd.xlane.f32.xlu0 %v331
      %v333 = vpop.xlane.xlu0 %332
      %v334 = vsel %vm261, %v253, 0.0
      %335 = vadd.xlane.f32.xlu0 %v334
      %v336 = vpop.xlane.xlu0 %335
      %v337 = vsel %vm261, %v254, 0.0
      %338 = vadd.xlane.f32.xlu0 %v337
      %v339 = vpop.xlane.xlu0 %338
      %v340 = vsel %vm261, %v255, 0.0
      %341 = vadd.xlane.f32.xlu0 %v340
      %v342 = vpop.xlane.xlu0 %341
      %v343 = vsel %vm261, %v256, 0.0
      %344 = vadd.xlane.f32.xlu0 %v343
      %v345 = vpop.xlane.xlu0 %344
      %v346 = vsel %vm261, %v257, 0.0
      %347 = vadd.xlane.f32.xlu0 %v346
      %v348 = vpop.xlane.xlu0 %347
      %v349 = vsel %vm261, %v258, 0.0
      %350 = vadd.xlane.f32.xlu0 %v349
      %v351 = vpop.xlane.xlu0 %350
      %v352 = vsel %vm261, %v259, 0.0
      %353 = vadd.xlane.f32.xlu0 %v352
      %v354 = vpop.xlane.xlu0 %353
      %v355 = vsel %vm261, %v260, 0.0
      %356 = vadd.xlane.f32.xlu0 %v355
      %v357 = vpop.xlane.xlu0 %356
      %v358 = vrcp.pop 32.0
      %v359 = vmul.f32 %v264, %v358
      %v360 = vmul.f32 %v267, %v358
      %v361 = vmul.f32 %v270, %v358
      %v362 = vmul.f32 %v273, %v358
      %v363 = vmul.f32 %v276, %v358
      %v364 = vmul.f32 %v279, %v358
      %v365 = vmul.f32 %v282, %v358
      %v366 = vmul.f32 %v285, %v358
      %v367 = vmul.f32 %v288, %v358
      %v368 = vmul.f32 %v291, %v358
      %v369 = vmul.f32 %v294, %v358
      %v370 = vmul.f32 %v297, %v358
      %v371 = vmul.f32 %v300, %v358
      %v372 = vmul.f32 %v303, %v358
      %v373 = vmul.f32 %v306, %v358
      %v374 = vmul.f32 %v309, %v358
      %v375 = vmul.f32 %v312, %v358
      %v376 = vmul.f32 %v315, %v358
      %v377 = vmul.f32 %v318, %v358
      %v378 = vmul.f32 %v321, %v358
      %v379 = vmul.f32 %v324, %v358
      %v380 = vmul.f32 %v327, %v358
      %v381 = vmul.f32 %v330, %v358
      %v382 = vmul.f32 %v333, %v358
      %v383 = vmul.f32 %v336, %v358
      %v384 = vmul.f32 %v339, %v358
      %v385 = vmul.f32 %v342, %v358
      %v386 = vmul.f32 %v345, %v358
      %v387 = vmul.f32 %v348, %v358
      %v388 = vmul.f32 %v351, %v358
      %v389 = vmul.f32 %v354, %v358
      %v390 = vmul.f32 %v357, %v358
      %v391 = vsub.f32 %v229, %v359
      %v392 = vsub.f32 %v230, %v360
      %v393 = vsub.f32 %v231, %v361
      %v394 = vsub.f32 %v232, %v362
      %v395 = vsub.f32 %v233, %v363
      %v396 = vsub.f32 %v234, %v364
      %v397 = vsub.f32 %v235, %v365
      %v398 = vsub.f32 %v236, %v366
      %v399 = vsub.f32 %v237, %v367
      %v400 = vsub.f32 %v238, %v368
      %v401 = vsub.f32 %v239, %v369
      %v402 = vsub.f32 %v240, %v370
      %v403 = vsub.f32 %v241, %v371
      %v404 = vsub.f32 %v242, %v372
      %v405 = vsub.f32 %v243, %v373
      %v406 = vsub.f32 %v244, %v374
      %v407 = vsub.f32 %v245, %v375
      %v408 = vsub.f32 %v246, %v376
      %v409 = vsub.f32 %v247, %v377
      %v410 = vsub.f32 %v248, %v378
      %v411 = vsub.f32 %v249, %v379
      %v412 = vsub.f32 %v250, %v380
      %v413 = vsub.f32 %v251, %v381
      %v414 = vsub.f32 %v252, %v382
      %v415 = vsub.f32 %v253, %v383
      %v416 = vsub.f32 %v254, %v384
      %v417 = vsub.f32 %v255, %v385
      %v418 = vsub.f32 %v256, %v386
      %v419 = vsub.f32 %v257, %v387
      %v420 = vsub.f32 %v258, %v388
      %v421 = vsub.f32 %v259, %v389
      %v422 = vsub.f32 %v260, %v390
      %v423 = vmul.f32 %v391, %v391
      %v424 = vmul.f32 %v392, %v392
      %v425 = vmul.f32 %v393, %v393
      %v426 = vmul.f32 %v394, %v394
      %v427 = vmul.f32 %v395, %v395
      %v428 = vmul.f32 %v396, %v396
      %v429 = vmul.f32 %v397, %v397
      %v430 = vmul.f32 %v398, %v398
      %v431 = vmul.f32 %v399, %v399
      %v432 = vmul.f32 %v400, %v400
      %v433 = vmul.f32 %v401, %v401
      %v434 = vmul.f32 %v402, %v402
      %v435 = vmul.f32 %v403, %v403
      %v436 = vmul.f32 %v404, %v404
      %v437 = vmul.f32 %v405, %v405
      %v438 = vmul.f32 %v406, %v406
      %v439 = vmul.f32 %v407, %v407
      %v440 = vmul.f32 %v408, %v408
      %v441 = vmul.f32 %v409, %v409
      %v442 = vmul.f32 %v410, %v410
      %v443 = vmul.f32 %v411, %v411
      %v444 = vmul.f32 %v412, %v412
      %v445 = vmul.f32 %v413, %v413
      %v446 = vmul.f32 %v414, %v414
      %v447 = vmul.f32 %v415, %v415
      %v448 = vmul.f32 %v416, %v416
      %v449 = vmul.f32 %v417, %v417
      %v450 = vmul.f32 %v418, %v418
      %v451 = vmul.f32 %v419, %v419
      %v452 = vmul.f32 %v420, %v420
      %v453 = vmul.f32 %v421, %v421
      %v454 = vmul.f32 %v422, %v422
      %v455 = vsel %vm261, %v423, 0.0
      %456 = vadd.xlane.f32.xlu0 %v455
      %v457 = vpop.xlane.xlu0 %456
      %v458 = vsel %vm261, %v424, 0.0
      %459 = vadd.xlane.f32.xlu0 %v458
      %v460 = vpop.xlane.xlu0 %459
      %v461 = vsel %vm261, %v425, 0.0
      %462 = vadd.xlane.f32.xlu0 %v461
      %v463 = vpop.xlane.xlu0 %462
      %v464 = vsel %vm261, %v426, 0.0
      %465 = vadd.xlane.f32.xlu0 %v464
      %v466 = vpop.xlane.xlu0 %465
      %v467 = vsel %vm261, %v427, 0.0
      %468 = vadd.xlane.f32.xlu0 %v467
      %v469 = vpop.xlane.xlu0 %468
      %v470 = vsel %vm261, %v428, 0.0
      %471 = vadd.xlane.f32.xlu0 %v470
      %v472 = vpop.xlane.xlu0 %471
      %v473 = vsel %vm261, %v429, 0.0
      %474 = vadd.xlane.f32.xlu0 %v473
      %v475 = vpop.xlane.xlu0 %474
      %v476 = vsel %vm261, %v430, 0.0
      %477 = vadd.xlane.f32.xlu0 %v476
      %v478 = vpop.xlane.xlu0 %477
      %v479 = vsel %vm261, %v431, 0.0
      %480 = vadd.xlane.f32.xlu0 %v479
      %v481 = vpop.xlane.xlu0 %480
      %v482 = vsel %vm261, %v432, 0.0
      %483 = vadd.xlane.f32.xlu0 %v482
      %v484 = vpop.xlane.xlu0 %483
      %v485 = vsel %vm261, %v433, 0.0
      %486 = vadd.xlane.f32.xlu0 %v485
      %v487 = vpop.xlane.xlu0 %486
      %v488 = vsel %vm261, %v434, 0.0
      %489 = vadd.xlane.f32.xlu0 %v488
      %v490 = vpop.xlane.xlu0 %489
      %v491 = vsel %vm261, %v435, 0.0
      %492 = vadd.xlane.f32.xlu0 %v491
      %v493 = vpop.xlane.xlu0 %492
      %v494 = vsel %vm261, %v436, 0.0
      %495 = vadd.xlane.f32.xlu0 %v494
      %v496 = vpop.xlane.xlu0 %495
      %v497 = vsel %vm261, %v437, 0.0
      %498 = vadd.xlane.f32.xlu0 %v497
      %v499 = vpop.xlane.xlu0 %498
      %v500 = vsel %vm261, %v438, 0.0
      %501 = vadd.xlane.f32.xlu0 %v500
      %v502 = vpop.xlane.xlu0 %501
      %v503 = vsel %vm261, %v439, 0.0
      %504 = vadd.xlane.f32.xlu0 %v503
      %v505 = vpop.xlane.xlu0 %504
      %v506 = vsel %vm261, %v440, 0.0
      %507 = vadd.xlane.f32.xlu0 %v506
      %v508 = vpop.xlane.xlu0 %507
      %v509 = vsel %vm261, %v441, 0.0
      %510 = vadd.xlane.f32.xlu0 %v509
      %v511 = vpop.xlane.xlu0 %510
      %v512 = vsel %vm261, %v442, 0.0
      %513 = vadd.xlane.f32.xlu0 %v512
      %v514 = vpop.xlane.xlu0 %513
      %v515 = vsel %vm261, %v443, 0.0
      %516 = vadd.xlane.f32.xlu0 %v515
      %v517 = vpop.xlane.xlu0 %516
      %v518 = vsel %vm261, %v444, 0.0
      %519 = vadd.xlane.f32.xlu0 %v518
      %v520 = vpop.xlane.xlu0 %519
      %v521 = vsel %vm261, %v445, 0.0
      %522 = vadd.xlane.f32.xlu0 %v521
      %v523 = vpop.xlane.xlu0 %522
      %v524 = vsel %vm261, %v446, 0.0
      %525 = vadd.xlane.f32.xlu0 %v524
      %v526 = vpop.xlane.xlu0 %525
      %v527 = vsel %vm261, %v447, 0.0
      %528 = vadd.xlane.f32.xlu0 %v527
      %v529 = vpop.xlane.xlu0 %528
      %v530 = vsel %vm261, %v448, 0.0
      %531 = vadd.xlane.f32.xlu0 %v530
      %v532 = vpop.xlane.xlu0 %531
      %v533 = vsel %vm261, %v449, 0.0
      %534 = vadd.xlane.f32.xlu0 %v533
      %v535 = vpop.xlane.xlu0 %534
      %v536 = vsel %vm261, %v450, 0.0
      %537 = vadd.xlane.f32.xlu0 %v536
      %v538 = vpop.xlane.xlu0 %537
      %v539 = vsel %vm261, %v451, 0.0
      %540 = vadd.xlane.f32.xlu0 %v539
      %v541 = vpop.xlane.xlu0 %540
      %v542 = vsel %vm261, %v452, 0.0
      %543 = vadd.xlane.f32.xlu0 %v542
      %v544 = vpop.xlane.xlu0 %543
      %v545 = vsel %vm261, %v453, 0.0
      %546 = vadd.xlane.f32.xlu0 %v545
      %v547 = vpop.xlane.xlu0 %546
      %v548 = vsel %vm261, %v454, 0.0
      %549 = vadd.xlane.f32.xlu0 %v548
      %v550 = vpop.xlane.xlu0 %549
      %v551 = vmul.f32 %v457, %v358
      %v552 = vmul.f32 %v460, %v358
      %v553 = vmul.f32 %v463, %v358
      %v554 = vmul.f32 %v466, %v358
      %v555 = vmul.f32 %v469, %v358
      %v556 = vmul.f32 %v472, %v358
      %v557 = vmul.f32 %v475, %v358
      %v558 = vmul.f32 %v478, %v358
      %v559 = vmul.f32 %v481, %v358
      %v560 = vmul.f32 %v484, %v358
      %v561 = vmul.f32 %v487, %v358
      %v562 = vmul.f32 %v490, %v358
      %v563 = vmul.f32 %v493, %v358
      %v564 = vmul.f32 %v496, %v358
      %v565 = vmul.f32 %v499, %v358
      %v566 = vmul.f32 %v502, %v358
      %v567 = vmul.f32 %v505, %v358
      %v568 = vmul.f32 %v508, %v358
      %v569 = vmul.f32 %v511, %v358
      %v570 = vmul.f32 %v514, %v358
      %v571 = vmul.f32 %v517, %v358
      %v572 = vmul.f32 %v520, %v358
      %v573 = vmul.f32 %v523, %v358
      %v574 = vmul.f32 %v526, %v358
      %v575 = vmul.f32 %v529, %v358
      %v576 = vmul.f32 %v532, %v358
      %v577 = vmul.f32 %v535, %v358
      %v578 = vmul.f32 %v538, %v358
      %v579 = vmul.f32 %v541, %v358
      %v580 = vmul.f32 %v544, %v358
      %v581 = vmul.f32 %v547, %v358
      %v582 = vmul.f32 %v550, %v358
      %v583 = vadd.f32 %v551, 1e-06
      %v584 = vadd.f32 %v552, 1e-06
      %v585 = vadd.f32 %v553, 1e-06
      %v586 = vadd.f32 %v554, 1e-06
      %v587 = vadd.f32 %v555, 1e-06
      %v588 = vadd.f32 %v556, 1e-06
      %v589 = vadd.f32 %v557, 1e-06
      %v590 = vadd.f32 %v558, 1e-06
      %v591 = vadd.f32 %v559, 1e-06
      %v592 = vadd.f32 %v560, 1e-06
      %v593 = vadd.f32 %v561, 1e-06
      %v594 = vadd.f32 %v562, 1e-06
      %v595 = vadd.f32 %v563, 1e-06
      %v596 = vadd.f32 %v564, 1e-06
      %v597 = vadd.f32 %v565, 1e-06
      %v598 = vadd.f32 %v566, 1e-06
      %v599 = vadd.f32 %v567, 1e-06
      %v600 = vadd.f32 %v568, 1e-06
      %v601 = vadd.f32 %v569, 1e-06
      %v602 = vadd.f32 %v570, 1e-06
      %v603 = vadd.f32 %v571, 1e-06
      %v604 = vadd.f32 %v572, 1e-06
      %v605 = vadd.f32 %v573, 1e-06
      %v606 = vadd.f32 %v574, 1e-06
      %v607 = vadd.f32 %v575, 1e-06
      %v608 = vadd.f32 %v576, 1e-06
      %v609 = vadd.f32 %v577, 1e-06
      %v610 = vadd.f32 %v578, 1e-06
      %v611 = vadd.f32 %v579, 1e-06
      %v612 = vadd.f32 %v580, 1e-06
      %v613 = vadd.f32 %v581, 1e-06
      %v614 = vadd.f32 %v582, 1e-06
      %v615 = vrsqrt.pop %v583
      %v616 = vrsqrt.pop %v584
      %v617 = vrsqrt.pop %v585
      %v618 = vrsqrt.pop %v586
      %v619 = vrsqrt.pop %v587
      %v620 = vrsqrt.pop %v588
      %v621 = vrsqrt.pop %v589
      %v622 = vrsqrt.pop %v590
      %v623 = vrsqrt.pop %v591
      %v624 = vrsqrt.pop %v592
      %v625 = vrsqrt.pop %v593
      %v626 = vrsqrt.pop %v594
      %v627 = vrsqrt.pop %v595
      %v628 = vrsqrt.pop %v596
      %v629 = vrsqrt.pop %v597
      %v630 = vrsqrt.pop %v598
      %v631 = vrsqrt.pop %v599
      %v632 = vrsqrt.pop %v600
      %v633 = vrsqrt.pop %v601
      %v634 = vrsqrt.pop %v602
      %v635 = vrsqrt.pop %v603
      %v636 = vrsqrt.pop %v604
      %v637 = vrsqrt.pop %v605
      %v638 = vrsqrt.pop %v606
      %v639 = vrsqrt.pop %v607
      %v640 = vrsqrt.pop %v608
      %v641 = vrsqrt.pop %v609
      %v642 = vrsqrt.pop %v610
      %v643 = vrsqrt.pop %v611
      %v644 = vrsqrt.pop %v612
      %v645 = vrsqrt.pop %v613
      %v646 = vrsqrt.pop %v614
      %v647 = vmul.f32 %v391, %v615
      %v648 = vmul.f32 %v392, %v616
      %v649 = vmul.f32 %v393, %v617
      %v650 = vmul.f32 %v394, %v618
      %v651 = vmul.f32 %v395, %v619
      %v652 = vmul.f32 %v396, %v620
      %v653 = vmul.f32 %v397, %v621
      %v654 = vmul.f32 %v398, %v622
      %v655 = vmul.f32 %v399, %v623
      %v656 = vmul.f32 %v400, %v624
      %v657 = vmul.f32 %v401, %v625
      %v658 = vmul.f32 %v402, %v626
      %v659 = vmul.f32 %v403, %v627
      %v660 = vmul.f32 %v404, %v628
      %v661 = vmul.f32 %v405, %v629
      %v662 = vmul.f32 %v406, %v630
      %v663 = vmul.f32 %v407, %v631
      %v664 = vmul.f32 %v408, %v632
      %v665 = vmul.f32 %v409, %v633
      %v666 = vmul.f32 %v410, %v634
      %v667 = vmul.f32 %v411, %v635
      %v668 = vmul.f32 %v412, %v636
      %v669 = vmul.f32 %v413, %v637
      %v670 = vmul.f32 %v414, %v638
      %v671 = vmul.f32 %v415, %v639
      %v672 = vmul.f32 %v416, %v640
      %v673 = vmul.f32 %v417, %v641
      %v674 = vmul.f32 %v418, %v642
      %v675 = vmul.f32 %v419, %v643
      %v676 = vmul.f32 %v420, %v644
      %v677 = vmul.f32 %v421, %v645
      %v678 = vmul.f32 %v422, %v646
      %v679 = vld [vmem:[%s1] sm:$0x1]
      %v681 = vlaneseq
      %v682 = vshrl.u32 %v681, 7
      %v683 = vsub.s32 0, %v682
      %v684 = vrot.slane %v679, %v683
      %v686 = vmul.f32 %v647, %v684
      %v687 = vmul.f32 %v648, %v684
      %v688 = vmul.f32 %v649, %v684
      %v689 = vmul.f32 %v650, %v684
      %v690 = vmul.f32 %v651, %v684
      %v691 = vmul.f32 %v652, %v684
      %v692 = vmul.f32 %v653, %v684
      %v693 = vmul.f32 %v654, %v684
      %v694 = vmul.f32 %v655, %v684
      %v695 = vmul.f32 %v656, %v684
      %v696 = vmul.f32 %v657, %v684
      %v697 = vmul.f32 %v658, %v684
      %v698 = vmul.f32 %v659, %v684
      %v699 = vmul.f32 %v660, %v684
      %v700 = vmul.f32 %v661, %v684
      %v701 = vmul.f32 %v662, %v684
      %v702 = vmul.f32 %v663, %v684
      %v703 = vmul.f32 %v664, %v684
      %v704 = vmul.f32 %v665, %v684
      %v705 = vmul.f32 %v666, %v684
      %v706 = vmul.f32 %v667, %v684
      %v707 = vmul.f32 %v668, %v684
      %v708 = vmul.f32 %v669, %v684
      %v709 = vmul.f32 %v670, %v684
      %v710 = vmul.f32 %v671, %v684
      %v711 = vmul.f32 %v672, %v684
      %v712 = vmul.f32 %v673, %v684
      %v713 = vmul.f32 %v674, %v684
      %v714 = vmul.f32 %v675, %v684
      %v715 = vmul.f32 %v676, %v684
      %v716 = vmul.f32 %v677, %v684
      %v717 = vmul.f32 %v678, %v684
      %v718 = vld [vmem:[%s2] sm:$0x1]
      %v720 = vlaneseq
      %v721 = vshrl.u32 %v720, 7
      %v722 = vsub.s32 0, %v721
      %v723 = vrot.slane %v718, %v722
      %v725 = vadd.f32 %v686, %v723
      %v726 = vadd.f32 %v687, %v723
      %v727 = vadd.f32 %v688, %v723
      %v728 = vadd.f32 %v689, %v723
      %v729 = vadd.f32 %v690, %v723
      %v730 = vadd.f32 %v691, %v723
      %v731 = vadd.f32 %v692, %v723
      %v732 = vadd.f32 %v693, %v723
      %v733 = vadd.f32 %v694, %v723
      %v734 = vadd.f32 %v695, %v723
      %v735 = vadd.f32 %v696, %v723
      %v736 = vadd.f32 %v697, %v723
      %v737 = vadd.f32 %v698, %v723
      %v738 = vadd.f32 %v699, %v723
      %v739 = vadd.f32 %v700, %v723
      %v740 = vadd.f32 %v701, %v723
      %v741 = vadd.f32 %v702, %v723
      %v742 = vadd.f32 %v703, %v723
      %v743 = vadd.f32 %v704, %v723
      %v744 = vadd.f32 %v705, %v723
      %v745 = vadd.f32 %v706, %v723
      %v746 = vadd.f32 %v707, %v723
      %v747 = vadd.f32 %v708, %v723
      %v748 = vadd.f32 %v709, %v723
      %v749 = vadd.f32 %v710, %v723
      %v750 = vadd.f32 %v711, %v723
      %v751 = vadd.f32 %v712, %v723
      %v752 = vadd.f32 %v713, %v723
      %v753 = vadd.f32 %v714, %v723
      %v754 = vadd.f32 %v715, %v723
      %v755 = vadd.f32 %v716, %v723
      %v756 = vadd.f32 %v717, %v723
      %v757 = vpack.c.bf16 %v726, %v725
      %v758 = vpack.c.bf16 %v728, %v727
      %v759 = vpack.c.bf16 %v730, %v729
      %v760 = vpack.c.bf16 %v732, %v731
      %v761 = vpack.c.bf16 %v734, %v733
      %v762 = vpack.c.bf16 %v736, %v735
      %v763 = vpack.c.bf16 %v738, %v737
      %v764 = vpack.c.bf16 %v740, %v739
      %v765 = vpack.c.bf16 %v742, %v741
      %v766 = vpack.c.bf16 %v744, %v743
      %v767 = vpack.c.bf16 %v746, %v745
      %v768 = vpack.c.bf16 %v748, %v747
      %v769 = vpack.c.bf16 %v750, %v749
      %v770 = vpack.c.bf16 %v752, %v751
      %v771 = vpack.c.bf16 %v754, %v753
      %v772 = vpack.c.bf16 %v756, %v755
      %v773 = vld [vmem:[%s3] sm:$0xf]
      %v774 = vld [vmem:[%s3 + $0x4] sm:$0xf]
      %v775 = vld [vmem:[%s3 + $0x8] sm:$0xf]
      %v776 = vld [vmem:[%s3 + $0xc] sm:$0xf]
      %v777 = vld [vmem:[%s4] sm:$0x1]
      %v779 = vlaneseq
      %v780 = vshrl.u32 %v779, 7
      %v781 = vsub.s32 0, %v780
      %v782 = vrot.slane %v777, %v781
      %v788 = vunpack.c.l.b16 %v773
      %v789 = vunpack.c.l.b16 %v774
      %v790 = vunpack.c.l.b16 %v775
      %v791 = vunpack.c.l.b16 %v776
      %v792 = vpack.c.b16 %v789, %v788
      %v793 = vpack.c.b16 %v791, %v790
      %v797 = vsel %vm261, %v757, 0
      %v800 = vsel %vm261, %v758, 0
      %v803 = vsel %vm261, %v759, 0
      %v806 = vsel %vm261, %v760, 0
      %v809 = vsel %vm261, %v761, 0
      %v812 = vsel %vm261, %v762, 0
      %v815 = vsel %vm261, %v763, 0
      %v818 = vsel %vm261, %v764, 0
      %v821 = vsel %vm261, %v765, 0
      %v824 = vsel %vm261, %v766, 0
      %v827 = vsel %vm261, %v767, 0
      %v830 = vsel %vm261, %v768, 0
      %v833 = vsel %vm261, %v769, 0
      %v836 = vsel %vm261, %v770, 0
      %v839 = vsel %vm261, %v771, 0
      %v842 = vsel %vm261, %v772, 0
      %844 = vmatprep.subr.bf16.mxu0 0
      %845 = vmatpush1.bf16.msra.mxu0 0
      %846 = vmatprep.subr.bf16.mxu0 0
      %847 = vmatpush1.bf16.msra.mxu0 0
      %848 = vmatprep.subr.bf16.mxu0 0
      %849 = vmatpush1.bf16.msra.mxu0 0
      %850 = vmatprep.subr.bf16.mxu0 0
      %851 = vmatpush1.bf16.msra.mxu0 0
      %852 = vmatprep.subr.bf16.mxu0 0
      %853 = vmatpush1.bf16.msra.mxu0 0
      %854 = vmatprep.subr.bf16.mxu0 0
      %855 = vmatpush1.bf16.msra.mxu0 0
      %856 = vmatprep.subr.bf16.mxu0 0
      %857 = vmatpush1.bf16.msra.mxu0 %v793
      %858 = vmatprep.subr.bf16.mxu0 0
      %859 = vmatpush1.bf16.msra.mxu0 %v792
      %860 = vmatprep.subr.bf16.mxu0 0
      %861 = vmatpush2.bf16.msra.mxu0 0
      %862 = vmatprep.subr.bf16.mxu0 0
      %863 = vmatpush2.bf16.msra.mxu0 0
      %864 = vmatprep.subr.bf16.mxu0 0
      %865 = vmatpush2.bf16.msra.mxu0 0
      %866 = vmatprep.subr.bf16.mxu0 0
      %867 = vmatpush2.bf16.msra.mxu0 0
      %868 = vmatprep.subr.bf16.mxu0 0
      %869 = vmatpush2.bf16.msra.mxu0 0
      %870 = vmatprep.subr.bf16.mxu0 0
      %871 = vmatpush2.bf16.msra.mxu0 0
      %872 = vmatprep.subr.bf16.mxu0 0
      %873 = vmatpush2.bf16.msra.mxu0 0
      %874 = vmatprep.subr.bf16.mxu0 0
      %875 = vmatpush2.bf16.msra.mxu0 0
      %876 = vmatprep.mubr.bf16.mxu0 0
      %877 = vmatmul.mubr.bf16.gmra.mxu0 %v797
      %v878 = vpop.f32.mrf.mxu0
      %v879 = vadd.f32 %v782, %v878
      %v880 = vpop.f32.mrf.mxu0
      %v881 = vpop.f32.mrf.mxu0
      %v882 = vadd.f32 %v782, %v881
      %v883 = vpop.f32.mrf.mxu0
      %884 = vmatprep.mubr.bf16.mxu0 0
      %885 = vmatmul.mubr.bf16.gmra.mxu0 %v800
      %v886 = vpop.f32.mrf.mxu0
      %v887 = vadd.f32 %v782, %v886
      %v888 = vpop.f32.mrf.mxu0
      %v889 = vpop.f32.mrf.mxu0
      %v890 = vadd.f32 %v782, %v889
      %v891 = vpop.f32.mrf.mxu0
      %892 = vmatprep.mubr.bf16.mxu0 0
      %893 = vmatmul.mubr.bf16.gmra.mxu0 %v803
      %v894 = vpop.f32.mrf.mxu0
      %v895 = vadd.f32 %v782, %v894
      %v896 = vpop.f32.mrf.mxu0
      %v897 = vpop.f32.mrf.mxu0
      %v898 = vadd.f32 %v782, %v897
      %v899 = vpop.f32.mrf.mxu0
      %900 = vmatprep.mubr.bf16.mxu0 0
      %901 = vmatmul.mubr.bf16.gmra.mxu0 %v806
      %v902 = vpop.f32.mrf.mxu0
      %v903 = vadd.f32 %v782, %v902
      %v904 = vpop.f32.mrf.mxu0
      %v905 = vpop.f32.mrf.mxu0
      %v906 = vadd.f32 %v782, %v905
      %v907 = vpop.f32.mrf.mxu0
      %908 = vmatprep.mubr.bf16.mxu0 0
      %909 = vmatmul.mubr.bf16.gmra.mxu0 %v809
      %v910 = vpop.f32.mrf.mxu0
      %v911 = vadd.f32 %v782, %v910
      %v912 = vpop.f32.mrf.mxu0
      %v913 = vpop.f32.mrf.mxu0
      %v914 = vadd.f32 %v782, %v913
      %v915 = vpop.f32.mrf.mxu0
      %916 = vmatprep.mubr.bf16.mxu0 0
      %917 = vmatmul.mubr.bf16.gmra.mxu0 %v812
      %v918 = vpop.f32.mrf.mxu0
      %v919 = vadd.f32 %v782, %v918
      %v920 = vpop.f32.mrf.mxu0
      %v921 = vpop.f32.mrf.mxu0
      %v922 = vadd.f32 %v782, %v921
      %v923 = vpop.f32.mrf.mxu0
      %924 = vmatprep.mubr.bf16.mxu0 0
      %925 = vmatmul.mubr.bf16.gmra.mxu0 %v815
      %v926 = vpop.f32.mrf.mxu0
      %v927 = vadd.f32 %v782, %v926
      %v928 = vpop.f32.mrf.mxu0
      %v929 = vpop.f32.mrf.mxu0
      %v930 = vadd.f32 %v782, %v929
      %v931 = vpop.f32.mrf.mxu0
      %932 = vmatprep.mubr.bf16.mxu0 0
      %933 = vmatmul.mubr.bf16.gmra.mxu0 %v818
      %v934 = vpop.f32.mrf.mxu0
      %v935 = vadd.f32 %v782, %v934
      %v936 = vpop.f32.mrf.mxu0
      %v937 = vpop.f32.mrf.mxu0
      %v938 = vadd.f32 %v782, %v937
      %v939 = vpop.f32.mrf.mxu0
      %940 = vmatprep.mubr.bf16.mxu0 0
      %941 = vmatmul.mubr.bf16.gmra.mxu0 %v821
      %v942 = vpop.f32.mrf.mxu0
      %v943 = vadd.f32 %v782, %v942
      %v944 = vpop.f32.mrf.mxu0
      %v945 = vpop.f32.mrf.mxu0
      %v946 = vadd.f32 %v782, %v945
      %v947 = vpop.f32.mrf.mxu0
      %948 = vmatprep.mubr.bf16.mxu0 0
      %949 = vmatmul.mubr.bf16.gmra.mxu0 %v824
      %v950 = vpop.f32.mrf.mxu0
      %v951 = vadd.f32 %v782, %v950
      %v952 = vpop.f32.mrf.mxu0
      %v953 = vpop.f32.mrf.mxu0
      %v954 = vadd.f32 %v782, %v953
      %v955 = vpop.f32.mrf.mxu0
      %956 = vmatprep.mubr.bf16.mxu0 0
      %957 = vmatmul.mubr.bf16.gmra.mxu0 %v827
      %v958 = vpop.f32.mrf.mxu0
      %v959 = vadd.f32 %v782, %v958
      %v960 = vpop.f32.mrf.mxu0
      %v961 = vpop.f32.mrf.mxu0
      %v962 = vadd.f32 %v782, %v961
      %v963 = vpop.f32.mrf.mxu0
      %964 = vmatprep.mubr.bf16.mxu0 0
      %965 = vmatmul.mubr.bf16.gmra.mxu0 %v830
      %v966 = vpop.f32.mrf.mxu0
      %v967 = vadd.f32 %v782, %v966
      %v968 = vpop.f32.mrf.mxu0
      %v969 = vpop.f32.mrf.mxu0
      %v970 = vadd.f32 %v782, %v969
      %v971 = vpop.f32.mrf.mxu0
      %972 = vmatprep.mubr.bf16.mxu0 0
      %973 = vmatmul.mubr.bf16.gmra.mxu0 %v833
      %v974 = vpop.f32.mrf.mxu0
      %v975 = vadd.f32 %v782, %v974
      %v976 = vpop.f32.mrf.mxu0
      %v977 = vpop.f32.mrf.mxu0
      %v978 = vadd.f32 %v782, %v977
      %v979 = vpop.f32.mrf.mxu0
      %980 = vmatprep.mubr.bf16.mxu0 0
      %981 = vmatmul.mubr.bf16.gmra.mxu0 %v836
      %v982 = vpop.f32.mrf.mxu0
      %v983 = vadd.f32 %v782, %v982
      %v984 = vpop.f32.mrf.mxu0
      %v985 = vpop.f32.mrf.mxu0
      %v986 = vadd.f32 %v782, %v985
      %v987 = vpop.f32.mrf.mxu0
      %988 = vmatprep.mubr.bf16.mxu0 0
      %989 = vmatmul.mubr.bf16.gmra.mxu0 %v839
      %v990 = vpop.f32.mrf.mxu0
      %v991 = vadd.f32 %v782, %v990
      %v992 = vpop.f32.mrf.mxu0
      %v993 = vpop.f32.mrf.mxu0
      %v994 = vadd.f32 %v782, %v993
      %v995 = vpop.f32.mrf.mxu0
      %996 = vmatprep.mubr.bf16.mxu0 0
      %997 = vmatmul.mubr.bf16.gmra.mxu0 %v842
      %v998 = vpop.f32.mrf.mxu0
      %v999 = vadd.f32 %v782, %v998
      %v1000 = vpop.f32.mrf.mxu0
      %v1001 = vpop.f32.mrf.mxu0
      %v1002 = vadd.f32 %v782, %v1001
      %v1003 = vpop.f32.mrf.mxu0
      %1004 = vdwg.mxu0
      %v1005 = vpack.c.bf16 %v882, %v879
      %v1006 = vpack.c.bf16 %v890, %v887
      %v1007 = vpack.c.bf16 %v898, %v895
      %v1008 = vpack.c.bf16 %v906, %v903
      %v1009 = vpack.c.bf16 %v914, %v911
      %v1010 = vpack.c.bf16 %v922, %v919
      %v1011 = vpack.c.bf16 %v930, %v927
      %v1012 = vpack.c.bf16 %v938, %v935
      %v1013 = vpack.c.bf16 %v946, %v943
      %v1014 = vpack.c.bf16 %v954, %v951
      %v1015 = vpack.c.bf16 %v962, %v959
      %v1016 = vpack.c.bf16 %v970, %v967
      %v1017 = vpack.c.bf16 %v978, %v975
      %v1018 = vpack.c.bf16 %v986, %v983
      %v1019 = vpack.c.bf16 %v994, %v991
      %v1020 = vpack.c.bf16 %v1002, %v999
      %v1037 = vunpack.c.l.b16 %v1005
      %v1038 = vunpack.c.h.b16 %v1005
      %v1039 = vunpack.c.l.b16 %v1006
      %v1040 = vunpack.c.h.b16 %v1006
      %v1041 = vunpack.c.l.b16 %v1007
      %v1042 = vunpack.c.h.b16 %v1007
      %v1043 = vunpack.c.l.b16 %v1008
      %v1044 = vunpack.c.h.b16 %v1008
      %v1045 = vunpack.c.l.b16 %v1009
      %v1046 = vunpack.c.h.b16 %v1009
      %v1047 = vunpack.c.l.b16 %v1010
      %v1048 = vunpack.c.h.b16 %v1010
      %v1049 = vunpack.c.l.b16 %v1011
      %v1050 = vunpack.c.h.b16 %v1011
      %v1051 = vunpack.c.l.b16 %v1012
      %v1052 = vunpack.c.h.b16 %v1012
      %v1053 = vunpack.c.l.b16 %v1013
      %v1054 = vunpack.c.h.b16 %v1013
      %v1055 = vunpack.c.l.b16 %v1014
      %v1056 = vunpack.c.h.b16 %v1014
      %v1057 = vunpack.c.l.b16 %v1015
      %v1058 = vunpack.c.h.b16 %v1015
      %v1059 = vunpack.c.l.b16 %v1016
      %v1060 = vunpack.c.h.b16 %v1016
      %v1061 = vunpack.c.l.b16 %v1017
      %v1062 = vunpack.c.h.b16 %v1017
      %v1063 = vunpack.c.l.b16 %v1018
      %v1064 = vunpack.c.h.b16 %v1018
      %v1065 = vunpack.c.l.b16 %v1019
      %v1066 = vunpack.c.h.b16 %v1019
      %v1067 = vunpack.c.l.b16 %v1020
      %v1068 = vunpack.c.h.b16 %v1020
      %v1069 = vpack.c.b16 %v1037, %v1037
      %v1070 = vpack.c.b16 %v1038, %v1038
      %v1071 = vpack.c.b16 %v1039, %v1039
      %v1072 = vpack.c.b16 %v1040, %v1040
      %v1073 = vpack.c.b16 %v1041, %v1041
      %v1074 = vpack.c.b16 %v1042, %v1042
      %v1075 = vpack.c.b16 %v1043, %v1043
      %v1076 = vpack.c.b16 %v1044, %v1044
      %v1077 = vpack.c.b16 %v1045, %v1045
      %v1078 = vpack.c.b16 %v1046, %v1046
      %v1079 = vpack.c.b16 %v1047, %v1047
      %v1080 = vpack.c.b16 %v1048, %v1048
      %v1081 = vpack.c.b16 %v1049, %v1049
      %v1082 = vpack.c.b16 %v1050, %v1050
      %v1083 = vpack.c.b16 %v1051, %v1051
      %v1084 = vpack.c.b16 %v1052, %v1052
      %v1085 = vpack.c.b16 %v1053, %v1053
      %v1086 = vpack.c.b16 %v1054, %v1054
      %v1087 = vpack.c.b16 %v1055, %v1055
      %v1088 = vpack.c.b16 %v1056, %v1056
      %v1089 = vpack.c.b16 %v1057, %v1057
      %v1090 = vpack.c.b16 %v1058, %v1058
      %v1091 = vpack.c.b16 %v1059, %v1059
      %v1092 = vpack.c.b16 %v1060, %v1060
      %v1093 = vpack.c.b16 %v1061, %v1061
      %v1094 = vpack.c.b16 %v1062, %v1062
      %v1095 = vpack.c.b16 %v1063, %v1063
      %v1096 = vpack.c.b16 %v1064, %v1064
      %v1097 = vpack.c.b16 %v1065, %v1065
      %v1098 = vpack.c.b16 %v1066, %v1066
      %v1099 = vpack.c.b16 %v1067, %v1067
      %v1100 = vpack.c.b16 %v1068, %v1068
      %vm1133 = vcmask 781312
      %1134 = vst.msk [vmem:[%s226] sm:$0xf] %vm1133, %v1069
      %1135 = vst.msk [vmem:[%s226 + $0x4] sm:$0xf] %vm1133, %v1070
      %1136 = vst.msk [vmem:[%s226 + $0x8] sm:$0xf] %vm1133, %v1071
      %1137 = vst.msk [vmem:[%s226 + $0xc] sm:$0xf] %vm1133, %v1072
      %1138 = vst.msk [vmem:[%s226 + $0x10] sm:$0xf] %vm1133, %v1073
      %1139 = vst.msk [vmem:[%s226 + $0x14] sm:$0xf] %vm1133, %v1074
      %1140 = vst.msk [vmem:[%s226 + $0x18] sm:$0xf] %vm1133, %v1075
      %1141 = vst.msk [vmem:[%s226 + $0x1c] sm:$0xf] %vm1133, %v1076
      %1142 = vst.msk [vmem:[%s226 + $0x20] sm:$0xf] %vm1133, %v1077
      %1143 = vst.msk [vmem:[%s226 + $0x24] sm:$0xf] %vm1133, %v1078
      %1144 = vst.msk [vmem:[%s226 + $0x28] sm:$0xf] %vm1133, %v1079
      %1145 = vst.msk [vmem:[%s226 + $0x2c] sm:$0xf] %vm1133, %v1080
      %1146 = vst.msk [vmem:[%s226 + $0x30] sm:$0xf] %vm1133, %v1081
      %1147 = vst.msk [vmem:[%s226 + $0x34] sm:$0xf] %vm1133, %v1082
      %1148 = vst.msk [vmem:[%s226 + $0x38] sm:$0xf] %vm1133, %v1083
      %1149 = vst.msk [vmem:[%s226 + $0x3c] sm:$0xf] %vm1133, %v1084
      %1150 = vst.msk [vmem:[%s226 + $0x40] sm:$0xf] %vm1133, %v1085
      %1151 = vst.msk [vmem:[%s226 + $0x44] sm:$0xf] %vm1133, %v1086
      %1152 = vst.msk [vmem:[%s226 + $0x48] sm:$0xf] %vm1133, %v1087
      %1153 = vst.msk [vmem:[%s226 + $0x4c] sm:$0xf] %vm1133, %v1088
      %1154 = vst.msk [vmem:[%s226 + $0x50] sm:$0xf] %vm1133, %v1089
      %1155 = vst.msk [vmem:[%s226 + $0x54] sm:$0xf] %vm1133, %v1090
      %1156 = vst.msk [vmem:[%s226 + $0x58] sm:$0xf] %vm1133, %v1091
      %1157 = vst.msk [vmem:[%s226 + $0x5c] sm:$0xf] %vm1133, %v1092
      %1158 = vst.msk [vmem:[%s226 + $0x60] sm:$0xf] %vm1133, %v1093
      %1159 = vst.msk [vmem:[%s226 + $0x64] sm:$0xf] %vm1133, %v1094
      %1160 = vst.msk [vmem:[%s226 + $0x68] sm:$0xf] %vm1133, %v1095
      %1161 = vst.msk [vmem:[%s226 + $0x6c] sm:$0xf] %vm1133, %v1096
      %1162 = vst.msk [vmem:[%s226 + $0x70] sm:$0xf] %vm1133, %v1097
      %1163 = vst.msk [vmem:[%s226 + $0x74] sm:$0xf] %vm1133, %v1098
      %1164 = vst.msk [vmem:[%s226 + $0x78] sm:$0xf] %vm1133, %v1099
      %1165 = vst.msk [vmem:[%s226 + $0x7c] sm:$0xf] %vm1133, %v1100
      %s1166 = smul.u32 32, %s16
      %p1167 = scmp.lt.s32.totalorder %s1166, 63
      %s1168 = scalar_select %p1167, %s1166, 63
      %s1169 = smul.addr %s1168, 4
      %s1170 = scalar_lea.vmem %s5, %s1169
      // Predicated region
      $region41: #{mtl_dinov2_forward.65} parent=39 // pred_check
        %p1171 = pneg %p144
      $region42: #{mtl_dinov2_forward.65} parent=39 // pred_check_branch
        %1173 = sbr.rel (%p1171) target = $region44
      $region43: #{mtl_dinov2_forward.65} parent=39 // pred_region
        %s1174 = smul.u32 32, %s16
      $region44: #{mtl_dinov2_forward.65} parent=39 // pred_fallthru
        _
    $region40: #{mtl_dinov2_forward.65} parent=5 // pred_fallthru
      _
    %p1175 = scmp.le.s32.totalorder 2, %s11
    // Predicated region
    $region45: #{mtl_dinov2_forward.65} parent=5 // pred_check
      %p1176 = pneg %p1175
    $region46: #{mtl_dinov2_forward.65} parent=5 // pred_check_branch
      %1178 = sbr.rel (%p1176) target = $region48
    $region47: #{mtl_dinov2_forward.65} parent=5 // pred_region
      %s1179 = ssub.s32 %s11, 2
      // Predicated region
      $region49: #{mtl_dinov2_forward.65} parent=47 // pred_check
        %p1180 = pneg %p150
      $region50: #{mtl_dinov2_forward.65} parent=47 // pred_check_branch
        %1182 = sbr.rel (%p1180) target = $region52
      $region51: #{mtl_dinov2_forward.65} parent=47 // pred_region
        %s1183 = smul.u32 32, %s17
        %p1184 = scmp.lt.s32.totalorder %s1183, 63
        %s1185 = scalar_select %p1184, %s1183, 63
        %s1186 = smul.addr %s1185, 4
        %s1187 = scalar_lea.vmem %s5, %s1186
      $region52: #{mtl_dinov2_forward.65} parent=47 // pred_fallthru
        _
    $region48: #{mtl_dinov2_forward.65} parent=5 // pred_fallthru
      _
  $region6: #{mtl_dinov2_forward.65} parent=0 // loop_footer
    %s15 = sadd.s32 1, %s11
  $region7: #{mtl_dinov2_forward.65} parent=0 // loop_footer_branch
    %10 = sbr.rel target = $region3
  $region8: #{mtl_dinov2_forward.65} parent=0 // loop_exit
    _

// kernel: mtl_dinov2_forward.67
$region0: #{mtl_dinov2_forward.67}
  #allocation0 [shape = 'u32[]', space=smem, size = 0x4, offset = 0x4, fixed_abs, tag = 'smem constant byte address 0x4 - core index']
  #allocation1 [shape = 'u32[144,128]{1,0:T(1,128)}', space=vmem, size = 0x12000, scoped, tag = 'internal scratch']
  %s0 = inlined_call_operand.vmem [shape: bf16[512,32], index: 0, kind: input, shape index: {}]
  %s1 = inlined_call_operand.vmem [shape: f32[512,32], index: 1, kind: input, shape index: {}]
  %s2 = inlined_call_operand.vmem [shape: bf16[32,32], index: 2, kind: input, shape index: {}]
  %s3 = inlined_call_operand.vmem [shape: f32[1,32], index: 3, kind: input, shape index: {}]
  %s4 = inlined_call_operand.vmem [shape: f32[1,32], index: 4, kind: input, shape index: {}]
  %s5 = inlined_call_operand.vmem [shape: f32[512,32], index: 5, kind: output, shape index: {}]
  %s6 = sld [smem:[#allocation0]]
  $region53: #{mtl_dinov2_forward.67} parent=0
    _
  %s8 = ssub.s32 1, %s6
  %s9 = scalar_select 0, %s8, %s6
  loop: start=0, step=1, limit=4
  $region2: #{mtl_dinov2_forward.67} parent=0 // loop_pre_header
    _
  $region3: #{mtl_dinov2_forward.67} parent=0 // loop_header
    %s11 = sphi 0, %s15
    %p12 = scmp.ge.s32.totalorder %s11, 4
    %s21 = sphi 0, %s23
    %s24 = sphi 0, %s21
    %s25 = sphi 0, %s24
    %s41 = sphi 0, %s25
    %s47 = sphi 0, %s49
    %s50 = sphi 0, %s47
    %s51 = sphi 0, %s50
    %s67 = sphi 0, %s51
    %s71 = sphi 0, %s71
    %s73 = sphi 0, %s71
    %s74 = sphi 0, %s73
    %s88 = sphi 0, %s74
    %s92 = sphi 0, %s92
    %s94 = sphi 0, %s92
    %s95 = sphi 0, %s94
    %s109 = sphi 0, %s95
    %s113 = sphi 0, %s113
    %s115 = sphi 0, %s113
    %s116 = sphi 0, %s115
    %s130 = sphi 0, %s116
    %s136 = sphi 0, %s138
    %s139 = sphi 0, %s136
    %s140 = sphi 0, %s139
    %s156 = sphi 0, %s140
  $region4: #{mtl_dinov2_forward.67} parent=0 // loop_header_branch
    %14 = sbr.rel (%p12) target = $region8
  $region5: #{mtl_dinov2_forward.67} parent=0 // loop_body
    %s16 = ssub.s32 %s11, 1
    %s17 = ssub.s32 %s11, 2
    %s18 = sadd.s32 %s11, 1
    %s19 = ssub.s32 %s11, %s18
    %p20 = scmp.eq.s32.totalorder %s19, 0
    %s22 = sadd.s32 %s21, 1
    %s23 = scalar_select %p20, %s21, %s22
    %p26 = pneg %p20
    %p27 = scmp.eq.s32.totalorder %s11, 1
    %p28 = por %p26, %p27
    %p29 = scmp.ne.s32.totalorder %s21, %s24
    %p30 = scmp.eq.s32.totalorder %s11, 0
    %p31 = por %p29, %p30
    %p32 = scmp.ne.s32.totalorder %s21, %s24
    %p33 = scmp.eq.s32.totalorder %s16, 1
    %p34 = por %p32, %p33
    %p35 = scmp.ne.s32.totalorder %s24, %s25
    %p36 = scmp.eq.s32.totalorder %s16, 0
    %p37 = por %p35, %p36
    %p38 = scmp.ne.s32.totalorder %s24, %s25
    %p39 = scmp.eq.s32.totalorder %s17, 1
    %p40 = por %p38, %p39
    %p42 = scmp.ne.s32.totalorder %s25, %s41
    %p43 = scmp.eq.s32.totalorder %s17, 0
    %p44 = por %p42, %p43
    %s45 = ssub.s32 %s11, %s18
    %p46 = scmp.eq.s32.totalorder %s45, 0
    %s48 = sadd.s32 %s47, 1
    %s49 = scalar_select %p46, %s47, %s48
    %p52 = pneg %p46
    %p53 = scmp.eq.s32.totalorder %s11, 1
    %p54 = por %p52, %p53
    %p55 = scmp.ne.s32.totalorder %s47, %s50
    %p56 = scmp.eq.s32.totalorder %s11, 0
    %p57 = por %p55, %p56
    %p58 = scmp.ne.s32.totalorder %s47, %s50
    %p59 = scmp.eq.s32.totalorder %s16, 1
    %p60 = por %p58, %p59
    %p61 = scmp.ne.s32.totalorder %s50, %s51
    %p62 = scmp.eq.s32.totalorder %s16, 0
    %p63 = por %p61, %p62
    %p64 = scmp.ne.s32.totalorder %s50, %s51
    %p65 = scmp.eq.s32.totalorder %s17, 1
    %p66 = por %p64, %p65
    %p68 = scmp.ne.s32.totalorder %s51, %s67
    %p69 = scmp.eq.s32.totalorder %s17, 0
    %p70 = por %p68, %p69
    %s72 = sadd.s32 %s71, 1
    %p75 = scmp.eq.s32.totalorder %s11, 1
    %p76 = scmp.ne.s32.totalorder %s71, %s73
    %p77 = scmp.eq.s32.totalorder %s11, 0
    %p78 = por %p76, %p77
    %p79 = scmp.ne.s32.totalorder %s71, %s73
    %p80 = scmp.eq.s32.totalorder %s16, 1
    %p81 = por %p79, %p80
    %p82 = scmp.ne.s32.totalorder %s73, %s74
    %p83 = scmp.eq.s32.totalorder %s16, 0
    %p84 = por %p82, %p83
    %p85 = scmp.ne.s32.totalorder %s73, %s74
    %p86 = scmp.eq.s32.totalorder %s17, 1
    %p87 = por %p85, %p86
    %p89 = scmp.ne.s32.totalorder %s74, %s88
    %p90 = scmp.eq.s32.totalorder %s17, 0
    %p91 = por %p89, %p90
    %s93 = sadd.s32 %s92, 1
    %p96 = scmp.eq.s32.totalorder %s11, 1
    %p97 = scmp.ne.s32.totalorder %s92, %s94
    %p98 = scmp.eq.s32.totalorder %s11, 0
    %p99 = por %p97, %p98
    %p100 = scmp.ne.s32.totalorder %s92, %s94
    %p101 = scmp.eq.s32.totalorder %s16, 1
    %p102 = por %p100, %p101
    %p103 = scmp.ne.s32.totalorder %s94, %s95
    %p104 = scmp.eq.s32.totalorder %s16, 0
    %p105 = por %p103, %p104
    %p106 = scmp.ne.s32.totalorder %s94, %s95
    %p107 = scmp.eq.s32.totalorder %s17, 1
    %p108 = por %p106, %p107
    %p110 = scmp.ne.s32.totalorder %s95, %s109
    %p111 = scmp.eq.s32.totalorder %s17, 0
    %p112 = por %p110, %p111
    %s114 = sadd.s32 %s113, 1
    %p117 = scmp.eq.s32.totalorder %s11, 1
    %p118 = scmp.ne.s32.totalorder %s113, %s115
    %p119 = scmp.eq.s32.totalorder %s11, 0
    %p120 = por %p118, %p119
    %p121 = scmp.ne.s32.totalorder %s113, %s115
    %p122 = scmp.eq.s32.totalorder %s16, 1
    %p123 = por %p121, %p122
    %p124 = scmp.ne.s32.totalorder %s115, %s116
    %p125 = scmp.eq.s32.totalorder %s16, 0
    %p126 = por %p124, %p125
    %p127 = scmp.ne.s32.totalorder %s115, %s116
    %p128 = scmp.eq.s32.totalorder %s17, 1
    %p129 = por %p127, %p128
    %p131 = scmp.ne.s32.totalorder %s116, %s130
    %p132 = scmp.eq.s32.totalorder %s17, 0
    %p133 = por %p131, %p132
    %s134 = ssub.s32 %s11, %s18
    %p135 = scmp.eq.s32.totalorder %s134, 0
    %s137 = sadd.s32 %s136, 1
    %s138 = scalar_select %p135, %s136, %s137
    %p141 = pneg %p135
    %p142 = scmp.eq.s32.totalorder %s11, 1
    %p143 = por %p141, %p142
    %p144 = scmp.ne.s32.totalorder %s136, %s139
    %p145 = scmp.eq.s32.totalorder %s11, 0
    %p146 = por %p144, %p145
    %p147 = scmp.ne.s32.totalorder %s136, %s139
    %p148 = scmp.eq.s32.totalorder %s16, 1
    %p149 = por %p147, %p148
    %p150 = scmp.ne.s32.totalorder %s139, %s140
    %p151 = scmp.eq.s32.totalorder %s16, 0
    %p152 = por %p150, %p151
    %p153 = scmp.ne.s32.totalorder %s139, %s140
    %p154 = scmp.eq.s32.totalorder %s17, 1
    %p155 = por %p153, %p154
    %p157 = scmp.ne.s32.totalorder %s140, %s156
    %p158 = scmp.eq.s32.totalorder %s17, 0
    %p159 = por %p157, %p158
    %p160 = scmp.le.s32.totalorder 1, %s11
    %p161 = scmp.lt.s32.totalorder %s11, 3
    %p162 = pnand %p160, %p161
    %p163 = pneg %p162
    // Predicated region
    $region9: #{mtl_dinov2_forward.67} parent=5 // pred_check
      _
    $region10: #{mtl_dinov2_forward.67} parent=5 // pred_check_branch
      %165 = sbr.rel (%p162) target = $region12
    $region11: #{mtl_dinov2_forward.67} parent=5 // pred_region
      %s166 = ssub.s32 %s11, 1
      // Predicated region
      $region13: #{mtl_dinov2_forward.67} parent=11 // pred_check
        %p167 = pneg %p84
      $region14: #{mtl_dinov2_forward.67} parent=11 // pred_check_branch
        %169 = sbr.rel (%p167) target = $region16
      $region15: #{mtl_dinov2_forward.67} parent=11 // pred_region
        _
      $region16: #{mtl_dinov2_forward.67} parent=11 // pred_fallthru
        _
      // Predicated region
      $region17: #{mtl_dinov2_forward.67} parent=11 // pred_check
        %p170 = pneg %p105
      $region18: #{mtl_dinov2_forward.67} parent=11 // pred_check_branch
        %172 = sbr.rel (%p170) target = $region20
      $region19: #{mtl_dinov2_forward.67} parent=11 // pred_region
        _
      $region20: #{mtl_dinov2_forward.67} parent=11 // pred_fallthru
        _
      // Predicated region
      $region21: #{mtl_dinov2_forward.67} parent=11 // pred_check
        %p173 = pneg %p126
      $region22: #{mtl_dinov2_forward.67} parent=11 // pred_check_branch
        %175 = sbr.rel (%p173) target = $region24
      $region23: #{mtl_dinov2_forward.67} parent=11 // pred_region
        _
      $region24: #{mtl_dinov2_forward.67} parent=11 // pred_fallthru
        _
    $region12: #{mtl_dinov2_forward.67} parent=5 // pred_fallthru
      _
    %p176 = scmp.lt.s32.totalorder %s11, 2
    // Predicated region
    $region25: #{mtl_dinov2_forward.67} parent=5 // pred_check
      %p177 = pneg %p176
    $region26: #{mtl_dinov2_forward.67} parent=5 // pred_check_branch
      %179 = sbr.rel (%p177) target = $region28
    $region27: #{mtl_dinov2_forward.67} parent=5 // pred_region
      // Predicated region
      $region29: #{mtl_dinov2_forward.67} parent=27 // pred_check
        %p180 = pneg %p31
      $region30: #{mtl_dinov2_forward.67} parent=27 // pred_check_branch
        %182 = sbr.rel (%p180) target = $region32
      $region31: #{mtl_dinov2_forward.67} parent=27 // pred_region
        %s183 = smul.u32 32, %s11
        %p184 = scmp.lt.s32.totalorder %s183, 63
        %s185 = scalar_select %p184, %s183, 63
        %s186 = smul.addr %s185, 4
        %s187 = scalar_lea.vmem %s0, %s186
        %s188 = smul.u32 32, %s11
      $region32: #{mtl_dinov2_forward.67} parent=27 // pred_fallthru
        _
      // Predicated region
      $region33: #{mtl_dinov2_forward.67} parent=27 // pred_check
        %p189 = pneg %p57
      $region34: #{mtl_dinov2_forward.67} parent=27 // pred_check_branch
        %191 = sbr.rel (%p189) target = $region36
      $region35: #{mtl_dinov2_forward.67} parent=27 // pred_region
        %s192 = smul.u32 32, %s11
        %p193 = scmp.lt.s32.totalorder %s192, 63
        %s194 = scalar_select %p193, %s192, 63
        %s195 = smul.addr %s194, 8
        %s196 = scalar_lea.vmem %s1, %s195
        %s197 = smul.u32 32, %s11
      $region36: #{mtl_dinov2_forward.67} parent=27 // pred_fallthru
        _
    $region28: #{mtl_dinov2_forward.67} parent=5 // pred_fallthru
      _
    %p198 = scmp.le.s32.totalorder 1, %s11
    %p199 = scmp.lt.s32.totalorder %s11, 3
    %p200 = pnand %p198, %p199
    %p201 = pneg %p200
    // Predicated region
    $region37: #{mtl_dinov2_forward.67} parent=5 // pred_check
      _
    $region38: #{mtl_dinov2_forward.67} parent=5 // pred_check_branch
      %203 = sbr.rel (%p200) target = $region40
    $region39: #{mtl_dinov2_forward.67} parent=5 // pred_region
      %s204 = ssub.s32 %s11, 1
      %s205 = smul.u32 32, %s16
      %p206 = scmp.lt.s32.totalorder %s205, 63
      %s207 = scalar_select %p206, %s205, 63
      %s208 = smul.addr %s207, 4
      %s209 = scalar_lea.vmem %s0, %s208
      %p210 = pneg %p37
      %p211 = pneg %p34
      %s212 = smul.u32 32, %s16
      %p213 = scmp.lt.s32.totalorder %s212, 63
      %s214 = scalar_select %p213, %s212, 63
      %s215 = smul.addr %s214, 8
      %s216 = scalar_lea.vmem %s1, %s215
      %p217 = pneg %p63
      %p218 = pneg %p60
      %p219 = pneg %p84
      %p220 = pneg %p81
      %p221 = pneg %p105
      %p222 = pneg %p102
      %p223 = pneg %p126
      %p224 = pneg %p123
      %p225 = pneg %p152
      %p226 = pneg %p149
      %s227 = smul.u32 32, %s16
      %p228 = scmp.lt.s32.totalorder %s227, 63
      %s229 = scalar_select %p228, %s227, 63
      %s230 = smul.addr %s229, 8
      %s231 = scalar_lea.vmem %s5, %s230
      %s232 = smul.u32 32, %s16
      %p233 = scmp.lt.s32.totalorder %s232, 63
      %s234 = scalar_select %p233, %s232, 63
      %s235 = smul.addr %s234, 4
      %s236 = scalar_lea.vmem %s0, %s235
      %s237 = smul.u32 32, %s16
      %s238 = smul.u32 32, %s16
      %p239 = scmp.lt.s32.totalorder %s238, 63
      %s240 = scalar_select %p239, %s238, 63
      %s241 = smul.addr %s240, 8
      %s242 = scalar_lea.vmem %s1, %s241
      %s243 = smul.u32 32, %s16
      %s244 = smul.u32 32, %s16
      %p245 = scmp.lt.s32.totalorder %s244, 63
      %s246 = scalar_select %p245, %s244, 63
      %s247 = smul.addr %s246, 8
      %s248 = scalar_lea.vmem %s5, %s247
      %s249 = smul.u32 32, %s16
      %v251 = vld [vmem:[%s236] sm:$0xf]
      %v252 = vld [vmem:[%s236 + $0x4] sm:$0xf]
      %v253 = vld [vmem:[%s236 + $0x8] sm:$0xf]
      %v254 = vld [vmem:[%s236 + $0xc] sm:$0xf]
      %v255 = vld [vmem:[%s236 + $0x10] sm:$0xf]
      %v256 = vld [vmem:[%s236 + $0x14] sm:$0xf]
      %v257 = vld [vmem:[%s236 + $0x18] sm:$0xf]
      %v258 = vld [vmem:[%s236 + $0x1c] sm:$0xf]
      %v259 = vld [vmem:[%s236 + $0x20] sm:$0xf]
      %v260 = vld [vmem:[%s236 + $0x24] sm:$0xf]
      %v261 = vld [vmem:[%s236 + $0x28] sm:$0xf]
      %v262 = vld [vmem:[%s236 + $0x2c] sm:$0xf]
      %v263 = vld [vmem:[%s236 + $0x30] sm:$0xf]
      %v264 = vld [vmem:[%s236 + $0x34] sm:$0xf]
      %v265 = vld [vmem:[%s236 + $0x38] sm:$0xf]
      %v266 = vld [vmem:[%s236 + $0x3c] sm:$0xf]
      %v267 = vld [vmem:[%s236 + $0x40] sm:$0xf]
      %v268 = vld [vmem:[%s236 + $0x44] sm:$0xf]
      %v269 = vld [vmem:[%s236 + $0x48] sm:$0xf]
      %v270 = vld [vmem:[%s236 + $0x4c] sm:$0xf]
      %v271 = vld [vmem:[%s236 + $0x50] sm:$0xf]
      %v272 = vld [vmem:[%s236 + $0x54] sm:$0xf]
      %v273 = vld [vmem:[%s236 + $0x58] sm:$0xf]
      %v274 = vld [vmem:[%s236 + $0x5c] sm:$0xf]
      %v275 = vld [vmem:[%s236 + $0x60] sm:$0xf]
      %v276 = vld [vmem:[%s236 + $0x64] sm:$0xf]
      %v277 = vld [vmem:[%s236 + $0x68] sm:$0xf]
      %v278 = vld [vmem:[%s236 + $0x6c] sm:$0xf]
      %v279 = vld [vmem:[%s236 + $0x70] sm:$0xf]
      %v280 = vld [vmem:[%s236 + $0x74] sm:$0xf]
      %v281 = vld [vmem:[%s236 + $0x78] sm:$0xf]
      %v282 = vld [vmem:[%s236 + $0x7c] sm:$0xf]
      %v283 = vld [vmem:[%s2] sm:$0xf]
      %v284 = vld [vmem:[%s2 + $0x4] sm:$0xf]
      %v285 = vld [vmem:[%s2 + $0x8] sm:$0xf]
      %v286 = vld [vmem:[%s2 + $0xc] sm:$0xf]
      %v287 = vld [vmem:[%s3] sm:$0x1]
      %v289 = vlaneseq
      %v290 = vshrl.u32 %v289, 7
      %v291 = vsub.s32 0, %v290
      %v292 = vrot.slane %v287, %v291
      %v326 = vunpack.c.l.b16 %v251
      %v327 = vunpack.c.l.b16 %v252
      %v328 = vunpack.c.l.b16 %v253
      %v329 = vunpack.c.l.b16 %v254
      %v330 = vunpack.c.l.b16 %v255
      %v331 = vunpack.c.l.b16 %v256
      %v332 = vunpack.c.l.b16 %v257
      %v333 = vunpack.c.l.b16 %v258
      %v334 = vunpack.c.l.b16 %v259
      %v335 = vunpack.c.l.b16 %v260
      %v336 = vunpack.c.l.b16 %v261
      %v337 = vunpack.c.l.b16 %v262
      %v338 = vunpack.c.l.b16 %v263
      %v339 = vunpack.c.l.b16 %v264
      %v340 = vunpack.c.l.b16 %v265
      %v341 = vunpack.c.l.b16 %v266
      %v342 = vunpack.c.l.b16 %v267
      %v343 = vunpack.c.l.b16 %v268
      %v344 = vunpack.c.l.b16 %v269
      %v345 = vunpack.c.l.b16 %v270
      %v346 = vunpack.c.l.b16 %v271
      %v347 = vunpack.c.l.b16 %v272
      %v348 = vunpack.c.l.b16 %v273
      %v349 = vunpack.c.l.b16 %v274
      %v350 = vunpack.c.l.b16 %v275
      %v351 = vunpack.c.l.b16 %v276
      %v352 = vunpack.c.l.b16 %v277
      %v353 = vunpack.c.l.b16 %v278
      %v354 = vunpack.c.l.b16 %v279
      %v355 = vunpack.c.l.b16 %v280
      %v356 = vunpack.c.l.b16 %v281
      %v357 = vunpack.c.l.b16 %v282
      %v358 = vpack.c.b16 %v327, %v326
      %v359 = vpack.c.b16 %v329, %v328
      %v360 = vpack.c.b16 %v331, %v330
      %v361 = vpack.c.b16 %v333, %v332
      %v362 = vpack.c.b16 %v335, %v334
      %v363 = vpack.c.b16 %v337, %v336
      %v364 = vpack.c.b16 %v339, %v338
      %v365 = vpack.c.b16 %v341, %v340
      %v366 = vpack.c.b16 %v343, %v342
      %v367 = vpack.c.b16 %v345, %v344
      %v368 = vpack.c.b16 %v347, %v346
      %v369 = vpack.c.b16 %v349, %v348
      %v370 = vpack.c.b16 %v351, %v350
      %v371 = vpack.c.b16 %v353, %v352
      %v372 = vpack.c.b16 %v355, %v354
      %v373 = vpack.c.b16 %v357, %v356
      %v378 = vunpack.c.l.b16 %v283
      %v379 = vunpack.c.l.b16 %v284
      %v380 = vunpack.c.l.b16 %v285
      %v381 = vunpack.c.l.b16 %v286
      %v382 = vpack.c.b16 %v379, %v378
      %v383 = vpack.c.b16 %v381, %v380
      %vm386 = vcmask 261120
      %v388 = vsel %vm386, %v358, 0
      %v391 = vsel %vm386, %v359, 0
      %v394 = vsel %vm386, %v360, 0
      %v397 = vsel %vm386, %v361, 0
      %v400 = vsel %vm386, %v362, 0
      %v403 = vsel %vm386, %v363, 0
      %v406 = vsel %vm386, %v364, 0
      %v409 = vsel %vm386, %v365, 0
      %v412 = vsel %vm386, %v366, 0
      %v415 = vsel %vm386, %v367, 0
      %v418 = vsel %vm386, %v368, 0
      %v421 = vsel %vm386, %v369, 0
      %v424 = vsel %vm386, %v370, 0
      %v427 = vsel %vm386, %v371, 0
      %v430 = vsel %vm386, %v372, 0
      %v433 = vsel %vm386, %v373, 0
      %435 = vmatprep.subr.bf16.mxu0 0
      %436 = vmatpush1.bf16.msra.mxu0 0
      %437 = vmatprep.subr.bf16.mxu0 0
      %438 = vmatpush1.bf16.msra.mxu0 0
      %439 = vmatprep.subr.bf16.mxu0 0
      %440 = vmatpush1.bf16.msra.mxu0 0
      %441 = vmatprep.subr.bf16.mxu0 0
      %442 = vmatpush1.bf16.msra.mxu0 0
      %443 = vmatprep.subr.bf16.mxu0 0
      %444 = vmatpush1.bf16.msra.mxu0 0
      %445 = vmatprep.subr.bf16.mxu0 0
      %446 = vmatpush1.bf16.msra.mxu0 0
      %447 = vmatprep.subr.bf16.mxu0 0
      %448 = vmatpush1.bf16.msra.mxu0 %v383
      %449 = vmatprep.subr.bf16.mxu0 0
      %450 = vmatpush1.bf16.msra.mxu0 %v382
      %451 = vmatprep.subr.bf16.mxu0 0
      %452 = vmatpush2.bf16.msra.mxu0 0
      %453 = vmatprep.subr.bf16.mxu0 0
      %454 = vmatpush2.bf16.msra.mxu0 0
      %455 = vmatprep.subr.bf16.mxu0 0
      %456 = vmatpush2.bf16.msra.mxu0 0
      %457 = vmatprep.subr.bf16.mxu0 0
      %458 = vmatpush2.bf16.msra.mxu0 0
      %459 = vmatprep.subr.bf16.mxu0 0
      %460 = vmatpush2.bf16.msra.mxu0 0
      %461 = vmatprep.subr.bf16.mxu0 0
      %462 = vmatpush2.bf16.msra.mxu0 0
      %463 = vmatprep.subr.bf16.mxu0 0
      %464 = vmatpush2.bf16.msra.mxu0 0
      %465 = vmatprep.subr.bf16.mxu0 0
      %466 = vmatpush2.bf16.msra.mxu0 0
      %467 = vmatprep.mubr.bf16.mxu0 0
      %468 = vmatmul.mubr.bf16.gmra.mxu0 %v388
      %v469 = vpop.f32.mrf.mxu0
      %v470 = vadd.f32 %v292, %v469
      %v471 = vpop.f32.mrf.mxu0
      %v472 = vpop.f32.mrf.mxu0
      %v473 = vadd.f32 %v292, %v472
      %v474 = vpop.f32.mrf.mxu0
      %475 = vmatprep.mubr.bf16.mxu0 0
      %476 = vmatmul.mubr.bf16.gmra.mxu0 %v391
      %v477 = vpop.f32.mrf.mxu0
      %v478 = vadd.f32 %v292, %v477
      %v479 = vpop.f32.mrf.mxu0
      %v480 = vpop.f32.mrf.mxu0
      %v481 = vadd.f32 %v292, %v480
      %v482 = vpop.f32.mrf.mxu0
      %483 = vmatprep.mubr.bf16.mxu0 0
      %484 = vmatmul.mubr.bf16.gmra.mxu0 %v394
      %v485 = vpop.f32.mrf.mxu0
      %v486 = vadd.f32 %v292, %v485
      %v487 = vpop.f32.mrf.mxu0
      %v488 = vpop.f32.mrf.mxu0
      %v489 = vadd.f32 %v292, %v488
      %v490 = vpop.f32.mrf.mxu0
      %491 = vmatprep.mubr.bf16.mxu0 0
      %492 = vmatmul.mubr.bf16.gmra.mxu0 %v397
      %v493 = vpop.f32.mrf.mxu0
      %v494 = vadd.f32 %v292, %v493
      %v495 = vpop.f32.mrf.mxu0
      %v496 = vpop.f32.mrf.mxu0
      %v497 = vadd.f32 %v292, %v496
      %v498 = vpop.f32.mrf.mxu0
      %499 = vmatprep.mubr.bf16.mxu0 0
      %500 = vmatmul.mubr.bf16.gmra.mxu0 %v400
      %v501 = vpop.f32.mrf.mxu0
      %v502 = vadd.f32 %v292, %v501
      %v503 = vpop.f32.mrf.mxu0
      %v504 = vpop.f32.mrf.mxu0
      %v505 = vadd.f32 %v292, %v504
      %v506 = vpop.f32.mrf.mxu0
      %507 = vmatprep.mubr.bf16.mxu0 0
      %508 = vmatmul.mubr.bf16.gmra.mxu0 %v403
      %v509 = vpop.f32.mrf.mxu0
      %v510 = vadd.f32 %v292, %v509
      %v511 = vpop.f32.mrf.mxu0
      %v512 = vpop.f32.mrf.mxu0
      %v513 = vadd.f32 %v292, %v512
      %v514 = vpop.f32.mrf.mxu0
      %515 = vmatprep.mubr.bf16.mxu0 0
      %516 = vmatmul.mubr.bf16.gmra.mxu0 %v406
      %v517 = vpop.f32.mrf.mxu0
      %v518 = vadd.f32 %v292, %v517
      %v519 = vpop.f32.mrf.mxu0
      %v520 = vpop.f32.mrf.mxu0
      %v521 = vadd.f32 %v292, %v520
      %v522 = vpop.f32.mrf.mxu0
      %523 = vmatprep.mubr.bf16.mxu0 0
      %524 = vmatmul.mubr.bf16.gmra.mxu0 %v409
      %v525 = vpop.f32.mrf.mxu0
      %v526 = vadd.f32 %v292, %v525
      %v527 = vpop.f32.mrf.mxu0
      %v528 = vpop.f32.mrf.mxu0
      %v529 = vadd.f32 %v292, %v528
      %v530 = vpop.f32.mrf.mxu0
      %531 = vmatprep.mubr.bf16.mxu0 0
      %532 = vmatmul.mubr.bf16.gmra.mxu0 %v412
      %v533 = vpop.f32.mrf.mxu0
      %v534 = vadd.f32 %v292, %v533
      %v535 = vpop.f32.mrf.mxu0
      %v536 = vpop.f32.mrf.mxu0
      %v537 = vadd.f32 %v292, %v536
      %v538 = vpop.f32.mrf.mxu0
      %539 = vmatprep.mubr.bf16.mxu0 0
      %540 = vmatmul.mubr.bf16.gmra.mxu0 %v415
      %v541 = vpop.f32.mrf.mxu0
      %v542 = vadd.f32 %v292, %v541
      %v543 = vpop.f32.mrf.mxu0
      %v544 = vpop.f32.mrf.mxu0
      %v545 = vadd.f32 %v292, %v544
      %v546 = vpop.f32.mrf.mxu0
      %547 = vmatprep.mubr.bf16.mxu0 0
      %548 = vmatmul.mubr.bf16.gmra.mxu0 %v418
      %v549 = vpop.f32.mrf.mxu0
      %v550 = vadd.f32 %v292, %v549
      %v551 = vpop.f32.mrf.mxu0
      %v552 = vpop.f32.mrf.mxu0
      %v553 = vadd.f32 %v292, %v552
      %v554 = vpop.f32.mrf.mxu0
      %555 = vmatprep.mubr.bf16.mxu0 0
      %556 = vmatmul.mubr.bf16.gmra.mxu0 %v421
      %v557 = vpop.f32.mrf.mxu0
      %v558 = vadd.f32 %v292, %v557
      %v559 = vpop.f32.mrf.mxu0
      %v560 = vpop.f32.mrf.mxu0
      %v561 = vadd.f32 %v292, %v560
      %v562 = vpop.f32.mrf.mxu0
      %563 = vmatprep.mubr.bf16.mxu0 0
      %564 = vmatmul.mubr.bf16.gmra.mxu0 %v424
      %v565 = vpop.f32.mrf.mxu0
      %v566 = vadd.f32 %v292, %v565
      %v567 = vpop.f32.mrf.mxu0
      %v568 = vpop.f32.mrf.mxu0
      %v569 = vadd.f32 %v292, %v568
      %v570 = vpop.f32.mrf.mxu0
      %571 = vmatprep.mubr.bf16.mxu0 0
      %572 = vmatmul.mubr.bf16.gmra.mxu0 %v427
      %v573 = vpop.f32.mrf.mxu0
      %v574 = vadd.f32 %v292, %v573
      %v575 = vpop.f32.mrf.mxu0
      %v576 = vpop.f32.mrf.mxu0
      %v577 = vadd.f32 %v292, %v576
      %v578 = vpop.f32.mrf.mxu0
      %579 = vmatprep.mubr.bf16.mxu0 0
      %580 = vmatmul.mubr.bf16.gmra.mxu0 %v430
      %v581 = vpop.f32.mrf.mxu0
      %v582 = vadd.f32 %v292, %v581
      %v583 = vpop.f32.mrf.mxu0
      %v584 = vpop.f32.mrf.mxu0
      %v585 = vadd.f32 %v292, %v584
      %v586 = vpop.f32.mrf.mxu0
      %587 = vmatprep.mubr.bf16.mxu0 0
      %588 = vmatmul.mubr.bf16.gmra.mxu0 %v433
      %v589 = vpop.f32.mrf.mxu0
      %v590 = vadd.f32 %v292, %v589
      %v591 = vpop.f32.mrf.mxu0
      %v592 = vpop.f32.mrf.mxu0
      %v593 = vadd.f32 %v292, %v592
      %v594 = vpop.f32.mrf.mxu0
      %595 = vdwg.mxu0
      %v596 = vld [vmem:[%s242] sm:$0xff]
      %v597 = vld [vmem:[%s242 + $0x8] sm:$0xff]
      %v598 = vld [vmem:[%s242 + $0x10] sm:$0xff]
      %v599 = vld [vmem:[%s242 + $0x18] sm:$0xff]
      %v600 = vld [vmem:[%s242 + $0x20] sm:$0xff]
      %v601 = vld [vmem:[%s242 + $0x28] sm:$0xff]
      %v602 = vld [vmem:[%s242 + $0x30] sm:$0xff]
      %v603 = vld [vmem:[%s242 + $0x38] sm:$0xff]
      %v604 = vld [vmem:[%s242 + $0x40] sm:$0xff]
      %v605 = vld [vmem:[%s242 + $0x48] sm:$0xff]
      %v606 = vld [vmem:[%s242 + $0x50] sm:$0xff]
      %v607 = vld [vmem:[%s242 + $0x58] sm:$0xff]
      %v608 = vld [vmem:[%s242 + $0x60] sm:$0xff]
      %v609 = vld [vmem:[%s242 + $0x68] sm:$0xff]
      %v610 = vld [vmem:[%s242 + $0x70] sm:$0xff]
      %v611 = vld [vmem:[%s242 + $0x78] sm:$0xff]
      %v612 = vld [vmem:[%s242 + $0x80] sm:$0xff]
      %v613 = vld [vmem:[%s242 + $0x88] sm:$0xff]
      %v614 = vld [vmem:[%s242 + $0x90] sm:$0xff]
      %v615 = vld [vmem:[%s242 + $0x98] sm:$0xff]
      %v616 = vld [vmem:[%s242 + $0xa0] sm:$0xff]
      %v617 = vld [vmem:[%s242 + $0xa8] sm:$0xff]
      %v618 = vld [vmem:[%s242 + $0xb0] sm:$0xff]
      %v619 = vld [vmem:[%s242 + $0xb8] sm:$0xff]
      %v620 = vld [vmem:[%s242 + $0xc0] sm:$0xff]
      %v621 = vld [vmem:[%s242 + $0xc8] sm:$0xff]
      %v622 = vld [vmem:[%s242 + $0xd0] sm:$0xff]
      %v623 = vld [vmem:[%s242 + $0xd8] sm:$0xff]
      %v624 = vld [vmem:[%s242 + $0xe0] sm:$0xff]
      %v625 = vld [vmem:[%s242 + $0xe8] sm:$0xff]
      %v626 = vld [vmem:[%s242 + $0xf0] sm:$0xff]
      %v627 = vld [vmem:[%s242 + $0xf8] sm:$0xff]
      %v628 = vld [vmem:[%s4] sm:$0x1]
      %v630 = vlaneseq
      %v631 = vshrl.u32 %v630, 7
      %v632 = vsub.s32 0, %v631
      %v633 = vrot.slane %v628, %v632
      %v635 = vmul.f32 %v633, %v470
      %v636 = vmul.f32 %v633, %v473
      %v637 = vmul.f32 %v633, %v478
      %v638 = vmul.f32 %v633, %v481
      %v639 = vmul.f32 %v633, %v486
      %v640 = vmul.f32 %v633, %v489
      %v641 = vmul.f32 %v633, %v494
      %v642 = vmul.f32 %v633, %v497
      %v643 = vmul.f32 %v633, %v502
      %v644 = vmul.f32 %v633, %v505
      %v645 = vmul.f32 %v633, %v510
      %v646 = vmul.f32 %v633, %v513
      %v647 = vmul.f32 %v633, %v518
      %v648 = vmul.f32 %v633, %v521
      %v649 = vmul.f32 %v633, %v526
      %v650 = vmul.f32 %v633, %v529
      %v651 = vmul.f32 %v633, %v534
      %v652 = vmul.f32 %v633, %v537
      %v653 = vmul.f32 %v633, %v542
      %v654 = vmul.f32 %v633, %v545
      %v655 = vmul.f32 %v633, %v550
      %v656 = vmul.f32 %v633, %v553
      %v657 = vmul.f32 %v633, %v558
      %v658 = vmul.f32 %v633, %v561
      %v659 = vmul.f32 %v633, %v566
      %v660 = vmul.f32 %v633, %v569
      %v661 = vmul.f32 %v633, %v574
      %v662 = vmul.f32 %v633, %v577
      %v663 = vmul.f32 %v633, %v582
      %v664 = vmul.f32 %v633, %v585
      %v665 = vmul.f32 %v633, %v590
      %v666 = vmul.f32 %v633, %v593
      %v667 = vadd.f32 %v596, %v635
      %v668 = vadd.f32 %v597, %v636
      %v669 = vadd.f32 %v598, %v637
      %v670 = vadd.f32 %v599, %v638
      %v671 = vadd.f32 %v600, %v639
      %v672 = vadd.f32 %v601, %v640
      %v673 = vadd.f32 %v602, %v641
      %v674 = vadd.f32 %v603, %v642
      %v675 = vadd.f32 %v604, %v643
      %v676 = vadd.f32 %v605, %v644
      %v677 = vadd.f32 %v606, %v645
      %v678 = vadd.f32 %v607, %v646
      %v679 = vadd.f32 %v608, %v647
      %v680 = vadd.f32 %v609, %v648
      %v681 = vadd.f32 %v610, %v649
      %v682 = vadd.f32 %v611, %v650
      %v683 = vadd.f32 %v612, %v651
      %v684 = vadd.f32 %v613, %v652
      %v685 = vadd.f32 %v614, %v653
      %v686 = vadd.f32 %v615, %v654
      %v687 = vadd.f32 %v616, %v655
      %v688 = vadd.f32 %v617, %v656
      %v689 = vadd.f32 %v618, %v657
      %v690 = vadd.f32 %v619, %v658
      %v691 = vadd.f32 %v620, %v659
      %v692 = vadd.f32 %v621, %v660
      %v693 = vadd.f32 %v622, %v661
      %v694 = vadd.f32 %v623, %v662
      %v695 = vadd.f32 %v624, %v663
      %v696 = vadd.f32 %v625, %v664
      %v697 = vadd.f32 %v626, %v665
      %v698 = vadd.f32 %v627, %v666
      %699 = vst.msk [vmem:[%s248] sm:$0xff] %vm386, %v667
      %700 = vst.msk [vmem:[%s248 + $0x8] sm:$0xff] %vm386, %v668
      %701 = vst.msk [vmem:[%s248 + $0x10] sm:$0xff] %vm386, %v669
      %702 = vst.msk [vmem:[%s248 + $0x18] sm:$0xff] %vm386, %v670
      %703 = vst.msk [vmem:[%s248 + $0x20] sm:$0xff] %vm386, %v671
      %704 = vst.msk [vmem:[%s248 + $0x28] sm:$0xff] %vm386, %v672
      %705 = vst.msk [vmem:[%s248 + $0x30] sm:$0xff] %vm386, %v673
      %706 = vst.msk [vmem:[%s248 + $0x38] sm:$0xff] %vm386, %v674
      %707 = vst.msk [vmem:[%s248 + $0x40] sm:$0xff] %vm386, %v675
      %708 = vst.msk [vmem:[%s248 + $0x48] sm:$0xff] %vm386, %v676
      %709 = vst.msk [vmem:[%s248 + $0x50] sm:$0xff] %vm386, %v677
      %710 = vst.msk [vmem:[%s248 + $0x58] sm:$0xff] %vm386, %v678
      %711 = vst.msk [vmem:[%s248 + $0x60] sm:$0xff] %vm386, %v679
      %712 = vst.msk [vmem:[%s248 + $0x68] sm:$0xff] %vm386, %v680
      %713 = vst.msk [vmem:[%s248 + $0x70] sm:$0xff] %vm386, %v681
      %714 = vst.msk [vmem:[%s248 + $0x78] sm:$0xff] %vm386, %v682
      %715 = vst.msk [vmem:[%s248 + $0x80] sm:$0xff] %vm386, %v683
      %716 = vst.msk [vmem:[%s248 + $0x88] sm:$0xff] %vm386, %v684
      %717 = vst.msk [vmem:[%s248 + $0x90] sm:$0xff] %vm386, %v685
      %718 = vst.msk [vmem:[%s248 + $0x98] sm:$0xff] %vm386, %v686
      %719 = vst.msk [vmem:[%s248 + $0xa0] sm:$0xff] %vm386, %v687
      %720 = vst.msk [vmem:[%s248 + $0xa8] sm:$0xff] %vm386, %v688
      %721 = vst.msk [vmem:[%s248 + $0xb0] sm:$0xff] %vm386, %v689
      %722 = vst.msk [vmem:[%s248 + $0xb8] sm:$0xff] %vm386, %v690
      %723 = vst.msk [vmem:[%s248 + $0xc0] sm:$0xff] %vm386, %v691
      %724 = vst.msk [vmem:[%s248 + $0xc8] sm:$0xff] %vm386, %v692
      %725 = vst.msk [vmem:[%s248 + $0xd0] sm:$0xff] %vm386, %v693
      %726 = vst.msk [vmem:[%s248 + $0xd8] sm:$0xff] %vm386, %v694
      %727 = vst.msk [vmem:[%s248 + $0xe0] sm:$0xff] %vm386, %v695
      %728 = vst.msk [vmem:[%s248 + $0xe8] sm:$0xff] %vm386, %v696
      %729 = vst.msk [vmem:[%s248 + $0xf0] sm:$0xff] %vm386, %v697
      %730 = vst.msk [vmem:[%s248 + $0xf8] sm:$0xff] %vm386, %v698
      %s731 = smul.u32 32, %s16
      %p732 = scmp.lt.s32.totalorder %s731, 63
      %s733 = scalar_select %p732, %s731, 63
      %s734 = smul.addr %s733, 8
      %s735 = scalar_lea.vmem %s5, %s734
      // Predicated region
      $region41: #{mtl_dinov2_forward.67} parent=39 // pred_check
        %p736 = pneg %p149
      $region42: #{mtl_dinov2_forward.67} parent=39 // pred_check_branch
        %738 = sbr.rel (%p736) target = $region44
      $region43: #{mtl_dinov2_forward.67} parent=39 // pred_region
        %s739 = smul.u32 32, %s16
      $region44: #{mtl_dinov2_forward.67} parent=39 // pred_fallthru
        _
    $region40: #{mtl_dinov2_forward.67} parent=5 // pred_fallthru
      _
    %p740 = scmp.le.s32.totalorder 2, %s11
    // Predicated region
    $region45: #{mtl_dinov2_forward.67} parent=5 // pred_check
      %p741 = pneg %p740
    $region46: #{mtl_dinov2_forward.67} parent=5 // pred_check_branch
      %743 = sbr.rel (%p741) target = $region48
    $region47: #{mtl_dinov2_forward.67} parent=5 // pred_region
      %s744 = ssub.s32 %s11, 2
      // Predicated region
      $region49: #{mtl_dinov2_forward.67} parent=47 // pred_check
        %p745 = pneg %p155
      $region50: #{mtl_dinov2_forward.67} parent=47 // pred_check_branch
        %747 = sbr.rel (%p745) target = $region52
      $region51: #{mtl_dinov2_forward.67} parent=47 // pred_region
        %s748 = smul.u32 32, %s17
        %p749 = scmp.lt.s32.totalorder %s748, 63
        %s750 = scalar_select %p749, %s748, 63
        %s751 = smul.addr %s750, 8
        %s752 = scalar_lea.vmem %s5, %s751
      $region52: #{mtl_dinov2_forward.67} parent=47 // pred_fallthru
        _
    $region48: #{mtl_dinov2_forward.67} parent=5 // pred_fallthru
      _
  $region6: #{mtl_dinov2_forward.67} parent=0 // loop_footer
    %s15 = sadd.s32 1, %s11
  $region7: #{mtl_dinov2_forward.67} parent=0 // loop_footer_branch
    %10 = sbr.rel target = $region3
  $region8: #{mtl_dinov2_forward.67} parent=0 // loop_exit
    _

// kernel: mtl_dinov2_forward.68
$region0: #{mtl_dinov2_forward.68}
  #allocation0 [shape = 'u32[]', space=smem, size = 0x4, offset = 0x4, fixed_abs, tag = 'smem constant byte address 0x4 - core index']
  #allocation1 [shape = 'u32[144,128]{1,0:T(1,128)}', space=vmem, size = 0x12000, scoped, tag = 'internal scratch']
  %s0 = inlined_call_operand.vmem [shape: f32[512,32], index: 0, kind: input, shape index: {}]
  %s1 = inlined_call_operand.vmem [shape: f32[1,32], index: 1, kind: input, shape index: {}]
  %s2 = inlined_call_operand.vmem [shape: f32[1,32], index: 2, kind: input, shape index: {}]
  %s3 = inlined_call_operand.vmem [shape: bf16[32,128], index: 3, kind: input, shape index: {}]
  %s4 = inlined_call_operand.vmem [shape: f32[1,128], index: 4, kind: input, shape index: {}]
  %s5 = inlined_call_operand.vmem [shape: bf16[512,128], index: 5, kind: output, shape index: {}]
  %s6 = sld [smem:[#allocation0]]
  $region53: #{mtl_dinov2_forward.68} parent=0
    _
  %s8 = ssub.s32 1, %s6
  %s9 = scalar_select 0, %s8, %s6
  loop: start=0, step=1, limit=4
  $region2: #{mtl_dinov2_forward.68} parent=0 // loop_pre_header
    _
  $region3: #{mtl_dinov2_forward.68} parent=0 // loop_header
    %s11 = sphi 0, %s15
    %p12 = scmp.ge.s32.totalorder %s11, 4
    %s21 = sphi 0, %s23
    %s24 = sphi 0, %s21
    %s25 = sphi 0, %s24
    %s41 = sphi 0, %s25
    %s45 = sphi 0, %s45
    %s47 = sphi 0, %s45
    %s48 = sphi 0, %s47
    %s62 = sphi 0, %s48
    %s66 = sphi 0, %s66
    %s68 = sphi 0, %s66
    %s69 = sphi 0, %s68
    %s83 = sphi 0, %s69
    %s87 = sphi 0, %s87
    %s89 = sphi 0, %s87
    %s90 = sphi 0, %s89
    %s104 = sphi 0, %s90
    %s108 = sphi 0, %s108
    %s110 = sphi 0, %s108
    %s111 = sphi 0, %s110
    %s125 = sphi 0, %s111
    %s131 = sphi 0, %s133
    %s134 = sphi 0, %s131
    %s135 = sphi 0, %s134
    %s151 = sphi 0, %s135
  $region4: #{mtl_dinov2_forward.68} parent=0 // loop_header_branch
    %14 = sbr.rel (%p12) target = $region8
  $region5: #{mtl_dinov2_forward.68} parent=0 // loop_body
    %s16 = ssub.s32 %s11, 1
    %s17 = ssub.s32 %s11, 2
    %s18 = sadd.s32 %s11, 1
    %s19 = ssub.s32 %s11, %s18
    %p20 = scmp.eq.s32.totalorder %s19, 0
    %s22 = sadd.s32 %s21, 1
    %s23 = scalar_select %p20, %s21, %s22
    %p26 = pneg %p20
    %p27 = scmp.eq.s32.totalorder %s11, 1
    %p28 = por %p26, %p27
    %p29 = scmp.ne.s32.totalorder %s21, %s24
    %p30 = scmp.eq.s32.totalorder %s11, 0
    %p31 = por %p29, %p30
    %p32 = scmp.ne.s32.totalorder %s21, %s24
    %p33 = scmp.eq.s32.totalorder %s16, 1
    %p34 = por %p32, %p33
    %p35 = scmp.ne.s32.totalorder %s24, %s25
    %p36 = scmp.eq.s32.totalorder %s16, 0
    %p37 = por %p35, %p36
    %p38 = scmp.ne.s32.totalorder %s24, %s25
    %p39 = scmp.eq.s32.totalorder %s17, 1
    %p40 = por %p38, %p39
    %p42 = scmp.ne.s32.totalorder %s25, %s41
    %p43 = scmp.eq.s32.totalorder %s17, 0
    %p44 = por %p42, %p43
    %s46 = sadd.s32 %s45, 1
    %p49 = scmp.eq.s32.totalorder %s11, 1
    %p50 = scmp.ne.s32.totalorder %s45, %s47
    %p51 = scmp.eq.s32.totalorder %s11, 0
    %p52 = por %p50, %p51
    %p53 = scmp.ne.s32.totalorder %s45, %s47
    %p54 = scmp.eq.s32.totalorder %s16, 1
    %p55 = por %p53, %p54
    %p56 = scmp.ne.s32.totalorder %s47, %s48
    %p57 = scmp.eq.s32.totalorder %s16, 0
    %p58 = por %p56, %p57
    %p59 = scmp.ne.s32.totalorder %s47, %s48
    %p60 = scmp.eq.s32.totalorder %s17, 1
    %p61 = por %p59, %p60
    %p63 = scmp.ne.s32.totalorder %s48, %s62
    %p64 = scmp.eq.s32.totalorder %s17, 0
    %p65 = por %p63, %p64
    %s67 = sadd.s32 %s66, 1
    %p70 = scmp.eq.s32.totalorder %s11, 1
    %p71 = scmp.ne.s32.totalorder %s66, %s68
    %p72 = scmp.eq.s32.totalorder %s11, 0
    %p73 = por %p71, %p72
    %p74 = scmp.ne.s32.totalorder %s66, %s68
    %p75 = scmp.eq.s32.totalorder %s16, 1
    %p76 = por %p74, %p75
    %p77 = scmp.ne.s32.totalorder %s68, %s69
    %p78 = scmp.eq.s32.totalorder %s16, 0
    %p79 = por %p77, %p78
    %p80 = scmp.ne.s32.totalorder %s68, %s69
    %p81 = scmp.eq.s32.totalorder %s17, 1
    %p82 = por %p80, %p81
    %p84 = scmp.ne.s32.totalorder %s69, %s83
    %p85 = scmp.eq.s32.totalorder %s17, 0
    %p86 = por %p84, %p85
    %s88 = sadd.s32 %s87, 1
    %p91 = scmp.eq.s32.totalorder %s11, 1
    %p92 = scmp.ne.s32.totalorder %s87, %s89
    %p93 = scmp.eq.s32.totalorder %s11, 0
    %p94 = por %p92, %p93
    %p95 = scmp.ne.s32.totalorder %s87, %s89
    %p96 = scmp.eq.s32.totalorder %s16, 1
    %p97 = por %p95, %p96
    %p98 = scmp.ne.s32.totalorder %s89, %s90
    %p99 = scmp.eq.s32.totalorder %s16, 0
    %p100 = por %p98, %p99
    %p101 = scmp.ne.s32.totalorder %s89, %s90
    %p102 = scmp.eq.s32.totalorder %s17, 1
    %p103 = por %p101, %p102
    %p105 = scmp.ne.s32.totalorder %s90, %s104
    %p106 = scmp.eq.s32.totalorder %s17, 0
    %p107 = por %p105, %p106
    %s109 = sadd.s32 %s108, 1
    %p112 = scmp.eq.s32.totalorder %s11, 1
    %p113 = scmp.ne.s32.totalorder %s108, %s110
    %p114 = scmp.eq.s32.totalorder %s11, 0
    %p115 = por %p113, %p114
    %p116 = scmp.ne.s32.totalorder %s108, %s110
    %p117 = scmp.eq.s32.totalorder %s16, 1
    %p118 = por %p116, %p117
    %p119 = scmp.ne.s32.totalorder %s110, %s111
    %p120 = scmp.eq.s32.totalorder %s16, 0
    %p121 = por %p119, %p120
    %p122 = scmp.ne.s32.totalorder %s110, %s111
    %p123 = scmp.eq.s32.totalorder %s17, 1
    %p124 = por %p122, %p123
    %p126 = scmp.ne.s32.totalorder %s111, %s125
    %p127 = scmp.eq.s32.totalorder %s17, 0
    %p128 = por %p126, %p127
    %s129 = ssub.s32 %s11, %s18
    %p130 = scmp.eq.s32.totalorder %s129, 0
    %s132 = sadd.s32 %s131, 1
    %s133 = scalar_select %p130, %s131, %s132
    %p136 = pneg %p130
    %p137 = scmp.eq.s32.totalorder %s11, 1
    %p138 = por %p136, %p137
    %p139 = scmp.ne.s32.totalorder %s131, %s134
    %p140 = scmp.eq.s32.totalorder %s11, 0
    %p141 = por %p139, %p140
    %p142 = scmp.ne.s32.totalorder %s131, %s134
    %p143 = scmp.eq.s32.totalorder %s16, 1
    %p144 = por %p142, %p143
    %p145 = scmp.ne.s32.totalorder %s134, %s135
    %p146 = scmp.eq.s32.totalorder %s16, 0
    %p147 = por %p145, %p146
    %p148 = scmp.ne.s32.totalorder %s134, %s135
    %p149 = scmp.eq.s32.totalorder %s17, 1
    %p150 = por %p148, %p149
    %p152 = scmp.ne.s32.totalorder %s135, %s151
    %p153 = scmp.eq.s32.totalorder %s17, 0
    %p154 = por %p152, %p153
    %p155 = scmp.le.s32.totalorder 1, %s11
    %p156 = scmp.lt.s32.totalorder %s11, 3
    %p157 = pnand %p155, %p156
    %p158 = pneg %p157
    // Predicated region
    $region9: #{mtl_dinov2_forward.68} parent=5 // pred_check
      _
    $region10: #{mtl_dinov2_forward.68} parent=5 // pred_check_branch
      %160 = sbr.rel (%p157) target = $region12
    $region11: #{mtl_dinov2_forward.68} parent=5 // pred_region
      %s161 = ssub.s32 %s11, 1
      // Predicated region
      $region13: #{mtl_dinov2_forward.68} parent=11 // pred_check
        %p162 = pneg %p58
      $region14: #{mtl_dinov2_forward.68} parent=11 // pred_check_branch
        %164 = sbr.rel (%p162) target = $region16
      $region15: #{mtl_dinov2_forward.68} parent=11 // pred_region
        _
      $region16: #{mtl_dinov2_forward.68} parent=11 // pred_fallthru
        _
      // Predicated region
      $region17: #{mtl_dinov2_forward.68} parent=11 // pred_check
        %p165 = pneg %p79
      $region18: #{mtl_dinov2_forward.68} parent=11 // pred_check_branch
        %167 = sbr.rel (%p165) target = $region20
      $region19: #{mtl_dinov2_forward.68} parent=11 // pred_region
        _
      $region20: #{mtl_dinov2_forward.68} parent=11 // pred_fallthru
        _
      // Predicated region
      $region21: #{mtl_dinov2_forward.68} parent=11 // pred_check
        %p168 = pneg %p100
      $region22: #{mtl_dinov2_forward.68} parent=11 // pred_check_branch
        %170 = sbr.rel (%p168) target = $region24
      $region23: #{mtl_dinov2_forward.68} parent=11 // pred_region
        _
      $region24: #{mtl_dinov2_forward.68} parent=11 // pred_fallthru
        _
      // Predicated region
      $region25: #{mtl_dinov2_forward.68} parent=11 // pred_check
        %p171 = pneg %p121
      $region26: #{mtl_dinov2_forward.68} parent=11 // pred_check_branch
        %173 = sbr.rel (%p171) target = $region28
      $region27: #{mtl_dinov2_forward.68} parent=11 // pred_region
        _
      $region28: #{mtl_dinov2_forward.68} parent=11 // pred_fallthru
        _
    $region12: #{mtl_dinov2_forward.68} parent=5 // pred_fallthru
      _
    %p174 = scmp.lt.s32.totalorder %s11, 2
    // Predicated region
    $region29: #{mtl_dinov2_forward.68} parent=5 // pred_check
      %p175 = pneg %p174
    $region30: #{mtl_dinov2_forward.68} parent=5 // pred_check_branch
      %177 = sbr.rel (%p175) target = $region32
    $region31: #{mtl_dinov2_forward.68} parent=5 // pred_region
      // Predicated region
      $region33: #{mtl_dinov2_forward.68} parent=31 // pred_check
        %p178 = pneg %p31
      $region34: #{mtl_dinov2_forward.68} parent=31 // pred_check_branch
        %180 = sbr.rel (%p178) target = $region36
      $region35: #{mtl_dinov2_forward.68} parent=31 // pred_region
        %s181 = smul.u32 32, %s11
        %p182 = scmp.lt.s32.totalorder %s181, 63
        %s183 = scalar_select %p182, %s181, 63
        %s184 = smul.addr %s183, 8
        %s185 = scalar_lea.vmem %s0, %s184
        %s186 = smul.u32 32, %s11
      $region36: #{mtl_dinov2_forward.68} parent=31 // pred_fallthru
        _
    $region32: #{mtl_dinov2_forward.68} parent=5 // pred_fallthru
      _
    %p187 = scmp.le.s32.totalorder 1, %s11
    %p188 = scmp.lt.s32.totalorder %s11, 3
    %p189 = pnand %p187, %p188
    %p190 = pneg %p189
    // Predicated region
    $region37: #{mtl_dinov2_forward.68} parent=5 // pred_check
      _
    $region38: #{mtl_dinov2_forward.68} parent=5 // pred_check_branch
      %192 = sbr.rel (%p189) target = $region40
    $region39: #{mtl_dinov2_forward.68} parent=5 // pred_region
      %s193 = ssub.s32 %s11, 1
      %s194 = smul.u32 32, %s16
      %p195 = scmp.lt.s32.totalorder %s194, 63
      %s196 = scalar_select %p195, %s194, 63
      %s197 = smul.addr %s196, 8
      %s198 = scalar_lea.vmem %s0, %s197
      %p199 = pneg %p37
      %p200 = pneg %p34
      %p201 = pneg %p58
      %p202 = pneg %p55
      %p203 = pneg %p79
      %p204 = pneg %p76
      %p205 = pneg %p100
      %p206 = pneg %p97
      %p207 = pneg %p121
      %p208 = pneg %p118
      %p209 = pneg %p147
      %p210 = pneg %p144
      %s211 = smul.u32 32, %s16
      %p212 = scmp.lt.s32.totalorder %s211, 63
      %s213 = scalar_select %p212, %s211, 63
      %s214 = smul.addr %s213, 4
      %s215 = scalar_lea.vmem %s5, %s214
      %s216 = smul.u32 32, %s16
      %p217 = scmp.lt.s32.totalorder %s216, 63
      %s218 = scalar_select %p217, %s216, 63
      %s219 = smul.addr %s218, 8
      %s220 = scalar_lea.vmem %s0, %s219
      %s221 = smul.u32 32, %s16
      %s222 = smul.u32 32, %s16
      %p223 = scmp.lt.s32.totalorder %s222, 63
      %s224 = scalar_select %p223, %s222, 63
      %s225 = smul.addr %s224, 4
      %s226 = scalar_lea.vmem %s5, %s225
      %s227 = smul.u32 32, %s16
      %v229 = vld [vmem:[%s220] sm:$0xff]
      %v230 = vld [vmem:[%s220 + $0x8] sm:$0xff]
      %v231 = vld [vmem:[%s220 + $0x10] sm:$0xff]
      %v232 = vld [vmem:[%s220 + $0x18] sm:$0xff]
      %v233 = vld [vmem:[%s220 + $0x20] sm:$0xff]
      %v234 = vld [vmem:[%s220 + $0x28] sm:$0xff]
      %v235 = vld [vmem:[%s220 + $0x30] sm:$0xff]
      %v236 = vld [vmem:[%s220 + $0x38] sm:$0xff]
      %v237 = vld [vmem:[%s220 + $0x40] sm:$0xff]
      %v238 = vld [vmem:[%s220 + $0x48] sm:$0xff]
      %v239 = vld [vmem:[%s220 + $0x50] sm:$0xff]
      %v240 = vld [vmem:[%s220 + $0x58] sm:$0xff]
      %v241 = vld [vmem:[%s220 + $0x60] sm:$0xff]
      %v242 = vld [vmem:[%s220 + $0x68] sm:$0xff]
      %v243 = vld [vmem:[%s220 + $0x70] sm:$0xff]
      %v244 = vld [vmem:[%s220 + $0x78] sm:$0xff]
      %v245 = vld [vmem:[%s220 + $0x80] sm:$0xff]
      %v246 = vld [vmem:[%s220 + $0x88] sm:$0xff]
      %v247 = vld [vmem:[%s220 + $0x90] sm:$0xff]
      %v248 = vld [vmem:[%s220 + $0x98] sm:$0xff]
      %v249 = vld [vmem:[%s220 + $0xa0] sm:$0xff]
      %v250 = vld [vmem:[%s220 + $0xa8] sm:$0xff]
      %v251 = vld [vmem:[%s220 + $0xb0] sm:$0xff]
      %v252 = vld [vmem:[%s220 + $0xb8] sm:$0xff]
      %v253 = vld [vmem:[%s220 + $0xc0] sm:$0xff]
      %v254 = vld [vmem:[%s220 + $0xc8] sm:$0xff]
      %v255 = vld [vmem:[%s220 + $0xd0] sm:$0xff]
      %v256 = vld [vmem:[%s220 + $0xd8] sm:$0xff]
      %v257 = vld [vmem:[%s220 + $0xe0] sm:$0xff]
      %v258 = vld [vmem:[%s220 + $0xe8] sm:$0xff]
      %v259 = vld [vmem:[%s220 + $0xf0] sm:$0xff]
      %v260 = vld [vmem:[%s220 + $0xf8] sm:$0xff]
      %vm261 = vcmask 261120
      %v262 = vsel %vm261, %v229, 0.0
      %263 = vadd.xlane.f32.xlu0 %v262
      %v264 = vpop.xlane.xlu0 %263
      %v265 = vsel %vm261, %v230, 0.0
      %266 = vadd.xlane.f32.xlu0 %v265
      %v267 = vpop.xlane.xlu0 %266
      %v268 = vsel %vm261, %v231, 0.0
      %269 = vadd.xlane.f32.xlu0 %v268
      %v270 = vpop.xlane.xlu0 %269
      %v271 = vsel %vm261, %v232, 0.0
      %272 = vadd.xlane.f32.xlu0 %v271
      %v273 = vpop.xlane.xlu0 %272
      %v274 = vsel %vm261, %v233, 0.0
      %275 = vadd.xlane.f32.xlu0 %v274
      %v276 = vpop.xlane.xlu0 %275
      %v277 = vsel %vm261, %v234, 0.0
      %278 = vadd.xlane.f32.xlu0 %v277
      %v279 = vpop.xlane.xlu0 %278
      %v280 = vsel %vm261, %v235, 0.0
      %281 = vadd.xlane.f32.xlu0 %v280
      %v282 = vpop.xlane.xlu0 %281
      %v283 = vsel %vm261, %v236, 0.0
      %284 = vadd.xlane.f32.xlu0 %v283
      %v285 = vpop.xlane.xlu0 %284
      %v286 = vsel %vm261, %v237, 0.0
      %287 = vadd.xlane.f32.xlu0 %v286
      %v288 = vpop.xlane.xlu0 %287
      %v289 = vsel %vm261, %v238, 0.0
      %290 = vadd.xlane.f32.xlu0 %v289
      %v291 = vpop.xlane.xlu0 %290
      %v292 = vsel %vm261, %v239, 0.0
      %293 = vadd.xlane.f32.xlu0 %v292
      %v294 = vpop.xlane.xlu0 %293
      %v295 = vsel %vm261, %v240, 0.0
      %296 = vadd.xlane.f32.xlu0 %v295
      %v297 = vpop.xlane.xlu0 %296
      %v298 = vsel %vm261, %v241, 0.0
      %299 = vadd.xlane.f32.xlu0 %v298
      %v300 = vpop.xlane.xlu0 %299
      %v301 = vsel %vm261, %v242, 0.0
      %302 = vadd.xlane.f32.xlu0 %v301
      %v303 = vpop.xlane.xlu0 %302
      %v304 = vsel %vm261, %v243, 0.0
      %305 = vadd.xlane.f32.xlu0 %v304
      %v306 = vpop.xlane.xlu0 %305
      %v307 = vsel %vm261, %v244, 0.0
      %308 = vadd.xlane.f32.xlu0 %v307
      %v309 = vpop.xlane.xlu0 %308
      %v310 = vsel %vm261, %v245, 0.0
      %311 = vadd.xlane.f32.xlu0 %v310
      %v312 = vpop.xlane.xlu0 %311
      %v313 = vsel %vm261, %v246, 0.0
      %314 = vadd.xlane.f32.xlu0 %v313
      %v315 = vpop.xlane.xlu0 %314
      %v316 = vsel %vm261, %v247, 0.0
      %317 = vadd.xlane.f32.xlu0 %v316
      %v318 = vpop.xlane.xlu0 %317
      %v319 = vsel %vm261, %v248, 0.0
      %320 = vadd.xlane.f32.xlu0 %v319
      %v321 = vpop.xlane.xlu0 %320
      %v322 = vsel %vm261, %v249, 0.0
      %323 = vadd.xlane.f32.xlu0 %v322
      %v324 = vpop.xlane.xlu0 %323
      %v325 = vsel %vm261, %v250, 0.0
      %326 = vadd.xlane.f32.xlu0 %v325
      %v327 = vpop.xlane.xlu0 %326
      %v328 = vsel %vm261, %v251, 0.0
      %329 = vadd.xlane.f32.xlu0 %v328
      %v330 = vpop.xlane.xlu0 %329
      %v331 = vsel %vm261, %v252, 0.0
      %332 = vadd.xlane.f32.xlu0 %v331
      %v333 = vpop.xlane.xlu0 %332
      %v334 = vsel %vm261, %v253, 0.0
      %335 = vadd.xlane.f32.xlu0 %v334
      %v336 = vpop.xlane.xlu0 %335
      %v337 = vsel %vm261, %v254, 0.0
      %338 = vadd.xlane.f32.xlu0 %v337
      %v339 = vpop.xlane.xlu0 %338
      %v340 = vsel %vm261, %v255, 0.0
      %341 = vadd.xlane.f32.xlu0 %v340
      %v342 = vpop.xlane.xlu0 %341
      %v343 = vsel %vm261, %v256, 0.0
      %344 = vadd.xlane.f32.xlu0 %v343
      %v345 = vpop.xlane.xlu0 %344
      %v346 = vsel %vm261, %v257, 0.0
      %347 = vadd.xlane.f32.xlu0 %v346
      %v348 = vpop.xlane.xlu0 %347
      %v349 = vsel %vm261, %v258, 0.0
      %350 = vadd.xlane.f32.xlu0 %v349
      %v351 = vpop.xlane.xlu0 %350
      %v352 = vsel %vm261, %v259, 0.0
      %353 = vadd.xlane.f32.xlu0 %v352
      %v354 = vpop.xlane.xlu0 %353
      %v355 = vsel %vm261, %v260, 0.0
      %356 = vadd.xlane.f32.xlu0 %v355
      %v357 = vpop.xlane.xlu0 %356
      %v358 = vrcp.pop 32.0
      %v359 = vmul.f32 %v264, %v358
      %v360 = vmul.f32 %v267, %v358
      %v361 = vmul.f32 %v270, %v358
      %v362 = vmul.f32 %v273, %v358
      %v363 = vmul.f32 %v276, %v358
      %v364 = vmul.f32 %v279, %v358
      %v365 = vmul.f32 %v282, %v358
      %v366 = vmul.f32 %v285, %v358
      %v367 = vmul.f32 %v288, %v358
      %v368 = vmul.f32 %v291, %v358
      %v369 = vmul.f32 %v294, %v358
      %v370 = vmul.f32 %v297, %v358
      %v371 = vmul.f32 %v300, %v358
      %v372 = vmul.f32 %v303, %v358
      %v373 = vmul.f32 %v306, %v358
      %v374 = vmul.f32 %v309, %v358
      %v375 = vmul.f32 %v312, %v358
      %v376 = vmul.f32 %v315, %v358
      %v377 = vmul.f32 %v318, %v358
      %v378 = vmul.f32 %v321, %v358
      %v379 = vmul.f32 %v324, %v358
      %v380 = vmul.f32 %v327, %v358
      %v381 = vmul.f32 %v330, %v358
      %v382 = vmul.f32 %v333, %v358
      %v383 = vmul.f32 %v336, %v358
      %v384 = vmul.f32 %v339, %v358
      %v385 = vmul.f32 %v342, %v358
      %v386 = vmul.f32 %v345, %v358
      %v387 = vmul.f32 %v348, %v358
      %v388 = vmul.f32 %v351, %v358
      %v389 = vmul.f32 %v354, %v358
      %v390 = vmul.f32 %v357, %v358
      %v391 = vsub.f32 %v229, %v359
      %v392 = vsub.f32 %v230, %v360
      %v393 = vsub.f32 %v231, %v361
      %v394 = vsub.f32 %v232, %v362
      %v395 = vsub.f32 %v233, %v363
      %v396 = vsub.f32 %v234, %v364
      %v397 = vsub.f32 %v235, %v365
      %v398 = vsub.f32 %v236, %v366
      %v399 = vsub.f32 %v237, %v367
      %v400 = vsub.f32 %v238, %v368
      %v401 = vsub.f32 %v239, %v369
      %v402 = vsub.f32 %v240, %v370
      %v403 = vsub.f32 %v241, %v371
      %v404 = vsub.f32 %v242, %v372
      %v405 = vsub.f32 %v243, %v373
      %v406 = vsub.f32 %v244, %v374
      %v407 = vsub.f32 %v245, %v375
      %v408 = vsub.f32 %v246, %v376
      %v409 = vsub.f32 %v247, %v377
      %v410 = vsub.f32 %v248, %v378
      %v411 = vsub.f32 %v249, %v379
      %v412 = vsub.f32 %v250, %v380
      %v413 = vsub.f32 %v251, %v381
      %v414 = vsub.f32 %v252, %v382
      %v415 = vsub.f32 %v253, %v383
      %v416 = vsub.f32 %v254, %v384
      %v417 = vsub.f32 %v255, %v385
      %v418 = vsub.f32 %v256, %v386
      %v419 = vsub.f32 %v257, %v387
      %v420 = vsub.f32 %v258, %v388
      %v421 = vsub.f32 %v259, %v389
      %v422 = vsub.f32 %v260, %v390
      %v423 = vmul.f32 %v391, %v391
      %v424 = vmul.f32 %v392, %v392
      %v425 = vmul.f32 %v393, %v393
      %v426 = vmul.f32 %v394, %v394
      %v427 = vmul.f32 %v395, %v395
      %v428 = vmul.f32 %v396, %v396
      %v429 = vmul.f32 %v397, %v397
      %v430 = vmul.f32 %v398, %v398
      %v431 = vmul.f32 %v399, %v399
      %v432 = vmul.f32 %v400, %v400
      %v433 = vmul.f32 %v401, %v401
      %v434 = vmul.f32 %v402, %v402
      %v435 = vmul.f32 %v403, %v403
      %v436 = vmul.f32 %v404, %v404
      %v437 = vmul.f32 %v405, %v405
      %v438 = vmul.f32 %v406, %v406
      %v439 = vmul.f32 %v407, %v407
      %v440 = vmul.f32 %v408, %v408
      %v441 = vmul.f32 %v409, %v409
      %v442 = vmul.f32 %v410, %v410
      %v443 = vmul.f32 %v411, %v411
      %v444 = vmul.f32 %v412, %v412
      %v445 = vmul.f32 %v413, %v413
      %v446 = vmul.f32 %v414, %v414
      %v447 = vmul.f32 %v415, %v415
      %v448 = vmul.f32 %v416, %v416
      %v449 = vmul.f32 %v417, %v417
      %v450 = vmul.f32 %v418, %v418
      %v451 = vmul.f32 %v419, %v419
      %v452 = vmul.f32 %v420, %v420
      %v453 = vmul.f32 %v421, %v421
      %v454 = vmul.f32 %v422, %v422
      %v455 = vsel %vm261, %v423, 0.0
      %456 = vadd.xlane.f32.xlu0 %v455
      %v457 = vpop.xlane.xlu0 %456
      %v458 = vsel %vm261, %v424, 0.0
      %459 = vadd.xlane.f32.xlu0 %v458
      %v460 = vpop.xlane.xlu0 %459
      %v461 = vsel %vm261, %v425, 0.0
      %462 = vadd.xlane.f32.xlu0 %v461
      %v463 = vpop.xlane.xlu0 %462
      %v464 = vsel %vm261, %v426, 0.0
      %465 = vadd.xlane.f32.xlu0 %v464
      %v466 = vpop.xlane.xlu0 %465
      %v467 = vsel %vm261, %v427, 0.0
      %468 = vadd.xlane.f32.xlu0 %v467
      %v469 = vpop.xlane.xlu0 %468
      %v470 = vsel %vm261, %v428, 0.0
      %471 = vadd.xlane.f32.xlu0 %v470
      %v472 = vpop.xlane.xlu0 %471
      %v473 = vsel %vm261, %v429, 0.0
      %474 = vadd.xlane.f32.xlu0 %v473
      %v475 = vpop.xlane.xlu0 %474
      %v476 = vsel %vm261, %v430, 0.0
      %477 = vadd.xlane.f32.xlu0 %v476
      %v478 = vpop.xlane.xlu0 %477
      %v479 = vsel %vm261, %v431, 0.0
      %480 = vadd.xlane.f32.xlu0 %v479
      %v481 = vpop.xlane.xlu0 %480
      %v482 = vsel %vm261, %v432, 0.0
      %483 = vadd.xlane.f32.xlu0 %v482
      %v484 = vpop.xlane.xlu0 %483
      %v485 = vsel %vm261, %v433, 0.0
      %486 = vadd.xlane.f32.xlu0 %v485
      %v487 = vpop.xlane.xlu0 %486
      %v488 = vsel %vm261, %v434, 0.0
      %489 = vadd.xlane.f32.xlu0 %v488
      %v490 = vpop.xlane.xlu0 %489
      %v491 = vsel %vm261, %v435, 0.0
      %492 = vadd.xlane.f32.xlu0 %v491
      %v493 = vpop.xlane.xlu0 %492
      %v494 = vsel %vm261, %v436, 0.0
      %495 = vadd.xlane.f32.xlu0 %v494
      %v496 = vpop.xlane.xlu0 %495
      %v497 = vsel %vm261, %v437, 0.0
      %498 = vadd.xlane.f32.xlu0 %v497
      %v499 = vpop.xlane.xlu0 %498
      %v500 = vsel %vm261, %v438, 0.0
      %501 = vadd.xlane.f32.xlu0 %v500
      %v502 = vpop.xlane.xlu0 %501
      %v503 = vsel %vm261, %v439, 0.0
      %504 = vadd.xlane.f32.xlu0 %v503
      %v505 = vpop.xlane.xlu0 %504
      %v506 = vsel %vm261, %v440, 0.0
      %507 = vadd.xlane.f32.xlu0 %v506
      %v508 = vpop.xlane.xlu0 %507
      %v509 = vsel %vm261, %v441, 0.0
      %510 = vadd.xlane.f32.xlu0 %v509
      %v511 = vpop.xlane.xlu0 %510
      %v512 = vsel %vm261, %v442, 0.0
      %513 = vadd.xlane.f32.xlu0 %v512
      %v514 = vpop.xlane.xlu0 %513
      %v515 = vsel %vm261, %v443, 0.0
      %516 = vadd.xlane.f32.xlu0 %v515
      %v517 = vpop.xlane.xlu0 %516
      %v518 = vsel %vm261, %v444, 0.0
      %519 = vadd.xlane.f32.xlu0 %v518
      %v520 = vpop.xlane.xlu0 %519
      %v521 = vsel %vm261, %v445, 0.0
      %522 = vadd.xlane.f32.xlu0 %v521
      %v523 = vpop.xlane.xlu0 %522
      %v524 = vsel %vm261, %v446, 0.0
      %525 = vadd.xlane.f32.xlu0 %v524
      %v526 = vpop.xlane.xlu0 %525
      %v527 = vsel %vm261, %v447, 0.0
      %528 = vadd.xlane.f32.xlu0 %v527
      %v529 = vpop.xlane.xlu0 %528
      %v530 = vsel %vm261, %v448, 0.0
      %531 = vadd.xlane.f32.xlu0 %v530
      %v532 = vpop.xlane.xlu0 %531
      %v533 = vsel %vm261, %v449, 0.0
      %534 = vadd.xlane.f32.xlu0 %v533
      %v535 = vpop.xlane.xlu0 %534
      %v536 = vsel %vm261, %v450, 0.0
      %537 = vadd.xlane.f32.xlu0 %v536
      %v538 = vpop.xlane.xlu0 %537
      %v539 = vsel %vm261, %v451, 0.0
      %540 = vadd.xlane.f32.xlu0 %v539
      %v541 = vpop.xlane.xlu0 %540
      %v542 = vsel %vm261, %v452, 0.0
      %543 = vadd.xlane.f32.xlu0 %v542
      %v544 = vpop.xlane.xlu0 %543
      %v545 = vsel %vm261, %v453, 0.0
      %546 = vadd.xlane.f32.xlu0 %v545
      %v547 = vpop.xlane.xlu0 %546
      %v548 = vsel %vm261, %v454, 0.0
      %549 = vadd.xlane.f32.xlu0 %v548
      %v550 = vpop.xlane.xlu0 %549
      %v551 = vmul.f32 %v457, %v358
      %v552 = vmul.f32 %v460, %v358
      %v553 = vmul.f32 %v463, %v358
      %v554 = vmul.f32 %v466, %v358
      %v555 = vmul.f32 %v469, %v358
      %v556 = vmul.f32 %v472, %v358
      %v557 = vmul.f32 %v475, %v358
      %v558 = vmul.f32 %v478, %v358
      %v559 = vmul.f32 %v481, %v358
      %v560 = vmul.f32 %v484, %v358
      %v561 = vmul.f32 %v487, %v358
      %v562 = vmul.f32 %v490, %v358
      %v563 = vmul.f32 %v493, %v358
      %v564 = vmul.f32 %v496, %v358
      %v565 = vmul.f32 %v499, %v358
      %v566 = vmul.f32 %v502, %v358
      %v567 = vmul.f32 %v505, %v358
      %v568 = vmul.f32 %v508, %v358
      %v569 = vmul.f32 %v511, %v358
      %v570 = vmul.f32 %v514, %v358
      %v571 = vmul.f32 %v517, %v358
      %v572 = vmul.f32 %v520, %v358
      %v573 = vmul.f32 %v523, %v358
      %v574 = vmul.f32 %v526, %v358
      %v575 = vmul.f32 %v529, %v358
      %v576 = vmul.f32 %v532, %v358
      %v577 = vmul.f32 %v535, %v358
      %v578 = vmul.f32 %v538, %v358
      %v579 = vmul.f32 %v541, %v358
      %v580 = vmul.f32 %v544, %v358
      %v581 = vmul.f32 %v547, %v358
      %v582 = vmul.f32 %v550, %v358
      %v583 = vadd.f32 %v551, 1e-06
      %v584 = vadd.f32 %v552, 1e-06
      %v585 = vadd.f32 %v553, 1e-06
      %v586 = vadd.f32 %v554, 1e-06
      %v587 = vadd.f32 %v555, 1e-06
      %v588 = vadd.f32 %v556, 1e-06
      %v589 = vadd.f32 %v557, 1e-06
      %v590 = vadd.f32 %v558, 1e-06
      %v591 = vadd.f32 %v559, 1e-06
      %v592 = vadd.f32 %v560, 1e-06
      %v593 = vadd.f32 %v561, 1e-06
      %v594 = vadd.f32 %v562, 1e-06
      %v595 = vadd.f32 %v563, 1e-06
      %v596 = vadd.f32 %v564, 1e-06
      %v597 = vadd.f32 %v565, 1e-06
      %v598 = vadd.f32 %v566, 1e-06
      %v599 = vadd.f32 %v567, 1e-06
      %v600 = vadd.f32 %v568, 1e-06
      %v601 = vadd.f32 %v569, 1e-06
      %v602 = vadd.f32 %v570, 1e-06
      %v603 = vadd.f32 %v571, 1e-06
      %v604 = vadd.f32 %v572, 1e-06
      %v605 = vadd.f32 %v573, 1e-06
      %v606 = vadd.f32 %v574, 1e-06
      %v607 = vadd.f32 %v575, 1e-06
      %v608 = vadd.f32 %v576, 1e-06
      %v609 = vadd.f32 %v577, 1e-06
      %v610 = vadd.f32 %v578, 1e-06
      %v611 = vadd.f32 %v579, 1e-06
      %v612 = vadd.f32 %v580, 1e-06
      %v613 = vadd.f32 %v581, 1e-06
      %v614 = vadd.f32 %v582, 1e-06
      %v615 = vrsqrt.pop %v583
      %v616 = vrsqrt.pop %v584
      %v617 = vrsqrt.pop %v585
      %v618 = vrsqrt.pop %v586
      %v619 = vrsqrt.pop %v587
      %v620 = vrsqrt.pop %v588
      %v621 = vrsqrt.pop %v589
      %v622 = vrsqrt.pop %v590
      %v623 = vrsqrt.pop %v591
      %v624 = vrsqrt.pop %v592
      %v625 = vrsqrt.pop %v593
      %v626 = vrsqrt.pop %v594
      %v627 = vrsqrt.pop %v595
      %v628 = vrsqrt.pop %v596
      %v629 = vrsqrt.pop %v597
      %v630 = vrsqrt.pop %v598
      %v631 = vrsqrt.pop %v599
      %v632 = vrsqrt.pop %v600
      %v633 = vrsqrt.pop %v601
      %v634 = vrsqrt.pop %v602
      %v635 = vrsqrt.pop %v603
      %v636 = vrsqrt.pop %v604
      %v637 = vrsqrt.pop %v605
      %v638 = vrsqrt.pop %v606
      %v639 = vrsqrt.pop %v607
      %v640 = vrsqrt.pop %v608
      %v641 = vrsqrt.pop %v609
      %v642 = vrsqrt.pop %v610
      %v643 = vrsqrt.pop %v611
      %v644 = vrsqrt.pop %v612
      %v645 = vrsqrt.pop %v613
      %v646 = vrsqrt.pop %v614
      %v647 = vmul.f32 %v391, %v615
      %v648 = vmul.f32 %v392, %v616
      %v649 = vmul.f32 %v393, %v617
      %v650 = vmul.f32 %v394, %v618
      %v651 = vmul.f32 %v395, %v619
      %v652 = vmul.f32 %v396, %v620
      %v653 = vmul.f32 %v397, %v621
      %v654 = vmul.f32 %v398, %v622
      %v655 = vmul.f32 %v399, %v623
      %v656 = vmul.f32 %v400, %v624
      %v657 = vmul.f32 %v401, %v625
      %v658 = vmul.f32 %v402, %v626
      %v659 = vmul.f32 %v403, %v627
      %v660 = vmul.f32 %v404, %v628
      %v661 = vmul.f32 %v405, %v629
      %v662 = vmul.f32 %v406, %v630
      %v663 = vmul.f32 %v407, %v631
      %v664 = vmul.f32 %v408, %v632
      %v665 = vmul.f32 %v409, %v633
      %v666 = vmul.f32 %v410, %v634
      %v667 = vmul.f32 %v411, %v635
      %v668 = vmul.f32 %v412, %v636
      %v669 = vmul.f32 %v413, %v637
      %v670 = vmul.f32 %v414, %v638
      %v671 = vmul.f32 %v415, %v639
      %v672 = vmul.f32 %v416, %v640
      %v673 = vmul.f32 %v417, %v641
      %v674 = vmul.f32 %v418, %v642
      %v675 = vmul.f32 %v419, %v643
      %v676 = vmul.f32 %v420, %v644
      %v677 = vmul.f32 %v421, %v645
      %v678 = vmul.f32 %v422, %v646
      %v679 = vld [vmem:[%s1] sm:$0x1]
      %v681 = vlaneseq
      %v682 = vshrl.u32 %v681, 7
      %v683 = vsub.s32 0, %v682
      %v684 = vrot.slane %v679, %v683
      %v686 = vmul.f32 %v647, %v684
      %v687 = vmul.f32 %v648, %v684
      %v688 = vmul.f32 %v649, %v684
      %v689 = vmul.f32 %v650, %v684
      %v690 = vmul.f32 %v651, %v684
      %v691 = vmul.f32 %v652, %v684
      %v692 = vmul.f32 %v653, %v684
      %v693 = vmul.f32 %v654, %v684
      %v694 = vmul.f32 %v655, %v684
      %v695 = vmul.f32 %v656, %v684
      %v696 = vmul.f32 %v657, %v684
      %v697 = vmul.f32 %v658, %v684
      %v698 = vmul.f32 %v659, %v684
      %v699 = vmul.f32 %v660, %v684
      %v700 = vmul.f32 %v661, %v684
      %v701 = vmul.f32 %v662, %v684
      %v702 = vmul.f32 %v663, %v684
      %v703 = vmul.f32 %v664, %v684
      %v704 = vmul.f32 %v665, %v684
      %v705 = vmul.f32 %v666, %v684
      %v706 = vmul.f32 %v667, %v684
      %v707 = vmul.f32 %v668, %v684
      %v708 = vmul.f32 %v669, %v684
      %v709 = vmul.f32 %v670, %v684
      %v710 = vmul.f32 %v671, %v684
      %v711 = vmul.f32 %v672, %v684
      %v712 = vmul.f32 %v673, %v684
      %v713 = vmul.f32 %v674, %v684
      %v714 = vmul.f32 %v675, %v684
      %v715 = vmul.f32 %v676, %v684
      %v716 = vmul.f32 %v677, %v684
      %v717 = vmul.f32 %v678, %v684
      %v718 = vld [vmem:[%s2] sm:$0x1]
      %v720 = vlaneseq
      %v721 = vshrl.u32 %v720, 7
      %v722 = vsub.s32 0, %v721
      %v723 = vrot.slane %v718, %v722
      %v725 = vadd.f32 %v686, %v723
      %v726 = vadd.f32 %v687, %v723
      %v727 = vadd.f32 %v688, %v723
      %v728 = vadd.f32 %v689, %v723
      %v729 = vadd.f32 %v690, %v723
      %v730 = vadd.f32 %v691, %v723
      %v731 = vadd.f32 %v692, %v723
      %v732 = vadd.f32 %v693, %v723
      %v733 = vadd.f32 %v694, %v723
      %v734 = vadd.f32 %v695, %v723
      %v735 = vadd.f32 %v696, %v723
      %v736 = vadd.f32 %v697, %v723
      %v737 = vadd.f32 %v698, %v723
      %v738 = vadd.f32 %v699, %v723
      %v739 = vadd.f32 %v700, %v723
      %v740 = vadd.f32 %v701, %v723
      %v741 = vadd.f32 %v702, %v723
      %v742 = vadd.f32 %v703, %v723
      %v743 = vadd.f32 %v704, %v723
      %v744 = vadd.f32 %v705, %v723
      %v745 = vadd.f32 %v706, %v723
      %v746 = vadd.f32 %v707, %v723
      %v747 = vadd.f32 %v708, %v723
      %v748 = vadd.f32 %v709, %v723
      %v749 = vadd.f32 %v710, %v723
      %v750 = vadd.f32 %v711, %v723
      %v751 = vadd.f32 %v712, %v723
      %v752 = vadd.f32 %v713, %v723
      %v753 = vadd.f32 %v714, %v723
      %v754 = vadd.f32 %v715, %v723
      %v755 = vadd.f32 %v716, %v723
      %v756 = vadd.f32 %v717, %v723
      %v757 = vpack.c.bf16 %v726, %v725
      %v758 = vpack.c.bf16 %v728, %v727
      %v759 = vpack.c.bf16 %v730, %v729
      %v760 = vpack.c.bf16 %v732, %v731
      %v761 = vpack.c.bf16 %v734, %v733
      %v762 = vpack.c.bf16 %v736, %v735
      %v763 = vpack.c.bf16 %v738, %v737
      %v764 = vpack.c.bf16 %v740, %v739
      %v765 = vpack.c.bf16 %v742, %v741
      %v766 = vpack.c.bf16 %v744, %v743
      %v767 = vpack.c.bf16 %v746, %v745
      %v768 = vpack.c.bf16 %v748, %v747
      %v769 = vpack.c.bf16 %v750, %v749
      %v770 = vpack.c.bf16 %v752, %v751
      %v771 = vpack.c.bf16 %v754, %v753
      %v772 = vpack.c.bf16 %v756, %v755
      %v773 = vld [vmem:[%s3] sm:$0xf]
      %v774 = vld [vmem:[%s3 + $0x4] sm:$0xf]
      %v775 = vld [vmem:[%s3 + $0x8] sm:$0xf]
      %v776 = vld [vmem:[%s3 + $0xc] sm:$0xf]
      %v777 = vld [vmem:[%s4] sm:$0x1]
      %v779 = vlaneseq
      %v780 = vshrl.u32 %v779, 7
      %v781 = vsub.s32 0, %v780
      %v782 = vrot.slane %v777, %v781
      %v788 = vunpack.c.l.b16 %v773
      %v789 = vunpack.c.l.b16 %v774
      %v790 = vunpack.c.l.b16 %v775
      %v791 = vunpack.c.l.b16 %v776
      %v792 = vpack.c.b16 %v789, %v788
      %v793 = vpack.c.b16 %v791, %v790
      %v797 = vsel %vm261, %v757, 0
      %v800 = vsel %vm261, %v758, 0
      %v803 = vsel %vm261, %v759, 0
      %v806 = vsel %vm261, %v760, 0
      %v809 = vsel %vm261, %v761, 0
      %v812 = vsel %vm261, %v762, 0
      %v815 = vsel %vm261, %v763, 0
      %v818 = vsel %vm261, %v764, 0
      %v821 = vsel %vm261, %v765, 0
      %v824 = vsel %vm261, %v766, 0
      %v827 = vsel %vm261, %v767, 0
      %v830 = vsel %vm261, %v768, 0
      %v833 = vsel %vm261, %v769, 0
      %v836 = vsel %vm261, %v770, 0
      %v839 = vsel %vm261, %v771, 0
      %v842 = vsel %vm261, %v772, 0
      %844 = vmatprep.subr.bf16.mxu0 0
      %845 = vmatpush1.bf16.msra.mxu0 0
      %846 = vmatprep.subr.bf16.mxu0 0
      %847 = vmatpush1.bf16.msra.mxu0 0
      %848 = vmatprep.subr.bf16.mxu0 0
      %849 = vmatpush1.bf16.msra.mxu0 0
      %850 = vmatprep.subr.bf16.mxu0 0
      %851 = vmatpush1.bf16.msra.mxu0 0
      %852 = vmatprep.subr.bf16.mxu0 0
      %853 = vmatpush1.bf16.msra.mxu0 0
      %854 = vmatprep.subr.bf16.mxu0 0
      %855 = vmatpush1.bf16.msra.mxu0 0
      %856 = vmatprep.subr.bf16.mxu0 0
      %857 = vmatpush1.bf16.msra.mxu0 %v793
      %858 = vmatprep.subr.bf16.mxu0 0
      %859 = vmatpush1.bf16.msra.mxu0 %v792
      %860 = vmatprep.subr.bf16.mxu0 0
      %861 = vmatpush2.bf16.msra.mxu0 0
      %862 = vmatprep.subr.bf16.mxu0 0
      %863 = vmatpush2.bf16.msra.mxu0 0
      %864 = vmatprep.subr.bf16.mxu0 0
      %865 = vmatpush2.bf16.msra.mxu0 0
      %866 = vmatprep.subr.bf16.mxu0 0
      %867 = vmatpush2.bf16.msra.mxu0 0
      %868 = vmatprep.subr.bf16.mxu0 0
      %869 = vmatpush2.bf16.msra.mxu0 0
      %870 = vmatprep.subr.bf16.mxu0 0
      %871 = vmatpush2.bf16.msra.mxu0 0
      %872 = vmatprep.subr.bf16.mxu0 0
      %873 = vmatpush2.bf16.msra.mxu0 0
      %874 = vmatprep.subr.bf16.mxu0 0
      %875 = vmatpush2.bf16.msra.mxu0 0
      %876 = vmatprep.mubr.bf16.mxu0 0
      %877 = vmatmul.mubr.bf16.gmra.mxu0 %v797
      %v878 = vpop.f32.mrf.mxu0
      %v879 = vadd.f32 %v782, %v878
      %v880 = vpop.f32.mrf.mxu0
      %v881 = vpop.f32.mrf.mxu0
      %v882 = vadd.f32 %v782, %v881
      %v883 = vpop.f32.mrf.mxu0
      %884 = vmatprep.mubr.bf16.mxu0 0
      %885 = vmatmul.mubr.bf16.gmra.mxu0 %v800
      %v886 = vpop.f32.mrf.mxu0
      %v887 = vadd.f32 %v782, %v886
      %v888 = vpop.f32.mrf.mxu0
      %v889 = vpop.f32.mrf.mxu0
      %v890 = vadd.f32 %v782, %v889
      %v891 = vpop.f32.mrf.mxu0
      %892 = vmatprep.mubr.bf16.mxu0 0
      %893 = vmatmul.mubr.bf16.gmra.mxu0 %v803
      %v894 = vpop.f32.mrf.mxu0
      %v895 = vadd.f32 %v782, %v894
      %v896 = vpop.f32.mrf.mxu0
      %v897 = vpop.f32.mrf.mxu0
      %v898 = vadd.f32 %v782, %v897
      %v899 = vpop.f32.mrf.mxu0
      %900 = vmatprep.mubr.bf16.mxu0 0
      %901 = vmatmul.mubr.bf16.gmra.mxu0 %v806
      %v902 = vpop.f32.mrf.mxu0
      %v903 = vadd.f32 %v782, %v902
      %v904 = vpop.f32.mrf.mxu0
      %v905 = vpop.f32.mrf.mxu0
      %v906 = vadd.f32 %v782, %v905
      %v907 = vpop.f32.mrf.mxu0
      %908 = vmatprep.mubr.bf16.mxu0 0
      %909 = vmatmul.mubr.bf16.gmra.mxu0 %v809
      %v910 = vpop.f32.mrf.mxu0
      %v911 = vadd.f32 %v782, %v910
      %v912 = vpop.f32.mrf.mxu0
      %v913 = vpop.f32.mrf.mxu0
      %v914 = vadd.f32 %v782, %v913
      %v915 = vpop.f32.mrf.mxu0
      %916 = vmatprep.mubr.bf16.mxu0 0
      %917 = vmatmul.mubr.bf16.gmra.mxu0 %v812
      %v918 = vpop.f32.mrf.mxu0
      %v919 = vadd.f32 %v782, %v918
      %v920 = vpop.f32.mrf.mxu0
      %v921 = vpop.f32.mrf.mxu0
      %v922 = vadd.f32 %v782, %v921
      %v923 = vpop.f32.mrf.mxu0
      %924 = vmatprep.mubr.bf16.mxu0 0
      %925 = vmatmul.mubr.bf16.gmra.mxu0 %v815
      %v926 = vpop.f32.mrf.mxu0
      %v927 = vadd.f32 %v782, %v926
      %v928 = vpop.f32.mrf.mxu0
      %v929 = vpop.f32.mrf.mxu0
      %v930 = vadd.f32 %v782, %v929
      %v931 = vpop.f32.mrf.mxu0
      %932 = vmatprep.mubr.bf16.mxu0 0
      %933 = vmatmul.mubr.bf16.gmra.mxu0 %v818
      %v934 = vpop.f32.mrf.mxu0
      %v935 = vadd.f32 %v782, %v934
      %v936 = vpop.f32.mrf.mxu0
      %v937 = vpop.f32.mrf.mxu0
      %v938 = vadd.f32 %v782, %v937
      %v939 = vpop.f32.mrf.mxu0
      %940 = vmatprep.mubr.bf16.mxu0 0
      %941 = vmatmul.mubr.bf16.gmra.mxu0 %v821
      %v942 = vpop.f32.mrf.mxu0
      %v943 = vadd.f32 %v782, %v942
      %v944 = vpop.f32.mrf.mxu0
      %v945 = vpop.f32.mrf.mxu0
      %v946 = vadd.f32 %v782, %v945
      %v947 = vpop.f32.mrf.mxu0
      %948 = vmatprep.mubr.bf16.mxu0 0
      %949 = vmatmul.mubr.bf16.gmra.mxu0 %v824
      %v950 = vpop.f32.mrf.mxu0
      %v951 = vadd.f32 %v782, %v950
      %v952 = vpop.f32.mrf.mxu0
      %v953 = vpop.f32.mrf.mxu0
      %v954 = vadd.f32 %v782, %v953
      %v955 = vpop.f32.mrf.mxu0
      %956 = vmatprep.mubr.bf16.mxu0 0
      %957 = vmatmul.mubr.bf16.gmra.mxu0 %v827
      %v958 = vpop.f32.mrf.mxu0
      %v959 = vadd.f32 %v782, %v958
      %v960 = vpop.f32.mrf.mxu0
      %v961 = vpop.f32.mrf.mxu0
      %v962 = vadd.f32 %v782, %v961
      %v963 = vpop.f32.mrf.mxu0
      %964 = vmatprep.mubr.bf16.mxu0 0
      %965 = vmatmul.mubr.bf16.gmra.mxu0 %v830
      %v966 = vpop.f32.mrf.mxu0
      %v967 = vadd.f32 %v782, %v966
      %v968 = vpop.f32.mrf.mxu0
      %v969 = vpop.f32.mrf.mxu0
      %v970 = vadd.f32 %v782, %v969
      %v971 = vpop.f32.mrf.mxu0
      %972 = vmatprep.mubr.bf16.mxu0 0
      %973 = vmatmul.mubr.bf16.gmra.mxu0 %v833
      %v974 = vpop.f32.mrf.mxu0
      %v975 = vadd.f32 %v782, %v974
      %v976 = vpop.f32.mrf.mxu0
      %v977 = vpop.f32.mrf.mxu0
      %v978 = vadd.f32 %v782, %v977
      %v979 = vpop.f32.mrf.mxu0
      %980 = vmatprep.mubr.bf16.mxu0 0
      %981 = vmatmul.mubr.bf16.gmra.mxu0 %v836
      %v982 = vpop.f32.mrf.mxu0
      %v983 = vadd.f32 %v782, %v982
      %v984 = vpop.f32.mrf.mxu0
      %v985 = vpop.f32.mrf.mxu0
      %v986 = vadd.f32 %v782, %v985
      %v987 = vpop.f32.mrf.mxu0
      %988 = vmatprep.mubr.bf16.mxu0 0
      %989 = vmatmul.mubr.bf16.gmra.mxu0 %v839
      %v990 = vpop.f32.mrf.mxu0
      %v991 = vadd.f32 %v782, %v990
      %v992 = vpop.f32.mrf.mxu0
      %v993 = vpop.f32.mrf.mxu0
      %v994 = vadd.f32 %v782, %v993
      %v995 = vpop.f32.mrf.mxu0
      %996 = vmatprep.mubr.bf16.mxu0 0
      %997 = vmatmul.mubr.bf16.gmra.mxu0 %v842
      %v998 = vpop.f32.mrf.mxu0
      %v999 = vadd.f32 %v782, %v998
      %v1000 = vpop.f32.mrf.mxu0
      %v1001 = vpop.f32.mrf.mxu0
      %v1002 = vadd.f32 %v782, %v1001
      %v1003 = vpop.f32.mrf.mxu0
      %1004 = vdwg.mxu0
      %v1005 = vmul.f32 %v879, %v879
      %v1006 = vmul.f32 %v882, %v882
      %v1007 = vmul.f32 %v887, %v887
      %v1008 = vmul.f32 %v890, %v890
      %v1009 = vmul.f32 %v895, %v895
      %v1010 = vmul.f32 %v898, %v898
      %v1011 = vmul.f32 %v903, %v903
      %v1012 = vmul.f32 %v906, %v906
      %v1013 = vmul.f32 %v911, %v911
      %v1014 = vmul.f32 %v914, %v914
      %v1015 = vmul.f32 %v919, %v919
      %v1016 = vmul.f32 %v922, %v922
      %v1017 = vmul.f32 %v927, %v927
      %v1018 = vmul.f32 %v930, %v930
      %v1019 = vmul.f32 %v935, %v935
      %v1020 = vmul.f32 %v938, %v938
      %v1021 = vmul.f32 %v943, %v943
      %v1022 = vmul.f32 %v946, %v946
      %v1023 = vmul.f32 %v951, %v951
      %v1024 = vmul.f32 %v954, %v954
      %v1025 = vmul.f32 %v959, %v959
      %v1026 = vmul.f32 %v962, %v962
      %v1027 = vmul.f32 %v967, %v967
      %v1028 = vmul.f32 %v970, %v970
      %v1029 = vmul.f32 %v975, %v975
      %v1030 = vmul.f32 %v978, %v978
      %v1031 = vmul.f32 %v983, %v983
      %v1032 = vmul.f32 %v986, %v986
      %v1033 = vmul.f32 %v991, %v991
      %v1034 = vmul.f32 %v994, %v994
      %v1035 = vmul.f32 %v999, %v999
      %v1036 = vmul.f32 %v1002, %v1002
      %v1037 = vmul.f32 %v879, %v1005
      %v1038 = vmul.f32 %v882, %v1006
      %v1039 = vmul.f32 %v887, %v1007
      %v1040 = vmul.f32 %v890, %v1008
      %v1041 = vmul.f32 %v895, %v1009
      %v1042 = vmul.f32 %v898, %v1010
      %v1043 = vmul.f32 %v903, %v1011
      %v1044 = vmul.f32 %v906, %v1012
      %v1045 = vmul.f32 %v911, %v1013
      %v1046 = vmul.f32 %v914, %v1014
      %v1047 = vmul.f32 %v919, %v1015
      %v1048 = vmul.f32 %v922, %v1016
      %v1049 = vmul.f32 %v927, %v1017
      %v1050 = vmul.f32 %v930, %v1018
      %v1051 = vmul.f32 %v935, %v1019
      %v1052 = vmul.f32 %v938, %v1020
      %v1053 = vmul.f32 %v943, %v1021
      %v1054 = vmul.f32 %v946, %v1022
      %v1055 = vmul.f32 %v951, %v1023
      %v1056 = vmul.f32 %v954, %v1024
      %v1057 = vmul.f32 %v959, %v1025
      %v1058 = vmul.f32 %v962, %v1026
      %v1059 = vmul.f32 %v967, %v1027
      %v1060 = vmul.f32 %v970, %v1028
      %v1061 = vmul.f32 %v975, %v1029
      %v1062 = vmul.f32 %v978, %v1030
      %v1063 = vmul.f32 %v983, %v1031
      %v1064 = vmul.f32 %v986, %v1032
      %v1065 = vmul.f32 %v991, %v1033
      %v1066 = vmul.f32 %v994, %v1034
      %v1067 = vmul.f32 %v999, %v1035
      %v1068 = vmul.f32 %v1002, %v1036
      %v1069 = vmul.f32 %v1037, 0.044715
      %v1070 = vmul.f32 %v1038, 0.044715
      %v1071 = vmul.f32 %v1039, 0.044715
      %v1072 = vmul.f32 %v1040, 0.044715
      %v1073 = vmul.f32 %v1041, 0.044715
      %v1074 = vmul.f32 %v1042, 0.044715
      %v1075 = vmul.f32 %v1043, 0.044715
      %v1076 = vmul.f32 %v1044, 0.044715
      %v1077 = vmul.f32 %v1045, 0.044715
      %v1078 = vmul.f32 %v1046, 0.044715
      %v1079 = vmul.f32 %v1047, 0.044715
      %v1080 = vmul.f32 %v1048, 0.044715
      %v1081 = vmul.f32 %v1049, 0.044715
      %v1082 = vmul.f32 %v1050, 0.044715
      %v1083 = vmul.f32 %v1051, 0.044715
      %v1084 = vmul.f32 %v1052, 0.044715
      %v1085 = vmul.f32 %v1053, 0.044715
      %v1086 = vmul.f32 %v1054, 0.044715
      %v1087 = vmul.f32 %v1055, 0.044715
      %v1088 = vmul.f32 %v1056, 0.044715
      %v1089 = vmul.f32 %v1057, 0.044715
      %v1090 = vmul.f32 %v1058, 0.044715
      %v1091 = vmul.f32 %v1059, 0.044715
      %v1092 = vmul.f32 %v1060, 0.044715
      %v1093 = vmul.f32 %v1061, 0.044715
      %v1094 = vmul.f32 %v1062, 0.044715
      %v1095 = vmul.f32 %v1063, 0.044715
      %v1096 = vmul.f32 %v1064, 0.044715
      %v1097 = vmul.f32 %v1065, 0.044715
      %v1098 = vmul.f32 %v1066, 0.044715
      %v1099 = vmul.f32 %v1067, 0.044715
      %v1100 = vmul.f32 %v1068, 0.044715
      %v1101 = vadd.f32 %v879, %v1069
      %v1102 = vadd.f32 %v882, %v1070
      %v1103 = vadd.f32 %v887, %v1071
      %v1104 = vadd.f32 %v890, %v1072
      %v1105 = vadd.f32 %v895, %v1073
      %v1106 = vadd.f32 %v898, %v1074
      %v1107 = vadd.f32 %v903, %v1075
      %v1108 = vadd.f32 %v906, %v1076
      %v1109 = vadd.f32 %v911, %v1077
      %v1110 = vadd.f32 %v914, %v1078
      %v1111 = vadd.f32 %v919, %v1079
      %v1112 = vadd.f32 %v922, %v1080
      %v1113 = vadd.f32 %v927, %v1081
      %v1114 = vadd.f32 %v930, %v1082
      %v1115 = vadd.f32 %v935, %v1083
      %v1116 = vadd.f32 %v938, %v1084
      %v1117 = vadd.f32 %v943, %v1085
      %v1118 = vadd.f32 %v946, %v1086
      %v1119 = vadd.f32 %v951, %v1087
      %v1120 = vadd.f32 %v954, %v1088
      %v1121 = vadd.f32 %v959, %v1089
      %v1122 = vadd.f32 %v962, %v1090
      %v1123 = vadd.f32 %v967, %v1091
      %v1124 = vadd.f32 %v970, %v1092
      %v1125 = vadd.f32 %v975, %v1093
      %v1126 = vadd.f32 %v978, %v1094
      %v1127 = vadd.f32 %v983, %v1095
      %v1128 = vadd.f32 %v986, %v1096
      %v1129 = vadd.f32 %v991, %v1097
      %v1130 = vadd.f32 %v994, %v1098
      %v1131 = vadd.f32 %v999, %v1099
      %v1132 = vadd.f32 %v1002, %v1100
      %v1133 = vmul.f32 %v1101, 0.7978846
      %v1134 = vmul.f32 %v1102, 0.7978846
      %v1135 = vmul.f32 %v1103, 0.7978846
      %v1136 = vmul.f32 %v1104, 0.7978846
      %v1137 = vmul.f32 %v1105, 0.7978846
      %v1138 = vmul.f32 %v1106, 0.7978846
      %v1139 = vmul.f32 %v1107, 0.7978846
      %v1140 = vmul.f32 %v1108, 0.7978846
      %v1141 = vmul.f32 %v1109, 0.7978846
      %v1142 = vmul.f32 %v1110, 0.7978846
      %v1143 = vmul.f32 %v1111, 0.7978846
      %v1144 = vmul.f32 %v1112, 0.7978846
      %v1145 = vmul.f32 %v1113, 0.7978846
      %v1146 = vmul.f32 %v1114, 0.7978846
      %v1147 = vmul.f32 %v1115, 0.7978846
      %v1148 = vmul.f32 %v1116, 0.7978846
      %v1149 = vmul.f32 %v1117, 0.7978846
      %v1150 = vmul.f32 %v1118, 0.7978846
      %v1151 = vmul.f32 %v1119, 0.7978846
      %v1152 = vmul.f32 %v1120, 0.7978846
      %v1153 = vmul.f32 %v1121, 0.7978846
      %v1154 = vmul.f32 %v1122, 0.7978846
      %v1155 = vmul.f32 %v1123, 0.7978846
      %v1156 = vmul.f32 %v1124, 0.7978846
      %v1157 = vmul.f32 %v1125, 0.7978846
      %v1158 = vmul.f32 %v1126, 0.7978846
      %v1159 = vmul.f32 %v1127, 0.7978846
      %v1160 = vmul.f32 %v1128, 0.7978846
      %v1161 = vmul.f32 %v1129, 0.7978846
      %v1162 = vmul.f32 %v1130, 0.7978846
      %v1163 = vmul.f32 %v1131, 0.7978846
      %v1164 = vmul.f32 %v1132, 0.7978846
      %v1165 = vtanh.pop %v1133
      %v1166 = vtanh.pop %v1134
      %v1167 = vtanh.pop %v1135
      %v1168 = vtanh.pop %v1136
      %v1169 = vtanh.pop %v1137
      %v1170 = vtanh.pop %v1138
      %v1171 = vtanh.pop %v1139
      %v1172 = vtanh.pop %v1140
      %v1173 = vtanh.pop %v1141
      %v1174 = vtanh.pop %v1142
      %v1175 = vtanh.pop %v1143
      %v1176 = vtanh.pop %v1144
      %v1177 = vtanh.pop %v1145
      %v1178 = vtanh.pop %v1146
      %v1179 = vtanh.pop %v1147
      %v1180 = vtanh.pop %v1148
      %v1181 = vtanh.pop %v1149
      %v1182 = vtanh.pop %v1150
      %v1183 = vtanh.pop %v1151
      %v1184 = vtanh.pop %v1152
      %v1185 = vtanh.pop %v1153
      %v1186 = vtanh.pop %v1154
      %v1187 = vtanh.pop %v1155
      %v1188 = vtanh.pop %v1156
      %v1189 = vtanh.pop %v1157
      %v1190 = vtanh.pop %v1158
      %v1191 = vtanh.pop %v1159
      %v1192 = vtanh.pop %v1160
      %v1193 = vtanh.pop %v1161
      %v1194 = vtanh.pop %v1162
      %v1195 = vtanh.pop %v1163
      %v1196 = vtanh.pop %v1164
      %v1197 = vadd.f32 %v1165, 1.0
      %v1198 = vadd.f32 %v1166, 1.0
      %v1199 = vadd.f32 %v1167, 1.0
      %v1200 = vadd.f32 %v1168, 1.0
      %v1201 = vadd.f32 %v1169, 1.0
      %v1202 = vadd.f32 %v1170, 1.0
      %v1203 = vadd.f32 %v1171, 1.0
      %v1204 = vadd.f32 %v1172, 1.0
      %v1205 = vadd.f32 %v1173, 1.0
      %v1206 = vadd.f32 %v1174, 1.0
      %v1207 = vadd.f32 %v1175, 1.0
      %v1208 = vadd.f32 %v1176, 1.0
      %v1209 = vadd.f32 %v1177, 1.0
      %v1210 = vadd.f32 %v1178, 1.0
      %v1211 = vadd.f32 %v1179, 1.0
      %v1212 = vadd.f32 %v1180, 1.0
      %v1213 = vadd.f32 %v1181, 1.0
      %v1214 = vadd.f32 %v1182, 1.0
      %v1215 = vadd.f32 %v1183, 1.0
      %v1216 = vadd.f32 %v1184, 1.0
      %v1217 = vadd.f32 %v1185, 1.0
      %v1218 = vadd.f32 %v1186, 1.0
      %v1219 = vadd.f32 %v1187, 1.0
      %v1220 = vadd.f32 %v1188, 1.0
      %v1221 = vadd.f32 %v1189, 1.0
      %v1222 = vadd.f32 %v1190, 1.0
      %v1223 = vadd.f32 %v1191, 1.0
      %v1224 = vadd.f32 %v1192, 1.0
      %v1225 = vadd.f32 %v1193, 1.0
      %v1226 = vadd.f32 %v1194, 1.0
      %v1227 = vadd.f32 %v1195, 1.0
      %v1228 = vadd.f32 %v1196, 1.0
      %v1229 = vmul.f32 %v1197, 0.5
      %v1230 = vmul.f32 %v1198, 0.5
      %v1231 = vmul.f32 %v1199, 0.5
      %v1232 = vmul.f32 %v1200, 0.5
      %v1233 = vmul.f32 %v1201, 0.5
      %v1234 = vmul.f32 %v1202, 0.5
      %v1235 = vmul.f32 %v1203, 0.5
      %v1236 = vmul.f32 %v1204, 0.5
      %v1237 = vmul.f32 %v1205, 0.5
      %v1238 = vmul.f32 %v1206, 0.5
      %v1239 = vmul.f32 %v1207, 0.5
      %v1240 = vmul.f32 %v1208, 0.5
      %v1241 = vmul.f32 %v1209, 0.5
      %v1242 = vmul.f32 %v1210, 0.5
      %v1243 = vmul.f32 %v1211, 0.5
      %v1244 = vmul.f32 %v1212, 0.5
      %v1245 = vmul.f32 %v1213, 0.5
      %v1246 = vmul.f32 %v1214, 0.5
      %v1247 = vmul.f32 %v1215, 0.5
      %v1248 = vmul.f32 %v1216, 0.5
      %v1249 = vmul.f32 %v1217, 0.5
      %v1250 = vmul.f32 %v1218, 0.5
      %v1251 = vmul.f32 %v1219, 0.5
      %v1252 = vmul.f32 %v1220, 0.5
      %v1253 = vmul.f32 %v1221, 0.5
      %v1254 = vmul.f32 %v1222, 0.5
      %v1255 = vmul.f32 %v1223, 0.5
      %v1256 = vmul.f32 %v1224, 0.5
      %v1257 = vmul.f32 %v1225, 0.5
      %v1258 = vmul.f32 %v1226, 0.5
      %v1259 = vmul.f32 %v1227, 0.5
      %v1260 = vmul.f32 %v1228, 0.5
      %v1261 = vmul.f32 %v879, %v1229
      %v1262 = vmul.f32 %v882, %v1230
      %v1263 = vmul.f32 %v887, %v1231
      %v1264 = vmul.f32 %v890, %v1232
      %v1265 = vmul.f32 %v895, %v1233
      %v1266 = vmul.f32 %v898, %v1234
      %v1267 = vmul.f32 %v903, %v1235
      %v1268 = vmul.f32 %v906, %v1236
      %v1269 = vmul.f32 %v911, %v1237
      %v1270 = vmul.f32 %v914, %v1238
      %v1271 = vmul.f32 %v919, %v1239
      %v1272 = vmul.f32 %v922, %v1240
      %v1273 = vmul.f32 %v927, %v1241
      %v1274 = vmul.f32 %v930, %v1242
      %v1275 = vmul.f32 %v935, %v1243
      %v1276 = vmul.f32 %v938, %v1244
      %v1277 = vmul.f32 %v943, %v1245
      %v1278 = vmul.f32 %v946, %v1246
      %v1279 = vmul.f32 %v951, %v1247
      %v1280 = vmul.f32 %v954, %v1248
      %v1281 = vmul.f32 %v959, %v1249
      %v1282 = vmul.f32 %v962, %v1250
      %v1283 = vmul.f32 %v967, %v1251
      %v1284 = vmul.f32 %v970, %v1252
      %v1285 = vmul.f32 %v975, %v1253
      %v1286 = vmul.f32 %v978, %v1254
      %v1287 = vmul.f32 %v983, %v1255
      %v1288 = vmul.f32 %v986, %v1256
      %v1289 = vmul.f32 %v991, %v1257
      %v1290 = vmul.f32 %v994, %v1258
      %v1291 = vmul.f32 %v999, %v1259
      %v1292 = vmul.f32 %v1002, %v1260
      %v1293 = vpack.c.bf16 %v1262, %v1261
      %v1294 = vpack.c.bf16 %v1264, %v1263
      %v1295 = vpack.c.bf16 %v1266, %v1265
      %v1296 = vpack.c.bf16 %v1268, %v1267
      %v1297 = vpack.c.bf16 %v1270, %v1269
      %v1298 = vpack.c.bf16 %v1272, %v1271
      %v1299 = vpack.c.bf16 %v1274, %v1273
      %v1300 = vpack.c.bf16 %v1276, %v1275
      %v1301 = vpack.c.bf16 %v1278, %v1277
      %v1302 = vpack.c.bf16 %v1280, %v1279
      %v1303 = vpack.c.bf16 %v1282, %v1281
      %v1304 = vpack.c.bf16 %v1284, %v1283
      %v1305 = vpack.c.bf16 %v1286, %v1285
      %v1306 = vpack.c.bf16 %v1288, %v1287
      %v1307 = vpack.c.bf16 %v1290, %v1289
      %v1308 = vpack.c.bf16 %v1292, %v1291
      %v1325 = vunpack.c.l.b16 %v1293
      %v1326 = vunpack.c.h.b16 %v1293
      %v1327 = vunpack.c.l.b16 %v1294
      %v1328 = vunpack.c.h.b16 %v1294
      %v1329 = vunpack.c.l.b16 %v1295
      %v1330 = vunpack.c.h.b16 %v1295
      %v1331 = vunpack.c.l.b16 %v1296
      %v1332 = vunpack.c.h.b16 %v1296
      %v1333 = vunpack.c.l.b16 %v1297
      %v1334 = vunpack.c.h.b16 %v1297
      %v1335 = vunpack.c.l.b16 %v1298
      %v1336 = vunpack.c.h.b16 %v1298
      %v1337 = vunpack.c.l.b16 %v1299
      %v1338 = vunpack.c.h.b16 %v1299
      %v1339 = vunpack.c.l.b16 %v1300
      %v1340 = vunpack.c.h.b16 %v1300
      %v1341 = vunpack.c.l.b16 %v1301
      %v1342 = vunpack.c.h.b16 %v1301
      %v1343 = vunpack.c.l.b16 %v1302
      %v1344 = vunpack.c.h.b16 %v1302
      %v1345 = vunpack.c.l.b16 %v1303
      %v1346 = vunpack.c.h.b16 %v1303
      %v1347 = vunpack.c.l.b16 %v1304
      %v1348 = vunpack.c.h.b16 %v1304
      %v1349 = vunpack.c.l.b16 %v1305
      %v1350 = vunpack.c.h.b16 %v1305
      %v1351 = vunpack.c.l.b16 %v1306
      %v1352 = vunpack.c.h.b16 %v1306
      %v1353 = vunpack.c.l.b16 %v1307
      %v1354 = vunpack.c.h.b16 %v1307
      %v1355 = vunpack.c.l.b16 %v1308
      %v1356 = vunpack.c.h.b16 %v1308
      %v1357 = vpack.c.b16 %v1325, %v1325
      %v1358 = vpack.c.b16 %v1326, %v1326
      %v1359 = vpack.c.b16 %v1327, %v1327
      %v1360 = vpack.c.b16 %v1328, %v1328
      %v1361 = vpack.c.b16 %v1329, %v1329
      %v1362 = vpack.c.b16 %v1330, %v1330
      %v1363 = vpack.c.b16 %v1331, %v1331
      %v1364 = vpack.c.b16 %v1332, %v1332
      %v1365 = vpack.c.b16 %v1333, %v1333
      %v1366 = vpack.c.b16 %v1334, %v1334
      %v1367 = vpack.c.b16 %v1335, %v1335
      %v1368 = vpack.c.b16 %v1336, %v1336
      %v1369 = vpack.c.b16 %v1337, %v1337
      %v1370 = vpack.c.b16 %v1338, %v1338
      %v1371 = vpack.c.b16 %v1339, %v1339
      %v1372 = vpack.c.b16 %v1340, %v1340
      %v1373 = vpack.c.b16 %v1341, %v1341
      %v1374 = vpack.c.b16 %v1342, %v1342
      %v1375 = vpack.c.b16 %v1343, %v1343
      %v1376 = vpack.c.b16 %v1344, %v1344
      %v1377 = vpack.c.b16 %v1345, %v1345
      %v1378 = vpack.c.b16 %v1346, %v1346
      %v1379 = vpack.c.b16 %v1347, %v1347
      %v1380 = vpack.c.b16 %v1348, %v1348
      %v1381 = vpack.c.b16 %v1349, %v1349
      %v1382 = vpack.c.b16 %v1350, %v1350
      %v1383 = vpack.c.b16 %v1351, %v1351
      %v1384 = vpack.c.b16 %v1352, %v1352
      %v1385 = vpack.c.b16 %v1353, %v1353
      %v1386 = vpack.c.b16 %v1354, %v1354
      %v1387 = vpack.c.b16 %v1355, %v1355
      %v1388 = vpack.c.b16 %v1356, %v1356
      %1421 = vst [vmem:[%s226] sm:$0xf] %v1357
      %1422 = vst [vmem:[%s226 + $0x4] sm:$0xf] %v1358
      %1423 = vst [vmem:[%s226 + $0x8] sm:$0xf] %v1359
      %1424 = vst [vmem:[%s226 + $0xc] sm:$0xf] %v1360
      %1425 = vst [vmem:[%s226 + $0x10] sm:$0xf] %v1361
      %1426 = vst [vmem:[%s226 + $0x14] sm:$0xf] %v1362
      %1427 = vst [vmem:[%s226 + $0x18] sm:$0xf] %v1363
      %1428 = vst [vmem:[%s226 + $0x1c] sm:$0xf] %v1364
      %1429 = vst [vmem:[%s226 + $0x20] sm:$0xf] %v1365
      %1430 = vst [vmem:[%s226 + $0x24] sm:$0xf] %v1366
      %1431 = vst [vmem:[%s226 + $0x28] sm:$0xf] %v1367
      %1432 = vst [vmem:[%s226 + $0x2c] sm:$0xf] %v1368
      %1433 = vst [vmem:[%s226 + $0x30] sm:$0xf] %v1369
      %1434 = vst [vmem:[%s226 + $0x34] sm:$0xf] %v1370
      %1435 = vst [vmem:[%s226 + $0x38] sm:$0xf] %v1371
      %1436 = vst [vmem:[%s226 + $0x3c] sm:$0xf] %v1372
      %1437 = vst [vmem:[%s226 + $0x40] sm:$0xf] %v1373
      %1438 = vst [vmem:[%s226 + $0x44] sm:$0xf] %v1374
      %1439 = vst [vmem:[%s226 + $0x48] sm:$0xf] %v1375
      %1440 = vst [vmem:[%s226 + $0x4c] sm:$0xf] %v1376
      %1441 = vst [vmem:[%s226 + $0x50] sm:$0xf] %v1377
      %1442 = vst [vmem:[%s226 + $0x54] sm:$0xf] %v1378
      %1443 = vst [vmem:[%s226 + $0x58] sm:$0xf] %v1379
      %1444 = vst [vmem:[%s226 + $0x5c] sm:$0xf] %v1380
      %1445 = vst [vmem:[%s226 + $0x60] sm:$0xf] %v1381
      %1446 = vst [vmem:[%s226 + $0x64] sm:$0xf] %v1382
      %1447 = vst [vmem:[%s226 + $0x68] sm:$0xf] %v1383
      %1448 = vst [vmem:[%s226 + $0x6c] sm:$0xf] %v1384
      %1449 = vst [vmem:[%s226 + $0x70] sm:$0xf] %v1385
      %1450 = vst [vmem:[%s226 + $0x74] sm:$0xf] %v1386
      %1451 = vst [vmem:[%s226 + $0x78] sm:$0xf] %v1387
      %1452 = vst [vmem:[%s226 + $0x7c] sm:$0xf] %v1388
      %s1453 = smul.u32 32, %s16
      %p1454 = scmp.lt.s32.totalorder %s1453, 63
      %s1455 = scalar_select %p1454, %s1453, 63
      %s1456 = smul.addr %s1455, 4
      %s1457 = scalar_lea.vmem %s5, %s1456
      // Predicated region
      $region41: #{mtl_dinov2_forward.68} parent=39 // pred_check
        %p1458 = pneg %p144
      $region42: #{mtl_dinov2_forward.68} parent=39 // pred_check_branch
        %1460 = sbr.rel (%p1458) target = $region44
      $region43: #{mtl_dinov2_forward.68} parent=39 // pred_region
        %s1461 = smul.u32 32, %s16
      $region44: #{mtl_dinov2_forward.68} parent=39 // pred_fallthru
        _
    $region40: #{mtl_dinov2_forward.68} parent=5 // pred_fallthru
      _
    %p1462 = scmp.le.s32.totalorder 2, %s11
    // Predicated region
    $region45: #{mtl_dinov2_forward.68} parent=5 // pred_check
      %p1463 = pneg %p1462
    $region46: #{mtl_dinov2_forward.68} parent=5 // pred_check_branch
      %1465 = sbr.rel (%p1463) target = $region48
    $region47: #{mtl_dinov2_forward.68} parent=5 // pred_region
      %s1466 = ssub.s32 %s11, 2
      // Predicated region
      $region49: #{mtl_dinov2_forward.68} parent=47 // pred_check
        %p1467 = pneg %p150
      $region50: #{mtl_dinov2_forward.68} parent=47 // pred_check_branch
        %1469 = sbr.rel (%p1467) target = $region52
      $region51: #{mtl_dinov2_forward.68} parent=47 // pred_region
        %s1470 = smul.u32 32, %s17
        %p1471 = scmp.lt.s32.totalorder %s1470, 63
        %s1472 = scalar_select %p1471, %s1470, 63
        %s1473 = smul.addr %s1472, 4
        %s1474 = scalar_lea.vmem %s5, %s1473
      $region52: #{mtl_dinov2_forward.68} parent=47 // pred_fallthru
        _
    $region48: #{mtl_dinov2_forward.68} parent=5 // pred_fallthru
      _
  $region6: #{mtl_dinov2_forward.68} parent=0 // loop_footer
    %s15 = sadd.s32 1, %s11
  $region7: #{mtl_dinov2_forward.68} parent=0 // loop_footer_branch
    %10 = sbr.rel target = $region3
  $region8: #{mtl_dinov2_forward.68} parent=0 // loop_exit
    _

// kernel: mtl_dinov2_forward.69
$region0: #{mtl_dinov2_forward.69}
  #allocation0 [shape = 'u32[]', space=smem, size = 0x4, offset = 0x4, fixed_abs, tag = 'smem constant byte address 0x4 - core index']
  #allocation1 [shape = 'u32[144,128]{1,0:T(1,128)}', space=vmem, size = 0x12000, scoped, tag = 'internal scratch']
  %s0 = inlined_call_operand.vmem [shape: bf16[512,128], index: 0, kind: input, shape index: {}]
  %s1 = inlined_call_operand.vmem [shape: f32[512,32], index: 1, kind: input, shape index: {}]
  %s2 = inlined_call_operand.vmem [shape: bf16[128,32], index: 2, kind: input, shape index: {}]
  %s3 = inlined_call_operand.vmem [shape: f32[1,32], index: 3, kind: input, shape index: {}]
  %s4 = inlined_call_operand.vmem [shape: f32[1,32], index: 4, kind: input, shape index: {}]
  %s5 = inlined_call_operand.vmem [shape: f32[512,32], index: 5, kind: output, shape index: {}]
  %s6 = sld [smem:[#allocation0]]
  $region53: #{mtl_dinov2_forward.69} parent=0
    _
  %s8 = ssub.s32 1, %s6
  %s9 = scalar_select 0, %s8, %s6
  loop: start=0, step=1, limit=4
  $region2: #{mtl_dinov2_forward.69} parent=0 // loop_pre_header
    _
  $region3: #{mtl_dinov2_forward.69} parent=0 // loop_header
    %s11 = sphi 0, %s15
    %p12 = scmp.ge.s32.totalorder %s11, 4
    %s21 = sphi 0, %s23
    %s24 = sphi 0, %s21
    %s25 = sphi 0, %s24
    %s41 = sphi 0, %s25
    %s47 = sphi 0, %s49
    %s50 = sphi 0, %s47
    %s51 = sphi 0, %s50
    %s67 = sphi 0, %s51
    %s71 = sphi 0, %s71
    %s73 = sphi 0, %s71
    %s74 = sphi 0, %s73
    %s88 = sphi 0, %s74
    %s92 = sphi 0, %s92
    %s94 = sphi 0, %s92
    %s95 = sphi 0, %s94
    %s109 = sphi 0, %s95
    %s113 = sphi 0, %s113
    %s115 = sphi 0, %s113
    %s116 = sphi 0, %s115
    %s130 = sphi 0, %s116
    %s136 = sphi 0, %s138
    %s139 = sphi 0, %s136
    %s140 = sphi 0, %s139
    %s156 = sphi 0, %s140
  $region4: #{mtl_dinov2_forward.69} parent=0 // loop_header_branch
    %14 = sbr.rel (%p12) target = $region8
  $region5: #{mtl_dinov2_forward.69} parent=0 // loop_body
    %s16 = ssub.s32 %s11, 1
    %s17 = ssub.s32 %s11, 2
    %s18 = sadd.s32 %s11, 1
    %s19 = ssub.s32 %s11, %s18
    %p20 = scmp.eq.s32.totalorder %s19, 0
    %s22 = sadd.s32 %s21, 1
    %s23 = scalar_select %p20, %s21, %s22
    %p26 = pneg %p20
    %p27 = scmp.eq.s32.totalorder %s11, 1
    %p28 = por %p26, %p27
    %p29 = scmp.ne.s32.totalorder %s21, %s24
    %p30 = scmp.eq.s32.totalorder %s11, 0
    %p31 = por %p29, %p30
    %p32 = scmp.ne.s32.totalorder %s21, %s24
    %p33 = scmp.eq.s32.totalorder %s16, 1
    %p34 = por %p32, %p33
    %p35 = scmp.ne.s32.totalorder %s24, %s25
    %p36 = scmp.eq.s32.totalorder %s16, 0
    %p37 = por %p35, %p36
    %p38 = scmp.ne.s32.totalorder %s24, %s25
    %p39 = scmp.eq.s32.totalorder %s17, 1
    %p40 = por %p38, %p39
    %p42 = scmp.ne.s32.totalorder %s25, %s41
    %p43 = scmp.eq.s32.totalorder %s17, 0
    %p44 = por %p42, %p43
    %s45 = ssub.s32 %s11, %s18
    %p46 = scmp.eq.s32.totalorder %s45, 0
    %s48 = sadd.s32 %s47, 1
    %s49 = scalar_select %p46, %s47, %s48
    %p52 = pneg %p46
    %p53 = scmp.eq.s32.totalorder %s11, 1
    %p54 = por %p52, %p53
    %p55 = scmp.ne.s32.totalorder %s47, %s50
    %p56 = scmp.eq.s32.totalorder %s11, 0
    %p57 = por %p55, %p56
    %p58 = scmp.ne.s32.totalorder %s47, %s50
    %p59 = scmp.eq.s32.totalorder %s16, 1
    %p60 = por %p58, %p59
    %p61 = scmp.ne.s32.totalorder %s50, %s51
    %p62 = scmp.eq.s32.totalorder %s16, 0
    %p63 = por %p61, %p62
    %p64 = scmp.ne.s32.totalorder %s50, %s51
    %p65 = scmp.eq.s32.totalorder %s17, 1
    %p66 = por %p64, %p65
    %p68 = scmp.ne.s32.totalorder %s51, %s67
    %p69 = scmp.eq.s32.totalorder %s17, 0
    %p70 = por %p68, %p69
    %s72 = sadd.s32 %s71, 1
    %p75 = scmp.eq.s32.totalorder %s11, 1
    %p76 = scmp.ne.s32.totalorder %s71, %s73
    %p77 = scmp.eq.s32.totalorder %s11, 0
    %p78 = por %p76, %p77
    %p79 = scmp.ne.s32.totalorder %s71, %s73
    %p80 = scmp.eq.s32.totalorder %s16, 1
    %p81 = por %p79, %p80
    %p82 = scmp.ne.s32.totalorder %s73, %s74
    %p83 = scmp.eq.s32.totalorder %s16, 0
    %p84 = por %p82, %p83
    %p85 = scmp.ne.s32.totalorder %s73, %s74
    %p86 = scmp.eq.s32.totalorder %s17, 1
    %p87 = por %p85, %p86
    %p89 = scmp.ne.s32.totalorder %s74, %s88
    %p90 = scmp.eq.s32.totalorder %s17, 0
    %p91 = por %p89, %p90
    %s93 = sadd.s32 %s92, 1
    %p96 = scmp.eq.s32.totalorder %s11, 1
    %p97 = scmp.ne.s32.totalorder %s92, %s94
    %p98 = scmp.eq.s32.totalorder %s11, 0
    %p99 = por %p97, %p98
    %p100 = scmp.ne.s32.totalorder %s92, %s94
    %p101 = scmp.eq.s32.totalorder %s16, 1
    %p102 = por %p100, %p101
    %p103 = scmp.ne.s32.totalorder %s94, %s95
    %p104 = scmp.eq.s32.totalorder %s16, 0
    %p105 = por %p103, %p104
    %p106 = scmp.ne.s32.totalorder %s94, %s95
    %p107 = scmp.eq.s32.totalorder %s17, 1
    %p108 = por %p106, %p107
    %p110 = scmp.ne.s32.totalorder %s95, %s109
    %p111 = scmp.eq.s32.totalorder %s17, 0
    %p112 = por %p110, %p111
    %s114 = sadd.s32 %s113, 1
    %p117 = scmp.eq.s32.totalorder %s11, 1
    %p118 = scmp.ne.s32.totalorder %s113, %s115
    %p119 = scmp.eq.s32.totalorder %s11, 0
    %p120 = por %p118, %p119
    %p121 = scmp.ne.s32.totalorder %s113, %s115
    %p122 = scmp.eq.s32.totalorder %s16, 1
    %p123 = por %p121, %p122
    %p124 = scmp.ne.s32.totalorder %s115, %s116
    %p125 = scmp.eq.s32.totalorder %s16, 0
    %p126 = por %p124, %p125
    %p127 = scmp.ne.s32.totalorder %s115, %s116
    %p128 = scmp.eq.s32.totalorder %s17, 1
    %p129 = por %p127, %p128
    %p131 = scmp.ne.s32.totalorder %s116, %s130
    %p132 = scmp.eq.s32.totalorder %s17, 0
    %p133 = por %p131, %p132
    %s134 = ssub.s32 %s11, %s18
    %p135 = scmp.eq.s32.totalorder %s134, 0
    %s137 = sadd.s32 %s136, 1
    %s138 = scalar_select %p135, %s136, %s137
    %p141 = pneg %p135
    %p142 = scmp.eq.s32.totalorder %s11, 1
    %p143 = por %p141, %p142
    %p144 = scmp.ne.s32.totalorder %s136, %s139
    %p145 = scmp.eq.s32.totalorder %s11, 0
    %p146 = por %p144, %p145
    %p147 = scmp.ne.s32.totalorder %s136, %s139
    %p148 = scmp.eq.s32.totalorder %s16, 1
    %p149 = por %p147, %p148
    %p150 = scmp.ne.s32.totalorder %s139, %s140
    %p151 = scmp.eq.s32.totalorder %s16, 0
    %p152 = por %p150, %p151
    %p153 = scmp.ne.s32.totalorder %s139, %s140
    %p154 = scmp.eq.s32.totalorder %s17, 1
    %p155 = por %p153, %p154
    %p157 = scmp.ne.s32.totalorder %s140, %s156
    %p158 = scmp.eq.s32.totalorder %s17, 0
    %p159 = por %p157, %p158
    %p160 = scmp.le.s32.totalorder 1, %s11
    %p161 = scmp.lt.s32.totalorder %s11, 3
    %p162 = pnand %p160, %p161
    %p163 = pneg %p162
    // Predicated region
    $region9: #{mtl_dinov2_forward.69} parent=5 // pred_check
      _
    $region10: #{mtl_dinov2_forward.69} parent=5 // pred_check_branch
      %165 = sbr.rel (%p162) target = $region12
    $region11: #{mtl_dinov2_forward.69} parent=5 // pred_region
      %s166 = ssub.s32 %s11, 1
      // Predicated region
      $region13: #{mtl_dinov2_forward.69} parent=11 // pred_check
        %p167 = pneg %p84
      $region14: #{mtl_dinov2_forward.69} parent=11 // pred_check_branch
        %169 = sbr.rel (%p167) target = $region16
      $region15: #{mtl_dinov2_forward.69} parent=11 // pred_region
        _
      $region16: #{mtl_dinov2_forward.69} parent=11 // pred_fallthru
        _
      // Predicated region
      $region17: #{mtl_dinov2_forward.69} parent=11 // pred_check
        %p170 = pneg %p105
      $region18: #{mtl_dinov2_forward.69} parent=11 // pred_check_branch
        %172 = sbr.rel (%p170) target = $region20
      $region19: #{mtl_dinov2_forward.69} parent=11 // pred_region
        _
      $region20: #{mtl_dinov2_forward.69} parent=11 // pred_fallthru
        _
      // Predicated region
      $region21: #{mtl_dinov2_forward.69} parent=11 // pred_check
        %p173 = pneg %p126
      $region22: #{mtl_dinov2_forward.69} parent=11 // pred_check_branch
        %175 = sbr.rel (%p173) target = $region24
      $region23: #{mtl_dinov2_forward.69} parent=11 // pred_region
        _
      $region24: #{mtl_dinov2_forward.69} parent=11 // pred_fallthru
        _
    $region12: #{mtl_dinov2_forward.69} parent=5 // pred_fallthru
      _
    %p176 = scmp.lt.s32.totalorder %s11, 2
    // Predicated region
    $region25: #{mtl_dinov2_forward.69} parent=5 // pred_check
      %p177 = pneg %p176
    $region26: #{mtl_dinov2_forward.69} parent=5 // pred_check_branch
      %179 = sbr.rel (%p177) target = $region28
    $region27: #{mtl_dinov2_forward.69} parent=5 // pred_region
      // Predicated region
      $region29: #{mtl_dinov2_forward.69} parent=27 // pred_check
        %p180 = pneg %p31
      $region30: #{mtl_dinov2_forward.69} parent=27 // pred_check_branch
        %182 = sbr.rel (%p180) target = $region32
      $region31: #{mtl_dinov2_forward.69} parent=27 // pred_region
        %s183 = smul.u32 32, %s11
        %p184 = scmp.lt.s32.totalorder %s183, 63
        %s185 = scalar_select %p184, %s183, 63
        %s186 = smul.addr %s185, 4
        %s187 = scalar_lea.vmem %s0, %s186
        %s188 = smul.u32 32, %s11
      $region32: #{mtl_dinov2_forward.69} parent=27 // pred_fallthru
        _
      // Predicated region
      $region33: #{mtl_dinov2_forward.69} parent=27 // pred_check
        %p189 = pneg %p57
      $region34: #{mtl_dinov2_forward.69} parent=27 // pred_check_branch
        %191 = sbr.rel (%p189) target = $region36
      $region35: #{mtl_dinov2_forward.69} parent=27 // pred_region
        %s192 = smul.u32 32, %s11
        %p193 = scmp.lt.s32.totalorder %s192, 63
        %s194 = scalar_select %p193, %s192, 63
        %s195 = smul.addr %s194, 8
        %s196 = scalar_lea.vmem %s1, %s195
        %s197 = smul.u32 32, %s11
      $region36: #{mtl_dinov2_forward.69} parent=27 // pred_fallthru
        _
    $region28: #{mtl_dinov2_forward.69} parent=5 // pred_fallthru
      _
    %p198 = scmp.le.s32.totalorder 1, %s11
    %p199 = scmp.lt.s32.totalorder %s11, 3
    %p200 = pnand %p198, %p199
    %p201 = pneg %p200
    // Predicated region
    $region37: #{mtl_dinov2_forward.69} parent=5 // pred_check
      _
    $region38: #{mtl_dinov2_forward.69} parent=5 // pred_check_branch
      %203 = sbr.rel (%p200) target = $region40
    $region39: #{mtl_dinov2_forward.69} parent=5 // pred_region
      %s204 = ssub.s32 %s11, 1
      %s205 = smul.u32 32, %s16
      %p206 = scmp.lt.s32.totalorder %s205, 63
      %s207 = scalar_select %p206, %s205, 63
      %s208 = smul.addr %s207, 4
      %s209 = scalar_lea.vmem %s0, %s208
      %p210 = pneg %p37
      %p211 = pneg %p34
      %s212 = smul.u32 32, %s16
      %p213 = scmp.lt.s32.totalorder %s212, 63
      %s214 = scalar_select %p213, %s212, 63
      %s215 = smul.addr %s214, 8
      %s216 = scalar_lea.vmem %s1, %s215
      %p217 = pneg %p63
      %p218 = pneg %p60
      %p219 = pneg %p84
      %p220 = pneg %p81
      %p221 = pneg %p105
      %p222 = pneg %p102
      %p223 = pneg %p126
      %p224 = pneg %p123
      %p225 = pneg %p152
      %p226 = pneg %p149
      %s227 = smul.u32 32, %s16
      %p228 = scmp.lt.s32.totalorder %s227, 63
      %s229 = scalar_select %p228, %s227, 63
      %s230 = smul.addr %s229, 8
      %s231 = scalar_lea.vmem %s5, %s230
      %s232 = smul.u32 32, %s16
      %p233 = scmp.lt.s32.totalorder %s232, 63
      %s234 = scalar_select %p233, %s232, 63
      %s235 = smul.addr %s234, 4
      %s236 = scalar_lea.vmem %s0, %s235
      %s237 = smul.u32 32, %s16
      %s238 = smul.u32 32, %s16
      %p239 = scmp.lt.s32.totalorder %s238, 63
      %s240 = scalar_select %p239, %s238, 63
      %s241 = smul.addr %s240, 8
      %s242 = scalar_lea.vmem %s1, %s241
      %s243 = smul.u32 32, %s16
      %s244 = smul.u32 32, %s16
      %p245 = scmp.lt.s32.totalorder %s244, 63
      %s246 = scalar_select %p245, %s244, 63
      %s247 = smul.addr %s246, 8
      %s248 = scalar_lea.vmem %s5, %s247
      %s249 = smul.u32 32, %s16
      %v251 = vld [vmem:[%s236] sm:$0xf]
      %v252 = vld [vmem:[%s236 + $0x4] sm:$0xf]
      %v253 = vld [vmem:[%s236 + $0x8] sm:$0xf]
      %v254 = vld [vmem:[%s236 + $0xc] sm:$0xf]
      %v255 = vld [vmem:[%s236 + $0x10] sm:$0xf]
      %v256 = vld [vmem:[%s236 + $0x14] sm:$0xf]
      %v257 = vld [vmem:[%s236 + $0x18] sm:$0xf]
      %v258 = vld [vmem:[%s236 + $0x1c] sm:$0xf]
      %v259 = vld [vmem:[%s236 + $0x20] sm:$0xf]
      %v260 = vld [vmem:[%s236 + $0x24] sm:$0xf]
      %v261 = vld [vmem:[%s236 + $0x28] sm:$0xf]
      %v262 = vld [vmem:[%s236 + $0x2c] sm:$0xf]
      %v263 = vld [vmem:[%s236 + $0x30] sm:$0xf]
      %v264 = vld [vmem:[%s236 + $0x34] sm:$0xf]
      %v265 = vld [vmem:[%s236 + $0x38] sm:$0xf]
      %v266 = vld [vmem:[%s236 + $0x3c] sm:$0xf]
      %v267 = vld [vmem:[%s236 + $0x40] sm:$0xf]
      %v268 = vld [vmem:[%s236 + $0x44] sm:$0xf]
      %v269 = vld [vmem:[%s236 + $0x48] sm:$0xf]
      %v270 = vld [vmem:[%s236 + $0x4c] sm:$0xf]
      %v271 = vld [vmem:[%s236 + $0x50] sm:$0xf]
      %v272 = vld [vmem:[%s236 + $0x54] sm:$0xf]
      %v273 = vld [vmem:[%s236 + $0x58] sm:$0xf]
      %v274 = vld [vmem:[%s236 + $0x5c] sm:$0xf]
      %v275 = vld [vmem:[%s236 + $0x60] sm:$0xf]
      %v276 = vld [vmem:[%s236 + $0x64] sm:$0xf]
      %v277 = vld [vmem:[%s236 + $0x68] sm:$0xf]
      %v278 = vld [vmem:[%s236 + $0x6c] sm:$0xf]
      %v279 = vld [vmem:[%s236 + $0x70] sm:$0xf]
      %v280 = vld [vmem:[%s236 + $0x74] sm:$0xf]
      %v281 = vld [vmem:[%s236 + $0x78] sm:$0xf]
      %v282 = vld [vmem:[%s236 + $0x7c] sm:$0xf]
      %v283 = vld [vmem:[%s2] sm:$0xf]
      %v284 = vld [vmem:[%s2 + $0x4] sm:$0xf]
      %v285 = vld [vmem:[%s2 + $0x8] sm:$0xf]
      %v286 = vld [vmem:[%s2 + $0xc] sm:$0xf]
      %v287 = vld [vmem:[%s2 + $0x10] sm:$0xf]
      %v288 = vld [vmem:[%s2 + $0x14] sm:$0xf]
      %v289 = vld [vmem:[%s2 + $0x18] sm:$0xf]
      %v290 = vld [vmem:[%s2 + $0x1c] sm:$0xf]
      %v291 = vld [vmem:[%s2 + $0x20] sm:$0xf]
      %v292 = vld [vmem:[%s2 + $0x24] sm:$0xf]
      %v293 = vld [vmem:[%s2 + $0x28] sm:$0xf]
      %v294 = vld [vmem:[%s2 + $0x2c] sm:$0xf]
      %v295 = vld [vmem:[%s2 + $0x30] sm:$0xf]
      %v296 = vld [vmem:[%s2 + $0x34] sm:$0xf]
      %v297 = vld [vmem:[%s2 + $0x38] sm:$0xf]
      %v298 = vld [vmem:[%s2 + $0x3c] sm:$0xf]
      %v299 = vld [vmem:[%s3] sm:$0x1]
      %v301 = vlaneseq
      %v302 = vshrl.u32 %v301, 7
      %v303 = vsub.s32 0, %v302
      %v304 = vrot.slane %v299, %v303
      %v338 = vunpack.c.l.b16 %v251
      %v339 = vunpack.c.l.b16 %v252
      %v340 = vunpack.c.l.b16 %v253
      %v341 = vunpack.c.l.b16 %v254
      %v342 = vunpack.c.l.b16 %v255
      %v343 = vunpack.c.l.b16 %v256
      %v344 = vunpack.c.l.b16 %v257
      %v345 = vunpack.c.l.b16 %v258
      %v346 = vunpack.c.l.b16 %v259
      %v347 = vunpack.c.l.b16 %v260
      %v348 = vunpack.c.l.b16 %v261
      %v349 = vunpack.c.l.b16 %v262
      %v350 = vunpack.c.l.b16 %v263
      %v351 = vunpack.c.l.b16 %v264
      %v352 = vunpack.c.l.b16 %v265
      %v353 = vunpack.c.l.b16 %v266
      %v354 = vunpack.c.l.b16 %v267
      %v355 = vunpack.c.l.b16 %v268
      %v356 = vunpack.c.l.b16 %v269
      %v357 = vunpack.c.l.b16 %v270
      %v358 = vunpack.c.l.b16 %v271
      %v359 = vunpack.c.l.b16 %v272
      %v360 = vunpack.c.l.b16 %v273
      %v361 = vunpack.c.l.b16 %v274
      %v362 = vunpack.c.l.b16 %v275
      %v363 = vunpack.c.l.b16 %v276
      %v364 = vunpack.c.l.b16 %v277
      %v365 = vunpack.c.l.b16 %v278
      %v366 = vunpack.c.l.b16 %v279
      %v367 = vunpack.c.l.b16 %v280
      %v368 = vunpack.c.l.b16 %v281
      %v369 = vunpack.c.l.b16 %v282
      %v370 = vpack.c.b16 %v339, %v338
      %v371 = vpack.c.b16 %v341, %v340
      %v372 = vpack.c.b16 %v343, %v342
      %v373 = vpack.c.b16 %v345, %v344
      %v374 = vpack.c.b16 %v347, %v346
      %v375 = vpack.c.b16 %v349, %v348
      %v376 = vpack.c.b16 %v351, %v350
      %v377 = vpack.c.b16 %v353, %v352
      %v378 = vpack.c.b16 %v355, %v354
      %v379 = vpack.c.b16 %v357, %v356
      %v380 = vpack.c.b16 %v359, %v358
      %v381 = vpack.c.b16 %v361, %v360
      %v382 = vpack.c.b16 %v363, %v362
      %v383 = vpack.c.b16 %v365, %v364
      %v384 = vpack.c.b16 %v367, %v366
      %v385 = vpack.c.b16 %v369, %v368
      %v418 = vunpack.c.l.b16 %v283
      %v419 = vunpack.c.l.b16 %v284
      %v420 = vunpack.c.l.b16 %v285
      %v421 = vunpack.c.l.b16 %v286
      %v422 = vunpack.c.l.b16 %v287
      %v423 = vunpack.c.l.b16 %v288
      %v424 = vunpack.c.l.b16 %v289
      %v425 = vunpack.c.l.b16 %v290
      %v426 = vunpack.c.l.b16 %v291
      %v427 = vunpack.c.l.b16 %v292
      %v428 = vunpack.c.l.b16 %v293
      %v429 = vunpack.c.l.b16 %v294
      %v430 = vunpack.c.l.b16 %v295
      %v431 = vunpack.c.l.b16 %v296
      %v432 = vunpack.c.l.b16 %v297
      %v433 = vunpack.c.l.b16 %v298
      %v434 = vpack.c.b16 %v419, %v418
      %v435 = vpack.c.b16 %v421, %v420
      %v436 = vpack.c.b16 %v423, %v422
      %v437 = vpack.c.b16 %v425, %v424
      %v438 = vpack.c.b16 %v427, %v426
      %v439 = vpack.c.b16 %v429, %v428
      %v440 = vpack.c.b16 %v431, %v430
      %v441 = vpack.c.b16 %v433, %v432
      %450 = vmatprep.subr.bf16.mxu0 0
      %451 = vmatpush1.bf16.msra.mxu0 %v441
      %452 = vmatprep.subr.bf16.mxu0 0
      %453 = vmatpush1.bf16.msra.mxu0 %v440
      %454 = vmatprep.subr.bf16.mxu0 0
      %455 = vmatpush1.bf16.msra.mxu0 %v439
      %456 = vmatprep.subr.bf16.mxu0 0
      %457 = vmatpush1.bf16.msra.mxu0 %v438
      %458 = vmatprep.subr.bf16.mxu0 0
      %459 = vmatpush1.bf16.msra.mxu0 %v437
      %460 = vmatprep.subr.bf16.mxu0 0
      %461 = vmatpush1.bf16.msra.mxu0 %v436
      %462 = vmatprep.subr.bf16.mxu0 0
      %463 = vmatpush1.bf16.msra.mxu0 %v435
      %464 = vmatprep.subr.bf16.mxu0 0
      %465 = vmatpush1.bf16.msra.mxu0 %v434
      %466 = vmatprep.subr.bf16.mxu0 0
      %467 = vmatpush2.bf16.msra.mxu0 0
      %468 = vmatprep.subr.bf16.mxu0 0
      %469 = vmatpush2.bf16.msra.mxu0 0
      %470 = vmatprep.subr.bf16.mxu0 0
      %471 = vmatpush2.bf16.msra.mxu0 0
      %472 = vmatprep.subr.bf16.mxu0 0
      %473 = vmatpush2.bf16.msra.mxu0 0
      %474 = vmatprep.subr.bf16.mxu0 0
      %475 = vmatpush2.bf16.msra.mxu0 0
      %476 = vmatprep.subr.bf16.mxu0 0
      %477 = vmatpush2.bf16.msra.mxu0 0
      %478 = vmatprep.subr.bf16.mxu0 0
      %479 = vmatpush2.bf16.msra.mxu0 0
      %480 = vmatprep.subr.bf16.mxu0 0
      %481 = vmatpush2.bf16.msra.mxu0 0
      %482 = vmatprep.mubr.bf16.mxu0 0
      %483 = vmatmul.mubr.bf16.gmra.mxu0 %v370
      %v484 = vpop.f32.mrf.mxu0
      %v485 = vadd.f32 %v304, %v484
      %v486 = vpop.f32.mrf.mxu0
      %v487 = vpop.f32.mrf.mxu0
      %v488 = vadd.f32 %v304, %v487
      %v489 = vpop.f32.mrf.mxu0
      %490 = vmatprep.mubr.bf16.mxu0 0
      %491 = vmatmul.mubr.bf16.gmra.mxu0 %v371
      %v492 = vpop.f32.mrf.mxu0
      %v493 = vadd.f32 %v304, %v492
      %v494 = vpop.f32.mrf.mxu0
      %v495 = vpop.f32.mrf.mxu0
      %v496 = vadd.f32 %v304, %v495
      %v497 = vpop.f32.mrf.mxu0
      %498 = vmatprep.mubr.bf16.mxu0 0
      %499 = vmatmul.mubr.bf16.gmra.mxu0 %v372
      %v500 = vpop.f32.mrf.mxu0
      %v501 = vadd.f32 %v304, %v500
      %v502 = vpop.f32.mrf.mxu0
      %v503 = vpop.f32.mrf.mxu0
      %v504 = vadd.f32 %v304, %v503
      %v505 = vpop.f32.mrf.mxu0
      %506 = vmatprep.mubr.bf16.mxu0 0
      %507 = vmatmul.mubr.bf16.gmra.mxu0 %v373
      %v508 = vpop.f32.mrf.mxu0
      %v509 = vadd.f32 %v304, %v508
      %v510 = vpop.f32.mrf.mxu0
      %v511 = vpop.f32.mrf.mxu0
      %v512 = vadd.f32 %v304, %v511
      %v513 = vpop.f32.mrf.mxu0
      %514 = vmatprep.mubr.bf16.mxu0 0
      %515 = vmatmul.mubr.bf16.gmra.mxu0 %v374
      %v516 = vpop.f32.mrf.mxu0
      %v517 = vadd.f32 %v304, %v516
      %v518 = vpop.f32.mrf.mxu0
      %v519 = vpop.f32.mrf.mxu0
      %v520 = vadd.f32 %v304, %v519
      %v521 = vpop.f32.mrf.mxu0
      %522 = vmatprep.mubr.bf16.mxu0 0
      %523 = vmatmul.mubr.bf16.gmra.mxu0 %v375
      %v524 = vpop.f32.mrf.mxu0
      %v525 = vadd.f32 %v304, %v524
      %v526 = vpop.f32.mrf.mxu0
      %v527 = vpop.f32.mrf.mxu0
      %v528 = vadd.f32 %v304, %v527
      %v529 = vpop.f32.mrf.mxu0
      %530 = vmatprep.mubr.bf16.mxu0 0
      %531 = vmatmul.mubr.bf16.gmra.mxu0 %v376
      %v532 = vpop.f32.mrf.mxu0
      %v533 = vadd.f32 %v304, %v532
      %v534 = vpop.f32.mrf.mxu0
      %v535 = vpop.f32.mrf.mxu0
      %v536 = vadd.f32 %v304, %v535
      %v537 = vpop.f32.mrf.mxu0
      %538 = vmatprep.mubr.bf16.mxu0 0
      %539 = vmatmul.mubr.bf16.gmra.mxu0 %v377
      %v540 = vpop.f32.mrf.mxu0
      %v541 = vadd.f32 %v304, %v540
      %v542 = vpop.f32.mrf.mxu0
      %v543 = vpop.f32.mrf.mxu0
      %v544 = vadd.f32 %v304, %v543
      %v545 = vpop.f32.mrf.mxu0
      %546 = vmatprep.mubr.bf16.mxu0 0
      %547 = vmatmul.mubr.bf16.gmra.mxu0 %v378
      %v548 = vpop.f32.mrf.mxu0
      %v549 = vadd.f32 %v304, %v548
      %v550 = vpop.f32.mrf.mxu0
      %v551 = vpop.f32.mrf.mxu0
      %v552 = vadd.f32 %v304, %v551
      %v553 = vpop.f32.mrf.mxu0
      %554 = vmatprep.mubr.bf16.mxu0 0
      %555 = vmatmul.mubr.bf16.gmra.mxu0 %v379
      %v556 = vpop.f32.mrf.mxu0
      %v557 = vadd.f32 %v304, %v556
      %v558 = vpop.f32.mrf.mxu0
      %v559 = vpop.f32.mrf.mxu0
      %v560 = vadd.f32 %v304, %v559
      %v561 = vpop.f32.mrf.mxu0
      %562 = vmatprep.mubr.bf16.mxu0 0
      %563 = vmatmul.mubr.bf16.gmra.mxu0 %v380
      %v564 = vpop.f32.mrf.mxu0
      %v565 = vadd.f32 %v304, %v564
      %v566 = vpop.f32.mrf.mxu0
      %v567 = vpop.f32.mrf.mxu0
      %v568 = vadd.f32 %v304, %v567
      %v569 = vpop.f32.mrf.mxu0
      %570 = vmatprep.mubr.bf16.mxu0 0
      %571 = vmatmul.mubr.bf16.gmra.mxu0 %v381
      %v572 = vpop.f32.mrf.mxu0
      %v573 = vadd.f32 %v304, %v572
      %v574 = vpop.f32.mrf.mxu0
      %v575 = vpop.f32.mrf.mxu0
      %v576 = vadd.f32 %v304, %v575
      %v577 = vpop.f32.mrf.mxu0
      %578 = vmatprep.mubr.bf16.mxu0 0
      %579 = vmatmul.mubr.bf16.gmra.mxu0 %v382
      %v580 = vpop.f32.mrf.mxu0
      %v581 = vadd.f32 %v304, %v580
      %v582 = vpop.f32.mrf.mxu0
      %v583 = vpop.f32.mrf.mxu0
      %v584 = vadd.f32 %v304, %v583
      %v585 = vpop.f32.mrf.mxu0
      %586 = vmatprep.mubr.bf16.mxu0 0
      %587 = vmatmul.mubr.bf16.gmra.mxu0 %v383
      %v588 = vpop.f32.mrf.mxu0
      %v589 = vadd.f32 %v304, %v588
      %v590 = vpop.f32.mrf.mxu0
      %v591 = vpop.f32.mrf.mxu0
      %v592 = vadd.f32 %v304, %v591
      %v593 = vpop.f32.mrf.mxu0
      %594 = vmatprep.mubr.bf16.mxu0 0
      %595 = vmatmul.mubr.bf16.gmra.mxu0 %v384
      %v596 = vpop.f32.mrf.mxu0
      %v597 = vadd.f32 %v304, %v596
      %v598 = vpop.f32.mrf.mxu0
      %v599 = vpop.f32.mrf.mxu0
      %v600 = vadd.f32 %v304, %v599
      %v601 = vpop.f32.mrf.mxu0
      %602 = vmatprep.mubr.bf16.mxu0 0
      %603 = vmatmul.mubr.bf16.gmra.mxu0 %v385
      %v604 = vpop.f32.mrf.mxu0
      %v605 = vadd.f32 %v304, %v604
      %v606 = vpop.f32.mrf.mxu0
      %v607 = vpop.f32.mrf.mxu0
      %v608 = vadd.f32 %v304, %v607
      %v609 = vpop.f32.mrf.mxu0
      %610 = vdwg.mxu0
      %v611 = vld [vmem:[%s242] sm:$0xff]
      %v612 = vld [vmem:[%s242 + $0x8] sm:$0xff]
      %v613 = vld [vmem:[%s242 + $0x10] sm:$0xff]
      %v614 = vld [vmem:[%s242 + $0x18] sm:$0xff]
      %v615 = vld [vmem:[%s242 + $0x20] sm:$0xff]
      %v616 = vld [vmem:[%s242 + $0x28] sm:$0xff]
      %v617 = vld [vmem:[%s242 + $0x30] sm:$0xff]
      %v618 = vld [vmem:[%s242 + $0x38] sm:$0xff]
      %v619 = vld [vmem:[%s242 + $0x40] sm:$0xff]
      %v620 = vld [vmem:[%s242 + $0x48] sm:$0xff]
      %v621 = vld [vmem:[%s242 + $0x50] sm:$0xff]
      %v622 = vld [vmem:[%s242 + $0x58] sm:$0xff]
      %v623 = vld [vmem:[%s242 + $0x60] sm:$0xff]
      %v624 = vld [vmem:[%s242 + $0x68] sm:$0xff]
      %v625 = vld [vmem:[%s242 + $0x70] sm:$0xff]
      %v626 = vld [vmem:[%s242 + $0x78] sm:$0xff]
      %v627 = vld [vmem:[%s242 + $0x80] sm:$0xff]
      %v628 = vld [vmem:[%s242 + $0x88] sm:$0xff]
      %v629 = vld [vmem:[%s242 + $0x90] sm:$0xff]
      %v630 = vld [vmem:[%s242 + $0x98] sm:$0xff]
      %v631 = vld [vmem:[%s242 + $0xa0] sm:$0xff]
      %v632 = vld [vmem:[%s242 + $0xa8] sm:$0xff]
      %v633 = vld [vmem:[%s242 + $0xb0] sm:$0xff]
      %v634 = vld [vmem:[%s242 + $0xb8] sm:$0xff]
      %v635 = vld [vmem:[%s242 + $0xc0] sm:$0xff]
      %v636 = vld [vmem:[%s242 + $0xc8] sm:$0xff]
      %v637 = vld [vmem:[%s242 + $0xd0] sm:$0xff]
      %v638 = vld [vmem:[%s242 + $0xd8] sm:$0xff]
      %v639 = vld [vmem:[%s242 + $0xe0] sm:$0xff]
      %v640 = vld [vmem:[%s242 + $0xe8] sm:$0xff]
      %v641 = vld [vmem:[%s242 + $0xf0] sm:$0xff]
      %v642 = vld [vmem:[%s242 + $0xf8] sm:$0xff]
      %v643 = vld [vmem:[%s4] sm:$0x1]
      %v645 = vlaneseq
      %v646 = vshrl.u32 %v645, 7
      %v647 = vsub.s32 0, %v646
      %v648 = vrot.slane %v643, %v647
      %v650 = vmul.f32 %v648, %v485
      %v651 = vmul.f32 %v648, %v488
      %v652 = vmul.f32 %v648, %v493
      %v653 = vmul.f32 %v648, %v496
      %v654 = vmul.f32 %v648, %v501
      %v655 = vmul.f32 %v648, %v504
      %v656 = vmul.f32 %v648, %v509
      %v657 = vmul.f32 %v648, %v512
      %v658 = vmul.f32 %v648, %v517
      %v659 = vmul.f32 %v648, %v520
      %v660 = vmul.f32 %v648, %v525
      %v661 = vmul.f32 %v648, %v528
      %v662 = vmul.f32 %v648, %v533
      %v663 = vmul.f32 %v648, %v536
      %v664 = vmul.f32 %v648, %v541
      %v665 = vmul.f32 %v648, %v544
      %v666 = vmul.f32 %v648, %v549
      %v667 = vmul.f32 %v648, %v552
      %v668 = vmul.f32 %v648, %v557
      %v669 = vmul.f32 %v648, %v560
      %v670 = vmul.f32 %v648, %v565
      %v671 = vmul.f32 %v648, %v568
      %v672 = vmul.f32 %v648, %v573
      %v673 = vmul.f32 %v648, %v576
      %v674 = vmul.f32 %v648, %v581
      %v675 = vmul.f32 %v648, %v584
      %v676 = vmul.f32 %v648, %v589
      %v677 = vmul.f32 %v648, %v592
      %v678 = vmul.f32 %v648, %v597
      %v679 = vmul.f32 %v648, %v600
      %v680 = vmul.f32 %v648, %v605
      %v681 = vmul.f32 %v648, %v608
      %v682 = vadd.f32 %v611, %v650
      %v683 = vadd.f32 %v612, %v651
      %v684 = vadd.f32 %v613, %v652
      %v685 = vadd.f32 %v614, %v653
      %v686 = vadd.f32 %v615, %v654
      %v687 = vadd.f32 %v616, %v655
      %v688 = vadd.f32 %v617, %v656
      %v689 = vadd.f32 %v618, %v657
      %v690 = vadd.f32 %v619, %v658
      %v691 = vadd.f32 %v620, %v659
      %v692 = vadd.f32 %v621, %v660
      %v693 = vadd.f32 %v622, %v661
      %v694 = vadd.f32 %v623, %v662
      %v695 = vadd.f32 %v624, %v663
      %v696 = vadd.f32 %v625, %v664
      %v697 = vadd.f32 %v626, %v665
      %v698 = vadd.f32 %v627, %v666
      %v699 = vadd.f32 %v628, %v667
      %v700 = vadd.f32 %v629, %v668
      %v701 = vadd.f32 %v630, %v669
      %v702 = vadd.f32 %v631, %v670
      %v703 = vadd.f32 %v632, %v671
      %v704 = vadd.f32 %v633, %v672
      %v705 = vadd.f32 %v634, %v673
      %v706 = vadd.f32 %v635, %v674
      %v707 = vadd.f32 %v636, %v675
      %v708 = vadd.f32 %v637, %v676
      %v709 = vadd.f32 %v638, %v677
      %v710 = vadd.f32 %v639, %v678
      %v711 = vadd.f32 %v640, %v679
      %v712 = vadd.f32 %v641, %v680
      %v713 = vadd.f32 %v642, %v681
      %vm714 = vcmask 261120
      %715 = vst.msk [vmem:[%s248] sm:$0xff] %vm714, %v682
      %716 = vst.msk [vmem:[%s248 + $0x8] sm:$0xff] %vm714, %v683
      %717 = vst.msk [vmem:[%s248 + $0x10] sm:$0xff] %vm714, %v684
      %718 = vst.msk [vmem:[%s248 + $0x18] sm:$0xff] %vm714, %v685
      %719 = vst.msk [vmem:[%s248 + $0x20] sm:$0xff] %vm714, %v686
      %720 = vst.msk [vmem:[%s248 + $0x28] sm:$0xff] %vm714, %v687
      %721 = vst.msk [vmem:[%s248 + $0x30] sm:$0xff] %vm714, %v688
      %722 = vst.msk [vmem:[%s248 + $0x38] sm:$0xff] %vm714, %v689
      %723 = vst.msk [vmem:[%s248 + $0x40] sm:$0xff] %vm714, %v690
      %724 = vst.msk [vmem:[%s248 + $0x48] sm:$0xff] %vm714, %v691
      %725 = vst.msk [vmem:[%s248 + $0x50] sm:$0xff] %vm714, %v692
      %726 = vst.msk [vmem:[%s248 + $0x58] sm:$0xff] %vm714, %v693
      %727 = vst.msk [vmem:[%s248 + $0x60] sm:$0xff] %vm714, %v694
      %728 = vst.msk [vmem:[%s248 + $0x68] sm:$0xff] %vm714, %v695
      %729 = vst.msk [vmem:[%s248 + $0x70] sm:$0xff] %vm714, %v696
      %730 = vst.msk [vmem:[%s248 + $0x78] sm:$0xff] %vm714, %v697
      %731 = vst.msk [vmem:[%s248 + $0x80] sm:$0xff] %vm714, %v698
      %732 = vst.msk [vmem:[%s248 + $0x88] sm:$0xff] %vm714, %v699
      %733 = vst.msk [vmem:[%s248 + $0x90] sm:$0xff] %vm714, %v700
      %734 = vst.msk [vmem:[%s248 + $0x98] sm:$0xff] %vm714, %v701
      %735 = vst.msk [vmem:[%s248 + $0xa0] sm:$0xff] %vm714, %v702
      %736 = vst.msk [vmem:[%s248 + $0xa8] sm:$0xff] %vm714, %v703
      %737 = vst.msk [vmem:[%s248 + $0xb0] sm:$0xff] %vm714, %v704
      %738 = vst.msk [vmem:[%s248 + $0xb8] sm:$0xff] %vm714, %v705
      %739 = vst.msk [vmem:[%s248 + $0xc0] sm:$0xff] %vm714, %v706
      %740 = vst.msk [vmem:[%s248 + $0xc8] sm:$0xff] %vm714, %v707
      %741 = vst.msk [vmem:[%s248 + $0xd0] sm:$0xff] %vm714, %v708
      %742 = vst.msk [vmem:[%s248 + $0xd8] sm:$0xff] %vm714, %v709
      %743 = vst.msk [vmem:[%s248 + $0xe0] sm:$0xff] %vm714, %v710
      %744 = vst.msk [vmem:[%s248 + $0xe8] sm:$0xff] %vm714, %v711
      %745 = vst.msk [vmem:[%s248 + $0xf0] sm:$0xff] %vm714, %v712
      %746 = vst.msk [vmem:[%s248 + $0xf8] sm:$0xff] %vm714, %v713
      %s747 = smul.u32 32, %s16
      %p748 = scmp.lt.s32.totalorder %s747, 63
      %s749 = scalar_select %p748, %s747, 63
      %s750 = smul.addr %s749, 8
      %s751 = scalar_lea.vmem %s5, %s750
      // Predicated region
      $region41: #{mtl_dinov2_forward.69} parent=39 // pred_check
        %p752 = pneg %p149
      $region42: #{mtl_dinov2_forward.69} parent=39 // pred_check_branch
        %754 = sbr.rel (%p752) target = $region44
      $region43: #{mtl_dinov2_forward.69} parent=39 // pred_region
        %s755 = smul.u32 32, %s16
      $region44: #{mtl_dinov2_forward.69} parent=39 // pred_fallthru
        _
    $region40: #{mtl_dinov2_forward.69} parent=5 // pred_fallthru
      _
    %p756 = scmp.le.s32.totalorder 2, %s11
    // Predicated region
    $region45: #{mtl_dinov2_forward.69} parent=5 // pred_check
      %p757 = pneg %p756
    $region46: #{mtl_dinov2_forward.69} parent=5 // pred_check_branch
      %759 = sbr.rel (%p757) target = $region48
    $region47: #{mtl_dinov2_forward.69} parent=5 // pred_region
      %s760 = ssub.s32 %s11, 2
      // Predicated region
      $region49: #{mtl_dinov2_forward.69} parent=47 // pred_check
        %p761 = pneg %p155
      $region50: #{mtl_dinov2_forward.69} parent=47 // pred_check_branch
        %763 = sbr.rel (%p761) target = $region52
      $region51: #{mtl_dinov2_forward.69} parent=47 // pred_region
        %s764 = smul.u32 32, %s17
        %p765 = scmp.lt.s32.totalorder %s764, 63
        %s766 = scalar_select %p765, %s764, 63
        %s767 = smul.addr %s766, 8
        %s768 = scalar_lea.vmem %s5, %s767
      $region52: #{mtl_dinov2_forward.69} parent=47 // pred_fallthru
        _
    $region48: #{mtl_dinov2_forward.69} parent=5 // pred_fallthru
      _
  $region6: #{mtl_dinov2_forward.69} parent=0 // loop_footer
    %s15 = sadd.s32 1, %s11
  $region7: #{mtl_dinov2_forward.69} parent=0 // loop_footer_branch
    %10 = sbr.rel target = $region3
  $region8: #{mtl_dinov2_forward.69} parent=0 // loop_exit
    _

// kernel: mtl_dinov2_forward.66
$region0: #{mtl_dinov2_forward.66}
  #allocation0 [shape = 'u32[]', space=smem, size = 0x4, offset = 0x4, fixed_abs, tag = 'smem constant byte address 0x4 - core index']
  #allocation1 [shape = 'u32[144,128]{1,0:T(1,128)}', space=vmem, size = 0x12000, scoped, tag = 'internal scratch']
  #allocation2 [shape = 'f32[256,1]{1,0:T(8,128)}', space=vmem, size = 0x20000, scoped, tag = 'scratch operand']
  #allocation3 [shape = 'f32[256,1]{1,0:T(8,128)}', space=vmem, size = 0x20000, scoped, tag = 'scratch operand']
  #allocation4 [shape = 'f32[256,8]{1,0:T(8,128)}', space=vmem, size = 0x20000, scoped, tag = 'scratch operand']
  %s0 = inlined_call_operand.vmem [shape: bf16[8,256,8], index: 0, kind: input, shape index: {}]
  %s1 = inlined_call_operand.vmem [shape: bf16[8,256,8], index: 1, kind: input, shape index: {}]
  %s2 = inlined_call_operand.vmem [shape: bf16[8,256,8], index: 2, kind: input, shape index: {}]
  %s3 = inlined_call_operand.vmem [shape: bf16[8,256,8], index: 3, kind: output, shape index: {}]
  %s4 = sld [smem:[#allocation0]]
  $region53: #{mtl_dinov2_forward.66} parent=0
    _
  %s6 = ssub.s32 1, %s4
  %s7 = scalar_select 0, %s6, %s4
  loop: start=0, step=1, limit=10
  $region2: #{mtl_dinov2_forward.66} parent=0 // loop_pre_header
    _
  $region3: #{mtl_dinov2_forward.66} parent=0 // loop_header
    %s9 = sphi 0, %s13
    %p10 = scmp.ge.s32.totalorder %s9, 10
    %s16 = sphi 0, %s35
    %s17 = sphi 0, %s31
    %s18 = sphi 0, %s27
    %s19 = sphi 0, %s16
    %s20 = sphi 0, %s17
    %s21 = sphi 0, %s18
    %s22 = sphi 0, %s19
    %s23 = sphi 0, %s20
    %s24 = sphi 0, %s21
    %s40 = sphi 0, %s42
    %s43 = sphi 0, %s40
    %s44 = sphi 0, %s43
    %s60 = sphi 0, %s44
    %s68 = sphi 0, %s70
    %s71 = sphi 0, %s68
    %s72 = sphi 0, %s71
    %s88 = sphi 0, %s72
    %s96 = sphi 0, %s98
    %s99 = sphi 0, %s96
    %s100 = sphi 0, %s99
    %s116 = sphi 0, %s100
    %s124 = sphi 0, %s126
    %s127 = sphi 0, %s124
    %s128 = sphi 0, %s127
    %s144 = sphi 0, %s128
  $region4: #{mtl_dinov2_forward.66} parent=0 // loop_header_branch
    %12 = sbr.rel (%p10) target = $region8
  $region5: #{mtl_dinov2_forward.66} parent=0 // loop_body
    %s14 = ssub.s32 %s9, 1
    %s15 = ssub.s32 %s9, 2
    %s25 = sadd.s32 1, %s18
    %p26 = scmp.ge.s32.totalorder %s25, 1
    %s27 = scalar_select %p26, 0, %s25
    %s28 = sadd.s32 1, %s17
    %s29 = scalar_select %p26, %s28, %s17
    %p30 = scmp.ge.s32.totalorder %s29, 1
    %s31 = scalar_select %p30, 0, %s29
    %s32 = sadd.s32 1, %s16
    %s33 = scalar_select %p30, %s32, %s16
    %p34 = scmp.ge.s32.totalorder %s33, 8
    %s35 = scalar_select %p34, 0, %s33
    %s36 = ssub.s32 %s16, %s35
    %s37 = ssub.s32 %s17, %s31
    %s38 = sor.u32 %s36, %s37
    %p39 = scmp.eq.s32.totalorder %s38, 0
    %s41 = sadd.s32 %s40, 1
    %s42 = scalar_select %p39, %s40, %s41
    %p45 = pneg %p39
    %p46 = scmp.eq.s32.totalorder %s9, 7
    %p47 = por %p45, %p46
    %p48 = scmp.ne.s32.totalorder %s40, %s43
    %p49 = scmp.eq.s32.totalorder %s9, 0
    %p50 = por %p48, %p49
    %p51 = scmp.ne.s32.totalorder %s40, %s43
    %p52 = scmp.eq.s32.totalorder %s14, 7
    %p53 = por %p51, %p52
    %p54 = scmp.ne.s32.totalorder %s43, %s44
    %p55 = scmp.eq.s32.totalorder %s14, 0
    %p56 = por %p54, %p55
    %p57 = scmp.ne.s32.totalorder %s43, %s44
    %p58 = scmp.eq.s32.totalorder %s15, 7
    %p59 = por %p57, %p58
    %p61 = scmp.ne.s32.totalorder %s44, %s60
    %p62 = scmp.eq.s32.totalorder %s15, 0
    %p63 = por %p61, %p62
    %s64 = ssub.s32 %s16, %s35
    %s65 = ssub.s32 %s18, %s27
    %s66 = sor.u32 %s64, %s65
    %p67 = scmp.eq.s32.totalorder %s66, 0
    %s69 = sadd.s32 %s68, 1
    %s70 = scalar_select %p67, %s68, %s69
    %p73 = pneg %p67
    %p74 = scmp.eq.s32.totalorder %s9, 7
    %p75 = por %p73, %p74
    %p76 = scmp.ne.s32.totalorder %s68, %s71
    %p77 = scmp.eq.s32.totalorder %s9, 0
    %p78 = por %p76, %p77
    %p79 = scmp.ne.s32.totalorder %s68, %s71
    %p80 = scmp.eq.s32.totalorder %s14, 7
    %p81 = por %p79, %p80
    %p82 = scmp.ne.s32.totalorder %s71, %s72
    %p83 = scmp.eq.s32.totalorder %s14, 0
    %p84 = por %p82, %p83
    %p85 = scmp.ne.s32.totalorder %s71, %s72
    %p86 = scmp.eq.s32.totalorder %s15, 7
    %p87 = por %p85, %p86
    %p89 = scmp.ne.s32.totalorder %s72, %s88
    %p90 = scmp.eq.s32.totalorder %s15, 0
    %p91 = por %p89, %p90
    %s92 = ssub.s32 %s16, %s35
    %s93 = ssub.s32 %s18, %s27
    %s94 = sor.u32 %s92, %s93
    %p95 = scmp.eq.s32.totalorder %s94, 0
    %s97 = sadd.s32 %s96, 1
    %s98 = scalar_select %p95, %s96, %s97
    %p101 = pneg %p95
    %p102 = scmp.eq.s32.totalorder %s9, 7
    %p103 = por %p101, %p102
    %p104 = scmp.ne.s32.totalorder %s96, %s99
    %p105 = scmp.eq.s32.totalorder %s9, 0
    %p106 = por %p104, %p105
    %p107 = scmp.ne.s32.totalorder %s96, %s99
    %p108 = scmp.eq.s32.totalorder %s14, 7
    %p109 = por %p107, %p108
    %p110 = scmp.ne.s32.totalorder %s99, %s100
    %p111 = scmp.eq.s32.totalorder %s14, 0
    %p112 = por %p110, %p111
    %p113 = scmp.ne.s32.totalorder %s99, %s100
    %p114 = scmp.eq.s32.totalorder %s15, 7
    %p115 = por %p113, %p114
    %p117 = scmp.ne.s32.totalorder %s100, %s116
    %p118 = scmp.eq.s32.totalorder %s15, 0
    %p119 = por %p117, %p118
    %s120 = ssub.s32 %s16, %s35
    %s121 = ssub.s32 %s17, %s31
    %s122 = sor.u32 %s120, %s121
    %p123 = scmp.eq.s32.totalorder %s122, 0
    %s125 = sadd.s32 %s124, 1
    %s126 = scalar_select %p123, %s124, %s125
    %p129 = pneg %p123
    %p130 = scmp.eq.s32.totalorder %s9, 7
    %p131 = por %p129, %p130
    %p132 = scmp.ne.s32.totalorder %s124, %s127
    %p133 = scmp.eq.s32.totalorder %s9, 0
    %p134 = por %p132, %p133
    %p135 = scmp.ne.s32.totalorder %s124, %s127
    %p136 = scmp.eq.s32.totalorder %s14, 7
    %p137 = por %p135, %p136
    %p138 = scmp.ne.s32.totalorder %s127, %s128
    %p139 = scmp.eq.s32.totalorder %s14, 0
    %p140 = por %p138, %p139
    %p141 = scmp.ne.s32.totalorder %s127, %s128
    %p142 = scmp.eq.s32.totalorder %s15, 7
    %p143 = por %p141, %p142
    %p145 = scmp.ne.s32.totalorder %s128, %s144
    %p146 = scmp.eq.s32.totalorder %s15, 0
    %p147 = por %p145, %p146
    %p148 = scmp.le.s32.totalorder 1, %s9
    %p149 = scmp.lt.s32.totalorder %s9, 9
    %p150 = pnand %p148, %p149
    %p151 = pneg %p150
    // Predicated region
    $region9: #{mtl_dinov2_forward.66} parent=5 // pred_check
      _
    $region10: #{mtl_dinov2_forward.66} parent=5 // pred_check_branch
      %153 = sbr.rel (%p150) target = $region12
    $region11: #{mtl_dinov2_forward.66} parent=5 // pred_region
      %s154 = ssub.s32 %s9, 1
    $region12: #{mtl_dinov2_forward.66} parent=5 // pred_fallthru
      _
    %p155 = scmp.lt.s32.totalorder %s9, 8
    // Predicated region
    $region13: #{mtl_dinov2_forward.66} parent=5 // pred_check
      %p156 = pneg %p155
    $region14: #{mtl_dinov2_forward.66} parent=5 // pred_check_branch
      %158 = sbr.rel (%p156) target = $region16
    $region15: #{mtl_dinov2_forward.66} parent=5 // pred_region
      // Predicated region
      $region17: #{mtl_dinov2_forward.66} parent=15 // pred_check
        %p159 = pneg %p50
      $region18: #{mtl_dinov2_forward.66} parent=15 // pred_check_branch
        %161 = sbr.rel (%p159) target = $region20
      $region19: #{mtl_dinov2_forward.66} parent=15 // pred_region
        %s162 = smul.u32 32, %s17
        %p163 = scmp.lt.s32.totalorder %s16, 7
        %s164 = scalar_select %p163, %s16, 7
        %p165 = scmp.lt.s32.totalorder %s162, 31
        %s166 = scalar_select %p165, %s162, 31
        %s167 = smul.addr %s164, 32
        %s168 = sadd.s32 %s166, %s167
        %s169 = smul.addr %s168, 4
        %s170 = scalar_lea.vmem %s0, %s169
        %s171 = smul.u32 32, %s17
      $region20: #{mtl_dinov2_forward.66} parent=15 // pred_fallthru
        _
      // Predicated region
      $region21: #{mtl_dinov2_forward.66} parent=15 // pred_check
        %p172 = pneg %p78
      $region22: #{mtl_dinov2_forward.66} parent=15 // pred_check_branch
        %174 = sbr.rel (%p172) target = $region24
      $region23: #{mtl_dinov2_forward.66} parent=15 // pred_region
        %s175 = smul.u32 32, %s18
        %p176 = scmp.lt.s32.totalorder %s16, 7
        %s177 = scalar_select %p176, %s16, 7
        %p178 = scmp.lt.s32.totalorder %s175, 31
        %s179 = scalar_select %p178, %s175, 31
        %s180 = smul.addr %s177, 32
        %s181 = sadd.s32 %s179, %s180
        %s182 = smul.addr %s181, 4
        %s183 = scalar_lea.vmem %s1, %s182
        %s184 = smul.u32 32, %s18
      $region24: #{mtl_dinov2_forward.66} parent=15 // pred_fallthru
        _
      // Predicated region
      $region25: #{mtl_dinov2_forward.66} parent=15 // pred_check
        %p185 = pneg %p106
      $region26: #{mtl_dinov2_forward.66} parent=15 // pred_check_branch
        %187 = sbr.rel (%p185) target = $region28
      $region27: #{mtl_dinov2_forward.66} parent=15 // pred_region
        %s188 = smul.u32 32, %s18
        %p189 = scmp.lt.s32.totalorder %s16, 7
        %s190 = scalar_select %p189, %s16, 7
        %p191 = scmp.lt.s32.totalorder %s188, 31
        %s192 = scalar_select %p191, %s188, 31
        %s193 = smul.addr %s190, 32
        %s194 = sadd.s32 %s192, %s193
        %s195 = smul.addr %s194, 4
        %s196 = scalar_lea.vmem %s2, %s195
        %s197 = smul.u32 32, %s18
      $region28: #{mtl_dinov2_forward.66} parent=15 // pred_fallthru
        _
    $region16: #{mtl_dinov2_forward.66} parent=5 // pred_fallthru
      _
    %p198 = scmp.le.s32.totalorder 1, %s9
    %p199 = scmp.lt.s32.totalorder %s9, 9
    %p200 = pnand %p198, %p199
    %p201 = pneg %p200
    // Predicated region
    $region29: #{mtl_dinov2_forward.66} parent=5 // pred_check
      _
    $region30: #{mtl_dinov2_forward.66} parent=5 // pred_check_branch
      %203 = sbr.rel (%p200) target = $region32
    $region31: #{mtl_dinov2_forward.66} parent=5 // pred_region
      %s204 = ssub.s32 %s9, 1
      %s205 = smul.u32 32, %s20
      %p206 = scmp.lt.s32.totalorder %s19, 7
      %s207 = scalar_select %p206, %s19, 7
      %p208 = scmp.lt.s32.totalorder %s205, 31
      %s209 = scalar_select %p208, %s205, 31
      %s210 = smul.addr %s207, 32
      %s211 = sadd.s32 %s209, %s210
      %s212 = smul.addr %s211, 4
      %s213 = scalar_lea.vmem %s0, %s212
      %p214 = pneg %p56
      %p215 = pneg %p53
      %s216 = smul.u32 32, %s21
      %p217 = scmp.lt.s32.totalorder %s19, 7
      %s218 = scalar_select %p217, %s19, 7
      %p219 = scmp.lt.s32.totalorder %s216, 31
      %s220 = scalar_select %p219, %s216, 31
      %s221 = smul.addr %s218, 32
      %s222 = sadd.s32 %s220, %s221
      %s223 = smul.addr %s222, 4
      %s224 = scalar_lea.vmem %s1, %s223
      %p225 = pneg %p84
      %p226 = pneg %p81
      %s227 = smul.u32 32, %s21
      %p228 = scmp.lt.s32.totalorder %s19, 7
      %s229 = scalar_select %p228, %s19, 7
      %p230 = scmp.lt.s32.totalorder %s227, 31
      %s231 = scalar_select %p230, %s227, 31
      %s232 = smul.addr %s229, 32
      %s233 = sadd.s32 %s231, %s232
      %s234 = smul.addr %s233, 4
      %s235 = scalar_lea.vmem %s2, %s234
      %p236 = pneg %p112
      %p237 = pneg %p109
      %p238 = pneg %p140
      %p239 = pneg %p137
      %s240 = smul.u32 32, %s20
      %p241 = scmp.lt.s32.totalorder %s19, 7
      %s242 = scalar_select %p241, %s19, 7
      %p243 = scmp.lt.s32.totalorder %s240, 31
      %s244 = scalar_select %p243, %s240, 31
      %s245 = smul.addr %s242, 32
      %s246 = sadd.s32 %s244, %s245
      %s247 = smul.addr %s246, 4
      %s248 = scalar_lea.vmem %s3, %s247
      %s249 = smul.u32 32, %s20
      %p250 = scmp.lt.s32.totalorder %s19, 7
      %s251 = scalar_select %p250, %s19, 7
      %p252 = scmp.lt.s32.totalorder %s249, 31
      %s253 = scalar_select %p252, %s249, 31
      %s254 = smul.addr %s251, 32
      %s255 = sadd.s32 %s253, %s254
      %s256 = smul.addr %s255, 4
      %s257 = scalar_lea.vmem %s0, %s256
      %s258 = smul.u32 32, %s20
      %s259 = smul.u32 32, %s21
      %p260 = scmp.lt.s32.totalorder %s19, 7
      %s261 = scalar_select %p260, %s19, 7
      %p262 = scmp.lt.s32.totalorder %s259, 31
      %s263 = scalar_select %p262, %s259, 31
      %s264 = smul.addr %s261, 32
      %s265 = sadd.s32 %s263, %s264
      %s266 = smul.addr %s265, 4
      %s267 = scalar_lea.vmem %s1, %s266
      %s268 = smul.u32 32, %s21
      %s269 = smul.u32 32, %s21
      %p270 = scmp.lt.s32.totalorder %s19, 7
      %s271 = scalar_select %p270, %s19, 7
      %p272 = scmp.lt.s32.totalorder %s269, 31
      %s273 = scalar_select %p272, %s269, 31
      %s274 = smul.addr %s271, 32
      %s275 = sadd.s32 %s273, %s274
      %s276 = smul.addr %s275, 4
      %s277 = scalar_lea.vmem %s2, %s276
      %s278 = smul.u32 32, %s21
      %s279 = smul.u32 32, %s20
      %p280 = scmp.lt.s32.totalorder %s19, 7
      %s281 = scalar_select %p280, %s19, 7
      %p282 = scmp.lt.s32.totalorder %s279, 31
      %s283 = scalar_select %p282, %s279, 31
      %s284 = smul.addr %s281, 32
      %s285 = sadd.s32 %s283, %s284
      %s286 = smul.addr %s285, 4
      %s287 = scalar_lea.vmem %s3, %s286
      %s288 = smul.u32 32, %s20
      %p291 = scmp.eq.s32.totalorder %s21, 0
      // Predicated region
      $region33: #{mtl_dinov2_forward.66} parent=31 // pred_check
        %p292 = pneg %p291
      $region34: #{mtl_dinov2_forward.66} parent=31 // pred_check_branch
        %294 = sbr.rel (%p292) target = $region36
      $region35: #{mtl_dinov2_forward.66} parent=31 // pred_region
        %vm295 = vcmask 7168
        %296 = vst.msk [vmem:[#allocation2] sm:$0xff] %vm295, -inf
        %297 = vst.msk [vmem:[#allocation2 + $0x8] sm:$0xff] %vm295, -inf
        %298 = vst.msk [vmem:[#allocation2 + $0x10] sm:$0xff] %vm295, -inf
        %299 = vst.msk [vmem:[#allocation2 + $0x18] sm:$0xff] %vm295, -inf
        %300 = vst.msk [vmem:[#allocation2 + $0x20] sm:$0xff] %vm295, -inf
        %301 = vst.msk [vmem:[#allocation2 + $0x28] sm:$0xff] %vm295, -inf
        %302 = vst.msk [vmem:[#allocation2 + $0x30] sm:$0xff] %vm295, -inf
        %303 = vst.msk [vmem:[#allocation2 + $0x38] sm:$0xff] %vm295, -inf
        %304 = vst.msk [vmem:[#allocation2 + $0x40] sm:$0xff] %vm295, -inf
        %305 = vst.msk [vmem:[#allocation2 + $0x48] sm:$0xff] %vm295, -inf
        %306 = vst.msk [vmem:[#allocation2 + $0x50] sm:$0xff] %vm295, -inf
        %307 = vst.msk [vmem:[#allocation2 + $0x58] sm:$0xff] %vm295, -inf
        %308 = vst.msk [vmem:[#allocation2 + $0x60] sm:$0xff] %vm295, -inf
        %309 = vst.msk [vmem:[#allocation2 + $0x68] sm:$0xff] %vm295, -inf
        %310 = vst.msk [vmem:[#allocation2 + $0x70] sm:$0xff] %vm295, -inf
        %311 = vst.msk [vmem:[#allocation2 + $0x78] sm:$0xff] %vm295, -inf
        %312 = vst.msk [vmem:[#allocation2 + $0x80] sm:$0xff] %vm295, -inf
        %313 = vst.msk [vmem:[#allocation2 + $0x88] sm:$0xff] %vm295, -inf
        %314 = vst.msk [vmem:[#allocation2 + $0x90] sm:$0xff] %vm295, -inf
        %315 = vst.msk [vmem:[#allocation2 + $0x98] sm:$0xff] %vm295, -inf
        %316 = vst.msk [vmem:[#allocation2 + $0xa0] sm:$0xff] %vm295, -inf
        %317 = vst.msk [vmem:[#allocation2 + $0xa8] sm:$0xff] %vm295, -inf
        %318 = vst.msk [vmem:[#allocation2 + $0xb0] sm:$0xff] %vm295, -inf
        %319 = vst.msk [vmem:[#allocation2 + $0xb8] sm:$0xff] %vm295, -inf
        %320 = vst.msk [vmem:[#allocation2 + $0xc0] sm:$0xff] %vm295, -inf
        %321 = vst.msk [vmem:[#allocation2 + $0xc8] sm:$0xff] %vm295, -inf
        %322 = vst.msk [vmem:[#allocation2 + $0xd0] sm:$0xff] %vm295, -inf
        %323 = vst.msk [vmem:[#allocation2 + $0xd8] sm:$0xff] %vm295, -inf
        %324 = vst.msk [vmem:[#allocation2 + $0xe0] sm:$0xff] %vm295, -inf
        %325 = vst.msk [vmem:[#allocation2 + $0xe8] sm:$0xff] %vm295, -inf
        %326 = vst.msk [vmem:[#allocation2 + $0xf0] sm:$0xff] %vm295, -inf
        %327 = vst.msk [vmem:[#allocation2 + $0xf8] sm:$0xff] %vm295, -inf
        %328 = vst.msk [vmem:[#allocation3] sm:$0xff] %vm295, 0.0
        %329 = vst.msk [vmem:[#allocation3 + $0x8] sm:$0xff] %vm295, 0.0
        %330 = vst.msk [vmem:[#allocation3 + $0x10] sm:$0xff] %vm295, 0.0
        %331 = vst.msk [vmem:[#allocation3 + $0x18] sm:$0xff] %vm295, 0.0
        %332 = vst.msk [vmem:[#allocation3 + $0x20] sm:$0xff] %vm295, 0.0
        %333 = vst.msk [vmem:[#allocation3 + $0x28] sm:$0xff] %vm295, 0.0
        %334 = vst.msk [vmem:[#allocation3 + $0x30] sm:$0xff] %vm295, 0.0
        %335 = vst.msk [vmem:[#allocation3 + $0x38] sm:$0xff] %vm295, 0.0
        %336 = vst.msk [vmem:[#allocation3 + $0x40] sm:$0xff] %vm295, 0.0
        %337 = vst.msk [vmem:[#allocation3 + $0x48] sm:$0xff] %vm295, 0.0
        %338 = vst.msk [vmem:[#allocation3 + $0x50] sm:$0xff] %vm295, 0.0
        %339 = vst.msk [vmem:[#allocation3 + $0x58] sm:$0xff] %vm295, 0.0
        %340 = vst.msk [vmem:[#allocation3 + $0x60] sm:$0xff] %vm295, 0.0
        %341 = vst.msk [vmem:[#allocation3 + $0x68] sm:$0xff] %vm295, 0.0
        %342 = vst.msk [vmem:[#allocation3 + $0x70] sm:$0xff] %vm295, 0.0
        %343 = vst.msk [vmem:[#allocation3 + $0x78] sm:$0xff] %vm295, 0.0
        %344 = vst.msk [vmem:[#allocation3 + $0x80] sm:$0xff] %vm295, 0.0
        %345 = vst.msk [vmem:[#allocation3 + $0x88] sm:$0xff] %vm295, 0.0
        %346 = vst.msk [vmem:[#allocation3 + $0x90] sm:$0xff] %vm295, 0.0
        %347 = vst.msk [vmem:[#allocation3 + $0x98] sm:$0xff] %vm295, 0.0
        %348 = vst.msk [vmem:[#allocation3 + $0xa0] sm:$0xff] %vm295, 0.0
        %349 = vst.msk [vmem:[#allocation3 + $0xa8] sm:$0xff] %vm295, 0.0
        %350 = vst.msk [vmem:[#allocation3 + $0xb0] sm:$0xff] %vm295, 0.0
        %351 = vst.msk [vmem:[#allocation3 + $0xb8] sm:$0xff] %vm295, 0.0
        %352 = vst.msk [vmem:[#allocation3 + $0xc0] sm:$0xff] %vm295, 0.0
        %353 = vst.msk [vmem:[#allocation3 + $0xc8] sm:$0xff] %vm295, 0.0
        %354 = vst.msk [vmem:[#allocation3 + $0xd0] sm:$0xff] %vm295, 0.0
        %355 = vst.msk [vmem:[#allocation3 + $0xd8] sm:$0xff] %vm295, 0.0
        %356 = vst.msk [vmem:[#allocation3 + $0xe0] sm:$0xff] %vm295, 0.0
        %357 = vst.msk [vmem:[#allocation3 + $0xe8] sm:$0xff] %vm295, 0.0
        %358 = vst.msk [vmem:[#allocation3 + $0xf0] sm:$0xff] %vm295, 0.0
        %359 = vst.msk [vmem:[#allocation3 + $0xf8] sm:$0xff] %vm295, 0.0
        %vm360 = vcmask 64512
        %361 = vst.msk [vmem:[#allocation4] sm:$0xff] %vm360, 0.0
        %362 = vst.msk [vmem:[#allocation4 + $0x8] sm:$0xff] %vm360, 0.0
        %363 = vst.msk [vmem:[#allocation4 + $0x10] sm:$0xff] %vm360, 0.0
        %364 = vst.msk [vmem:[#allocation4 + $0x18] sm:$0xff] %vm360, 0.0
        %365 = vst.msk [vmem:[#allocation4 + $0x20] sm:$0xff] %vm360, 0.0
        %366 = vst.msk [vmem:[#allocation4 + $0x28] sm:$0xff] %vm360, 0.0
        %367 = vst.msk [vmem:[#allocation4 + $0x30] sm:$0xff] %vm360, 0.0
        %368 = vst.msk [vmem:[#allocation4 + $0x38] sm:$0xff] %vm360, 0.0
        %369 = vst.msk [vmem:[#allocation4 + $0x40] sm:$0xff] %vm360, 0.0
        %370 = vst.msk [vmem:[#allocation4 + $0x48] sm:$0xff] %vm360, 0.0
        %371 = vst.msk [vmem:[#allocation4 + $0x50] sm:$0xff] %vm360, 0.0
        %372 = vst.msk [vmem:[#allocation4 + $0x58] sm:$0xff] %vm360, 0.0
        %373 = vst.msk [vmem:[#allocation4 + $0x60] sm:$0xff] %vm360, 0.0
        %374 = vst.msk [vmem:[#allocation4 + $0x68] sm:$0xff] %vm360, 0.0
        %375 = vst.msk [vmem:[#allocation4 + $0x70] sm:$0xff] %vm360, 0.0
        %376 = vst.msk [vmem:[#allocation4 + $0x78] sm:$0xff] %vm360, 0.0
        %377 = vst.msk [vmem:[#allocation4 + $0x80] sm:$0xff] %vm360, 0.0
        %378 = vst.msk [vmem:[#allocation4 + $0x88] sm:$0xff] %vm360, 0.0
        %379 = vst.msk [vmem:[#allocation4 + $0x90] sm:$0xff] %vm360, 0.0
        %380 = vst.msk [vmem:[#allocation4 + $0x98] sm:$0xff] %vm360, 0.0
        %381 = vst.msk [vmem:[#allocation4 + $0xa0] sm:$0xff] %vm360, 0.0
        %382 = vst.msk [vmem:[#allocation4 + $0xa8] sm:$0xff] %vm360, 0.0
        %383 = vst.msk [vmem:[#allocation4 + $0xb0] sm:$0xff] %vm360, 0.0
        %384 = vst.msk [vmem:[#allocation4 + $0xb8] sm:$0xff] %vm360, 0.0
        %385 = vst.msk [vmem:[#allocation4 + $0xc0] sm:$0xff] %vm360, 0.0
        %386 = vst.msk [vmem:[#allocation4 + $0xc8] sm:$0xff] %vm360, 0.0
        %387 = vst.msk [vmem:[#allocation4 + $0xd0] sm:$0xff] %vm360, 0.0
        %388 = vst.msk [vmem:[#allocation4 + $0xd8] sm:$0xff] %vm360, 0.0
        %389 = vst.msk [vmem:[#allocation4 + $0xe0] sm:$0xff] %vm360, 0.0
        %390 = vst.msk [vmem:[#allocation4 + $0xe8] sm:$0xff] %vm360, 0.0
        %391 = vst.msk [vmem:[#allocation4 + $0xf0] sm:$0xff] %vm360, 0.0
        %392 = vst.msk [vmem:[#allocation4 + $0xf8] sm:$0xff] %vm360, 0.0
      $region36: #{mtl_dinov2_forward.66} parent=31 // pred_fallthru
        _
      %v393 = vld [vmem:[%s257] sm:$0xf]
      %v394 = vld [vmem:[%s257 + $0x4] sm:$0xf]
      %v395 = vld [vmem:[%s257 + $0x8] sm:$0xf]
      %v396 = vld [vmem:[%s257 + $0xc] sm:$0xf]
      %v397 = vld [vmem:[%s257 + $0x10] sm:$0xf]
      %v398 = vld [vmem:[%s257 + $0x14] sm:$0xf]
      %v399 = vld [vmem:[%s257 + $0x18] sm:$0xf]
      %v400 = vld [vmem:[%s257 + $0x1c] sm:$0xf]
      %v401 = vld [vmem:[%s257 + $0x20] sm:$0xf]
      %v402 = vld [vmem:[%s257 + $0x24] sm:$0xf]
      %v403 = vld [vmem:[%s257 + $0x28] sm:$0xf]
      %v404 = vld [vmem:[%s257 + $0x2c] sm:$0xf]
      %v405 = vld [vmem:[%s257 + $0x30] sm:$0xf]
      %v406 = vld [vmem:[%s257 + $0x34] sm:$0xf]
      %v407 = vld [vmem:[%s257 + $0x38] sm:$0xf]
      %v408 = vld [vmem:[%s257 + $0x3c] sm:$0xf]
      %v409 = vld [vmem:[%s257 + $0x40] sm:$0xf]
      %v410 = vld [vmem:[%s257 + $0x44] sm:$0xf]
      %v411 = vld [vmem:[%s257 + $0x48] sm:$0xf]
      %v412 = vld [vmem:[%s257 + $0x4c] sm:$0xf]
      %v413 = vld [vmem:[%s257 + $0x50] sm:$0xf]
      %v414 = vld [vmem:[%s257 + $0x54] sm:$0xf]
      %v415 = vld [vmem:[%s257 + $0x58] sm:$0xf]
      %v416 = vld [vmem:[%s257 + $0x5c] sm:$0xf]
      %v417 = vld [vmem:[%s257 + $0x60] sm:$0xf]
      %v418 = vld [vmem:[%s257 + $0x64] sm:$0xf]
      %v419 = vld [vmem:[%s257 + $0x68] sm:$0xf]
      %v420 = vld [vmem:[%s257 + $0x6c] sm:$0xf]
      %v421 = vld [vmem:[%s257 + $0x70] sm:$0xf]
      %v422 = vld [vmem:[%s257 + $0x74] sm:$0xf]
      %v423 = vld [vmem:[%s257 + $0x78] sm:$0xf]
      %v424 = vld [vmem:[%s257 + $0x7c] sm:$0xf]
      %v425 = vmul.bf16 %v393, 1052065461
      %v426 = vmul.bf16 %v394, 1052065461
      %v427 = vmul.bf16 %v395, 1052065461
      %v428 = vmul.bf16 %v396, 1052065461
      %v429 = vmul.bf16 %v397, 1052065461
      %v430 = vmul.bf16 %v398, 1052065461
      %v431 = vmul.bf16 %v399, 1052065461
      %v432 = vmul.bf16 %v400, 1052065461
      %v433 = vmul.bf16 %v401, 1052065461
      %v434 = vmul.bf16 %v402, 1052065461
      %v435 = vmul.bf16 %v403, 1052065461
      %v436 = vmul.bf16 %v404, 1052065461
      %v437 = vmul.bf16 %v405, 1052065461
      %v438 = vmul.bf16 %v406, 1052065461
      %v439 = vmul.bf16 %v407, 1052065461
      %v440 = vmul.bf16 %v408, 1052065461
      %v441 = vmul.bf16 %v409, 1052065461
      %v442 = vmul.bf16 %v410, 1052065461
      %v443 = vmul.bf16 %v411, 1052065461
      %v444 = vmul.bf16 %v412, 1052065461
      %v445 = vmul.bf16 %v413, 1052065461
      %v446 = vmul.bf16 %v414, 1052065461
      %v447 = vmul.bf16 %v415, 1052065461
      %v448 = vmul.bf16 %v416, 1052065461
      %v449 = vmul.bf16 %v417, 1052065461
      %v450 = vmul.bf16 %v418, 1052065461
      %v451 = vmul.bf16 %v419, 1052065461
      %v452 = vmul.bf16 %v420, 1052065461
      %v453 = vmul.bf16 %v421, 1052065461
      %v454 = vmul.bf16 %v422, 1052065461
      %v455 = vmul.bf16 %v423, 1052065461
      %v456 = vmul.bf16 %v424, 1052065461
      %v457 = vld [vmem:[%s267] sm:$0xf]
      %v458 = vld [vmem:[%s267 + $0x4] sm:$0xf]
      %v459 = vld [vmem:[%s267 + $0x8] sm:$0xf]
      %v460 = vld [vmem:[%s267 + $0xc] sm:$0xf]
      %v461 = vld [vmem:[%s267 + $0x10] sm:$0xf]
      %v462 = vld [vmem:[%s267 + $0x14] sm:$0xf]
      %v463 = vld [vmem:[%s267 + $0x18] sm:$0xf]
      %v464 = vld [vmem:[%s267 + $0x1c] sm:$0xf]
      %v465 = vld [vmem:[%s267 + $0x20] sm:$0xf]
      %v466 = vld [vmem:[%s267 + $0x24] sm:$0xf]
      %v467 = vld [vmem:[%s267 + $0x28] sm:$0xf]
      %v468 = vld [vmem:[%s267 + $0x2c] sm:$0xf]
      %v469 = vld [vmem:[%s267 + $0x30] sm:$0xf]
      %v470 = vld [vmem:[%s267 + $0x34] sm:$0xf]
      %v471 = vld [vmem:[%s267 + $0x38] sm:$0xf]
      %v472 = vld [vmem:[%s267 + $0x3c] sm:$0xf]
      %v473 = vld [vmem:[%s267 + $0x40] sm:$0xf]
      %v474 = vld [vmem:[%s267 + $0x44] sm:$0xf]
      %v475 = vld [vmem:[%s267 + $0x48] sm:$0xf]
      %v476 = vld [vmem:[%s267 + $0x4c] sm:$0xf]
      %v477 = vld [vmem:[%s267 + $0x50] sm:$0xf]
      %v478 = vld [vmem:[%s267 + $0x54] sm:$0xf]
      %v479 = vld [vmem:[%s267 + $0x58] sm:$0xf]
      %v480 = vld [vmem:[%s267 + $0x5c] sm:$0xf]
      %v481 = vld [vmem:[%s267 + $0x60] sm:$0xf]
      %v482 = vld [vmem:[%s267 + $0x64] sm:$0xf]
      %v483 = vld [vmem:[%s267 + $0x68] sm:$0xf]
      %v484 = vld [vmem:[%s267 + $0x6c] sm:$0xf]
      %v485 = vld [vmem:[%s267 + $0x70] sm:$0xf]
      %v486 = vld [vmem:[%s267 + $0x74] sm:$0xf]
      %v487 = vld [vmem:[%s267 + $0x78] sm:$0xf]
      %v488 = vld [vmem:[%s267 + $0x7c] sm:$0xf]
      %v489 = vld [vmem:[%s277] sm:$0xf]
      %v490 = vld [vmem:[%s277 + $0x4] sm:$0xf]
      %v491 = vld [vmem:[%s277 + $0x8] sm:$0xf]
      %v492 = vld [vmem:[%s277 + $0xc] sm:$0xf]
      %v493 = vld [vmem:[%s277 + $0x10] sm:$0xf]
      %v494 = vld [vmem:[%s277 + $0x14] sm:$0xf]
      %v495 = vld [vmem:[%s277 + $0x18] sm:$0xf]
      %v496 = vld [vmem:[%s277 + $0x1c] sm:$0xf]
      %v497 = vld [vmem:[%s277 + $0x20] sm:$0xf]
      %v498 = vld [vmem:[%s277 + $0x24] sm:$0xf]
      %v499 = vld [vmem:[%s277 + $0x28] sm:$0xf]
      %v500 = vld [vmem:[%s277 + $0x2c] sm:$0xf]
      %v501 = vld [vmem:[%s277 + $0x30] sm:$0xf]
      %v502 = vld [vmem:[%s277 + $0x34] sm:$0xf]
      %v503 = vld [vmem:[%s277 + $0x38] sm:$0xf]
      %v504 = vld [vmem:[%s277 + $0x3c] sm:$0xf]
      %v505 = vld [vmem:[%s277 + $0x40] sm:$0xf]
      %v506 = vld [vmem:[%s277 + $0x44] sm:$0xf]
      %v507 = vld [vmem:[%s277 + $0x48] sm:$0xf]
      %v508 = vld [vmem:[%s277 + $0x4c] sm:$0xf]
      %v509 = vld [vmem:[%s277 + $0x50] sm:$0xf]
      %v510 = vld [vmem:[%s277 + $0x54] sm:$0xf]
      %v511 = vld [vmem:[%s277 + $0x58] sm:$0xf]
      %v512 = vld [vmem:[%s277 + $0x5c] sm:$0xf]
      %v513 = vld [vmem:[%s277 + $0x60] sm:$0xf]
      %v514 = vld [vmem:[%s277 + $0x64] sm:$0xf]
      %v515 = vld [vmem:[%s277 + $0x68] sm:$0xf]
      %v516 = vld [vmem:[%s277 + $0x6c] sm:$0xf]
      %v517 = vld [vmem:[%s277 + $0x70] sm:$0xf]
      %v518 = vld [vmem:[%s277 + $0x74] sm:$0xf]
      %v519 = vld [vmem:[%s277 + $0x78] sm:$0xf]
      %v520 = vld [vmem:[%s277 + $0x7c] sm:$0xf]
      %v553 = vunpack.c.l.b16 %v425
      %v554 = vunpack.c.l.b16 %v426
      %v555 = vunpack.c.l.b16 %v427
      %v556 = vunpack.c.l.b16 %v428
      %v557 = vunpack.c.l.b16 %v429
      %v558 = vunpack.c.l.b16 %v430
      %v559 = vunpack.c.l.b16 %v431
      %v560 = vunpack.c.l.b16 %v432
      %v561 = vunpack.c.l.b16 %v433
      %v562 = vunpack.c.l.b16 %v434
      %v563 = vunpack.c.l.b16 %v435
      %v564 = vunpack.c.l.b16 %v436
      %v565 = vunpack.c.l.b16 %v437
      %v566 = vunpack.c.l.b16 %v438
      %v567 = vunpack.c.l.b16 %v439
      %v568 = vunpack.c.l.b16 %v440
      %v569 = vunpack.c.l.b16 %v441
      %v570 = vunpack.c.l.b16 %v442
      %v571 = vunpack.c.l.b16 %v443
      %v572 = vunpack.c.l.b16 %v444
      %v573 = vunpack.c.l.b16 %v445
      %v574 = vunpack.c.l.b16 %v446
      %v575 = vunpack.c.l.b16 %v447
      %v576 = vunpack.c.l.b16 %v448
      %v577 = vunpack.c.l.b16 %v449
      %v578 = vunpack.c.l.b16 %v450
      %v579 = vunpack.c.l.b16 %v451
      %v580 = vunpack.c.l.b16 %v452
      %v581 = vunpack.c.l.b16 %v453
      %v582 = vunpack.c.l.b16 %v454
      %v583 = vunpack.c.l.b16 %v455
      %v584 = vunpack.c.l.b16 %v456
      %v585 = vpack.c.b16 %v554, %v553
      %v586 = vpack.c.b16 %v556, %v555
      %v587 = vpack.c.b16 %v558, %v557
      %v588 = vpack.c.b16 %v560, %v559
      %v589 = vpack.c.b16 %v562, %v561
      %v590 = vpack.c.b16 %v564, %v563
      %v591 = vpack.c.b16 %v566, %v565
      %v592 = vpack.c.b16 %v568, %v567
      %v593 = vpack.c.b16 %v570, %v569
      %v594 = vpack.c.b16 %v572, %v571
      %v595 = vpack.c.b16 %v574, %v573
      %v596 = vpack.c.b16 %v576, %v575
      %v597 = vpack.c.b16 %v578, %v577
      %v598 = vpack.c.b16 %v580, %v579
      %v599 = vpack.c.b16 %v582, %v581
      %v600 = vpack.c.b16 %v584, %v583
      %v633 = vunpack.c.l.b16 %v457
      %v634 = vunpack.c.l.b16 %v458
      %v635 = vunpack.c.l.b16 %v459
      %v636 = vunpack.c.l.b16 %v460
      %v637 = vunpack.c.l.b16 %v461
      %v638 = vunpack.c.l.b16 %v462
      %v639 = vunpack.c.l.b16 %v463
      %v640 = vunpack.c.l.b16 %v464
      %v641 = vunpack.c.l.b16 %v465
      %v642 = vunpack.c.l.b16 %v466
      %v643 = vunpack.c.l.b16 %v467
      %v644 = vunpack.c.l.b16 %v468
      %v645 = vunpack.c.l.b16 %v469
      %v646 = vunpack.c.l.b16 %v470
      %v647 = vunpack.c.l.b16 %v471
      %v648 = vunpack.c.l.b16 %v472
      %v649 = vunpack.c.l.b16 %v473
      %v650 = vunpack.c.l.b16 %v474
      %v651 = vunpack.c.l.b16 %v475
      %v652 = vunpack.c.l.b16 %v476
      %v653 = vunpack.c.l.b16 %v477
      %v654 = vunpack.c.l.b16 %v478
      %v655 = vunpack.c.l.b16 %v479
      %v656 = vunpack.c.l.b16 %v480
      %v657 = vunpack.c.l.b16 %v481
      %v658 = vunpack.c.l.b16 %v482
      %v659 = vunpack.c.l.b16 %v483
      %v660 = vunpack.c.l.b16 %v484
      %v661 = vunpack.c.l.b16 %v485
      %v662 = vunpack.c.l.b16 %v486
      %v663 = vunpack.c.l.b16 %v487
      %v664 = vunpack.c.l.b16 %v488
      %v665 = vpack.c.b16 %v634, %v633
      %v666 = vpack.c.b16 %v636, %v635
      %v667 = vpack.c.b16 %v638, %v637
      %v668 = vpack.c.b16 %v640, %v639
      %v669 = vpack.c.b16 %v642, %v641
      %v670 = vpack.c.b16 %v644, %v643
      %v671 = vpack.c.b16 %v646, %v645
      %v672 = vpack.c.b16 %v648, %v647
      %v673 = vpack.c.b16 %v650, %v649
      %v674 = vpack.c.b16 %v652, %v651
      %v675 = vpack.c.b16 %v654, %v653
      %v676 = vpack.c.b16 %v656, %v655
      %v677 = vpack.c.b16 %v658, %v657
      %v678 = vpack.c.b16 %v660, %v659
      %v679 = vpack.c.b16 %v662, %v661
      %v680 = vpack.c.b16 %v664, %v663
      %vm681 = vcmask 64512
      %v683 = vsel %vm681, %v585, 0
      %v686 = vsel %vm681, %v586, 0
      %v689 = vsel %vm681, %v587, 0
      %v692 = vsel %vm681, %v588, 0
      %v695 = vsel %vm681, %v589, 0
      %v698 = vsel %vm681, %v590, 0
      %v701 = vsel %vm681, %v591, 0
      %v704 = vsel %vm681, %v592, 0
      %v707 = vsel %vm681, %v593, 0
      %v710 = vsel %vm681, %v594, 0
      %v713 = vsel %vm681, %v595, 0
      %v716 = vsel %vm681, %v596, 0
      %v719 = vsel %vm681, %v597, 0
      %v722 = vsel %vm681, %v598, 0
      %v725 = vsel %vm681, %v599, 0
      %v728 = vsel %vm681, %v600, 0
      %v731 = vsel %vm681, %v665, 0
      %v734 = vsel %vm681, %v666, 0
      %v737 = vsel %vm681, %v667, 0
      %v740 = vsel %vm681, %v668, 0
      %v743 = vsel %vm681, %v669, 0
      %v746 = vsel %vm681, %v670, 0
      %v749 = vsel %vm681, %v671, 0
      %v752 = vsel %vm681, %v672, 0
      %v755 = vsel %vm681, %v673, 0
      %v758 = vsel %vm681, %v674, 0
      %v761 = vsel %vm681, %v675, 0
      %v764 = vsel %vm681, %v676, 0
      %v767 = vsel %vm681, %v677, 0
      %v770 = vsel %vm681, %v678, 0
      %v773 = vsel %vm681, %v679, 0
      %v776 = vsel %vm681, %v680, 0
      %778 = vmatprep.subr.bf16.mxu0 0
      %779 = vmatpush1.bf16.xpose.msra.mxu0 %v752
      %780 = vmatprep.subr.bf16.mxu0 0
      %781 = vmatpush1.bf16.xpose.msra.mxu0 %v749
      %782 = vmatprep.subr.bf16.mxu0 0
      %783 = vmatpush1.bf16.xpose.msra.mxu0 %v746
      %784 = vmatprep.subr.bf16.mxu0 0
      %785 = vmatpush1.bf16.xpose.msra.mxu0 %v743
      %786 = vmatprep.subr.bf16.mxu0 0
      %787 = vmatpush1.bf16.xpose.msra.mxu0 %v740
      %788 = vmatprep.subr.bf16.mxu0 0
      %789 = vmatpush1.bf16.xpose.msra.mxu0 %v737
      %790 = vmatprep.subr.bf16.mxu0 0
      %791 = vmatpush1.bf16.xpose.msra.mxu0 %v734
      %792 = vmatprep.subr.bf16.mxu0 0
      %793 = vmatpush1.bf16.xpose.msra.mxu0 %v731
      %794 = vmatprep.subr.bf16.mxu0 0
      %795 = vmatpush2.bf16.xpose.msra.mxu0 %v776
      %796 = vmatprep.subr.bf16.mxu0 0
      %797 = vmatpush2.bf16.xpose.msra.mxu0 %v773
      %798 = vmatprep.subr.bf16.mxu0 0
      %799 = vmatpush2.bf16.xpose.msra.mxu0 %v770
      %800 = vmatprep.subr.bf16.mxu0 0
      %801 = vmatpush2.bf16.xpose.msra.mxu0 %v767
      %802 = vmatprep.subr.bf16.mxu0 0
      %803 = vmatpush2.bf16.xpose.msra.mxu0 %v764
      %804 = vmatprep.subr.bf16.mxu0 0
      %805 = vmatpush2.bf16.xpose.msra.mxu0 %v761
      %806 = vmatprep.subr.bf16.mxu0 0
      %807 = vmatpush2.bf16.xpose.msra.mxu0 %v758
      %808 = vmatprep.subr.bf16.mxu0 0
      %809 = vmatpush2.bf16.xpose.msra.mxu0 %v755
      %810 = vmatprep.mubr.bf16.mxu0 0
      %811 = vmatmul.mubr.bf16.gmra.mxu0 %v683
      %v812 = vpop.f32.mrf.mxu0
      %v813 = vadd.f32 0.0, %v812
      %v814 = vpop.f32.mrf.mxu0
      %v815 = vadd.f32 0.0, %v814
      %v816 = vpop.f32.mrf.mxu0
      %v817 = vadd.f32 0.0, %v816
      %v818 = vpop.f32.mrf.mxu0
      %v819 = vadd.f32 0.0, %v818
      %820 = vmatprep.mubr.bf16.mxu0 0
      %821 = vmatmul.mubr.bf16.gmra.mxu0 %v686
      %v822 = vpop.f32.mrf.mxu0
      %v823 = vadd.f32 0.0, %v822
      %v824 = vpop.f32.mrf.mxu0
      %v825 = vadd.f32 0.0, %v824
      %v826 = vpop.f32.mrf.mxu0
      %v827 = vadd.f32 0.0, %v826
      %v828 = vpop.f32.mrf.mxu0
      %v829 = vadd.f32 0.0, %v828
      %830 = vmatprep.mubr.bf16.mxu0 0
      %831 = vmatmul.mubr.bf16.gmra.mxu0 %v689
      %v832 = vpop.f32.mrf.mxu0
      %v833 = vadd.f32 0.0, %v832
      %v834 = vpop.f32.mrf.mxu0
      %v835 = vadd.f32 0.0, %v834
      %v836 = vpop.f32.mrf.mxu0
      %v837 = vadd.f32 0.0, %v836
      %v838 = vpop.f32.mrf.mxu0
      %v839 = vadd.f32 0.0, %v838
      %840 = vmatprep.mubr.bf16.mxu0 0
      %841 = vmatmul.mubr.bf16.gmra.mxu0 %v692
      %v842 = vpop.f32.mrf.mxu0
      %v843 = vadd.f32 0.0, %v842
      %v844 = vpop.f32.mrf.mxu0
      %v845 = vadd.f32 0.0, %v844
      %v846 = vpop.f32.mrf.mxu0
      %v847 = vadd.f32 0.0, %v846
      %v848 = vpop.f32.mrf.mxu0
      %v849 = vadd.f32 0.0, %v848
      %850 = vmatprep.mubr.bf16.mxu0 0
      %851 = vmatmul.mubr.bf16.gmra.mxu0 %v695
      %v852 = vpop.f32.mrf.mxu0
      %v853 = vadd.f32 0.0, %v852
      %v854 = vpop.f32.mrf.mxu0
      %v855 = vadd.f32 0.0, %v854
      %v856 = vpop.f32.mrf.mxu0
      %v857 = vadd.f32 0.0, %v856
      %v858 = vpop.f32.mrf.mxu0
      %v859 = vadd.f32 0.0, %v858
      %860 = vmatprep.mubr.bf16.mxu0 0
      %861 = vmatmul.mubr.bf16.gmra.mxu0 %v698
      %v862 = vpop.f32.mrf.mxu0
      %v863 = vadd.f32 0.0, %v862
      %v864 = vpop.f32.mrf.mxu0
      %v865 = vadd.f32 0.0, %v864
      %v866 = vpop.f32.mrf.mxu0
      %v867 = vadd.f32 0.0, %v866
      %v868 = vpop.f32.mrf.mxu0
      %v869 = vadd.f32 0.0, %v868
      %870 = vmatprep.mubr.bf16.mxu0 0
      %871 = vmatmul.mubr.bf16.gmra.mxu0 %v701
      %v872 = vpop.f32.mrf.mxu0
      %v873 = vadd.f32 0.0, %v872
      %v874 = vpop.f32.mrf.mxu0
      %v875 = vadd.f32 0.0, %v874
      %v876 = vpop.f32.mrf.mxu0
      %v877 = vadd.f32 0.0, %v876
      %v878 = vpop.f32.mrf.mxu0
      %v879 = vadd.f32 0.0, %v878
      %880 = vmatprep.mubr.bf16.mxu0 0
      %881 = vmatmul.mubr.bf16.gmra.mxu0 %v704
      %v882 = vpop.f32.mrf.mxu0
      %v883 = vadd.f32 0.0, %v882
      %v884 = vpop.f32.mrf.mxu0
      %v885 = vadd.f32 0.0, %v884
      %v886 = vpop.f32.mrf.mxu0
      %v887 = vadd.f32 0.0, %v886
      %v888 = vpop.f32.mrf.mxu0
      %v889 = vadd.f32 0.0, %v888
      %890 = vmatprep.mubr.bf16.mxu0 0
      %891 = vmatmul.mubr.bf16.gmra.mxu0 %v707
      %v892 = vpop.f32.mrf.mxu0
      %v893 = vadd.f32 0.0, %v892
      %v894 = vpop.f32.mrf.mxu0
      %v895 = vadd.f32 0.0, %v894
      %v896 = vpop.f32.mrf.mxu0
      %v897 = vadd.f32 0.0, %v896
      %v898 = vpop.f32.mrf.mxu0
      %v899 = vadd.f32 0.0, %v898
      %900 = vmatprep.mubr.bf16.mxu0 0
      %901 = vmatmul.mubr.bf16.gmra.mxu0 %v710
      %v902 = vpop.f32.mrf.mxu0
      %v903 = vadd.f32 0.0, %v902
      %v904 = vpop.f32.mrf.mxu0
      %v905 = vadd.f32 0.0, %v904
      %v906 = vpop.f32.mrf.mxu0
      %v907 = vadd.f32 0.0, %v906
      %v908 = vpop.f32.mrf.mxu0
      %v909 = vadd.f32 0.0, %v908
      %910 = vmatprep.mubr.bf16.mxu0 0
      %911 = vmatmul.mubr.bf16.gmra.mxu0 %v713
      %v912 = vpop.f32.mrf.mxu0
      %v913 = vadd.f32 0.0, %v912
      %v914 = vpop.f32.mrf.mxu0
      %v915 = vadd.f32 0.0, %v914
      %v916 = vpop.f32.mrf.mxu0
      %v917 = vadd.f32 0.0, %v916
      %v918 = vpop.f32.mrf.mxu0
      %v919 = vadd.f32 0.0, %v918
      %920 = vmatprep.mubr.bf16.mxu0 0
      %921 = vmatmul.mubr.bf16.gmra.mxu0 %v716
      %v922 = vpop.f32.mrf.mxu0
      %v923 = vadd.f32 0.0, %v922
      %v924 = vpop.f32.mrf.mxu0
      %v925 = vadd.f32 0.0, %v924
      %v926 = vpop.f32.mrf.mxu0
      %v927 = vadd.f32 0.0, %v926
      %v928 = vpop.f32.mrf.mxu0
      %v929 = vadd.f32 0.0, %v928
      %930 = vmatprep.mubr.bf16.mxu0 0
      %931 = vmatmul.mubr.bf16.gmra.mxu0 %v719
      %v932 = vpop.f32.mrf.mxu0
      %v933 = vadd.f32 0.0, %v932
      %v934 = vpop.f32.mrf.mxu0
      %v935 = vadd.f32 0.0, %v934
      %v936 = vpop.f32.mrf.mxu0
      %v937 = vadd.f32 0.0, %v936
      %v938 = vpop.f32.mrf.mxu0
      %v939 = vadd.f32 0.0, %v938
      %940 = vmatprep.mubr.bf16.mxu0 0
      %941 = vmatmul.mubr.bf16.gmra.mxu0 %v722
      %v942 = vpop.f32.mrf.mxu0
      %v943 = vadd.f32 0.0, %v942
      %v944 = vpop.f32.mrf.mxu0
      %v945 = vadd.f32 0.0, %v944
      %v946 = vpop.f32.mrf.mxu0
      %v947 = vadd.f32 0.0, %v946
      %v948 = vpop.f32.mrf.mxu0
      %v949 = vadd.f32 0.0, %v948
      %950 = vmatprep.mubr.bf16.mxu0 0
      %951 = vmatmul.mubr.bf16.gmra.mxu0 %v725
      %v952 = vpop.f32.mrf.mxu0
      %v953 = vadd.f32 0.0, %v952
      %v954 = vpop.f32.mrf.mxu0
      %v955 = vadd.f32 0.0, %v954
      %v956 = vpop.f32.mrf.mxu0
      %v957 = vadd.f32 0.0, %v956
      %v958 = vpop.f32.mrf.mxu0
      %v959 = vadd.f32 0.0, %v958
      %960 = vmatprep.mubr.bf16.mxu0 0
      %961 = vmatmul.mubr.bf16.gmra.mxu0 %v728
      %v962 = vpop.f32.mrf.mxu0
      %v963 = vadd.f32 0.0, %v962
      %v964 = vpop.f32.mrf.mxu0
      %v965 = vadd.f32 0.0, %v964
      %v966 = vpop.f32.mrf.mxu0
      %v967 = vadd.f32 0.0, %v966
      %v968 = vpop.f32.mrf.mxu0
      %v969 = vadd.f32 0.0, %v968
      %970 = vdwg.mxu0
      %v971 = vlaneseq
      %v972 = vand.u32 %v971, 127
      %v973 = vadd.s32 %v972, 128
      %s974 = smul.u32 %s21, 256
      %v975 = vstv %s974
      %v976 = vadd.s32 %v972, %v975
      %v977 = vadd.s32 %v973, %v975
      %vm978 = vcmp.lt.s32.totalorder %v976, 17
      %vm979 = vcmp.lt.s32.totalorder %v977, 17
      %v980 = vsel %vm978, %v813, -1e+30
      %v981 = vsel %vm979, %v815, -1e+30
      %v982 = vsel %vm978, %v817, -1e+30
      %v983 = vsel %vm979, %v819, -1e+30
      %v984 = vsel %vm978, %v823, -1e+30
      %v985 = vsel %vm979, %v825, -1e+30
      %v986 = vsel %vm978, %v827, -1e+30
      %v987 = vsel %vm979, %v829, -1e+30
      %v988 = vsel %vm978, %v833, -1e+30
      %v989 = vsel %vm979, %v835, -1e+30
      %v990 = vsel %vm978, %v837, -1e+30
      %v991 = vsel %vm979, %v839, -1e+30
      %v992 = vsel %vm978, %v843, -1e+30
      %v993 = vsel %vm979, %v845, -1e+30
      %v994 = vsel %vm978, %v847, -1e+30
      %v995 = vsel %vm979, %v849, -1e+30
      %v996 = vsel %vm978, %v853, -1e+30
      %v997 = vsel %vm979, %v855, -1e+30
      %v998 = vsel %vm978, %v857, -1e+30
      %v999 = vsel %vm979, %v859, -1e+30
      %v1000 = vsel %vm978, %v863, -1e+30
      %v1001 = vsel %vm979, %v865, -1e+30
      %v1002 = vsel %vm978, %v867, -1e+30
      %v1003 = vsel %vm979, %v869, -1e+30
      %v1004 = vsel %vm978, %v873, -1e+30
      %v1005 = vsel %vm979, %v875, -1e+30
      %v1006 = vsel %vm978, %v877, -1e+30
      %v1007 = vsel %vm979, %v879, -1e+30
      %v1008 = vsel %vm978, %v883, -1e+30
      %v1009 = vsel %vm979, %v885, -1e+30
      %v1010 = vsel %vm978, %v887, -1e+30
      %v1011 = vsel %vm979, %v889, -1e+30
      %v1012 = vsel %vm978, %v893, -1e+30
      %v1013 = vsel %vm979, %v895, -1e+30
      %v1014 = vsel %vm978, %v897, -1e+30
      %v1015 = vsel %vm979, %v899, -1e+30
      %v1016 = vsel %vm978, %v903, -1e+30
      %v1017 = vsel %vm979, %v905, -1e+30
      %v1018 = vsel %vm978, %v907, -1e+30
      %v1019 = vsel %vm979, %v909, -1e+30
      %v1020 = vsel %vm978, %v913, -1e+30
      %v1021 = vsel %vm979, %v915, -1e+30
      %v1022 = vsel %vm978, %v917, -1e+30
      %v1023 = vsel %vm979, %v919, -1e+30
      %v1024 = vsel %vm978, %v923, -1e+30
      %v1025 = vsel %vm979, %v925, -1e+30
      %v1026 = vsel %vm978, %v927, -1e+30
      %v1027 = vsel %vm979, %v929, -1e+30
      %v1028 = vsel %vm978, %v933, -1e+30
      %v1029 = vsel %vm979, %v935, -1e+30
      %v1030 = vsel %vm978, %v937, -1e+30
      %v1031 = vsel %vm979, %v939, -1e+30
      %v1032 = vsel %vm978, %v943, -1e+30
      %v1033 = vsel %vm979, %v945, -1e+30
      %v1034 = vsel %vm978, %v947, -1e+30
      %v1035 = vsel %vm979, %v949, -1e+30
      %v1036 = vsel %vm978, %v953, -1e+30
      %v1037 = vsel %vm979, %v955, -1e+30
      %v1038 = vsel %vm978, %v957, -1e+30
      %v1039 = vsel %vm979, %v959, -1e+30
      %v1040 = vsel %vm978, %v963, -1e+30
      %v1041 = vsel %vm979, %v965, -1e+30
      %v1042 = vsel %vm978, %v967, -1e+30
      %v1043 = vsel %vm979, %v969, -1e+30
      %v1044 = vld [vmem:[#allocation2] sm:$0xff]
      %v1045 = vld [vmem:[#allocation2 + $0x8] sm:$0xff]
      %v1046 = vld [vmem:[#allocation2 + $0x10] sm:$0xff]
      %v1047 = vld [vmem:[#allocation2 + $0x18] sm:$0xff]
      %v1048 = vld [vmem:[#allocation2 + $0x20] sm:$0xff]
      %v1049 = vld [vmem:[#allocation2 + $0x28] sm:$0xff]
      %v1050 = vld [vmem:[#allocation2 + $0x30] sm:$0xff]
      %v1051 = vld [vmem:[#allocation2 + $0x38] sm:$0xff]
      %v1052 = vld [vmem:[#allocation2 + $0x40] sm:$0xff]
      %v1053 = vld [vmem:[#allocation2 + $0x48] sm:$0xff]
      %v1054 = vld [vmem:[#allocation2 + $0x50] sm:$0xff]
      %v1055 = vld [vmem:[#allocation2 + $0x58] sm:$0xff]
      %v1056 = vld [vmem:[#allocation2 + $0x60] sm:$0xff]
      %v1057 = vld [vmem:[#allocation2 + $0x68] sm:$0xff]
      %v1058 = vld [vmem:[#allocation2 + $0x70] sm:$0xff]
      %v1059 = vld [vmem:[#allocation2 + $0x78] sm:$0xff]
      %v1060 = vld [vmem:[#allocation2 + $0x80] sm:$0xff]
      %v1061 = vld [vmem:[#allocation2 + $0x88] sm:$0xff]
      %v1062 = vld [vmem:[#allocation2 + $0x90] sm:$0xff]
      %v1063 = vld [vmem:[#allocation2 + $0x98] sm:$0xff]
      %v1064 = vld [vmem:[#allocation2 + $0xa0] sm:$0xff]
      %v1065 = vld [vmem:[#allocation2 + $0xa8] sm:$0xff]
      %v1066 = vld [vmem:[#allocation2 + $0xb0] sm:$0xff]
      %v1067 = vld [vmem:[#allocation2 + $0xb8] sm:$0xff]
      %v1068 = vld [vmem:[#allocation2 + $0xc0] sm:$0xff]
      %v1069 = vld [vmem:[#allocation2 + $0xc8] sm:$0xff]
      %v1070 = vld [vmem:[#allocation2 + $0xd0] sm:$0xff]
      %v1071 = vld [vmem:[#allocation2 + $0xd8] sm:$0xff]
      %v1072 = vld [vmem:[#allocation2 + $0xe0] sm:$0xff]
      %v1073 = vld [vmem:[#allocation2 + $0xe8] sm:$0xff]
      %v1074 = vld [vmem:[#allocation2 + $0xf0] sm:$0xff]
      %v1075 = vld [vmem:[#allocation2 + $0xf8] sm:$0xff]
      %v1076 = vmax.f32 %v980, %v981
      %1077 = vmax.xlane.f32.xlu0 %v1076
      %v1078 = vpop.xlane.xlu0 %1077
      %v1079 = vmax.f32 %v982, %v983
      %1080 = vmax.xlane.f32.xlu0 %v1079
      %v1081 = vpop.xlane.xlu0 %1080
      %v1082 = vmax.f32 %v984, %v985
      %1083 = vmax.xlane.f32.xlu0 %v1082
      %v1084 = vpop.xlane.xlu0 %1083
      %v1085 = vmax.f32 %v986, %v987
      %1086 = vmax.xlane.f32.xlu0 %v1085
      %v1087 = vpop.xlane.xlu0 %1086
      %v1088 = vmax.f32 %v988, %v989
      %1089 = vmax.xlane.f32.xlu0 %v1088
      %v1090 = vpop.xlane.xlu0 %1089
      %v1091 = vmax.f32 %v990, %v991
      %1092 = vmax.xlane.f32.xlu0 %v1091
      %v1093 = vpop.xlane.xlu0 %1092
      %v1094 = vmax.f32 %v992, %v993
      %1095 = vmax.xlane.f32.xlu0 %v1094
      %v1096 = vpop.xlane.xlu0 %1095
      %v1097 = vmax.f32 %v994, %v995
      %1098 = vmax.xlane.f32.xlu0 %v1097
      %v1099 = vpop.xlane.xlu0 %1098
      %v1100 = vmax.f32 %v996, %v997
      %1101 = vmax.xlane.f32.xlu0 %v1100
      %v1102 = vpop.xlane.xlu0 %1101
      %v1103 = vmax.f32 %v998, %v999
      %1104 = vmax.xlane.f32.xlu0 %v1103
      %v1105 = vpop.xlane.xlu0 %1104
      %v1106 = vmax.f32 %v1000, %v1001
      %1107 = vmax.xlane.f32.xlu0 %v1106
      %v1108 = vpop.xlane.xlu0 %1107
      %v1109 = vmax.f32 %v1002, %v1003
      %1110 = vmax.xlane.f32.xlu0 %v1109
      %v1111 = vpop.xlane.xlu0 %1110
      %v1112 = vmax.f32 %v1004, %v1005
      %1113 = vmax.xlane.f32.xlu0 %v1112
      %v1114 = vpop.xlane.xlu0 %1113
      %v1115 = vmax.f32 %v1006, %v1007
      %1116 = vmax.xlane.f32.xlu0 %v1115
      %v1117 = vpop.xlane.xlu0 %1116
      %v1118 = vmax.f32 %v1008, %v1009
      %1119 = vmax.xlane.f32.xlu0 %v1118
      %v1120 = vpop.xlane.xlu0 %1119
      %v1121 = vmax.f32 %v1010, %v1011
      %1122 = vmax.xlane.f32.xlu0 %v1121
      %v1123 = vpop.xlane.xlu0 %1122
      %v1124 = vmax.f32 %v1012, %v1013
      %1125 = vmax.xlane.f32.xlu0 %v1124
      %v1126 = vpop.xlane.xlu0 %1125
      %v1127 = vmax.f32 %v1014, %v1015
      %1128 = vmax.xlane.f32.xlu0 %v1127
      %v1129 = vpop.xlane.xlu0 %1128
      %v1130 = vmax.f32 %v1016, %v1017
      %1131 = vmax.xlane.f32.xlu0 %v1130
      %v1132 = vpop.xlane.xlu0 %1131
      %v1133 = vmax.f32 %v1018, %v1019
      %1134 = vmax.xlane.f32.xlu0 %v1133
      %v1135 = vpop.xlane.xlu0 %1134
      %v1136 = vmax.f32 %v1020, %v1021
      %1137 = vmax.xlane.f32.xlu0 %v1136
      %v1138 = vpop.xlane.xlu0 %1137
      %v1139 = vmax.f32 %v1022, %v1023
      %1140 = vmax.xlane.f32.xlu0 %v1139
      %v1141 = vpop.xlane.xlu0 %1140
      %v1142 = vmax.f32 %v1024, %v1025
      %1143 = vmax.xlane.f32.xlu0 %v1142
      %v1144 = vpop.xlane.xlu0 %1143
      %v1145 = vmax.f32 %v1026, %v1027
      %1146 = vmax.xlane.f32.xlu0 %v1145
      %v1147 = vpop.xlane.xlu0 %1146
      %v1148 = vmax.f32 %v1028, %v1029
      %1149 = vmax.xlane.f32.xlu0 %v1148
      %v1150 = vpop.xlane.xlu0 %1149
      %v1151 = vmax.f32 %v1030, %v1031
      %1152 = vmax.xlane.f32.xlu0 %v1151
      %v1153 = vpop.xlane.xlu0 %1152
      %v1154 = vmax.f32 %v1032, %v1033
      %1155 = vmax.xlane.f32.xlu0 %v1154
      %v1156 = vpop.xlane.xlu0 %1155
      %v1157 = vmax.f32 %v1034, %v1035
      %1158 = vmax.xlane.f32.xlu0 %v1157
      %v1159 = vpop.xlane.xlu0 %1158
      %v1160 = vmax.f32 %v1036, %v1037
      %1161 = vmax.xlane.f32.xlu0 %v1160
      %v1162 = vpop.xlane.xlu0 %1161
      %v1163 = vmax.f32 %v1038, %v1039
      %1164 = vmax.xlane.f32.xlu0 %v1163
      %v1165 = vpop.xlane.xlu0 %1164
      %v1166 = vmax.f32 %v1040, %v1041
      %1167 = vmax.xlane.f32.xlu0 %v1166
      %v1168 = vpop.xlane.xlu0 %1167
      %v1169 = vmax.f32 %v1042, %v1043
      %1170 = vmax.xlane.f32.xlu0 %v1169
      %v1171 = vpop.xlane.xlu0 %1170
      %v1172 = vmax.f32 %v1044, %v1078
      %v1173 = vmax.f32 %v1045, %v1081
      %v1174 = vmax.f32 %v1046, %v1084
      %v1175 = vmax.f32 %v1047, %v1087
      %v1176 = vmax.f32 %v1048, %v1090
      %v1177 = vmax.f32 %v1049, %v1093
      %v1178 = vmax.f32 %v1050, %v1096
      %v1179 = vmax.f32 %v1051, %v1099
      %v1180 = vmax.f32 %v1052, %v1102
      %v1181 = vmax.f32 %v1053, %v1105
      %v1182 = vmax.f32 %v1054, %v1108
      %v1183 = vmax.f32 %v1055, %v1111
      %v1184 = vmax.f32 %v1056, %v1114
      %v1185 = vmax.f32 %v1057, %v1117
      %v1186 = vmax.f32 %v1058, %v1120
      %v1187 = vmax.f32 %v1059, %v1123
      %v1188 = vmax.f32 %v1060, %v1126
      %v1189 = vmax.f32 %v1061, %v1129
      %v1190 = vmax.f32 %v1062, %v1132
      %v1191 = vmax.f32 %v1063, %v1135
      %v1192 = vmax.f32 %v1064, %v1138
      %v1193 = vmax.f32 %v1065, %v1141
      %v1194 = vmax.f32 %v1066, %v1144
      %v1195 = vmax.f32 %v1067, %v1147
      %v1196 = vmax.f32 %v1068, %v1150
      %v1197 = vmax.f32 %v1069, %v1153
      %v1198 = vmax.f32 %v1070, %v1156
      %v1199 = vmax.f32 %v1071, %v1159
      %v1200 = vmax.f32 %v1072, %v1162
      %v1201 = vmax.f32 %v1073, %v1165
      %v1202 = vmax.f32 %v1074, %v1168
      %v1203 = vmax.f32 %v1075, %v1171
      %v1204 = vsub.f32 %v1044, %v1172
      %v1205 = vsub.f32 %v1045, %v1173
      %v1206 = vsub.f32 %v1046, %v1174
      %v1207 = vsub.f32 %v1047, %v1175
      %v1208 = vsub.f32 %v1048, %v1176
      %v1209 = vsub.f32 %v1049, %v1177
      %v1210 = vsub.f32 %v1050, %v1178
      %v1211 = vsub.f32 %v1051, %v1179
      %v1212 = vsub.f32 %v1052, %v1180
      %v1213 = vsub.f32 %v1053, %v1181
      %v1214 = vsub.f32 %v1054, %v1182
      %v1215 = vsub.f32 %v1055, %v1183
      %v1216 = vsub.f32 %v1056, %v1184
      %v1217 = vsub.f32 %v1057, %v1185
      %v1218 = vsub.f32 %v1058, %v1186
      %v1219 = vsub.f32 %v1059, %v1187
      %v1220 = vsub.f32 %v1060, %v1188
      %v1221 = vsub.f32 %v1061, %v1189
      %v1222 = vsub.f32 %v1062, %v1190
      %v1223 = vsub.f32 %v1063, %v1191
      %v1224 = vsub.f32 %v1064, %v1192
      %v1225 = vsub.f32 %v1065, %v1193
      %v1226 = vsub.f32 %v1066, %v1194
      %v1227 = vsub.f32 %v1067, %v1195
      %v1228 = vsub.f32 %v1068, %v1196
      %v1229 = vsub.f32 %v1069, %v1197
      %v1230 = vsub.f32 %v1070, %v1198
      %v1231 = vsub.f32 %v1071, %v1199
      %v1232 = vsub.f32 %v1072, %v1200
      %v1233 = vsub.f32 %v1073, %v1201
      %v1234 = vsub.f32 %v1074, %v1202
      %v1235 = vsub.f32 %v1075, %v1203
      %v1236 = vmul.f32 %v1204, 1.442695
      %v1237 = vpow.pop %v1236
      %v1238 = vmul.f32 %v1205, 1.442695
      %v1239 = vpow.pop %v1238
      %v1240 = vmul.f32 %v1206, 1.442695
      %v1241 = vpow.pop %v1240
      %v1242 = vmul.f32 %v1207, 1.442695
      %v1243 = vpow.pop %v1242
      %v1244 = vmul.f32 %v1208, 1.442695
      %v1245 = vpow.pop %v1244
      %v1246 = vmul.f32 %v1209, 1.442695
      %v1247 = vpow.pop %v1246
      %v1248 = vmul.f32 %v1210, 1.442695
      %v1249 = vpow.pop %v1248
      %v1250 = vmul.f32 %v1211, 1.442695
      %v1251 = vpow.pop %v1250
      %v1252 = vmul.f32 %v1212, 1.442695
      %v1253 = vpow.pop %v1252
      %v1254 = vmul.f32 %v1213, 1.442695
      %v1255 = vpow.pop %v1254
      %v1256 = vmul.f32 %v1214, 1.442695
      %v1257 = vpow.pop %v1256
      %v1258 = vmul.f32 %v1215, 1.442695
      %v1259 = vpow.pop %v1258
      %v1260 = vmul.f32 %v1216, 1.442695
      %v1261 = vpow.pop %v1260
      %v1262 = vmul.f32 %v1217, 1.442695
      %v1263 = vpow.pop %v1262
      %v1264 = vmul.f32 %v1218, 1.442695
      %v1265 = vpow.pop %v1264
      %v1266 = vmul.f32 %v1219, 1.442695
      %v1267 = vpow.pop %v1266
      %v1268 = vmul.f32 %v1220, 1.442695
      %v1269 = vpow.pop %v1268
      %v1270 = vmul.f32 %v1221, 1.442695
      %v1271 = vpow.pop %v1270
      %v1272 = vmul.f32 %v1222, 1.442695
      %v1273 = vpow.pop %v1272
      %v1274 = vmul.f32 %v1223, 1.442695
      %v1275 = vpow.pop %v1274
      %v1276 = vmul.f32 %v1224, 1.442695
      %v1277 = vpow.pop %v1276
      %v1278 = vmul.f32 %v1225, 1.442695
      %v1279 = vpow.pop %v1278
      %v1280 = vmul.f32 %v1226, 1.442695
      %v1281 = vpow.pop %v1280
      %v1282 = vmul.f32 %v1227, 1.442695
      %v1283 = vpow.pop %v1282
      %v1284 = vmul.f32 %v1228, 1.442695
      %v1285 = vpow.pop %v1284
      %v1286 = vmul.f32 %v1229, 1.442695
      %v1287 = vpow.pop %v1286
      %v1288 = vmul.f32 %v1230, 1.442695
      %v1289 = vpow.pop %v1288
      %v1290 = vmul.f32 %v1231, 1.442695
      %v1291 = vpow.pop %v1290
      %v1292 = vmul.f32 %v1232, 1.442695
      %v1293 = vpow.pop %v1292
      %v1294 = vmul.f32 %v1233, 1.442695
      %v1295 = vpow.pop %v1294
      %v1296 = vmul.f32 %v1234, 1.442695
      %v1297 = vpow.pop %v1296
      %v1298 = vmul.f32 %v1235, 1.442695
      %v1299 = vpow.pop %v1298
      %1301 = vset.pattern.permute.xlu0 0
      %1302 = vperm.xlu0 %1301, %v1172
      %v1303 = vpop.permute.xlu0 %1302
      %1306 = vset.pattern.permute.xlu0 0
      %1307 = vperm.xlu0 %1306, %v1173
      %v1308 = vpop.permute.xlu0 %1307
      %1311 = vset.pattern.permute.xlu0 0
      %1312 = vperm.xlu0 %1311, %v1174
      %v1313 = vpop.permute.xlu0 %1312
      %1316 = vset.pattern.permute.xlu0 0
      %1317 = vperm.xlu0 %1316, %v1175
      %v1318 = vpop.permute.xlu0 %1317
      %1321 = vset.pattern.permute.xlu0 0
      %1322 = vperm.xlu0 %1321, %v1176
      %v1323 = vpop.permute.xlu0 %1322
      %1326 = vset.pattern.permute.xlu0 0
      %1327 = vperm.xlu0 %1326, %v1177
      %v1328 = vpop.permute.xlu0 %1327
      %1331 = vset.pattern.permute.xlu0 0
      %1332 = vperm.xlu0 %1331, %v1178
      %v1333 = vpop.permute.xlu0 %1332
      %1336 = vset.pattern.permute.xlu0 0
      %1337 = vperm.xlu0 %1336, %v1179
      %v1338 = vpop.permute.xlu0 %1337
      %1341 = vset.pattern.permute.xlu0 0
      %1342 = vperm.xlu0 %1341, %v1180
      %v1343 = vpop.permute.xlu0 %1342
      %1346 = vset.pattern.permute.xlu0 0
      %1347 = vperm.xlu0 %1346, %v1181
      %v1348 = vpop.permute.xlu0 %1347
      %1351 = vset.pattern.permute.xlu0 0
      %1352 = vperm.xlu0 %1351, %v1182
      %v1353 = vpop.permute.xlu0 %1352
      %1356 = vset.pattern.permute.xlu0 0
      %1357 = vperm.xlu0 %1356, %v1183
      %v1358 = vpop.permute.xlu0 %1357
      %1361 = vset.pattern.permute.xlu0 0
      %1362 = vperm.xlu0 %1361, %v1184
      %v1363 = vpop.permute.xlu0 %1362
      %1366 = vset.pattern.permute.xlu0 0
      %1367 = vperm.xlu0 %1366, %v1185
      %v1368 = vpop.permute.xlu0 %1367
      %1371 = vset.pattern.permute.xlu0 0
      %1372 = vperm.xlu0 %1371, %v1186
      %v1373 = vpop.permute.xlu0 %1372
      %1376 = vset.pattern.permute.xlu0 0
      %1377 = vperm.xlu0 %1376, %v1187
      %v1378 = vpop.permute.xlu0 %1377
      %1381 = vset.pattern.permute.xlu0 0
      %1382 = vperm.xlu0 %1381, %v1188
      %v1383 = vpop.permute.xlu0 %1382
      %1386 = vset.pattern.permute.xlu0 0
      %1387 = vperm.xlu0 %1386, %v1189
      %v1388 = vpop.permute.xlu0 %1387
      %1391 = vset.pattern.permute.xlu0 0
      %1392 = vperm.xlu0 %1391, %v1190
      %v1393 = vpop.permute.xlu0 %1392
      %1396 = vset.pattern.permute.xlu0 0
      %1397 = vperm.xlu0 %1396, %v1191
      %v1398 = vpop.permute.xlu0 %1397
      %1401 = vset.pattern.permute.xlu0 0
      %1402 = vperm.xlu0 %1401, %v1192
      %v1403 = vpop.permute.xlu0 %1402
      %1406 = vset.pattern.permute.xlu0 0
      %1407 = vperm.xlu0 %1406, %v1193
      %v1408 = vpop.permute.xlu0 %1407
      %1411 = vset.pattern.permute.xlu0 0
      %1412 = vperm.xlu0 %1411, %v1194
      %v1413 = vpop.permute.xlu0 %1412
      %1416 = vset.pattern.permute.xlu0 0
      %1417 = vperm.xlu0 %1416, %v1195
      %v1418 = vpop.permute.xlu0 %1417
      %1421 = vset.pattern.permute.xlu0 0
      %1422 = vperm.xlu0 %1421, %v1196
      %v1423 = vpop.permute.xlu0 %1422
      %1426 = vset.pattern.permute.xlu0 0
      %1427 = vperm.xlu0 %1426, %v1197
      %v1428 = vpop.permute.xlu0 %1427
      %1431 = vset.pattern.permute.xlu0 0
      %1432 = vperm.xlu0 %1431, %v1198
      %v1433 = vpop.permute.xlu0 %1432
      %1436 = vset.pattern.permute.xlu0 0
      %1437 = vperm.xlu0 %1436, %v1199
      %v1438 = vpop.permute.xlu0 %1437
      %1441 = vset.pattern.permute.xlu0 0
      %1442 = vperm.xlu0 %1441, %v1200
      %v1443 = vpop.permute.xlu0 %1442
      %1446 = vset.pattern.permute.xlu0 0
      %1447 = vperm.xlu0 %1446, %v1201
      %v1448 = vpop.permute.xlu0 %1447
      %1451 = vset.pattern.permute.xlu0 0
      %1452 = vperm.xlu0 %1451, %v1202
      %v1453 = vpop.permute.xlu0 %1452
      %1456 = vset.pattern.permute.xlu0 0
      %1457 = vperm.xlu0 %1456, %v1203
      %v1458 = vpop.permute.xlu0 %1457
      %v1460 = vsub.f32 %v980, %v1303
      %v1461 = vsub.f32 %v981, %v1303
      %v1462 = vsub.f32 %v982, %v1308
      %v1463 = vsub.f32 %v983, %v1308
      %v1464 = vsub.f32 %v984, %v1313
      %v1465 = vsub.f32 %v985, %v1313
      %v1466 = vsub.f32 %v986, %v1318
      %v1467 = vsub.f32 %v987, %v1318
      %v1468 = vsub.f32 %v988, %v1323
      %v1469 = vsub.f32 %v989, %v1323
      %v1470 = vsub.f32 %v990, %v1328
      %v1471 = vsub.f32 %v991, %v1328
      %v1472 = vsub.f32 %v992, %v1333
      %v1473 = vsub.f32 %v993, %v1333
      %v1474 = vsub.f32 %v994, %v1338
      %v1475 = vsub.f32 %v995, %v1338
      %v1476 = vsub.f32 %v996, %v1343
      %v1477 = vsub.f32 %v997, %v1343
      %v1478 = vsub.f32 %v998, %v1348
      %v1479 = vsub.f32 %v999, %v1348
      %v1480 = vsub.f32 %v1000, %v1353
      %v1481 = vsub.f32 %v1001, %v1353
      %v1482 = vsub.f32 %v1002, %v1358
      %v1483 = vsub.f32 %v1003, %v1358
      %v1484 = vsub.f32 %v1004, %v1363
      %v1485 = vsub.f32 %v1005, %v1363
      %v1486 = vsub.f32 %v1006, %v1368
      %v1487 = vsub.f32 %v1007, %v1368
      %v1488 = vsub.f32 %v1008, %v1373
      %v1489 = vsub.f32 %v1009, %v1373
      %v1490 = vsub.f32 %v1010, %v1378
      %v1491 = vsub.f32 %v1011, %v1378
      %v1492 = vsub.f32 %v1012, %v1383
      %v1493 = vsub.f32 %v1013, %v1383
      %v1494 = vsub.f32 %v1014, %v1388
      %v1495 = vsub.f32 %v1015, %v1388
      %v1496 = vsub.f32 %v1016, %v1393
      %v1497 = vsub.f32 %v1017, %v1393
      %v1498 = vsub.f32 %v1018, %v1398
      %v1499 = vsub.f32 %v1019, %v1398
      %v1500 = vsub.f32 %v1020, %v1403
      %v1501 = vsub.f32 %v1021, %v1403
      %v1502 = vsub.f32 %v1022, %v1408
      %v1503 = vsub.f32 %v1023, %v1408
      %v1504 = vsub.f32 %v1024, %v1413
      %v1505 = vsub.f32 %v1025, %v1413
      %v1506 = vsub.f32 %v1026, %v1418
      %v1507 = vsub.f32 %v1027, %v1418
      %v1508 = vsub.f32 %v1028, %v1423
      %v1509 = vsub.f32 %v1029, %v1423
      %v1510 = vsub.f32 %v1030, %v1428
      %v1511 = vsub.f32 %v1031, %v1428
      %v1512 = vsub.f32 %v1032, %v1433
      %v1513 = vsub.f32 %v1033, %v1433
      %v1514 = vsub.f32 %v1034, %v1438
      %v1515 = vsub.f32 %v1035, %v1438
      %v1516 = vsub.f32 %v1036, %v1443
      %v1517 = vsub.f32 %v1037, %v1443
      %v1518 = vsub.f32 %v1038, %v1448
      %v1519 = vsub.f32 %v1039, %v1448
      %v1520 = vsub.f32 %v1040, %v1453
      %v1521 = vsub.f32 %v1041, %v1453
      %v1522 = vsub.f32 %v1042, %v1458
      %v1523 = vsub.f32 %v1043, %v1458
      %v1524 = vmul.f32 %v1460, 1.442695
      %v1525 = vpow.pop %v1524
      %v1526 = vmul.f32 %v1461, 1.442695
      %v1527 = vpow.pop %v1526
      %v1528 = vmul.f32 %v1462, 1.442695
      %v1529 = vpow.pop %v1528
      %v1530 = vmul.f32 %v1463, 1.442695
      %v1531 = vpow.pop %v1530
      %v1532 = vmul.f32 %v1464, 1.442695
      %v1533 = vpow.pop %v1532
      %v1534 = vmul.f32 %v1465, 1.442695
      %v1535 = vpow.pop %v1534
      %v1536 = vmul.f32 %v1466, 1.442695
      %v1537 = vpow.pop %v1536
      %v1538 = vmul.f32 %v1467, 1.442695
      %v1539 = vpow.pop %v1538
      %v1540 = vmul.f32 %v1468, 1.442695
      %v1541 = vpow.pop %v1540
      %v1542 = vmul.f32 %v1469, 1.442695
      %v1543 = vpow.pop %v1542
      %v1544 = vmul.f32 %v1470, 1.442695
      %v1545 = vpow.pop %v1544
      %v1546 = vmul.f32 %v1471, 1.442695
      %v1547 = vpow.pop %v1546
      %v1548 = vmul.f32 %v1472, 1.442695
      %v1549 = vpow.pop %v1548
      %v1550 = vmul.f32 %v1473, 1.442695
      %v1551 = vpow.pop %v1550
      %v1552 = vmul.f32 %v1474, 1.442695
      %v1553 = vpow.pop %v1552
      %v1554 = vmul.f32 %v1475, 1.442695
      %v1555 = vpow.pop %v1554
      %v1556 = vmul.f32 %v1476, 1.442695
      %v1557 = vpow.pop %v1556
      %v1558 = vmul.f32 %v1477, 1.442695
      %v1559 = vpow.pop %v1558
      %v1560 = vmul.f32 %v1478, 1.442695
      %v1561 = vpow.pop %v1560
      %v1562 = vmul.f32 %v1479, 1.442695
      %v1563 = vpow.pop %v1562
      %v1564 = vmul.f32 %v1480, 1.442695
      %v1565 = vpow.pop %v1564
      %v1566 = vmul.f32 %v1481, 1.442695
      %v1567 = vpow.pop %v1566
      %v1568 = vmul.f32 %v1482, 1.442695
      %v1569 = vpow.pop %v1568
      %v1570 = vmul.f32 %v1483, 1.442695
      %v1571 = vpow.pop %v1570
      %v1572 = vmul.f32 %v1484, 1.442695
      %v1573 = vpow.pop %v1572
      %v1574 = vmul.f32 %v1485, 1.442695
      %v1575 = vpow.pop %v1574
      %v1576 = vmul.f32 %v1486, 1.442695
      %v1577 = vpow.pop %v1576
      %v1578 = vmul.f32 %v1487, 1.442695
      %v1579 = vpow.pop %v1578
      %v1580 = vmul.f32 %v1488, 1.442695
      %v1581 = vpow.pop %v1580
      %v1582 = vmul.f32 %v1489, 1.442695
      %v1583 = vpow.pop %v1582
      %v1584 = vmul.f32 %v1490, 1.442695
      %v1585 = vpow.pop %v1584
      %v1586 = vmul.f32 %v1491, 1.442695
      %v1587 = vpow.pop %v1586
      %v1588 = vmul.f32 %v1492, 1.442695
      %v1589 = vpow.pop %v1588
      %v1590 = vmul.f32 %v1493, 1.442695
      %v1591 = vpow.pop %v1590
      %v1592 = vmul.f32 %v1494, 1.442695
      %v1593 = vpow.pop %v1592
      %v1594 = vmul.f32 %v1495, 1.442695
      %v1595 = vpow.pop %v1594
      %v1596 = vmul.f32 %v1496, 1.442695
      %v1597 = vpow.pop %v1596
      %v1598 = vmul.f32 %v1497, 1.442695
      %v1599 = vpow.pop %v1598
      %v1600 = vmul.f32 %v1498, 1.442695
      %v1601 = vpow.pop %v1600
      %v1602 = vmul.f32 %v1499, 1.442695
      %v1603 = vpow.pop %v1602
      %v1604 = vmul.f32 %v1500, 1.442695
      %v1605 = vpow.pop %v1604
      %v1606 = vmul.f32 %v1501, 1.442695
      %v1607 = vpow.pop %v1606
      %v1608 = vmul.f32 %v1502, 1.442695
      %v1609 = vpow.pop %v1608
      %v1610 = vmul.f32 %v1503, 1.442695
      %v1611 = vpow.pop %v1610
      %v1612 = vmul.f32 %v1504, 1.442695
      %v1613 = vpow.pop %v1612
      %v1614 = vmul.f32 %v1505, 1.442695
      %v1615 = vpow.pop %v1614
      %v1616 = vmul.f32 %v1506, 1.442695
      %v1617 = vpow.pop %v1616
      %v1618 = vmul.f32 %v1507, 1.442695
      %v1619 = vpow.pop %v1618
      %v1620 = vmul.f32 %v1508, 1.442695
      %v1621 = vpow.pop %v1620
      %v1622 = vmul.f32 %v1509, 1.442695
      %v1623 = vpow.pop %v1622
      %v1624 = vmul.f32 %v1510, 1.442695
      %v1625 = vpow.pop %v1624
      %v1626 = vmul.f32 %v1511, 1.442695
      %v1627 = vpow.pop %v1626
      %v1628 = vmul.f32 %v1512, 1.442695
      %v1629 = vpow.pop %v1628
      %v1630 = vmul.f32 %v1513, 1.442695
      %v1631 = vpow.pop %v1630
      %v1632 = vmul.f32 %v1514, 1.442695
      %v1633 = vpow.pop %v1632
      %v1634 = vmul.f32 %v1515, 1.442695
      %v1635 = vpow.pop %v1634
      %v1636 = vmul.f32 %v1516, 1.442695
      %v1637 = vpow.pop %v1636
      %v1638 = vmul.f32 %v1517, 1.442695
      %v1639 = vpow.pop %v1638
      %v1640 = vmul.f32 %v1518, 1.442695
      %v1641 = vpow.pop %v1640
      %v1642 = vmul.f32 %v1519, 1.442695
      %v1643 = vpow.pop %v1642
      %v1644 = vmul.f32 %v1520, 1.442695
      %v1645 = vpow.pop %v1644
      %v1646 = vmul.f32 %v1521, 1.442695
      %v1647 = vpow.pop %v1646
      %v1648 = vmul.f32 %v1522, 1.442695
      %v1649 = vpow.pop %v1648
      %v1650 = vmul.f32 %v1523, 1.442695
      %v1651 = vpow.pop %v1650
      %v1652 = vld [vmem:[#allocation3] sm:$0xff]
      %v1653 = vld [vmem:[#allocation3 + $0x8] sm:$0xff]
      %v1654 = vld [vmem:[#allocation3 + $0x10] sm:$0xff]
      %v1655 = vld [vmem:[#allocation3 + $0x18] sm:$0xff]
      %v1656 = vld [vmem:[#allocation3 + $0x20] sm:$0xff]
      %v1657 = vld [vmem:[#allocation3 + $0x28] sm:$0xff]
      %v1658 = vld [vmem:[#allocation3 + $0x30] sm:$0xff]
      %v1659 = vld [vmem:[#allocation3 + $0x38] sm:$0xff]
      %v1660 = vld [vmem:[#allocation3 + $0x40] sm:$0xff]
      %v1661 = vld [vmem:[#allocation3 + $0x48] sm:$0xff]
      %v1662 = vld [vmem:[#allocation3 + $0x50] sm:$0xff]
      %v1663 = vld [vmem:[#allocation3 + $0x58] sm:$0xff]
      %v1664 = vld [vmem:[#allocation3 + $0x60] sm:$0xff]
      %v1665 = vld [vmem:[#allocation3 + $0x68] sm:$0xff]
      %v1666 = vld [vmem:[#allocation3 + $0x70] sm:$0xff]
      %v1667 = vld [vmem:[#allocation3 + $0x78] sm:$0xff]
      %v1668 = vld [vmem:[#allocation3 + $0x80] sm:$0xff]
      %v1669 = vld [vmem:[#allocation3 + $0x88] sm:$0xff]
      %v1670 = vld [vmem:[#allocation3 + $0x90] sm:$0xff]
      %v1671 = vld [vmem:[#allocation3 + $0x98] sm:$0xff]
      %v1672 = vld [vmem:[#allocation3 + $0xa0] sm:$0xff]
      %v1673 = vld [vmem:[#allocation3 + $0xa8] sm:$0xff]
      %v1674 = vld [vmem:[#allocation3 + $0xb0] sm:$0xff]
      %v1675 = vld [vmem:[#allocation3 + $0xb8] sm:$0xff]
      %v1676 = vld [vmem:[#allocation3 + $0xc0] sm:$0xff]
      %v1677 = vld [vmem:[#allocation3 + $0xc8] sm:$0xff]
      %v1678 = vld [vmem:[#allocation3 + $0xd0] sm:$0xff]
      %v1679 = vld [vmem:[#allocation3 + $0xd8] sm:$0xff]
      %v1680 = vld [vmem:[#allocation3 + $0xe0] sm:$0xff]
      %v1681 = vld [vmem:[#allocation3 + $0xe8] sm:$0xff]
      %v1682 = vld [vmem:[#allocation3 + $0xf0] sm:$0xff]
      %v1683 = vld [vmem:[#allocation3 + $0xf8] sm:$0xff]
      %v1684 = vmul.f32 %v1237, %v1652
      %v1685 = vmul.f32 %v1239, %v1653
      %v1686 = vmul.f32 %v1241, %v1654
      %v1687 = vmul.f32 %v1243, %v1655
      %v1688 = vmul.f32 %v1245, %v1656
      %v1689 = vmul.f32 %v1247, %v1657
      %v1690 = vmul.f32 %v1249, %v1658
      %v1691 = vmul.f32 %v1251, %v1659
      %v1692 = vmul.f32 %v1253, %v1660
      %v1693 = vmul.f32 %v1255, %v1661
      %v1694 = vmul.f32 %v1257, %v1662
      %v1695 = vmul.f32 %v1259, %v1663
      %v1696 = vmul.f32 %v1261, %v1664
      %v1697 = vmul.f32 %v1263, %v1665
      %v1698 = vmul.f32 %v1265, %v1666
      %v1699 = vmul.f32 %v1267, %v1667
      %v1700 = vmul.f32 %v1269, %v1668
      %v1701 = vmul.f32 %v1271, %v1669
      %v1702 = vmul.f32 %v1273, %v1670
      %v1703 = vmul.f32 %v1275, %v1671
      %v1704 = vmul.f32 %v1277, %v1672
      %v1705 = vmul.f32 %v1279, %v1673
      %v1706 = vmul.f32 %v1281, %v1674
      %v1707 = vmul.f32 %v1283, %v1675
      %v1708 = vmul.f32 %v1285, %v1676
      %v1709 = vmul.f32 %v1287, %v1677
      %v1710 = vmul.f32 %v1289, %v1678
      %v1711 = vmul.f32 %v1291, %v1679
      %v1712 = vmul.f32 %v1293, %v1680
      %v1713 = vmul.f32 %v1295, %v1681
      %v1714 = vmul.f32 %v1297, %v1682
      %v1715 = vmul.f32 %v1299, %v1683
      %v1716 = vadd.f32 %v1525, %v1527
      %1717 = vadd.xlane.f32.xlu0 %v1716
      %v1718 = vpop.xlane.xlu0 %1717
      %v1719 = vadd.f32 %v1529, %v1531
      %1720 = vadd.xlane.f32.xlu0 %v1719
      %v1721 = vpop.xlane.xlu0 %1720
      %v1722 = vadd.f32 %v1533, %v1535
      %1723 = vadd.xlane.f32.xlu0 %v1722
      %v1724 = vpop.xlane.xlu0 %1723
      %v1725 = vadd.f32 %v1537, %v1539
      %1726 = vadd.xlane.f32.xlu0 %v1725
      %v1727 = vpop.xlane.xlu0 %1726
      %v1728 = vadd.f32 %v1541, %v1543
      %1729 = vadd.xlane.f32.xlu0 %v1728
      %v1730 = vpop.xlane.xlu0 %1729
      %v1731 = vadd.f32 %v1545, %v1547
      %1732 = vadd.xlane.f32.xlu0 %v1731
      %v1733 = vpop.xlane.xlu0 %1732
      %v1734 = vadd.f32 %v1549, %v1551
      %1735 = vadd.xlane.f32.xlu0 %v1734
      %v1736 = vpop.xlane.xlu0 %1735
      %v1737 = vadd.f32 %v1553, %v1555
      %1738 = vadd.xlane.f32.xlu0 %v1737
      %v1739 = vpop.xlane.xlu0 %1738
      %v1740 = vadd.f32 %v1557, %v1559
      %1741 = vadd.xlane.f32.xlu0 %v1740
      %v1742 = vpop.xlane.xlu0 %1741
      %v1743 = vadd.f32 %v1561, %v1563
      %1744 = vadd.xlane.f32.xlu0 %v1743
      %v1745 = vpop.xlane.xlu0 %1744
      %v1746 = vadd.f32 %v1565, %v1567
      %1747 = vadd.xlane.f32.xlu0 %v1746
      %v1748 = vpop.xlane.xlu0 %1747
      %v1749 = vadd.f32 %v1569, %v1571
      %1750 = vadd.xlane.f32.xlu0 %v1749
      %v1751 = vpop.xlane.xlu0 %1750
      %v1752 = vadd.f32 %v1573, %v1575
      %1753 = vadd.xlane.f32.xlu0 %v1752
      %v1754 = vpop.xlane.xlu0 %1753
      %v1755 = vadd.f32 %v1577, %v1579
      %1756 = vadd.xlane.f32.xlu0 %v1755
      %v1757 = vpop.xlane.xlu0 %1756
      %v1758 = vadd.f32 %v1581, %v1583
      %1759 = vadd.xlane.f32.xlu0 %v1758
      %v1760 = vpop.xlane.xlu0 %1759
      %v1761 = vadd.f32 %v1585, %v1587
      %1762 = vadd.xlane.f32.xlu0 %v1761
      %v1763 = vpop.xlane.xlu0 %1762
      %v1764 = vadd.f32 %v1589, %v1591
      %1765 = vadd.xlane.f32.xlu0 %v1764
      %v1766 = vpop.xlane.xlu0 %1765
      %v1767 = vadd.f32 %v1593, %v1595
      %1768 = vadd.xlane.f32.xlu0 %v1767
      %v1769 = vpop.xlane.xlu0 %1768
      %v1770 = vadd.f32 %v1597, %v1599
      %1771 = vadd.xlane.f32.xlu0 %v1770
      %v1772 = vpop.xlane.xlu0 %1771
      %v1773 = vadd.f32 %v1601, %v1603
      %1774 = vadd.xlane.f32.xlu0 %v1773
      %v1775 = vpop.xlane.xlu0 %1774
      %v1776 = vadd.f32 %v1605, %v1607
      %1777 = vadd.xlane.f32.xlu0 %v1776
      %v1778 = vpop.xlane.xlu0 %1777
      %v1779 = vadd.f32 %v1609, %v1611
      %1780 = vadd.xlane.f32.xlu0 %v1779
      %v1781 = vpop.xlane.xlu0 %1780
      %v1782 = vadd.f32 %v1613, %v1615
      %1783 = vadd.xlane.f32.xlu0 %v1782
      %v1784 = vpop.xlane.xlu0 %1783
      %v1785 = vadd.f32 %v1617, %v1619
      %1786 = vadd.xlane.f32.xlu0 %v1785
      %v1787 = vpop.xlane.xlu0 %1786
      %v1788 = vadd.f32 %v1621, %v1623
      %1789 = vadd.xlane.f32.xlu0 %v1788
      %v1790 = vpop.xlane.xlu0 %1789
      %v1791 = vadd.f32 %v1625, %v1627
      %1792 = vadd.xlane.f32.xlu0 %v1791
      %v1793 = vpop.xlane.xlu0 %1792
      %v1794 = vadd.f32 %v1629, %v1631
      %1795 = vadd.xlane.f32.xlu0 %v1794
      %v1796 = vpop.xlane.xlu0 %1795
      %v1797 = vadd.f32 %v1633, %v1635
      %1798 = vadd.xlane.f32.xlu0 %v1797
      %v1799 = vpop.xlane.xlu0 %1798
      %v1800 = vadd.f32 %v1637, %v1639
      %1801 = vadd.xlane.f32.xlu0 %v1800
      %v1802 = vpop.xlane.xlu0 %1801
      %v1803 = vadd.f32 %v1641, %v1643
      %1804 = vadd.xlane.f32.xlu0 %v1803
      %v1805 = vpop.xlane.xlu0 %1804
      %v1806 = vadd.f32 %v1645, %v1647
      %1807 = vadd.xlane.f32.xlu0 %v1806
      %v1808 = vpop.xlane.xlu0 %1807
      %v1809 = vadd.f32 %v1649, %v1651
      %1810 = vadd.xlane.f32.xlu0 %v1809
      %v1811 = vpop.xlane.xlu0 %1810
      %v1812 = vadd.f32 %v1684, %v1718
      %v1813 = vadd.f32 %v1685, %v1721
      %v1814 = vadd.f32 %v1686, %v1724
      %v1815 = vadd.f32 %v1687, %v1727
      %v1816 = vadd.f32 %v1688, %v1730
      %v1817 = vadd.f32 %v1689, %v1733
      %v1818 = vadd.f32 %v1690, %v1736
      %v1819 = vadd.f32 %v1691, %v1739
      %v1820 = vadd.f32 %v1692, %v1742
      %v1821 = vadd.f32 %v1693, %v1745
      %v1822 = vadd.f32 %v1694, %v1748
      %v1823 = vadd.f32 %v1695, %v1751
      %v1824 = vadd.f32 %v1696, %v1754
      %v1825 = vadd.f32 %v1697, %v1757
      %v1826 = vadd.f32 %v1698, %v1760
      %v1827 = vadd.f32 %v1699, %v1763
      %v1828 = vadd.f32 %v1700, %v1766
      %v1829 = vadd.f32 %v1701, %v1769
      %v1830 = vadd.f32 %v1702, %v1772
      %v1831 = vadd.f32 %v1703, %v1775
      %v1832 = vadd.f32 %v1704, %v1778
      %v1833 = vadd.f32 %v1705, %v1781
      %v1834 = vadd.f32 %v1706, %v1784
      %v1835 = vadd.f32 %v1707, %v1787
      %v1836 = vadd.f32 %v1708, %v1790
      %v1837 = vadd.f32 %v1709, %v1793
      %v1838 = vadd.f32 %v1710, %v1796
      %v1839 = vadd.f32 %v1711, %v1799
      %v1840 = vadd.f32 %v1712, %v1802
      %v1841 = vadd.f32 %v1713, %v1805
      %v1842 = vadd.f32 %v1714, %v1808
      %v1843 = vadd.f32 %v1715, %v1811
      %vm1844 = vcmask 7168
      %1845 = vst.msk [vmem:[#allocation3] sm:$0xff] %vm1844, %v1812
      %1846 = vst.msk [vmem:[#allocation3 + $0x8] sm:$0xff] %vm1844, %v1813
      %1847 = vst.msk [vmem:[#allocation3 + $0x10] sm:$0xff] %vm1844, %v1814
      %1848 = vst.msk [vmem:[#allocation3 + $0x18] sm:$0xff] %vm1844, %v1815
      %1849 = vst.msk [vmem:[#allocation3 + $0x20] sm:$0xff] %vm1844, %v1816
      %1850 = vst.msk [vmem:[#allocation3 + $0x28] sm:$0xff] %vm1844, %v1817
      %1851 = vst.msk [vmem:[#allocation3 + $0x30] sm:$0xff] %vm1844, %v1818
      %1852 = vst.msk [vmem:[#allocation3 + $0x38] sm:$0xff] %vm1844, %v1819
      %1853 = vst.msk [vmem:[#allocation3 + $0x40] sm:$0xff] %vm1844, %v1820
      %1854 = vst.msk [vmem:[#allocation3 + $0x48] sm:$0xff] %vm1844, %v1821
      %1855 = vst.msk [vmem:[#allocation3 + $0x50] sm:$0xff] %vm1844, %v1822
      %1856 = vst.msk [vmem:[#allocation3 + $0x58] sm:$0xff] %vm1844, %v1823
      %1857 = vst.msk [vmem:[#allocation3 + $0x60] sm:$0xff] %vm1844, %v1824
      %1858 = vst.msk [vmem:[#allocation3 + $0x68] sm:$0xff] %vm1844, %v1825
      %1859 = vst.msk [vmem:[#allocation3 + $0x70] sm:$0xff] %vm1844, %v1826
      %1860 = vst.msk [vmem:[#allocation3 + $0x78] sm:$0xff] %vm1844, %v1827
      %1861 = vst.msk [vmem:[#allocation3 + $0x80] sm:$0xff] %vm1844, %v1828
      %1862 = vst.msk [vmem:[#allocation3 + $0x88] sm:$0xff] %vm1844, %v1829
      %1863 = vst.msk [vmem:[#allocation3 + $0x90] sm:$0xff] %vm1844, %v1830
      %1864 = vst.msk [vmem:[#allocation3 + $0x98] sm:$0xff] %vm1844, %v1831
      %1865 = vst.msk [vmem:[#allocation3 + $0xa0] sm:$0xff] %vm1844, %v1832
      %1866 = vst.msk [vmem:[#allocation3 + $0xa8] sm:$0xff] %vm1844, %v1833
      %1867 = vst.msk [vmem:[#allocation3 + $0xb0] sm:$0xff] %vm1844, %v1834
      %1868 = vst.msk [vmem:[#allocation3 + $0xb8] sm:$0xff] %vm1844, %v1835
      %1869 = vst.msk [vmem:[#allocation3 + $0xc0] sm:$0xff] %vm1844, %v1836
      %1870 = vst.msk [vmem:[#allocation3 + $0xc8] sm:$0xff] %vm1844, %v1837
      %1871 = vst.msk [vmem:[#allocation3 + $0xd0] sm:$0xff] %vm1844, %v1838
      %1872 = vst.msk [vmem:[#allocation3 + $0xd8] sm:$0xff] %vm1844, %v1839
      %1873 = vst.msk [vmem:[#allocation3 + $0xe0] sm:$0xff] %vm1844, %v1840
      %1874 = vst.msk [vmem:[#allocation3 + $0xe8] sm:$0xff] %vm1844, %v1841
      %1875 = vst.msk [vmem:[#allocation3 + $0xf0] sm:$0xff] %vm1844, %v1842
      %1876 = vst.msk [vmem:[#allocation3 + $0xf8] sm:$0xff] %vm1844, %v1843
      %v1877 = vld [vmem:[#allocation4] sm:$0xff]
      %v1878 = vld [vmem:[#allocation4 + $0x8] sm:$0xff]
      %v1879 = vld [vmem:[#allocation4 + $0x10] sm:$0xff]
      %v1880 = vld [vmem:[#allocation4 + $0x18] sm:$0xff]
      %v1881 = vld [vmem:[#allocation4 + $0x20] sm:$0xff]
      %v1882 = vld [vmem:[#allocation4 + $0x28] sm:$0xff]
      %v1883 = vld [vmem:[#allocation4 + $0x30] sm:$0xff]
      %v1884 = vld [vmem:[#allocation4 + $0x38] sm:$0xff]
      %v1885 = vld [vmem:[#allocation4 + $0x40] sm:$0xff]
      %v1886 = vld [vmem:[#allocation4 + $0x48] sm:$0xff]
      %v1887 = vld [vmem:[#allocation4 + $0x50] sm:$0xff]
      %v1888 = vld [vmem:[#allocation4 + $0x58] sm:$0xff]
      %v1889 = vld [vmem:[#allocation4 + $0x60] sm:$0xff]
      %v1890 = vld [vmem:[#allocation4 + $0x68] sm:$0xff]
      %v1891 = vld [vmem:[#allocation4 + $0x70] sm:$0xff]
      %v1892 = vld [vmem:[#allocation4 + $0x78] sm:$0xff]
      %v1893 = vld [vmem:[#allocation4 + $0x80] sm:$0xff]
      %v1894 = vld [vmem:[#allocation4 + $0x88] sm:$0xff]
      %v1895 = vld [vmem:[#allocation4 + $0x90] sm:$0xff]
      %v1896 = vld [vmem:[#allocation4 + $0x98] sm:$0xff]
      %v1897 = vld [vmem:[#allocation4 + $0xa0] sm:$0xff]
      %v1898 = vld [vmem:[#allocation4 + $0xa8] sm:$0xff]
      %v1899 = vld [vmem:[#allocation4 + $0xb0] sm:$0xff]
      %v1900 = vld [vmem:[#allocation4 + $0xb8] sm:$0xff]
      %v1901 = vld [vmem:[#allocation4 + $0xc0] sm:$0xff]
      %v1902 = vld [vmem:[#allocation4 + $0xc8] sm:$0xff]
      %v1903 = vld [vmem:[#allocation4 + $0xd0] sm:$0xff]
      %v1904 = vld [vmem:[#allocation4 + $0xd8] sm:$0xff]
      %v1905 = vld [vmem:[#allocation4 + $0xe0] sm:$0xff]
      %v1906 = vld [vmem:[#allocation4 + $0xe8] sm:$0xff]
      %v1907 = vld [vmem:[#allocation4 + $0xf0] sm:$0xff]
      %v1908 = vld [vmem:[#allocation4 + $0xf8] sm:$0xff]
      %1910 = vset.pattern.permute.xlu0 0
      %1911 = vperm.xlu0 %1910, %v1237
      %v1912 = vpop.permute.xlu0 %1911
      %1915 = vset.pattern.permute.xlu0 0
      %1916 = vperm.xlu0 %1915, %v1239
      %v1917 = vpop.permute.xlu0 %1916
      %1920 = vset.pattern.permute.xlu0 0
      %1921 = vperm.xlu0 %1920, %v1241
      %v1922 = vpop.permute.xlu0 %1921
      %1925 = vset.pattern.permute.xlu0 0
      %1926 = vperm.xlu0 %1925, %v1243
      %v1927 = vpop.permute.xlu0 %1926
      %1930 = vset.pattern.permute.xlu0 0
      %1931 = vperm.xlu0 %1930, %v1245
      %v1932 = vpop.permute.xlu0 %1931
      %1935 = vset.pattern.permute.xlu0 0
      %1936 = vperm.xlu0 %1935, %v1247
      %v1937 = vpop.permute.xlu0 %1936
      %1940 = vset.pattern.permute.xlu0 0
      %1941 = vperm.xlu0 %1940, %v1249
      %v1942 = vpop.permute.xlu0 %1941
      %1945 = vset.pattern.permute.xlu0 0
      %1946 = vperm.xlu0 %1945, %v1251
      %v1947 = vpop.permute.xlu0 %1946
      %1950 = vset.pattern.permute.xlu0 0
      %1951 = vperm.xlu0 %1950, %v1253
      %v1952 = vpop.permute.xlu0 %1951
      %1955 = vset.pattern.permute.xlu0 0
      %1956 = vperm.xlu0 %1955, %v1255
      %v1957 = vpop.permute.xlu0 %1956
      %1960 = vset.pattern.permute.xlu0 0
      %1961 = vperm.xlu0 %1960, %v1257
      %v1962 = vpop.permute.xlu0 %1961
      %1965 = vset.pattern.permute.xlu0 0
      %1966 = vperm.xlu0 %1965, %v1259
      %v1967 = vpop.permute.xlu0 %1966
      %1970 = vset.pattern.permute.xlu0 0
      %1971 = vperm.xlu0 %1970, %v1261
      %v1972 = vpop.permute.xlu0 %1971
      %1975 = vset.pattern.permute.xlu0 0
      %1976 = vperm.xlu0 %1975, %v1263
      %v1977 = vpop.permute.xlu0 %1976
      %1980 = vset.pattern.permute.xlu0 0
      %1981 = vperm.xlu0 %1980, %v1265
      %v1982 = vpop.permute.xlu0 %1981
      %1985 = vset.pattern.permute.xlu0 0
      %1986 = vperm.xlu0 %1985, %v1267
      %v1987 = vpop.permute.xlu0 %1986
      %1990 = vset.pattern.permute.xlu0 0
      %1991 = vperm.xlu0 %1990, %v1269
      %v1992 = vpop.permute.xlu0 %1991
      %1995 = vset.pattern.permute.xlu0 0
      %1996 = vperm.xlu0 %1995, %v1271
      %v1997 = vpop.permute.xlu0 %1996
      %2000 = vset.pattern.permute.xlu0 0
      %2001 = vperm.xlu0 %2000, %v1273
      %v2002 = vpop.permute.xlu0 %2001
      %2005 = vset.pattern.permute.xlu0 0
      %2006 = vperm.xlu0 %2005, %v1275
      %v2007 = vpop.permute.xlu0 %2006
      %2010 = vset.pattern.permute.xlu0 0
      %2011 = vperm.xlu0 %2010, %v1277
      %v2012 = vpop.permute.xlu0 %2011
      %2015 = vset.pattern.permute.xlu0 0
      %2016 = vperm.xlu0 %2015, %v1279
      %v2017 = vpop.permute.xlu0 %2016
      %2020 = vset.pattern.permute.xlu0 0
      %2021 = vperm.xlu0 %2020, %v1281
      %v2022 = vpop.permute.xlu0 %2021
      %2025 = vset.pattern.permute.xlu0 0
      %2026 = vperm.xlu0 %2025, %v1283
      %v2027 = vpop.permute.xlu0 %2026
      %2030 = vset.pattern.permute.xlu0 0
      %2031 = vperm.xlu0 %2030, %v1285
      %v2032 = vpop.permute.xlu0 %2031
      %2035 = vset.pattern.permute.xlu0 0
      %2036 = vperm.xlu0 %2035, %v1287
      %v2037 = vpop.permute.xlu0 %2036
      %2040 = vset.pattern.permute.xlu0 0
      %2041 = vperm.xlu0 %2040, %v1289
      %v2042 = vpop.permute.xlu0 %2041
      %2045 = vset.pattern.permute.xlu0 0
      %2046 = vperm.xlu0 %2045, %v1291
      %v2047 = vpop.permute.xlu0 %2046
      %2050 = vset.pattern.permute.xlu0 0
      %2051 = vperm.xlu0 %2050, %v1293
      %v2052 = vpop.permute.xlu0 %2051
      %2055 = vset.pattern.permute.xlu0 0
      %2056 = vperm.xlu0 %2055, %v1295
      %v2057 = vpop.permute.xlu0 %2056
      %2060 = vset.pattern.permute.xlu0 0
      %2061 = vperm.xlu0 %2060, %v1297
      %v2062 = vpop.permute.xlu0 %2061
      %2065 = vset.pattern.permute.xlu0 0
      %2066 = vperm.xlu0 %2065, %v1299
      %v2067 = vpop.permute.xlu0 %2066
      %v2069 = vmul.f32 %v1912, %v1877
      %v2070 = vmul.f32 %v1917, %v1878
      %v2071 = vmul.f32 %v1922, %v1879
      %v2072 = vmul.f32 %v1927, %v1880
      %v2073 = vmul.f32 %v1932, %v1881
      %v2074 = vmul.f32 %v1937, %v1882
      %v2075 = vmul.f32 %v1942, %v1883
      %v2076 = vmul.f32 %v1947, %v1884
      %v2077 = vmul.f32 %v1952, %v1885
      %v2078 = vmul.f32 %v1957, %v1886
      %v2079 = vmul.f32 %v1962, %v1887
      %v2080 = vmul.f32 %v1967, %v1888
      %v2081 = vmul.f32 %v1972, %v1889
      %v2082 = vmul.f32 %v1977, %v1890
      %v2083 = vmul.f32 %v1982, %v1891
      %v2084 = vmul.f32 %v1987, %v1892
      %v2085 = vmul.f32 %v1992, %v1893
      %v2086 = vmul.f32 %v1997, %v1894
      %v2087 = vmul.f32 %v2002, %v1895
      %v2088 = vmul.f32 %v2007, %v1896
      %v2089 = vmul.f32 %v2012, %v1897
      %v2090 = vmul.f32 %v2017, %v1898
      %v2091 = vmul.f32 %v2022, %v1899
      %v2092 = vmul.f32 %v2027, %v1900
      %v2093 = vmul.f32 %v2032, %v1901
      %v2094 = vmul.f32 %v2037, %v1902
      %v2095 = vmul.f32 %v2042, %v1903
      %v2096 = vmul.f32 %v2047, %v1904
      %v2097 = vmul.f32 %v2052, %v1905
      %v2098 = vmul.f32 %v2057, %v1906
      %v2099 = vmul.f32 %v2062, %v1907
      %v2100 = vmul.f32 %v2067, %v1908
      %v2101 = vpack.c.bf16 %v1529, %v1525
      %v2102 = vpack.c.bf16 %v1531, %v1527
      %v2103 = vpack.c.bf16 %v1537, %v1533
      %v2104 = vpack.c.bf16 %v1539, %v1535
      %v2105 = vpack.c.bf16 %v1545, %v1541
      %v2106 = vpack.c.bf16 %v1547, %v1543
      %v2107 = vpack.c.bf16 %v1553, %v1549
      %v2108 = vpack.c.bf16 %v1555, %v1551
      %v2109 = vpack.c.bf16 %v1561, %v1557
      %v2110 = vpack.c.bf16 %v1563, %v1559
      %v2111 = vpack.c.bf16 %v1569, %v1565
      %v2112 = vpack.c.bf16 %v1571, %v1567
      %v2113 = vpack.c.bf16 %v1577, %v1573
      %v2114 = vpack.c.bf16 %v1579, %v1575
      %v2115 = vpack.c.bf16 %v1585, %v1581
      %v2116 = vpack.c.bf16 %v1587, %v1583
      %v2117 = vpack.c.bf16 %v1593, %v1589
      %v2118 = vpack.c.bf16 %v1595, %v1591
      %v2119 = vpack.c.bf16 %v1601, %v1597
      %v2120 = vpack.c.bf16 %v1603, %v1599
      %v2121 = vpack.c.bf16 %v1609, %v1605
      %v2122 = vpack.c.bf16 %v1611, %v1607
      %v2123 = vpack.c.bf16 %v1617, %v1613
      %v2124 = vpack.c.bf16 %v1619, %v1615
      %v2125 = vpack.c.bf16 %v1625, %v1621
      %v2126 = vpack.c.bf16 %v1627, %v1623
      %v2127 = vpack.c.bf16 %v1633, %v1629
      %v2128 = vpack.c.bf16 %v1635, %v1631
      %v2129 = vpack.c.bf16 %v1641, %v1637
      %v2130 = vpack.c.bf16 %v1643, %v1639
      %v2131 = vpack.c.bf16 %v1649, %v1645
      %v2132 = vpack.c.bf16 %v1651, %v1647
      %v2165 = vunpack.c.l.b16 %v489
      %v2166 = vunpack.c.l.b16 %v490
      %v2167 = vunpack.c.l.b16 %v491
      %v2168 = vunpack.c.l.b16 %v492
      %v2169 = vunpack.c.l.b16 %v493
      %v2170 = vunpack.c.l.b16 %v494
      %v2171 = vunpack.c.l.b16 %v495
      %v2172 = vunpack.c.l.b16 %v496
      %v2173 = vunpack.c.l.b16 %v497
      %v2174 = vunpack.c.l.b16 %v498
      %v2175 = vunpack.c.l.b16 %v499
      %v2176 = vunpack.c.l.b16 %v500
      %v2177 = vunpack.c.l.b16 %v501
      %v2178 = vunpack.c.l.b16 %v502
      %v2179 = vunpack.c.l.b16 %v503
      %v2180 = vunpack.c.l.b16 %v504
      %v2181 = vunpack.c.l.b16 %v505
      %v2182 = vunpack.c.l.b16 %v506
      %v2183 = vunpack.c.l.b16 %v507
      %v2184 = vunpack.c.l.b16 %v508
      %v2185 = vunpack.c.l.b16 %v509
      %v2186 = vunpack.c.l.b16 %v510
      %v2187 = vunpack.c.l.b16 %v511
      %v2188 = vunpack.c.l.b16 %v512
      %v2189 = vunpack.c.l.b16 %v513
      %v2190 = vunpack.c.l.b16 %v514
      %v2191 = vunpack.c.l.b16 %v515
      %v2192 = vunpack.c.l.b16 %v516
      %v2193 = vunpack.c.l.b16 %v517
      %v2194 = vunpack.c.l.b16 %v518
      %v2195 = vunpack.c.l.b16 %v519
      %v2196 = vunpack.c.l.b16 %v520
      %v2197 = vpack.c.b16 %v2166, %v2165
      %v2198 = vpack.c.b16 %v2168, %v2167
      %v2199 = vpack.c.b16 %v2170, %v2169
      %v2200 = vpack.c.b16 %v2172, %v2171
      %v2201 = vpack.c.b16 %v2174, %v2173
      %v2202 = vpack.c.b16 %v2176, %v2175
      %v2203 = vpack.c.b16 %v2178, %v2177
      %v2204 = vpack.c.b16 %v2180, %v2179
      %v2205 = vpack.c.b16 %v2182, %v2181
      %v2206 = vpack.c.b16 %v2184, %v2183
      %v2207 = vpack.c.b16 %v2186, %v2185
      %v2208 = vpack.c.b16 %v2188, %v2187
      %v2209 = vpack.c.b16 %v2190, %v2189
      %v2210 = vpack.c.b16 %v2192, %v2191
      %v2211 = vpack.c.b16 %v2194, %v2193
      %v2212 = vpack.c.b16 %v2196, %v2195
      %2229 = vmatprep.subr.bf16.mxu0 0
      %2230 = vmatpush1.bf16.msra.mxu0 %v2204
      %2231 = vmatprep.subr.bf16.mxu0 0
      %2232 = vmatpush1.bf16.msra.mxu0 %v2203
      %2233 = vmatprep.subr.bf16.mxu0 0
      %2234 = vmatpush1.bf16.msra.mxu0 %v2202
      %2235 = vmatprep.subr.bf16.mxu0 0
      %2236 = vmatpush1.bf16.msra.mxu0 %v2201
      %2237 = vmatprep.subr.bf16.mxu0 0
      %2238 = vmatpush1.bf16.msra.mxu0 %v2200
      %2239 = vmatprep.subr.bf16.mxu0 0
      %2240 = vmatpush1.bf16.msra.mxu0 %v2199
      %2241 = vmatprep.subr.bf16.mxu0 0
      %2242 = vmatpush1.bf16.msra.mxu0 %v2198
      %2243 = vmatprep.subr.bf16.mxu0 0
      %2244 = vmatpush1.bf16.msra.mxu0 %v2197
      %2245 = vmatprep.subr.bf16.mxu0 0
      %2246 = vmatpush2.bf16.msra.mxu0 %v2212
      %2247 = vmatprep.subr.bf16.mxu0 0
      %2248 = vmatpush2.bf16.msra.mxu0 %v2211
      %2249 = vmatprep.subr.bf16.mxu0 0
      %2250 = vmatpush2.bf16.msra.mxu0 %v2210
      %2251 = vmatprep.subr.bf16.mxu0 0
      %2252 = vmatpush2.bf16.msra.mxu0 %v2209
      %2253 = vmatprep.subr.bf16.mxu0 0
      %2254 = vmatpush2.bf16.msra.mxu0 %v2208
      %2255 = vmatprep.subr.bf16.mxu0 0
      %2256 = vmatpush2.bf16.msra.mxu0 %v2207
      %2257 = vmatprep.subr.bf16.mxu0 0
      %2258 = vmatpush2.bf16.msra.mxu0 %v2206
      %2259 = vmatprep.subr.bf16.mxu0 0
      %2260 = vmatpush2.bf16.msra.mxu0 %v2205
      %2261 = vmatprep.mubr.bf16.mxu0 %v2102
      %2262 = vmatmul.mubr.bf16.gmra.mxu0 %v2101
      %v2263 = vpop.f32.mrf.mxu0
      %v2264 = vadd.f32 0.0, %v2263
      %v2265 = vpop.f32.mrf.mxu0
      %v2266 = vpop.f32.mrf.mxu0
      %v2267 = vadd.f32 0.0, %v2266
      %v2268 = vpop.f32.mrf.mxu0
      %2269 = vmatprep.mubr.bf16.mxu0 %v2104
      %2270 = vmatmul.mubr.bf16.gmra.mxu0 %v2103
      %v2271 = vpop.f32.mrf.mxu0
      %v2272 = vadd.f32 0.0, %v2271
      %v2273 = vpop.f32.mrf.mxu0
      %v2274 = vpop.f32.mrf.mxu0
      %v2275 = vadd.f32 0.0, %v2274
      %v2276 = vpop.f32.mrf.mxu0
      %2277 = vmatprep.mubr.bf16.mxu0 %v2106
      %2278 = vmatmul.mubr.bf16.gmra.mxu0 %v2105
      %v2279 = vpop.f32.mrf.mxu0
      %v2280 = vadd.f32 0.0, %v2279
      %v2281 = vpop.f32.mrf.mxu0
      %v2282 = vpop.f32.mrf.mxu0
      %v2283 = vadd.f32 0.0, %v2282
      %v2284 = vpop.f32.mrf.mxu0
      %2285 = vmatprep.mubr.bf16.mxu0 %v2108
      %2286 = vmatmul.mubr.bf16.gmra.mxu0 %v2107
      %v2287 = vpop.f32.mrf.mxu0
      %v2288 = vadd.f32 0.0, %v2287
      %v2289 = vpop.f32.mrf.mxu0
      %v2290 = vpop.f32.mrf.mxu0
      %v2291 = vadd.f32 0.0, %v2290
      %v2292 = vpop.f32.mrf.mxu0
      %2293 = vmatprep.mubr.bf16.mxu0 %v2110
      %2294 = vmatmul.mubr.bf16.gmra.mxu0 %v2109
      %v2295 = vpop.f32.mrf.mxu0
      %v2296 = vadd.f32 0.0, %v2295
      %v2297 = vpop.f32.mrf.mxu0
      %v2298 = vpop.f32.mrf.mxu0
      %v2299 = vadd.f32 0.0, %v2298
      %v2300 = vpop.f32.mrf.mxu0
      %2301 = vmatprep.mubr.bf16.mxu0 %v2112
      %2302 = vmatmul.mubr.bf16.gmra.mxu0 %v2111
      %v2303 = vpop.f32.mrf.mxu0
      %v2304 = vadd.f32 0.0, %v2303
      %v2305 = vpop.f32.mrf.mxu0
      %v2306 = vpop.f32.mrf.mxu0
      %v2307 = vadd.f32 0.0, %v2306
      %v2308 = vpop.f32.mrf.mxu0
      %2309 = vmatprep.mubr.bf16.mxu0 %v2114
      %2310 = vmatmul.mubr.bf16.gmra.mxu0 %v2113
      %v2311 = vpop.f32.mrf.mxu0
      %v2312 = vadd.f32 0.0, %v2311
      %v2313 = vpop.f32.mrf.mxu0
      %v2314 = vpop.f32.mrf.mxu0
      %v2315 = vadd.f32 0.0, %v2314
      %v2316 = vpop.f32.mrf.mxu0
      %2317 = vmatprep.mubr.bf16.mxu0 %v2116
      %2318 = vmatmul.mubr.bf16.gmra.mxu0 %v2115
      %v2319 = vpop.f32.mrf.mxu0
      %v2320 = vadd.f32 0.0, %v2319
      %v2321 = vpop.f32.mrf.mxu0
      %v2322 = vpop.f32.mrf.mxu0
      %v2323 = vadd.f32 0.0, %v2322
      %v2324 = vpop.f32.mrf.mxu0
      %2325 = vmatprep.mubr.bf16.mxu0 %v2118
      %2326 = vmatmul.mubr.bf16.gmra.mxu0 %v2117
      %v2327 = vpop.f32.mrf.mxu0
      %v2328 = vadd.f32 0.0, %v2327
      %v2329 = vpop.f32.mrf.mxu0
      %v2330 = vpop.f32.mrf.mxu0
      %v2331 = vadd.f32 0.0, %v2330
      %v2332 = vpop.f32.mrf.mxu0
      %2333 = vmatprep.mubr.bf16.mxu0 %v2120
      %2334 = vmatmul.mubr.bf16.gmra.mxu0 %v2119
      %v2335 = vpop.f32.mrf.mxu0
      %v2336 = vadd.f32 0.0, %v2335
      %v2337 = vpop.f32.mrf.mxu0
      %v2338 = vpop.f32.mrf.mxu0
      %v2339 = vadd.f32 0.0, %v2338
      %v2340 = vpop.f32.mrf.mxu0
      %2341 = vmatprep.mubr.bf16.mxu0 %v2122
      %2342 = vmatmul.mubr.bf16.gmra.mxu0 %v2121
      %v2343 = vpop.f32.mrf.mxu0
      %v2344 = vadd.f32 0.0, %v2343
      %v2345 = vpop.f32.mrf.mxu0
      %v2346 = vpop.f32.mrf.mxu0
      %v2347 = vadd.f32 0.0, %v2346
      %v2348 = vpop.f32.mrf.mxu0
      %2349 = vmatprep.mubr.bf16.mxu0 %v2124
      %2350 = vmatmul.mubr.bf16.gmra.mxu0 %v2123
      %v2351 = vpop.f32.mrf.mxu0
      %v2352 = vadd.f32 0.0, %v2351
      %v2353 = vpop.f32.mrf.mxu0
      %v2354 = vpop.f32.mrf.mxu0
      %v2355 = vadd.f32 0.0, %v2354
      %v2356 = vpop.f32.mrf.mxu0
      %2357 = vmatprep.mubr.bf16.mxu0 %v2126
      %2358 = vmatmul.mubr.bf16.gmra.mxu0 %v2125
      %v2359 = vpop.f32.mrf.mxu0
      %v2360 = vadd.f32 0.0, %v2359
      %v2361 = vpop.f32.mrf.mxu0
      %v2362 = vpop.f32.mrf.mxu0
      %v2363 = vadd.f32 0.0, %v2362
      %v2364 = vpop.f32.mrf.mxu0
      %2365 = vmatprep.mubr.bf16.mxu0 %v2128
      %2366 = vmatmul.mubr.bf16.gmra.mxu0 %v2127
      %v2367 = vpop.f32.mrf.mxu0
      %v2368 = vadd.f32 0.0, %v2367
      %v2369 = vpop.f32.mrf.mxu0
      %v2370 = vpop.f32.mrf.mxu0
      %v2371 = vadd.f32 0.0, %v2370
      %v2372 = vpop.f32.mrf.mxu0
      %2373 = vmatprep.mubr.bf16.mxu0 %v2130
      %2374 = vmatmul.mubr.bf16.gmra.mxu0 %v2129
      %v2375 = vpop.f32.mrf.mxu0
      %v2376 = vadd.f32 0.0, %v2375
      %v2377 = vpop.f32.mrf.mxu0
      %v2378 = vpop.f32.mrf.mxu0
      %v2379 = vadd.f32 0.0, %v2378
      %v2380 = vpop.f32.mrf.mxu0
      %2381 = vmatprep.mubr.bf16.mxu0 %v2132
      %2382 = vmatmul.mubr.bf16.gmra.mxu0 %v2131
      %v2383 = vpop.f32.mrf.mxu0
      %v2384 = vadd.f32 0.0, %v2383
      %v2385 = vpop.f32.mrf.mxu0
      %v2386 = vpop.f32.mrf.mxu0
      %v2387 = vadd.f32 0.0, %v2386
      %v2388 = vpop.f32.mrf.mxu0
      %2389 = vdwg.mxu0
      %v2390 = vadd.f32 %v2069, %v2264
      %v2391 = vadd.f32 %v2070, %v2267
      %v2392 = vadd.f32 %v2071, %v2272
      %v2393 = vadd.f32 %v2072, %v2275
      %v2394 = vadd.f32 %v2073, %v2280
      %v2395 = vadd.f32 %v2074, %v2283
      %v2396 = vadd.f32 %v2075, %v2288
      %v2397 = vadd.f32 %v2076, %v2291
      %v2398 = vadd.f32 %v2077, %v2296
      %v2399 = vadd.f32 %v2078, %v2299
      %v2400 = vadd.f32 %v2079, %v2304
      %v2401 = vadd.f32 %v2080, %v2307
      %v2402 = vadd.f32 %v2081, %v2312
      %v2403 = vadd.f32 %v2082, %v2315
      %v2404 = vadd.f32 %v2083, %v2320
      %v2405 = vadd.f32 %v2084, %v2323
      %v2406 = vadd.f32 %v2085, %v2328
      %v2407 = vadd.f32 %v2086, %v2331
      %v2408 = vadd.f32 %v2087, %v2336
      %v2409 = vadd.f32 %v2088, %v2339
      %v2410 = vadd.f32 %v2089, %v2344
      %v2411 = vadd.f32 %v2090, %v2347
      %v2412 = vadd.f32 %v2091, %v2352
      %v2413 = vadd.f32 %v2092, %v2355
      %v2414 = vadd.f32 %v2093, %v2360
      %v2415 = vadd.f32 %v2094, %v2363
      %v2416 = vadd.f32 %v2095, %v2368
      %v2417 = vadd.f32 %v2096, %v2371
      %v2418 = vadd.f32 %v2097, %v2376
      %v2419 = vadd.f32 %v2098, %v2379
      %v2420 = vadd.f32 %v2099, %v2384
      %v2421 = vadd.f32 %v2100, %v2387
      %2422 = vst.msk [vmem:[#allocation4] sm:$0xff] %vm681, %v2390
      %2423 = vst.msk [vmem:[#allocation4 + $0x8] sm:$0xff] %vm681, %v2391
      %2424 = vst.msk [vmem:[#allocation4 + $0x10] sm:$0xff] %vm681, %v2392
      %2425 = vst.msk [vmem:[#allocation4 + $0x18] sm:$0xff] %vm681, %v2393
      %2426 = vst.msk [vmem:[#allocation4 + $0x20] sm:$0xff] %vm681, %v2394
      %2427 = vst.msk [vmem:[#allocation4 + $0x28] sm:$0xff] %vm681, %v2395
      %2428 = vst.msk [vmem:[#allocation4 + $0x30] sm:$0xff] %vm681, %v2396
      %2429 = vst.msk [vmem:[#allocation4 + $0x38] sm:$0xff] %vm681, %v2397
      %2430 = vst.msk [vmem:[#allocation4 + $0x40] sm:$0xff] %vm681, %v2398
      %2431 = vst.msk [vmem:[#allocation4 + $0x48] sm:$0xff] %vm681, %v2399
      %2432 = vst.msk [vmem:[#allocation4 + $0x50] sm:$0xff] %vm681, %v2400
      %2433 = vst.msk [vmem:[#allocation4 + $0x58] sm:$0xff] %vm681, %v2401
      %2434 = vst.msk [vmem:[#allocation4 + $0x60] sm:$0xff] %vm681, %v2402
      %2435 = vst.msk [vmem:[#allocation4 + $0x68] sm:$0xff] %vm681, %v2403
      %2436 = vst.msk [vmem:[#allocation4 + $0x70] sm:$0xff] %vm681, %v2404
      %2437 = vst.msk [vmem:[#allocation4 + $0x78] sm:$0xff] %vm681, %v2405
      %2438 = vst.msk [vmem:[#allocation4 + $0x80] sm:$0xff] %vm681, %v2406
      %2439 = vst.msk [vmem:[#allocation4 + $0x88] sm:$0xff] %vm681, %v2407
      %2440 = vst.msk [vmem:[#allocation4 + $0x90] sm:$0xff] %vm681, %v2408
      %2441 = vst.msk [vmem:[#allocation4 + $0x98] sm:$0xff] %vm681, %v2409
      %2442 = vst.msk [vmem:[#allocation4 + $0xa0] sm:$0xff] %vm681, %v2410
      %2443 = vst.msk [vmem:[#allocation4 + $0xa8] sm:$0xff] %vm681, %v2411
      %2444 = vst.msk [vmem:[#allocation4 + $0xb0] sm:$0xff] %vm681, %v2412
      %2445 = vst.msk [vmem:[#allocation4 + $0xb8] sm:$0xff] %vm681, %v2413
      %2446 = vst.msk [vmem:[#allocation4 + $0xc0] sm:$0xff] %vm681, %v2414
      %2447 = vst.msk [vmem:[#allocation4 + $0xc8] sm:$0xff] %vm681, %v2415
      %2448 = vst.msk [vmem:[#allocation4 + $0xd0] sm:$0xff] %vm681, %v2416
      %2449 = vst.msk [vmem:[#allocation4 + $0xd8] sm:$0xff] %vm681, %v2417
      %2450 = vst.msk [vmem:[#allocation4 + $0xe0] sm:$0xff] %vm681, %v2418
      %2451 = vst.msk [vmem:[#allocation4 + $0xe8] sm:$0xff] %vm681, %v2419
      %2452 = vst.msk [vmem:[#allocation4 + $0xf0] sm:$0xff] %vm681, %v2420
      %2453 = vst.msk [vmem:[#allocation4 + $0xf8] sm:$0xff] %vm681, %v2421
      %2454 = vst.msk [vmem:[#allocation2] sm:$0xff] %vm1844, %v1172
      %2455 = vst.msk [vmem:[#allocation2 + $0x8] sm:$0xff] %vm1844, %v1173
      %2456 = vst.msk [vmem:[#allocation2 + $0x10] sm:$0xff] %vm1844, %v1174
      %2457 = vst.msk [vmem:[#allocation2 + $0x18] sm:$0xff] %vm1844, %v1175
      %2458 = vst.msk [vmem:[#allocation2 + $0x20] sm:$0xff] %vm1844, %v1176
      %2459 = vst.msk [vmem:[#allocation2 + $0x28] sm:$0xff] %vm1844, %v1177
      %2460 = vst.msk [vmem:[#allocation2 + $0x30] sm:$0xff] %vm1844, %v1178
      %2461 = vst.msk [vmem:[#allocation2 + $0x38] sm:$0xff] %vm1844, %v1179
      %2462 = vst.msk [vmem:[#allocation2 + $0x40] sm:$0xff] %vm1844, %v1180
      %2463 = vst.msk [vmem:[#allocation2 + $0x48] sm:$0xff] %vm1844, %v1181
      %2464 = vst.msk [vmem:[#allocation2 + $0x50] sm:$0xff] %vm1844, %v1182
      %2465 = vst.msk [vmem:[#allocation2 + $0x58] sm:$0xff] %vm1844, %v1183
      %2466 = vst.msk [vmem:[#allocation2 + $0x60] sm:$0xff] %vm1844, %v1184
      %2467 = vst.msk [vmem:[#allocation2 + $0x68] sm:$0xff] %vm1844, %v1185
      %2468 = vst.msk [vmem:[#allocation2 + $0x70] sm:$0xff] %vm1844, %v1186
      %2469 = vst.msk [vmem:[#allocation2 + $0x78] sm:$0xff] %vm1844, %v1187
      %2470 = vst.msk [vmem:[#allocation2 + $0x80] sm:$0xff] %vm1844, %v1188
      %2471 = vst.msk [vmem:[#allocation2 + $0x88] sm:$0xff] %vm1844, %v1189
      %2472 = vst.msk [vmem:[#allocation2 + $0x90] sm:$0xff] %vm1844, %v1190
      %2473 = vst.msk [vmem:[#allocation2 + $0x98] sm:$0xff] %vm1844, %v1191
      %2474 = vst.msk [vmem:[#allocation2 + $0xa0] sm:$0xff] %vm1844, %v1192
      %2475 = vst.msk [vmem:[#allocation2 + $0xa8] sm:$0xff] %vm1844, %v1193
      %2476 = vst.msk [vmem:[#allocation2 + $0xb0] sm:$0xff] %vm1844, %v1194
      %2477 = vst.msk [vmem:[#allocation2 + $0xb8] sm:$0xff] %vm1844, %v1195
      %2478 = vst.msk [vmem:[#allocation2 + $0xc0] sm:$0xff] %vm1844, %v1196
      %2479 = vst.msk [vmem:[#allocation2 + $0xc8] sm:$0xff] %vm1844, %v1197
      %2480 = vst.msk [vmem:[#allocation2 + $0xd0] sm:$0xff] %vm1844, %v1198
      %2481 = vst.msk [vmem:[#allocation2 + $0xd8] sm:$0xff] %vm1844, %v1199
      %2482 = vst.msk [vmem:[#allocation2 + $0xe0] sm:$0xff] %vm1844, %v1200
      %2483 = vst.msk [vmem:[#allocation2 + $0xe8] sm:$0xff] %vm1844, %v1201
      %2484 = vst.msk [vmem:[#allocation2 + $0xf0] sm:$0xff] %vm1844, %v1202
      %2485 = vst.msk [vmem:[#allocation2 + $0xf8] sm:$0xff] %vm1844, %v1203
      // Predicated region
      $region37: #{mtl_dinov2_forward.66} parent=31 // pred_check
        %p2486 = pneg %p291
      $region38: #{mtl_dinov2_forward.66} parent=31 // pred_check_branch
        %2488 = sbr.rel (%p2486) target = $region40
      $region39: #{mtl_dinov2_forward.66} parent=31 // pred_region
        %v2489 = vld [vmem:[#allocation3] sm:$0xff]
        %v2490 = vld [vmem:[#allocation3 + $0x8] sm:$0xff]
        %v2491 = vld [vmem:[#allocation3 + $0x10] sm:$0xff]
        %v2492 = vld [vmem:[#allocation3 + $0x18] sm:$0xff]
        %v2493 = vld [vmem:[#allocation3 + $0x20] sm:$0xff]
        %v2494 = vld [vmem:[#allocation3 + $0x28] sm:$0xff]
        %v2495 = vld [vmem:[#allocation3 + $0x30] sm:$0xff]
        %v2496 = vld [vmem:[#allocation3 + $0x38] sm:$0xff]
        %v2497 = vld [vmem:[#allocation3 + $0x40] sm:$0xff]
        %v2498 = vld [vmem:[#allocation3 + $0x48] sm:$0xff]
        %v2499 = vld [vmem:[#allocation3 + $0x50] sm:$0xff]
        %v2500 = vld [vmem:[#allocation3 + $0x58] sm:$0xff]
        %v2501 = vld [vmem:[#allocation3 + $0x60] sm:$0xff]
        %v2502 = vld [vmem:[#allocation3 + $0x68] sm:$0xff]
        %v2503 = vld [vmem:[#allocation3 + $0x70] sm:$0xff]
        %v2504 = vld [vmem:[#allocation3 + $0x78] sm:$0xff]
        %v2505 = vld [vmem:[#allocation3 + $0x80] sm:$0xff]
        %v2506 = vld [vmem:[#allocation3 + $0x88] sm:$0xff]
        %v2507 = vld [vmem:[#allocation3 + $0x90] sm:$0xff]
        %v2508 = vld [vmem:[#allocation3 + $0x98] sm:$0xff]
        %v2509 = vld [vmem:[#allocation3 + $0xa0] sm:$0xff]
        %v2510 = vld [vmem:[#allocation3 + $0xa8] sm:$0xff]
        %v2511 = vld [vmem:[#allocation3 + $0xb0] sm:$0xff]
        %v2512 = vld [vmem:[#allocation3 + $0xb8] sm:$0xff]
        %v2513 = vld [vmem:[#allocation3 + $0xc0] sm:$0xff]
        %v2514 = vld [vmem:[#allocation3 + $0xc8] sm:$0xff]
        %v2515 = vld [vmem:[#allocation3 + $0xd0] sm:$0xff]
        %v2516 = vld [vmem:[#allocation3 + $0xd8] sm:$0xff]
        %v2517 = vld [vmem:[#allocation3 + $0xe0] sm:$0xff]
        %v2518 = vld [vmem:[#allocation3 + $0xe8] sm:$0xff]
        %v2519 = vld [vmem:[#allocation3 + $0xf0] sm:$0xff]
        %v2520 = vld [vmem:[#allocation3 + $0xf8] sm:$0xff]
        %v2521 = vrcp.pop %v2489
        %v2522 = vrcp.pop %v2490
        %v2523 = vrcp.pop %v2491
        %v2524 = vrcp.pop %v2492
        %v2525 = vrcp.pop %v2493
        %v2526 = vrcp.pop %v2494
        %v2527 = vrcp.pop %v2495
        %v2528 = vrcp.pop %v2496
        %v2529 = vrcp.pop %v2497
        %v2530 = vrcp.pop %v2498
        %v2531 = vrcp.pop %v2499
        %v2532 = vrcp.pop %v2500
        %v2533 = vrcp.pop %v2501
        %v2534 = vrcp.pop %v2502
        %v2535 = vrcp.pop %v2503
        %v2536 = vrcp.pop %v2504
        %v2537 = vrcp.pop %v2505
        %v2538 = vrcp.pop %v2506
        %v2539 = vrcp.pop %v2507
        %v2540 = vrcp.pop %v2508
        %v2541 = vrcp.pop %v2509
        %v2542 = vrcp.pop %v2510
        %v2543 = vrcp.pop %v2511
        %v2544 = vrcp.pop %v2512
        %v2545 = vrcp.pop %v2513
        %v2546 = vrcp.pop %v2514
        %v2547 = vrcp.pop %v2515
        %v2548 = vrcp.pop %v2516
        %v2549 = vrcp.pop %v2517
        %v2550 = vrcp.pop %v2518
        %v2551 = vrcp.pop %v2519
        %v2552 = vrcp.pop %v2520
        %v2553 = vld [vmem:[#allocation4] sm:$0xff]
        %v2554 = vld [vmem:[#allocation4 + $0x8] sm:$0xff]
        %v2555 = vld [vmem:[#allocation4 + $0x10] sm:$0xff]
        %v2556 = vld [vmem:[#allocation4 + $0x18] sm:$0xff]
        %v2557 = vld [vmem:[#allocation4 + $0x20] sm:$0xff]
        %v2558 = vld [vmem:[#allocation4 + $0x28] sm:$0xff]
        %v2559 = vld [vmem:[#allocation4 + $0x30] sm:$0xff]
        %v2560 = vld [vmem:[#allocation4 + $0x38] sm:$0xff]
        %v2561 = vld [vmem:[#allocation4 + $0x40] sm:$0xff]
        %v2562 = vld [vmem:[#allocation4 + $0x48] sm:$0xff]
        %v2563 = vld [vmem:[#allocation4 + $0x50] sm:$0xff]
        %v2564 = vld [vmem:[#allocation4 + $0x58] sm:$0xff]
        %v2565 = vld [vmem:[#allocation4 + $0x60] sm:$0xff]
        %v2566 = vld [vmem:[#allocation4 + $0x68] sm:$0xff]
        %v2567 = vld [vmem:[#allocation4 + $0x70] sm:$0xff]
        %v2568 = vld [vmem:[#allocation4 + $0x78] sm:$0xff]
        %v2569 = vld [vmem:[#allocation4 + $0x80] sm:$0xff]
        %v2570 = vld [vmem:[#allocation4 + $0x88] sm:$0xff]
        %v2571 = vld [vmem:[#allocation4 + $0x90] sm:$0xff]
        %v2572 = vld [vmem:[#allocation4 + $0x98] sm:$0xff]
        %v2573 = vld [vmem:[#allocation4 + $0xa0] sm:$0xff]
        %v2574 = vld [vmem:[#allocation4 + $0xa8] sm:$0xff]
        %v2575 = vld [vmem:[#allocation4 + $0xb0] sm:$0xff]
        %v2576 = vld [vmem:[#allocation4 + $0xb8] sm:$0xff]
        %v2577 = vld [vmem:[#allocation4 + $0xc0] sm:$0xff]
        %v2578 = vld [vmem:[#allocation4 + $0xc8] sm:$0xff]
        %v2579 = vld [vmem:[#allocation4 + $0xd0] sm:$0xff]
        %v2580 = vld [vmem:[#allocation4 + $0xd8] sm:$0xff]
        %v2581 = vld [vmem:[#allocation4 + $0xe0] sm:$0xff]
        %v2582 = vld [vmem:[#allocation4 + $0xe8] sm:$0xff]
        %v2583 = vld [vmem:[#allocation4 + $0xf0] sm:$0xff]
        %v2584 = vld [vmem:[#allocation4 + $0xf8] sm:$0xff]
        %2586 = vset.pattern.permute.xlu0 0
        %2587 = vperm.xlu0 %2586, %v2521
        %v2588 = vpop.permute.xlu0 %2587
        %2591 = vset.pattern.permute.xlu0 0
        %2592 = vperm.xlu0 %2591, %v2522
        %v2593 = vpop.permute.xlu0 %2592
        %2596 = vset.pattern.permute.xlu0 0
        %2597 = vperm.xlu0 %2596, %v2523
        %v2598 = vpop.permute.xlu0 %2597
        %2601 = vset.pattern.permute.xlu0 0
        %2602 = vperm.xlu0 %2601, %v2524
        %v2603 = vpop.permute.xlu0 %2602
        %2606 = vset.pattern.permute.xlu0 0
        %2607 = vperm.xlu0 %2606, %v2525
        %v2608 = vpop.permute.xlu0 %2607
        %2611 = vset.pattern.permute.xlu0 0
        %2612 = vperm.xlu0 %2611, %v2526
        %v2613 = vpop.permute.xlu0 %2612
        %2616 = vset.pattern.permute.xlu0 0
        %2617 = vperm.xlu0 %2616, %v2527
        %v2618 = vpop.permute.xlu0 %2617
        %2621 = vset.pattern.permute.xlu0 0
        %2622 = vperm.xlu0 %2621, %v2528
        %v2623 = vpop.permute.xlu0 %2622
        %2626 = vset.pattern.permute.xlu0 0
        %2627 = vperm.xlu0 %2626, %v2529
        %v2628 = vpop.permute.xlu0 %2627
        %2631 = vset.pattern.permute.xlu0 0
        %2632 = vperm.xlu0 %2631, %v2530
        %v2633 = vpop.permute.xlu0 %2632
        %2636 = vset.pattern.permute.xlu0 0
        %2637 = vperm.xlu0 %2636, %v2531
        %v2638 = vpop.permute.xlu0 %2637
        %2641 = vset.pattern.permute.xlu0 0
        %2642 = vperm.xlu0 %2641, %v2532
        %v2643 = vpop.permute.xlu0 %2642
        %2646 = vset.pattern.permute.xlu0 0
        %2647 = vperm.xlu0 %2646, %v2533
        %v2648 = vpop.permute.xlu0 %2647
        %2651 = vset.pattern.permute.xlu0 0
        %2652 = vperm.xlu0 %2651, %v2534
        %v2653 = vpop.permute.xlu0 %2652
        %2656 = vset.pattern.permute.xlu0 0
        %2657 = vperm.xlu0 %2656, %v2535
        %v2658 = vpop.permute.xlu0 %2657
        %2661 = vset.pattern.permute.xlu0 0
        %2662 = vperm.xlu0 %2661, %v2536
        %v2663 = vpop.permute.xlu0 %2662
        %2666 = vset.pattern.permute.xlu0 0
        %2667 = vperm.xlu0 %2666, %v2537
        %v2668 = vpop.permute.xlu0 %2667
        %2671 = vset.pattern.permute.xlu0 0
        %2672 = vperm.xlu0 %2671, %v2538
        %v2673 = vpop.permute.xlu0 %2672
        %2676 = vset.pattern.permute.xlu0 0
        %2677 = vperm.xlu0 %2676, %v2539
        %v2678 = vpop.permute.xlu0 %2677
        %2681 = vset.pattern.permute.xlu0 0
        %2682 = vperm.xlu0 %2681, %v2540
        %v2683 = vpop.permute.xlu0 %2682
        %2686 = vset.pattern.permute.xlu0 0
        %2687 = vperm.xlu0 %2686, %v2541
        %v2688 = vpop.permute.xlu0 %2687
        %2691 = vset.pattern.permute.xlu0 0
        %2692 = vperm.xlu0 %2691, %v2542
        %v2693 = vpop.permute.xlu0 %2692
        %2696 = vset.pattern.permute.xlu0 0
        %2697 = vperm.xlu0 %2696, %v2543
        %v2698 = vpop.permute.xlu0 %2697
        %2701 = vset.pattern.permute.xlu0 0
        %2702 = vperm.xlu0 %2701, %v2544
        %v2703 = vpop.permute.xlu0 %2702
        %2706 = vset.pattern.permute.xlu0 0
        %2707 = vperm.xlu0 %2706, %v2545
        %v2708 = vpop.permute.xlu0 %2707
        %2711 = vset.pattern.permute.xlu0 0
        %2712 = vperm.xlu0 %2711, %v2546
        %v2713 = vpop.permute.xlu0 %2712
        %2716 = vset.pattern.permute.xlu0 0
        %2717 = vperm.xlu0 %2716, %v2547
        %v2718 = vpop.permute.xlu0 %2717
        %2721 = vset.pattern.permute.xlu0 0
        %2722 = vperm.xlu0 %2721, %v2548
        %v2723 = vpop.permute.xlu0 %2722
        %2726 = vset.pattern.permute.xlu0 0
        %2727 = vperm.xlu0 %2726, %v2549
        %v2728 = vpop.permute.xlu0 %2727
        %2731 = vset.pattern.permute.xlu0 0
        %2732 = vperm.xlu0 %2731, %v2550
        %v2733 = vpop.permute.xlu0 %2732
        %2736 = vset.pattern.permute.xlu0 0
        %2737 = vperm.xlu0 %2736, %v2551
        %v2738 = vpop.permute.xlu0 %2737
        %2741 = vset.pattern.permute.xlu0 0
        %2742 = vperm.xlu0 %2741, %v2552
        %v2743 = vpop.permute.xlu0 %2742
        %v2745 = vmul.f32 %v2553, %v2588
        %v2746 = vmul.f32 %v2554, %v2593
        %v2747 = vmul.f32 %v2555, %v2598
        %v2748 = vmul.f32 %v2556, %v2603
        %v2749 = vmul.f32 %v2557, %v2608
        %v2750 = vmul.f32 %v2558, %v2613
        %v2751 = vmul.f32 %v2559, %v2618
        %v2752 = vmul.f32 %v2560, %v2623
        %v2753 = vmul.f32 %v2561, %v2628
        %v2754 = vmul.f32 %v2562, %v2633
        %v2755 = vmul.f32 %v2563, %v2638
        %v2756 = vmul.f32 %v2564, %v2643
        %v2757 = vmul.f32 %v2565, %v2648
        %v2758 = vmul.f32 %v2566, %v2653
        %v2759 = vmul.f32 %v2567, %v2658
        %v2760 = vmul.f32 %v2568, %v2663
        %v2761 = vmul.f32 %v2569, %v2668
        %v2762 = vmul.f32 %v2570, %v2673
        %v2763 = vmul.f32 %v2571, %v2678
        %v2764 = vmul.f32 %v2572, %v2683
        %v2765 = vmul.f32 %v2573, %v2688
        %v2766 = vmul.f32 %v2574, %v2693
        %v2767 = vmul.f32 %v2575, %v2698
        %v2768 = vmul.f32 %v2576, %v2703
        %v2769 = vmul.f32 %v2577, %v2708
        %v2770 = vmul.f32 %v2578, %v2713
        %v2771 = vmul.f32 %v2579, %v2718
        %v2772 = vmul.f32 %v2580, %v2723
        %v2773 = vmul.f32 %v2581, %v2728
        %v2774 = vmul.f32 %v2582, %v2733
        %v2775 = vmul.f32 %v2583, %v2738
        %v2776 = vmul.f32 %v2584, %v2743
        %v2777 = vpack.c.bf16 %v2746, %v2745
        %v2778 = vpack.c.bf16 %v2748, %v2747
        %v2779 = vpack.c.bf16 %v2750, %v2749
        %v2780 = vpack.c.bf16 %v2752, %v2751
        %v2781 = vpack.c.bf16 %v2754, %v2753
        %v2782 = vpack.c.bf16 %v2756, %v2755
        %v2783 = vpack.c.bf16 %v2758, %v2757
        %v2784 = vpack.c.bf16 %v2760, %v2759
        %v2785 = vpack.c.bf16 %v2762, %v2761
        %v2786 = vpack.c.bf16 %v2764, %v2763
        %v2787 = vpack.c.bf16 %v2766, %v2765
        %v2788 = vpack.c.bf16 %v2768, %v2767
        %v2789 = vpack.c.bf16 %v2770, %v2769
        %v2790 = vpack.c.bf16 %v2772, %v2771
        %v2791 = vpack.c.bf16 %v2774, %v2773
        %v2792 = vpack.c.bf16 %v2776, %v2775
        %v2809 = vunpack.c.l.b16 %v2777
        %v2810 = vunpack.c.h.b16 %v2777
        %v2811 = vunpack.c.l.b16 %v2778
        %v2812 = vunpack.c.h.b16 %v2778
        %v2813 = vunpack.c.l.b16 %v2779
        %v2814 = vunpack.c.h.b16 %v2779
        %v2815 = vunpack.c.l.b16 %v2780
        %v2816 = vunpack.c.h.b16 %v2780
        %v2817 = vunpack.c.l.b16 %v2781
        %v2818 = vunpack.c.h.b16 %v2781
        %v2819 = vunpack.c.l.b16 %v2782
        %v2820 = vunpack.c.h.b16 %v2782
        %v2821 = vunpack.c.l.b16 %v2783
        %v2822 = vunpack.c.h.b16 %v2783
        %v2823 = vunpack.c.l.b16 %v2784
        %v2824 = vunpack.c.h.b16 %v2784
        %v2825 = vunpack.c.l.b16 %v2785
        %v2826 = vunpack.c.h.b16 %v2785
        %v2827 = vunpack.c.l.b16 %v2786
        %v2828 = vunpack.c.h.b16 %v2786
        %v2829 = vunpack.c.l.b16 %v2787
        %v2830 = vunpack.c.h.b16 %v2787
        %v2831 = vunpack.c.l.b16 %v2788
        %v2832 = vunpack.c.h.b16 %v2788
        %v2833 = vunpack.c.l.b16 %v2789
        %v2834 = vunpack.c.h.b16 %v2789
        %v2835 = vunpack.c.l.b16 %v2790
        %v2836 = vunpack.c.h.b16 %v2790
        %v2837 = vunpack.c.l.b16 %v2791
        %v2838 = vunpack.c.h.b16 %v2791
        %v2839 = vunpack.c.l.b16 %v2792
        %v2840 = vunpack.c.h.b16 %v2792
        %v2841 = vpack.c.b16 %v2809, %v2809
        %v2842 = vpack.c.b16 %v2810, %v2810
        %v2843 = vpack.c.b16 %v2811, %v2811
        %v2844 = vpack.c.b16 %v2812, %v2812
        %v2845 = vpack.c.b16 %v2813, %v2813
        %v2846 = vpack.c.b16 %v2814, %v2814
        %v2847 = vpack.c.b16 %v2815, %v2815
        %v2848 = vpack.c.b16 %v2816, %v2816
        %v2849 = vpack.c.b16 %v2817, %v2817
        %v2850 = vpack.c.b16 %v2818, %v2818
        %v2851 = vpack.c.b16 %v2819, %v2819
        %v2852 = vpack.c.b16 %v2820, %v2820
        %v2853 = vpack.c.b16 %v2821, %v2821
        %v2854 = vpack.c.b16 %v2822, %v2822
        %v2855 = vpack.c.b16 %v2823, %v2823
        %v2856 = vpack.c.b16 %v2824, %v2824
        %v2857 = vpack.c.b16 %v2825, %v2825
        %v2858 = vpack.c.b16 %v2826, %v2826
        %v2859 = vpack.c.b16 %v2827, %v2827
        %v2860 = vpack.c.b16 %v2828, %v2828
        %v2861 = vpack.c.b16 %v2829, %v2829
        %v2862 = vpack.c.b16 %v2830, %v2830
        %v2863 = vpack.c.b16 %v2831, %v2831
        %v2864 = vpack.c.b16 %v2832, %v2832
        %v2865 = vpack.c.b16 %v2833, %v2833
        %v2866 = vpack.c.b16 %v2834, %v2834
        %v2867 = vpack.c.b16 %v2835, %v2835
        %v2868 = vpack.c.b16 %v2836, %v2836
        %v2869 = vpack.c.b16 %v2837, %v2837
        %v2870 = vpack.c.b16 %v2838, %v2838
        %v2871 = vpack.c.b16 %v2839, %v2839
        %v2872 = vpack.c.b16 %v2840, %v2840
        %vm2905 = vcmask 60416
        %2906 = vst.msk [vmem:[%s287] sm:$0xf] %vm2905, %v2841
        %2907 = vst.msk [vmem:[%s287 + $0x4] sm:$0xf] %vm2905, %v2842
        %2908 = vst.msk [vmem:[%s287 + $0x8] sm:$0xf] %vm2905, %v2843
        %2909 = vst.msk [vmem:[%s287 + $0xc] sm:$0xf] %vm2905, %v2844
        %2910 = vst.msk [vmem:[%s287 + $0x10] sm:$0xf] %vm2905, %v2845
        %2911 = vst.msk [vmem:[%s287 + $0x14] sm:$0xf] %vm2905, %v2846
        %2912 = vst.msk [vmem:[%s287 + $0x18] sm:$0xf] %vm2905, %v2847
        %2913 = vst.msk [vmem:[%s287 + $0x1c] sm:$0xf] %vm2905, %v2848
        %2914 = vst.msk [vmem:[%s287 + $0x20] sm:$0xf] %vm2905, %v2849
        %2915 = vst.msk [vmem:[%s287 + $0x24] sm:$0xf] %vm2905, %v2850
        %2916 = vst.msk [vmem:[%s287 + $0x28] sm:$0xf] %vm2905, %v2851
        %2917 = vst.msk [vmem:[%s287 + $0x2c] sm:$0xf] %vm2905, %v2852
        %2918 = vst.msk [vmem:[%s287 + $0x30] sm:$0xf] %vm2905, %v2853
        %2919 = vst.msk [vmem:[%s287 + $0x34] sm:$0xf] %vm2905, %v2854
        %2920 = vst.msk [vmem:[%s287 + $0x38] sm:$0xf] %vm2905, %v2855
        %2921 = vst.msk [vmem:[%s287 + $0x3c] sm:$0xf] %vm2905, %v2856
        %2922 = vst.msk [vmem:[%s287 + $0x40] sm:$0xf] %vm2905, %v2857
        %2923 = vst.msk [vmem:[%s287 + $0x44] sm:$0xf] %vm2905, %v2858
        %2924 = vst.msk [vmem:[%s287 + $0x48] sm:$0xf] %vm2905, %v2859
        %2925 = vst.msk [vmem:[%s287 + $0x4c] sm:$0xf] %vm2905, %v2860
        %2926 = vst.msk [vmem:[%s287 + $0x50] sm:$0xf] %vm2905, %v2861
        %2927 = vst.msk [vmem:[%s287 + $0x54] sm:$0xf] %vm2905, %v2862
        %2928 = vst.msk [vmem:[%s287 + $0x58] sm:$0xf] %vm2905, %v2863
        %2929 = vst.msk [vmem:[%s287 + $0x5c] sm:$0xf] %vm2905, %v2864
        %2930 = vst.msk [vmem:[%s287 + $0x60] sm:$0xf] %vm2905, %v2865
        %2931 = vst.msk [vmem:[%s287 + $0x64] sm:$0xf] %vm2905, %v2866
        %2932 = vst.msk [vmem:[%s287 + $0x68] sm:$0xf] %vm2905, %v2867
        %2933 = vst.msk [vmem:[%s287 + $0x6c] sm:$0xf] %vm2905, %v2868
        %2934 = vst.msk [vmem:[%s287 + $0x70] sm:$0xf] %vm2905, %v2869
        %2935 = vst.msk [vmem:[%s287 + $0x74] sm:$0xf] %vm2905, %v2870
        %2936 = vst.msk [vmem:[%s287 + $0x78] sm:$0xf] %vm2905, %v2871
        %2937 = vst.msk [vmem:[%s287 + $0x7c] sm:$0xf] %vm2905, %v2872
      $region40: #{mtl_dinov2_forward.66} parent=31 // pred_fallthru
        _
      %s2938 = smul.u32 32, %s20
      %p2939 = scmp.lt.s32.totalorder %s19, 7
      %s2940 = scalar_select %p2939, %s19, 7
      %p2941 = scmp.lt.s32.totalorder %s2938, 31
      %s2942 = scalar_select %p2941, %s2938, 31
      %s2943 = smul.addr %s2940, 32
      %s2944 = sadd.s32 %s2942, %s2943
      %s2945 = smul.addr %s2944, 4
      %s2946 = scalar_lea.vmem %s3, %s2945
      // Predicated region
      $region41: #{mtl_dinov2_forward.66} parent=31 // pred_check
        %p2947 = pneg %p137
      $region42: #{mtl_dinov2_forward.66} parent=31 // pred_check_branch
        %2949 = sbr.rel (%p2947) target = $region44
      $region43: #{mtl_dinov2_forward.66} parent=31 // pred_region
        %s2950 = smul.u32 32, %s20
      $region44: #{mtl_dinov2_forward.66} parent=31 // pred_fallthru
        _
    $region32: #{mtl_dinov2_forward.66} parent=5 // pred_fallthru
      _
    %p2951 = scmp.le.s32.totalorder 2, %s9
    // Predicated region
    $region45: #{mtl_dinov2_forward.66} parent=5 // pred_check
      %p2952 = pneg %p2951
    $region46: #{mtl_dinov2_forward.66} parent=5 // pred_check_branch
      %2954 = sbr.rel (%p2952) target = $region48
    $region47: #{mtl_dinov2_forward.66} parent=5 // pred_region
      %s2955 = ssub.s32 %s9, 2
      // Predicated region
      $region49: #{mtl_dinov2_forward.66} parent=47 // pred_check
        %p2956 = pneg %p143
      $region50: #{mtl_dinov2_forward.66} parent=47 // pred_check_branch
        %2958 = sbr.rel (%p2956) target = $region52
      $region51: #{mtl_dinov2_forward.66} parent=47 // pred_region
        %s2959 = smul.u32 32, %s23
        %p2960 = scmp.lt.s32.totalorder %s22, 7
        %s2961 = scalar_select %p2960, %s22, 7
        %p2962 = scmp.lt.s32.totalorder %s2959, 31
        %s2963 = scalar_select %p2962, %s2959, 31
        %s2964 = smul.addr %s2961, 32
        %s2965 = sadd.s32 %s2963, %s2964
        %s2966 = smul.addr %s2965, 4
        %s2967 = scalar_lea.vmem %s3, %s2966
      $region52: #{mtl_dinov2_forward.66} parent=47 // pred_fallthru
        _
    $region48: #{mtl_dinov2_forward.66} parent=5 // pred_fallthru
      _
  $region6: #{mtl_dinov2_forward.66} parent=0 // loop_footer
    %s13 = sadd.s32 1, %s9
  $region7: #{mtl_dinov2_forward.66} parent=0 // loop_footer_branch
    %8 = sbr.rel target = $region3
  $region8: #{mtl_dinov2_forward.66} parent=0 // loop_exit
    _

// kernel: mtl_dinov2_forward.125
$region0: #{mtl_dinov2_forward.125}
  #allocation0 [shape = 'u32[]', space=smem, size = 0x4, offset = 0x4, fixed_abs, tag = 'smem constant byte address 0x4 - core index']
  #allocation1 [shape = 'u32[144,128]{1,0:T(1,128)}', space=vmem, size = 0x12000, scoped, tag = 'internal scratch']
  %s0 = inlined_call_operand.vmem [shape: bf16[32,256], index: 0, kind: input, shape index: {}]
  %s1 = inlined_call_operand.vmem [shape: bf16[256,256], index: 1, kind: input, shape index: {}]
  %s2 = inlined_call_operand.vmem [shape: f32[1,256], index: 2, kind: input, shape index: {}]
  %s3 = inlined_call_operand.vmem [shape: f32[32,256], index: 3, kind: output, shape index: {}]
  %s4 = sld [smem:[#allocation0]]
  $region22: #{mtl_dinov2_forward.125} parent=0
    _
  %s6 = ssub.s32 1, %s4
  %s7 = scalar_select 0, %s6, %s4
  // Predicated region
  $region2: #{mtl_dinov2_forward.125} parent=0 // pred_check
    _
  $region3: #{mtl_dinov2_forward.125} parent=0 // pred_check_branch
    %9 = sbr.rel (0) target = $region5
  $region4: #{mtl_dinov2_forward.125} parent=0 // pred_region
    _
  $region5: #{mtl_dinov2_forward.125} parent=0 // pred_fallthru
    _
  // Predicated region
  $region6: #{mtl_dinov2_forward.125} parent=0 // pred_check
    _
  $region7: #{mtl_dinov2_forward.125} parent=0 // pred_check_branch
    %11 = sbr.rel (0) target = $region9
  $region8: #{mtl_dinov2_forward.125} parent=0 // pred_region
    _
  $region9: #{mtl_dinov2_forward.125} parent=0 // pred_fallthru
    _
  // Predicated region
  $region10: #{mtl_dinov2_forward.125} parent=0 // pred_check
    _
  $region11: #{mtl_dinov2_forward.125} parent=0 // pred_check_branch
    %13 = sbr.rel (0) target = $region13
  $region12: #{mtl_dinov2_forward.125} parent=0 // pred_region
    _
  $region13: #{mtl_dinov2_forward.125} parent=0 // pred_fallthru
    _
  %v14 = vld [vmem:[%s0] sm:$0xff]
  %v15 = vld [vmem:[%s0 + $0x8] sm:$0xff]
  %v16 = vld [vmem:[%s0 + $0x10] sm:$0xff]
  %v17 = vld [vmem:[%s0 + $0x18] sm:$0xff]
  %v18 = vld [vmem:[%s1] sm:$0xff]
  %v19 = vld [vmem:[%s1 + $0x8] sm:$0xff]
  %v20 = vld [vmem:[%s1 + $0x10] sm:$0xff]
  %v21 = vld [vmem:[%s1 + $0x18] sm:$0xff]
  %v22 = vld [vmem:[%s1 + $0x20] sm:$0xff]
  %v23 = vld [vmem:[%s1 + $0x28] sm:$0xff]
  %v24 = vld [vmem:[%s1 + $0x30] sm:$0xff]
  %v25 = vld [vmem:[%s1 + $0x38] sm:$0xff]
  %v26 = vld [vmem:[%s1 + $0x40] sm:$0xff]
  %v27 = vld [vmem:[%s1 + $0x48] sm:$0xff]
  %v28 = vld [vmem:[%s1 + $0x50] sm:$0xff]
  %v29 = vld [vmem:[%s1 + $0x58] sm:$0xff]
  %v30 = vld [vmem:[%s1 + $0x60] sm:$0xff]
  %v31 = vld [vmem:[%s1 + $0x68] sm:$0xff]
  %v32 = vld [vmem:[%s1 + $0x70] sm:$0xff]
  %v33 = vld [vmem:[%s1 + $0x78] sm:$0xff]
  %v34 = vld [vmem:[%s1 + $0x80] sm:$0xff]
  %v35 = vld [vmem:[%s1 + $0x88] sm:$0xff]
  %v36 = vld [vmem:[%s1 + $0x90] sm:$0xff]
  %v37 = vld [vmem:[%s1 + $0x98] sm:$0xff]
  %v38 = vld [vmem:[%s1 + $0xa0] sm:$0xff]
  %v39 = vld [vmem:[%s1 + $0xa8] sm:$0xff]
  %v40 = vld [vmem:[%s1 + $0xb0] sm:$0xff]
  %v41 = vld [vmem:[%s1 + $0xb8] sm:$0xff]
  %v42 = vld [vmem:[%s1 + $0xc0] sm:$0xff]
  %v43 = vld [vmem:[%s1 + $0xc8] sm:$0xff]
  %v44 = vld [vmem:[%s1 + $0xd0] sm:$0xff]
  %v45 = vld [vmem:[%s1 + $0xd8] sm:$0xff]
  %v46 = vld [vmem:[%s1 + $0xe0] sm:$0xff]
  %v47 = vld [vmem:[%s1 + $0xe8] sm:$0xff]
  %v48 = vld [vmem:[%s1 + $0xf0] sm:$0xff]
  %v49 = vld [vmem:[%s1 + $0xf8] sm:$0xff]
  %v50 = vld [vmem:[%s2] sm:$0x3]
  %v52 = vlaneseq
  %v53 = vshrl.u32 %v52, 7
  %v54 = vsub.s32 0, %v53
  %v55 = vrot.slane %v50, %v54
  %v56 = vlaneseq
  %v57 = vshrl.u32 %v56, 7
  %v58 = vsub.s32 1, %v57
  %v59 = vrot.slane %v50, %v58
  %v66 = vunpack.c.l.b16 %v14
  %v67 = vunpack.c.h.b16 %v14
  %v68 = vunpack.c.l.b16 %v15
  %v69 = vunpack.c.h.b16 %v15
  %v70 = vunpack.c.l.b16 %v16
  %v71 = vunpack.c.h.b16 %v16
  %v72 = vunpack.c.l.b16 %v17
  %v73 = vunpack.c.h.b16 %v17
  %v74 = vpack.c.b16 %v68, %v66
  %v75 = vpack.c.b16 %v69, %v67
  %v76 = vpack.c.b16 %v72, %v70
  %v77 = vpack.c.b16 %v73, %v71
  %v114 = vunpack.c.l.b16 %v18
  %v115 = vunpack.c.h.b16 %v18
  %v116 = vunpack.c.l.b16 %v19
  %v117 = vunpack.c.h.b16 %v19
  %v118 = vunpack.c.l.b16 %v20
  %v119 = vunpack.c.h.b16 %v20
  %v120 = vunpack.c.l.b16 %v21
  %v121 = vunpack.c.h.b16 %v21
  %v122 = vunpack.c.l.b16 %v22
  %v123 = vunpack.c.h.b16 %v22
  %v124 = vunpack.c.l.b16 %v23
  %v125 = vunpack.c.h.b16 %v23
  %v126 = vunpack.c.l.b16 %v24
  %v127 = vunpack.c.h.b16 %v24
  %v128 = vunpack.c.l.b16 %v25
  %v129 = vunpack.c.h.b16 %v25
  %v130 = vunpack.c.l.b16 %v26
  %v131 = vunpack.c.h.b16 %v26
  %v132 = vunpack.c.l.b16 %v27
  %v133 = vunpack.c.h.b16 %v27
  %v134 = vunpack.c.l.b16 %v28
  %v135 = vunpack.c.h.b16 %v28
  %v136 = vunpack.c.l.b16 %v29
  %v137 = vunpack.c.h.b16 %v29
  %v138 = vunpack.c.l.b16 %v30
  %v139 = vunpack.c.h.b16 %v30
  %v140 = vunpack.c.l.b16 %v31
  %v141 = vunpack.c.h.b16 %v31
  %v142 = vunpack.c.l.b16 %v32
  %v143 = vunpack.c.h.b16 %v32
  %v144 = vunpack.c.l.b16 %v33
  %v145 = vunpack.c.h.b16 %v33
  %v146 = vunpack.c.l.b16 %v34
  %v147 = vunpack.c.h.b16 %v34
  %v148 = vunpack.c.l.b16 %v35
  %v149 = vunpack.c.h.b16 %v35
  %v150 = vunpack.c.l.b16 %v36
  %v151 = vunpack.c.h.b16 %v36
  %v152 = vunpack.c.l.b16 %v37
  %v153 = vunpack.c.h.b16 %v37
  %v154 = vunpack.c.l.b16 %v38
  %v155 = vunpack.c.h.b16 %v38
  %v156 = vunpack.c.l.b16 %v39
  %v157 = vunpack.c.h.b16 %v39
  %v158 = vunpack.c.l.b16 %v40
  %v159 = vunpack.c.h.b16 %v40
  %v160 = vunpack.c.l.b16 %v41
  %v161 = vunpack.c.h.b16 %v41
  %v162 = vunpack.c.l.b16 %v42
  %v163 = vunpack.c.h.b16 %v42
  %v164 = vunpack.c.l.b16 %v43
  %v165 = vunpack.c.h.b16 %v43
  %v166 = vunpack.c.l.b16 %v44
  %v167 = vunpack.c.h.b16 %v44
  %v168 = vunpack.c.l.b16 %v45
  %v169 = vunpack.c.h.b16 %v45
  %v170 = vunpack.c.l.b16 %v46
  %v171 = vunpack.c.h.b16 %v46
  %v172 = vunpack.c.l.b16 %v47
  %v173 = vunpack.c.h.b16 %v47
  %v174 = vunpack.c.l.b16 %v48
  %v175 = vunpack.c.h.b16 %v48
  %v176 = vunpack.c.l.b16 %v49
  %v177 = vunpack.c.h.b16 %v49
  %v178 = vpack.c.b16 %v116, %v114
  %v179 = vpack.c.b16 %v117, %v115
  %v180 = vpack.c.b16 %v120, %v118
  %v181 = vpack.c.b16 %v121, %v119
  %v182 = vpack.c.b16 %v124, %v122
  %v183 = vpack.c.b16 %v125, %v123
  %v184 = vpack.c.b16 %v128, %v126
  %v185 = vpack.c.b16 %v129, %v127
  %v186 = vpack.c.b16 %v132, %v130
  %v187 = vpack.c.b16 %v133, %v131
  %v188 = vpack.c.b16 %v136, %v134
  %v189 = vpack.c.b16 %v137, %v135
  %v190 = vpack.c.b16 %v140, %v138
  %v191 = vpack.c.b16 %v141, %v139
  %v192 = vpack.c.b16 %v144, %v142
  %v193 = vpack.c.b16 %v145, %v143
  %v194 = vpack.c.b16 %v148, %v146
  %v195 = vpack.c.b16 %v149, %v147
  %v196 = vpack.c.b16 %v152, %v150
  %v197 = vpack.c.b16 %v153, %v151
  %v198 = vpack.c.b16 %v156, %v154
  %v199 = vpack.c.b16 %v157, %v155
  %v200 = vpack.c.b16 %v160, %v158
  %v201 = vpack.c.b16 %v161, %v159
  %v202 = vpack.c.b16 %v164, %v162
  %v203 = vpack.c.b16 %v165, %v163
  %v204 = vpack.c.b16 %v168, %v166
  %v205 = vpack.c.b16 %v169, %v167
  %v206 = vpack.c.b16 %v172, %v170
  %v207 = vpack.c.b16 %v173, %v171
  %v208 = vpack.c.b16 %v176, %v174
  %v209 = vpack.c.b16 %v177, %v175
  %242 = vmatprep.subr.bf16.mxu0 %v193
  %243 = vmatpush1.bf16.msra.mxu0 %v192
  %244 = vmatprep.subr.bf16.mxu0 %v191
  %245 = vmatpush1.bf16.msra.mxu0 %v190
  %246 = vmatprep.subr.bf16.mxu0 %v189
  %247 = vmatpush1.bf16.msra.mxu0 %v188
  %248 = vmatprep.subr.bf16.mxu0 %v187
  %249 = vmatpush1.bf16.msra.mxu0 %v186
  %250 = vmatprep.subr.bf16.mxu0 %v185
  %251 = vmatpush1.bf16.msra.mxu0 %v184
  %252 = vmatprep.subr.bf16.mxu0 %v183
  %253 = vmatpush1.bf16.msra.mxu0 %v182
  %254 = vmatprep.subr.bf16.mxu0 %v181
  %255 = vmatpush1.bf16.msra.mxu0 %v180
  %256 = vmatprep.subr.bf16.mxu0 %v179
  %257 = vmatpush1.bf16.msra.mxu0 %v178
  %258 = vmatprep.subr.bf16.mxu0 %v209
  %259 = vmatpush2.bf16.msra.mxu0 %v208
  %260 = vmatprep.subr.bf16.mxu0 %v207
  %261 = vmatpush2.bf16.msra.mxu0 %v206
  %262 = vmatprep.subr.bf16.mxu0 %v205
  %263 = vmatpush2.bf16.msra.mxu0 %v204
  %264 = vmatprep.subr.bf16.mxu0 %v203
  %265 = vmatpush2.bf16.msra.mxu0 %v202
  %266 = vmatprep.subr.bf16.mxu0 %v201
  %267 = vmatpush2.bf16.msra.mxu0 %v200
  %268 = vmatprep.subr.bf16.mxu0 %v199
  %269 = vmatpush2.bf16.msra.mxu0 %v198
  %270 = vmatprep.subr.bf16.mxu0 %v197
  %271 = vmatpush2.bf16.msra.mxu0 %v196
  %272 = vmatprep.subr.bf16.mxu0 %v195
  %273 = vmatpush2.bf16.msra.mxu0 %v194
  %274 = vmatprep.mubr.bf16.mxu0 %v75
  %275 = vmatmul.mubr.bf16.gmra.mxu0 %v74
  %v276 = vpop.f32.mrf.mxu0
  %v277 = vadd.f32 %v55, %v276
  %v278 = vpop.f32.mrf.mxu0
  %v279 = vadd.f32 %v59, %v278
  %v280 = vpop.f32.mrf.mxu0
  %v281 = vadd.f32 %v55, %v280
  %v282 = vpop.f32.mrf.mxu0
  %v283 = vadd.f32 %v59, %v282
  %284 = vmatprep.mubr.bf16.mxu0 %v77
  %285 = vmatmul.mubr.bf16.gmra.mxu0 %v76
  %v286 = vpop.f32.mrf.mxu0
  %v287 = vadd.f32 %v55, %v286
  %v288 = vpop.f32.mrf.mxu0
  %v289 = vadd.f32 %v59, %v288
  %v290 = vpop.f32.mrf.mxu0
  %v291 = vadd.f32 %v55, %v290
  %v292 = vpop.f32.mrf.mxu0
  %v293 = vadd.f32 %v59, %v292
  %294 = vdwg.mxu0
  %295 = vst [vmem:[%s3] sm:$0xff] %v277
  %296 = vst [vmem:[%s3 + $0x8] sm:$0xff] %v279
  %297 = vst [vmem:[%s3 + $0x10] sm:$0xff] %v281
  %298 = vst [vmem:[%s3 + $0x18] sm:$0xff] %v283
  %299 = vst [vmem:[%s3 + $0x20] sm:$0xff] %v287
  %300 = vst [vmem:[%s3 + $0x28] sm:$0xff] %v289
  %301 = vst [vmem:[%s3 + $0x30] sm:$0xff] %v291
  %302 = vst [vmem:[%s3 + $0x38] sm:$0xff] %v293
  // Predicated region
  $region14: #{mtl_dinov2_forward.125} parent=0 // pred_check
    _
  $region15: #{mtl_dinov2_forward.125} parent=0 // pred_check_branch
    %304 = sbr.rel (0) target = $region17
  $region16: #{mtl_dinov2_forward.125} parent=0 // pred_region
    _
  $region17: #{mtl_dinov2_forward.125} parent=0 // pred_fallthru
    _
  // Predicated region
  $region18: #{mtl_dinov2_forward.125} parent=0 // pred_check
    _
  $region19: #{mtl_dinov2_forward.125} parent=0 // pred_check_branch
    %306 = sbr.rel (0) target = $region21
  $region20: #{mtl_dinov2_forward.125} parent=0 // pred_region
    _
  $region21: #{mtl_dinov2_forward.125} parent=0 // pred_fallthru
    _

// kernel: mtl_dinov2_forward.127
$region0: #{mtl_dinov2_forward.127}
  #allocation0 [shape = 'u32[]', space=smem, size = 0x4, offset = 0x4, fixed_abs, tag = 'smem constant byte address 0x4 - core index']
  #allocation1 [shape = 'u32[144,128]{1,0:T(1,128)}', space=vmem, size = 0x12000, scoped, tag = 'internal scratch']
  %s0 = inlined_call_operand.vmem [shape: bf16[32,128], index: 0, kind: input, shape index: {}]
  %s1 = inlined_call_operand.vmem [shape: bf16[128,10], index: 1, kind: input, shape index: {}]
  %s2 = inlined_call_operand.vmem [shape: f32[1,10], index: 2, kind: input, shape index: {}]
  %s3 = inlined_call_operand.hbm [shape: f32[32,10], index: 3, kind: output, shape index: {}]
  %s4 = sld [smem:[#allocation0]]
  $region22: #{mtl_dinov2_forward.127} parent=0
    _
  %s6 = ssub.s32 1, %s4
  %s7 = scalar_select 0, %s6, %s4
  $region1: #{mtl_dinov2_forward.127} parent=0
    #allocation2 [shape = 'u8[16384]{0}', space=vmem, size = 0x4000, scoped, tag = 'output window, operand 0, single buffered']
    #allocation3 [shape = 's32[1]{0}', space=sflag, size = 0x4, scoped, tag = 'scoped memory for mtl_dinov2_forward.127']
    %8 = vsyncpa [#allocation3], 0
    // Predicated region
    $region2: #{mtl_dinov2_forward.127} parent=1 // pred_check
      _
    $region3: #{mtl_dinov2_forward.127} parent=1 // pred_check_branch
      %10 = sbr.rel (0) target = $region5
    $region4: #{mtl_dinov2_forward.127} parent=1 // pred_region
      _
    $region5: #{mtl_dinov2_forward.127} parent=1 // pred_fallthru
      _
    // Predicated region
    $region6: #{mtl_dinov2_forward.127} parent=1 // pred_check
      _
    $region7: #{mtl_dinov2_forward.127} parent=1 // pred_check_branch
      %12 = sbr.rel (0) target = $region9
    $region8: #{mtl_dinov2_forward.127} parent=1 // pred_region
      _
    $region9: #{mtl_dinov2_forward.127} parent=1 // pred_fallthru
      _
    // Predicated region
    $region10: #{mtl_dinov2_forward.127} parent=1 // pred_check
      _
    $region11: #{mtl_dinov2_forward.127} parent=1 // pred_check_branch
      %14 = sbr.rel (0) target = $region13
    $region12: #{mtl_dinov2_forward.127} parent=1 // pred_region
      _
    $region13: #{mtl_dinov2_forward.127} parent=1 // pred_fallthru
      _
    %v16 = vld [vmem:[%s0] sm:$0xf]
    %v17 = vld [vmem:[%s0 + $0x4] sm:$0xf]
    %v18 = vld [vmem:[%s0 + $0x8] sm:$0xf]
    %v19 = vld [vmem:[%s0 + $0xc] sm:$0xf]
    %v20 = vld [vmem:[%s1] sm:$0xf]
    %v21 = vld [vmem:[%s1 + $0x4] sm:$0xf]
    %v22 = vld [vmem:[%s1 + $0x8] sm:$0xf]
    %v23 = vld [vmem:[%s1 + $0xc] sm:$0xf]
    %v24 = vld [vmem:[%s1 + $0x10] sm:$0xf]
    %v25 = vld [vmem:[%s1 + $0x14] sm:$0xf]
    %v26 = vld [vmem:[%s1 + $0x18] sm:$0xf]
    %v27 = vld [vmem:[%s1 + $0x1c] sm:$0xf]
    %v28 = vld [vmem:[%s1 + $0x20] sm:$0xf]
    %v29 = vld [vmem:[%s1 + $0x24] sm:$0xf]
    %v30 = vld [vmem:[%s1 + $0x28] sm:$0xf]
    %v31 = vld [vmem:[%s1 + $0x2c] sm:$0xf]
    %v32 = vld [vmem:[%s1 + $0x30] sm:$0xf]
    %v33 = vld [vmem:[%s1 + $0x34] sm:$0xf]
    %v34 = vld [vmem:[%s1 + $0x38] sm:$0xf]
    %v35 = vld [vmem:[%s1 + $0x3c] sm:$0xf]
    %v36 = vld [vmem:[%s2] sm:$0x1]
    %v38 = vlaneseq
    %v39 = vshrl.u32 %v38, 7
    %v40 = vsub.s32 0, %v39
    %v41 = vrot.slane %v36, %v40
    %v47 = vunpack.c.l.b16 %v16
    %v48 = vunpack.c.l.b16 %v17
    %v49 = vunpack.c.l.b16 %v18
    %v50 = vunpack.c.l.b16 %v19
    %v51 = vpack.c.b16 %v48, %v47
    %v52 = vpack.c.b16 %v50, %v49
    %v71 = vunpack.c.l.b16 %v20
    %v72 = vunpack.c.l.b16 %v21
    %v73 = vunpack.c.l.b16 %v22
    %v74 = vunpack.c.l.b16 %v23
    %v75 = vunpack.c.l.b16 %v24
    %v76 = vunpack.c.l.b16 %v25
    %v77 = vunpack.c.l.b16 %v26
    %v78 = vunpack.c.l.b16 %v27
    %v79 = vunpack.c.l.b16 %v28
    %v80 = vunpack.c.l.b16 %v29
    %v81 = vunpack.c.l.b16 %v30
    %v82 = vunpack.c.l.b16 %v31
    %v83 = vunpack.c.l.b16 %v32
    %v84 = vunpack.c.l.b16 %v33
    %v85 = vunpack.c.l.b16 %v34
    %v86 = vunpack.c.l.b16 %v35
    %v87 = vpack.c.b16 %v72, %v71
    %v88 = vpack.c.b16 %v74, %v73
    %v89 = vpack.c.b16 %v76, %v75
    %v90 = vpack.c.b16 %v78, %v77
    %v91 = vpack.c.b16 %v80, %v79
    %v92 = vpack.c.b16 %v82, %v81
    %v93 = vpack.c.b16 %v84, %v83
    %v94 = vpack.c.b16 %v86, %v85
    %103 = vmatprep.subr.bf16.mxu0 0
    %104 = vmatpush1.bf16.msra.mxu0 %v94
    %105 = vmatprep.subr.bf16.mxu0 0
    %106 = vmatpush1.bf16.msra.mxu0 %v93
    %107 = vmatprep.subr.bf16.mxu0 0
    %108 = vmatpush1.bf16.msra.mxu0 %v92
    %109 = vmatprep.subr.bf16.mxu0 0
    %110 = vmatpush1.bf16.msra.mxu0 %v91
    %111 = vmatprep.subr.bf16.mxu0 0
    %112 = vmatpush1.bf16.msra.mxu0 %v90
    %113 = vmatprep.subr.bf16.mxu0 0
    %114 = vmatpush1.bf16.msra.mxu0 %v89
    %115 = vmatprep.subr.bf16.mxu0 0
    %116 = vmatpush1.bf16.msra.mxu0 %v88
    %117 = vmatprep.subr.bf16.mxu0 0
    %118 = vmatpush1.bf16.msra.mxu0 %v87
    %119 = vmatprep.subr.bf16.mxu0 0
    %120 = vmatpush2.bf16.msra.mxu0 0
    %121 = vmatprep.subr.bf16.mxu0 0
    %122 = vmatpush2.bf16.msra.mxu0 0
    %123 = vmatprep.subr.bf16.mxu0 0
    %124 = vmatpush2.bf16.msra.mxu0 0
    %125 = vmatprep.subr.bf16.mxu0 0
    %126 = vmatpush2.bf16.msra.mxu0 0
    %127 = vmatprep.subr.bf16.mxu0 0
    %128 = vmatpush2.bf16.msra.mxu0 0
    %129 = vmatprep.subr.bf16.mxu0 0
    %130 = vmatpush2.bf16.msra.mxu0 0
    %131 = vmatprep.subr.bf16.mxu0 0
    %132 = vmatpush2.bf16.msra.mxu0 0
    %133 = vmatprep.subr.bf16.mxu0 0
    %134 = vmatpush2.bf16.msra.mxu0 0
    %135 = vmatprep.mubr.bf16.mxu0 0
    %136 = vmatmul.mubr.bf16.gmra.mxu0 %v51
    %v137 = vpop.f32.mrf.mxu0
    %v138 = vadd.f32 %v41, %v137
    %v139 = vpop.f32.mrf.mxu0
    %v140 = vpop.f32.mrf.mxu0
    %v141 = vadd.f32 %v41, %v140
    %v142 = vpop.f32.mrf.mxu0
    %143 = vmatprep.mubr.bf16.mxu0 0
    %144 = vmatmul.mubr.bf16.gmra.mxu0 %v52
    %v145 = vpop.f32.mrf.mxu0
    %v146 = vadd.f32 %v41, %v145
    %v147 = vpop.f32.mrf.mxu0
    %v148 = vpop.f32.mrf.mxu0
    %v149 = vadd.f32 %v41, %v148
    %v150 = vpop.f32.mrf.mxu0
    %151 = vdwg.mxu0
    %vm152 = vcmask 80896
    %153 = vst.msk [vmem:[#allocation2] sm:$0xff] %vm152, %v138
    %154 = vst.msk [vmem:[#allocation2 + $0x8] sm:$0xff] %vm152, %v141
    %155 = vst.msk [vmem:[#allocation2 + $0x10] sm:$0xff] %vm152, %v146
    %156 = vst.msk [vmem:[#allocation2 + $0x18] sm:$0xff] %vm152, %v149
    // Predicated region
    $region14: #{mtl_dinov2_forward.127} parent=1 // pred_check
      _
    $region15: #{mtl_dinov2_forward.127} parent=1 // pred_check_branch
      %158 = sbr.rel (0) target = $region17
    $region16: #{mtl_dinov2_forward.127} parent=1 // pred_region
      %s160 = ssub.s32 512, 512
      %161 = vsyncadd [#allocation3], %s160
      %s162 = sshll.u32 [#allocation2], 4
      %s163 = int_to_ptr.vmem [resolvable:$true] %s162
      %168 = dma.vmem_to_hbm [thread:$0]  %s163, 512, %s3, [#allocation3], 128, 128, 8
    $region17: #{mtl_dinov2_forward.127} parent=1 // pred_fallthru
      _
    // Predicated region
    $region18: #{mtl_dinov2_forward.127} parent=1 // pred_check
      _
    $region19: #{mtl_dinov2_forward.127} parent=1 // pred_check_branch
      %170 = sbr.rel (0) target = $region21
    $region20: #{mtl_dinov2_forward.127} parent=1 // pred_region
      %171 = dma.done [#allocation3], 512
    $region21: #{mtl_dinov2_forward.127} parent=1 // pred_fallthru
      _
    %172 = vsyncpa [#allocation3], 1

// kernel: mtl_dinov2_forward.126
$region0: #{mtl_dinov2_forward.126}
  #allocation0 [shape = 'u32[]', space=smem, size = 0x4, offset = 0x4, fixed_abs, tag = 'smem constant byte address 0x4 - core index']
  #allocation1 [shape = 'u32[144,128]{1,0:T(1,128)}', space=vmem, size = 0x12000, scoped, tag = 'internal scratch']
  %s0 = inlined_call_operand.vmem [shape: f32[512,256], index: 0, kind: input, shape index: {}]
  %s1 = inlined_call_operand.vmem [shape: f32[1,256], index: 1, kind: input, shape index: {}]
  %s2 = inlined_call_operand.vmem [shape: f32[512,1], index: 2, kind: output, shape index: {}]
  %s3 = sld [smem:[#allocation0]]
  $region18: #{mtl_dinov2_forward.126} parent=0
    _
  %s5 = ssub.s32 1, %s3
  %s6 = scalar_select 0, %s5, %s3
  // Predicated region
  $region2: #{mtl_dinov2_forward.126} parent=0 // pred_check
    _
  $region3: #{mtl_dinov2_forward.126} parent=0 // pred_check_branch
    %8 = sbr.rel (0) target = $region5
  $region4: #{mtl_dinov2_forward.126} parent=0 // pred_region
    _
  $region5: #{mtl_dinov2_forward.126} parent=0 // pred_fallthru
    _
  // Predicated region
  $region6: #{mtl_dinov2_forward.126} parent=0 // pred_check
    _
  $region7: #{mtl_dinov2_forward.126} parent=0 // pred_check_branch
    %10 = sbr.rel (0) target = $region9
  $region8: #{mtl_dinov2_forward.126} parent=0 // pred_region
    _
  $region9: #{mtl_dinov2_forward.126} parent=0 // pred_fallthru
    _
  %v11 = vld [vmem:[%s0] sm:$0xff]
  %v12 = vld [vmem:[%s0 + $0x8] sm:$0xff]
  %v13 = vld [vmem:[%s0 + $0x10] sm:$0xff]
  %v14 = vld [vmem:[%s0 + $0x18] sm:$0xff]
  %v15 = vld [vmem:[%s0 + $0x20] sm:$0xff]
  %v16 = vld [vmem:[%s0 + $0x28] sm:$0xff]
  %v17 = vld [vmem:[%s0 + $0x30] sm:$0xff]
  %v18 = vld [vmem:[%s0 + $0x38] sm:$0xff]
  %v19 = vld [vmem:[%s0 + $0x40] sm:$0xff]
  %v20 = vld [vmem:[%s0 + $0x48] sm:$0xff]
  %v21 = vld [vmem:[%s0 + $0x50] sm:$0xff]
  %v22 = vld [vmem:[%s0 + $0x58] sm:$0xff]
  %v23 = vld [vmem:[%s0 + $0x60] sm:$0xff]
  %v24 = vld [vmem:[%s0 + $0x68] sm:$0xff]
  %v25 = vld [vmem:[%s0 + $0x70] sm:$0xff]
  %v26 = vld [vmem:[%s0 + $0x78] sm:$0xff]
  %v27 = vld [vmem:[%s0 + $0x80] sm:$0xff]
  %v28 = vld [vmem:[%s0 + $0x88] sm:$0xff]
  %v29 = vld [vmem:[%s0 + $0x90] sm:$0xff]
  %v30 = vld [vmem:[%s0 + $0x98] sm:$0xff]
  %v31 = vld [vmem:[%s0 + $0xa0] sm:$0xff]
  %v32 = vld [vmem:[%s0 + $0xa8] sm:$0xff]
  %v33 = vld [vmem:[%s0 + $0xb0] sm:$0xff]
  %v34 = vld [vmem:[%s0 + $0xb8] sm:$0xff]
  %v35 = vld [vmem:[%s0 + $0xc0] sm:$0xff]
  %v36 = vld [vmem:[%s0 + $0xc8] sm:$0xff]
  %v37 = vld [vmem:[%s0 + $0xd0] sm:$0xff]
  %v38 = vld [vmem:[%s0 + $0xd8] sm:$0xff]
  %v39 = vld [vmem:[%s0 + $0xe0] sm:$0xff]
  %v40 = vld [vmem:[%s0 + $0xe8] sm:$0xff]
  %v41 = vld [vmem:[%s0 + $0xf0] sm:$0xff]
  %v42 = vld [vmem:[%s0 + $0xf8] sm:$0xff]
  %v43 = vld [vmem:[%s0 + $0x100] sm:$0xff]
  %v44 = vld [vmem:[%s0 + $0x108] sm:$0xff]
  %v45 = vld [vmem:[%s0 + $0x110] sm:$0xff]
  %v46 = vld [vmem:[%s0 + $0x118] sm:$0xff]
  %v47 = vld [vmem:[%s0 + $0x120] sm:$0xff]
  %v48 = vld [vmem:[%s0 + $0x128] sm:$0xff]
  %v49 = vld [vmem:[%s0 + $0x130] sm:$0xff]
  %v50 = vld [vmem:[%s0 + $0x138] sm:$0xff]
  %v51 = vld [vmem:[%s0 + $0x140] sm:$0xff]
  %v52 = vld [vmem:[%s0 + $0x148] sm:$0xff]
  %v53 = vld [vmem:[%s0 + $0x150] sm:$0xff]
  %v54 = vld [vmem:[%s0 + $0x158] sm:$0xff]
  %v55 = vld [vmem:[%s0 + $0x160] sm:$0xff]
  %v56 = vld [vmem:[%s0 + $0x168] sm:$0xff]
  %v57 = vld [vmem:[%s0 + $0x170] sm:$0xff]
  %v58 = vld [vmem:[%s0 + $0x178] sm:$0xff]
  %v59 = vld [vmem:[%s0 + $0x180] sm:$0xff]
  %v60 = vld [vmem:[%s0 + $0x188] sm:$0xff]
  %v61 = vld [vmem:[%s0 + $0x190] sm:$0xff]
  %v62 = vld [vmem:[%s0 + $0x198] sm:$0xff]
  %v63 = vld [vmem:[%s0 + $0x1a0] sm:$0xff]
  %v64 = vld [vmem:[%s0 + $0x1a8] sm:$0xff]
  %v65 = vld [vmem:[%s0 + $0x1b0] sm:$0xff]
  %v66 = vld [vmem:[%s0 + $0x1b8] sm:$0xff]
  %v67 = vld [vmem:[%s0 + $0x1c0] sm:$0xff]
  %v68 = vld [vmem:[%s0 + $0x1c8] sm:$0xff]
  %v69 = vld [vmem:[%s0 + $0x1d0] sm:$0xff]
  %v70 = vld [vmem:[%s0 + $0x1d8] sm:$0xff]
  %v71 = vld [vmem:[%s0 + $0x1e0] sm:$0xff]
  %v72 = vld [vmem:[%s0 + $0x1e8] sm:$0xff]
  %v73 = vld [vmem:[%s0 + $0x1f0] sm:$0xff]
  %v74 = vld [vmem:[%s0 + $0x1f8] sm:$0xff]
  %v75 = vld [vmem:[%s0 + $0x200] sm:$0xff]
  %v76 = vld [vmem:[%s0 + $0x208] sm:$0xff]
  %v77 = vld [vmem:[%s0 + $0x210] sm:$0xff]
  %v78 = vld [vmem:[%s0 + $0x218] sm:$0xff]
  %v79 = vld [vmem:[%s0 + $0x220] sm:$0xff]
  %v80 = vld [vmem:[%s0 + $0x228] sm:$0xff]
  %v81 = vld [vmem:[%s0 + $0x230] sm:$0xff]
  %v82 = vld [vmem:[%s0 + $0x238] sm:$0xff]
  %v83 = vld [vmem:[%s0 + $0x240] sm:$0xff]
  %v84 = vld [vmem:[%s0 + $0x248] sm:$0xff]
  %v85 = vld [vmem:[%s0 + $0x250] sm:$0xff]
  %v86 = vld [vmem:[%s0 + $0x258] sm:$0xff]
  %v87 = vld [vmem:[%s0 + $0x260] sm:$0xff]
  %v88 = vld [vmem:[%s0 + $0x268] sm:$0xff]
  %v89 = vld [vmem:[%s0 + $0x270] sm:$0xff]
  %v90 = vld [vmem:[%s0 + $0x278] sm:$0xff]
  %v91 = vld [vmem:[%s0 + $0x280] sm:$0xff]
  %v92 = vld [vmem:[%s0 + $0x288] sm:$0xff]
  %v93 = vld [vmem:[%s0 + $0x290] sm:$0xff]
  %v94 = vld [vmem:[%s0 + $0x298] sm:$0xff]
  %v95 = vld [vmem:[%s0 + $0x2a0] sm:$0xff]
  %v96 = vld [vmem:[%s0 + $0x2a8] sm:$0xff]
  %v97 = vld [vmem:[%s0 + $0x2b0] sm:$0xff]
  %v98 = vld [vmem:[%s0 + $0x2b8] sm:$0xff]
  %v99 = vld [vmem:[%s0 + $0x2c0] sm:$0xff]
  %v100 = vld [vmem:[%s0 + $0x2c8] sm:$0xff]
  %v101 = vld [vmem:[%s0 + $0x2d0] sm:$0xff]
  %v102 = vld [vmem:[%s0 + $0x2d8] sm:$0xff]
  %v103 = vld [vmem:[%s0 + $0x2e0] sm:$0xff]
  %v104 = vld [vmem:[%s0 + $0x2e8] sm:$0xff]
  %v105 = vld [vmem:[%s0 + $0x2f0] sm:$0xff]
  %v106 = vld [vmem:[%s0 + $0x2f8] sm:$0xff]
  %v107 = vld [vmem:[%s0 + $0x300] sm:$0xff]
  %v108 = vld [vmem:[%s0 + $0x308] sm:$0xff]
  %v109 = vld [vmem:[%s0 + $0x310] sm:$0xff]
  %v110 = vld [vmem:[%s0 + $0x318] sm:$0xff]
  %v111 = vld [vmem:[%s0 + $0x320] sm:$0xff]
  %v112 = vld [vmem:[%s0 + $0x328] sm:$0xff]
  %v113 = vld [vmem:[%s0 + $0x330] sm:$0xff]
  %v114 = vld [vmem:[%s0 + $0x338] sm:$0xff]
  %v115 = vld [vmem:[%s0 + $0x340] sm:$0xff]
  %v116 = vld [vmem:[%s0 + $0x348] sm:$0xff]
  %v117 = vld [vmem:[%s0 + $0x350] sm:$0xff]
  %v118 = vld [vmem:[%s0 + $0x358] sm:$0xff]
  %v119 = vld [vmem:[%s0 + $0x360] sm:$0xff]
  %v120 = vld [vmem:[%s0 + $0x368] sm:$0xff]
  %v121 = vld [vmem:[%s0 + $0x370] sm:$0xff]
  %v122 = vld [vmem:[%s0 + $0x378] sm:$0xff]
  %v123 = vld [vmem:[%s0 + $0x380] sm:$0xff]
  %v124 = vld [vmem:[%s0 + $0x388] sm:$0xff]
  %v125 = vld [vmem:[%s0 + $0x390] sm:$0xff]
  %v126 = vld [vmem:[%s0 + $0x398] sm:$0xff]
  %v127 = vld [vmem:[%s0 + $0x3a0] sm:$0xff]
  %v128 = vld [vmem:[%s0 + $0x3a8] sm:$0xff]
  %v129 = vld [vmem:[%s0 + $0x3b0] sm:$0xff]
  %v130 = vld [vmem:[%s0 + $0x3b8] sm:$0xff]
  %v131 = vld [vmem:[%s0 + $0x3c0] sm:$0xff]
  %v132 = vld [vmem:[%s0 + $0x3c8] sm:$0xff]
  %v133 = vld [vmem:[%s0 + $0x3d0] sm:$0xff]
  %v134 = vld [vmem:[%s0 + $0x3d8] sm:$0xff]
  %v135 = vld [vmem:[%s0 + $0x3e0] sm:$0xff]
  %v136 = vld [vmem:[%s0 + $0x3e8] sm:$0xff]
  %v137 = vld [vmem:[%s0 + $0x3f0] sm:$0xff]
  %v138 = vld [vmem:[%s0 + $0x3f8] sm:$0xff]
  %v139 = vmax.f32 %v11, 0.0
  %v140 = vmax.f32 %v12, 0.0
  %v141 = vmax.f32 %v13, 0.0
  %v142 = vmax.f32 %v14, 0.0
  %v143 = vmax.f32 %v15, 0.0
  %v144 = vmax.f32 %v16, 0.0
  %v145 = vmax.f32 %v17, 0.0
  %v146 = vmax.f32 %v18, 0.0
  %v147 = vmax.f32 %v19, 0.0
  %v148 = vmax.f32 %v20, 0.0
  %v149 = vmax.f32 %v21, 0.0
  %v150 = vmax.f32 %v22, 0.0
  %v151 = vmax.f32 %v23, 0.0
  %v152 = vmax.f32 %v24, 0.0
  %v153 = vmax.f32 %v25, 0.0
  %v154 = vmax.f32 %v26, 0.0
  %v155 = vmax.f32 %v27, 0.0
  %v156 = vmax.f32 %v28, 0.0
  %v157 = vmax.f32 %v29, 0.0
  %v158 = vmax.f32 %v30, 0.0
  %v159 = vmax.f32 %v31, 0.0
  %v160 = vmax.f32 %v32, 0.0
  %v161 = vmax.f32 %v33, 0.0
  %v162 = vmax.f32 %v34, 0.0
  %v163 = vmax.f32 %v35, 0.0
  %v164 = vmax.f32 %v36, 0.0
  %v165 = vmax.f32 %v37, 0.0
  %v166 = vmax.f32 %v38, 0.0
  %v167 = vmax.f32 %v39, 0.0
  %v168 = vmax.f32 %v40, 0.0
  %v169 = vmax.f32 %v41, 0.0
  %v170 = vmax.f32 %v42, 0.0
  %v171 = vmax.f32 %v43, 0.0
  %v172 = vmax.f32 %v44, 0.0
  %v173 = vmax.f32 %v45, 0.0
  %v174 = vmax.f32 %v46, 0.0
  %v175 = vmax.f32 %v47, 0.0
  %v176 = vmax.f32 %v48, 0.0
  %v177 = vmax.f32 %v49, 0.0
  %v178 = vmax.f32 %v50, 0.0
  %v179 = vmax.f32 %v51, 0.0
  %v180 = vmax.f32 %v52, 0.0
  %v181 = vmax.f32 %v53, 0.0
  %v182 = vmax.f32 %v54, 0.0
  %v183 = vmax.f32 %v55, 0.0
  %v184 = vmax.f32 %v56, 0.0
  %v185 = vmax.f32 %v57, 0.0
  %v186 = vmax.f32 %v58, 0.0
  %v187 = vmax.f32 %v59, 0.0
  %v188 = vmax.f32 %v60, 0.0
  %v189 = vmax.f32 %v61, 0.0
  %v190 = vmax.f32 %v62, 0.0
  %v191 = vmax.f32 %v63, 0.0
  %v192 = vmax.f32 %v64, 0.0
  %v193 = vmax.f32 %v65, 0.0
  %v194 = vmax.f32 %v66, 0.0
  %v195 = vmax.f32 %v67, 0.0
  %v196 = vmax.f32 %v68, 0.0
  %v197 = vmax.f32 %v69, 0.0
  %v198 = vmax.f32 %v70, 0.0
  %v199 = vmax.f32 %v71, 0.0
  %v200 = vmax.f32 %v72, 0.0
  %v201 = vmax.f32 %v73, 0.0
  %v202 = vmax.f32 %v74, 0.0
  %v203 = vmax.f32 %v75, 0.0
  %v204 = vmax.f32 %v76, 0.0
  %v205 = vmax.f32 %v77, 0.0
  %v206 = vmax.f32 %v78, 0.0
  %v207 = vmax.f32 %v79, 0.0
  %v208 = vmax.f32 %v80, 0.0
  %v209 = vmax.f32 %v81, 0.0
  %v210 = vmax.f32 %v82, 0.0
  %v211 = vmax.f32 %v83, 0.0
  %v212 = vmax.f32 %v84, 0.0
  %v213 = vmax.f32 %v85, 0.0
  %v214 = vmax.f32 %v86, 0.0
  %v215 = vmax.f32 %v87, 0.0
  %v216 = vmax.f32 %v88, 0.0
  %v217 = vmax.f32 %v89, 0.0
  %v218 = vmax.f32 %v90, 0.0
  %v219 = vmax.f32 %v91, 0.0
  %v220 = vmax.f32 %v92, 0.0
  %v221 = vmax.f32 %v93, 0.0
  %v222 = vmax.f32 %v94, 0.0
  %v223 = vmax.f32 %v95, 0.0
  %v224 = vmax.f32 %v96, 0.0
  %v225 = vmax.f32 %v97, 0.0
  %v226 = vmax.f32 %v98, 0.0
  %v227 = vmax.f32 %v99, 0.0
  %v228 = vmax.f32 %v100, 0.0
  %v229 = vmax.f32 %v101, 0.0
  %v230 = vmax.f32 %v102, 0.0
  %v231 = vmax.f32 %v103, 0.0
  %v232 = vmax.f32 %v104, 0.0
  %v233 = vmax.f32 %v105, 0.0
  %v234 = vmax.f32 %v106, 0.0
  %v235 = vmax.f32 %v107, 0.0
  %v236 = vmax.f32 %v108, 0.0
  %v237 = vmax.f32 %v109, 0.0
  %v238 = vmax.f32 %v110, 0.0
  %v239 = vmax.f32 %v111, 0.0
  %v240 = vmax.f32 %v112, 0.0
  %v241 = vmax.f32 %v113, 0.0
  %v242 = vmax.f32 %v114, 0.0
  %v243 = vmax.f32 %v115, 0.0
  %v244 = vmax.f32 %v116, 0.0
  %v245 = vmax.f32 %v117, 0.0
  %v246 = vmax.f32 %v118, 0.0
  %v247 = vmax.f32 %v119, 0.0
  %v248 = vmax.f32 %v120, 0.0
  %v249 = vmax.f32 %v121, 0.0
  %v250 = vmax.f32 %v122, 0.0
  %v251 = vmax.f32 %v123, 0.0
  %v252 = vmax.f32 %v124, 0.0
  %v253 = vmax.f32 %v125, 0.0
  %v254 = vmax.f32 %v126, 0.0
  %v255 = vmax.f32 %v127, 0.0
  %v256 = vmax.f32 %v128, 0.0
  %v257 = vmax.f32 %v129, 0.0
  %v258 = vmax.f32 %v130, 0.0
  %v259 = vmax.f32 %v131, 0.0
  %v260 = vmax.f32 %v132, 0.0
  %v261 = vmax.f32 %v133, 0.0
  %v262 = vmax.f32 %v134, 0.0
  %v263 = vmax.f32 %v135, 0.0
  %v264 = vmax.f32 %v136, 0.0
  %v265 = vmax.f32 %v137, 0.0
  %v266 = vmax.f32 %v138, 0.0
  %v267 = vadd.f32 %v139, 0.1
  %v268 = vadd.f32 %v140, 0.1
  %v269 = vadd.f32 %v141, 0.1
  %v270 = vadd.f32 %v142, 0.1
  %v271 = vadd.f32 %v143, 0.1
  %v272 = vadd.f32 %v144, 0.1
  %v273 = vadd.f32 %v145, 0.1
  %v274 = vadd.f32 %v146, 0.1
  %v275 = vadd.f32 %v147, 0.1
  %v276 = vadd.f32 %v148, 0.1
  %v277 = vadd.f32 %v149, 0.1
  %v278 = vadd.f32 %v150, 0.1
  %v279 = vadd.f32 %v151, 0.1
  %v280 = vadd.f32 %v152, 0.1
  %v281 = vadd.f32 %v153, 0.1
  %v282 = vadd.f32 %v154, 0.1
  %v283 = vadd.f32 %v155, 0.1
  %v284 = vadd.f32 %v156, 0.1
  %v285 = vadd.f32 %v157, 0.1
  %v286 = vadd.f32 %v158, 0.1
  %v287 = vadd.f32 %v159, 0.1
  %v288 = vadd.f32 %v160, 0.1
  %v289 = vadd.f32 %v161, 0.1
  %v290 = vadd.f32 %v162, 0.1
  %v291 = vadd.f32 %v163, 0.1
  %v292 = vadd.f32 %v164, 0.1
  %v293 = vadd.f32 %v165, 0.1
  %v294 = vadd.f32 %v166, 0.1
  %v295 = vadd.f32 %v167, 0.1
  %v296 = vadd.f32 %v168, 0.1
  %v297 = vadd.f32 %v169, 0.1
  %v298 = vadd.f32 %v170, 0.1
  %v299 = vadd.f32 %v171, 0.1
  %v300 = vadd.f32 %v172, 0.1
  %v301 = vadd.f32 %v173, 0.1
  %v302 = vadd.f32 %v174, 0.1
  %v303 = vadd.f32 %v175, 0.1
  %v304 = vadd.f32 %v176, 0.1
  %v305 = vadd.f32 %v177, 0.1
  %v306 = vadd.f32 %v178, 0.1
  %v307 = vadd.f32 %v179, 0.1
  %v308 = vadd.f32 %v180, 0.1
  %v309 = vadd.f32 %v181, 0.1
  %v310 = vadd.f32 %v182, 0.1
  %v311 = vadd.f32 %v183, 0.1
  %v312 = vadd.f32 %v184, 0.1
  %v313 = vadd.f32 %v185, 0.1
  %v314 = vadd.f32 %v186, 0.1
  %v315 = vadd.f32 %v187, 0.1
  %v316 = vadd.f32 %v188, 0.1
  %v317 = vadd.f32 %v189, 0.1
  %v318 = vadd.f32 %v190, 0.1
  %v319 = vadd.f32 %v191, 0.1
  %v320 = vadd.f32 %v192, 0.1
  %v321 = vadd.f32 %v193, 0.1
  %v322 = vadd.f32 %v194, 0.1
  %v323 = vadd.f32 %v195, 0.1
  %v324 = vadd.f32 %v196, 0.1
  %v325 = vadd.f32 %v197, 0.1
  %v326 = vadd.f32 %v198, 0.1
  %v327 = vadd.f32 %v199, 0.1
  %v328 = vadd.f32 %v200, 0.1
  %v329 = vadd.f32 %v201, 0.1
  %v330 = vadd.f32 %v202, 0.1
  %v331 = vadd.f32 %v203, 0.1
  %v332 = vadd.f32 %v204, 0.1
  %v333 = vadd.f32 %v205, 0.1
  %v334 = vadd.f32 %v206, 0.1
  %v335 = vadd.f32 %v207, 0.1
  %v336 = vadd.f32 %v208, 0.1
  %v337 = vadd.f32 %v209, 0.1
  %v338 = vadd.f32 %v210, 0.1
  %v339 = vadd.f32 %v211, 0.1
  %v340 = vadd.f32 %v212, 0.1
  %v341 = vadd.f32 %v213, 0.1
  %v342 = vadd.f32 %v214, 0.1
  %v343 = vadd.f32 %v215, 0.1
  %v344 = vadd.f32 %v216, 0.1
  %v345 = vadd.f32 %v217, 0.1
  %v346 = vadd.f32 %v218, 0.1
  %v347 = vadd.f32 %v219, 0.1
  %v348 = vadd.f32 %v220, 0.1
  %v349 = vadd.f32 %v221, 0.1
  %v350 = vadd.f32 %v222, 0.1
  %v351 = vadd.f32 %v223, 0.1
  %v352 = vadd.f32 %v224, 0.1
  %v353 = vadd.f32 %v225, 0.1
  %v354 = vadd.f32 %v226, 0.1
  %v355 = vadd.f32 %v227, 0.1
  %v356 = vadd.f32 %v228, 0.1
  %v357 = vadd.f32 %v229, 0.1
  %v358 = vadd.f32 %v230, 0.1
  %v359 = vadd.f32 %v231, 0.1
  %v360 = vadd.f32 %v232, 0.1
  %v361 = vadd.f32 %v233, 0.1
  %v362 = vadd.f32 %v234, 0.1
  %v363 = vadd.f32 %v235, 0.1
  %v364 = vadd.f32 %v236, 0.1
  %v365 = vadd.f32 %v237, 0.1
  %v366 = vadd.f32 %v238, 0.1
  %v367 = vadd.f32 %v239, 0.1
  %v368 = vadd.f32 %v240, 0.1
  %v369 = vadd.f32 %v241, 0.1
  %v370 = vadd.f32 %v242, 0.1
  %v371 = vadd.f32 %v243, 0.1
  %v372 = vadd.f32 %v244, 0.1
  %v373 = vadd.f32 %v245, 0.1
  %v374 = vadd.f32 %v246, 0.1
  %v375 = vadd.f32 %v247, 0.1
  %v376 = vadd.f32 %v248, 0.1
  %v377 = vadd.f32 %v249, 0.1
  %v378 = vadd.f32 %v250, 0.1
  %v379 = vadd.f32 %v251, 0.1
  %v380 = vadd.f32 %v252, 0.1
  %v381 = vadd.f32 %v253, 0.1
  %v382 = vadd.f32 %v254, 0.1
  %v383 = vadd.f32 %v255, 0.1
  %v384 = vadd.f32 %v256, 0.1
  %v385 = vadd.f32 %v257, 0.1
  %v386 = vadd.f32 %v258, 0.1
  %v387 = vadd.f32 %v259, 0.1
  %v388 = vadd.f32 %v260, 0.1
  %v389 = vadd.f32 %v261, 0.1
  %v390 = vadd.f32 %v262, 0.1
  %v391 = vadd.f32 %v263, 0.1
  %v392 = vadd.f32 %v264, 0.1
  %v393 = vadd.f32 %v265, 0.1
  %v394 = vadd.f32 %v266, 0.1
  %v395 = vadd.f32 %v267, %v268
  %396 = vadd.xlane.f32.xlu0 %v395
  %v397 = vpop.xlane.xlu0 %396
  %v398 = vadd.f32 %v269, %v270
  %399 = vadd.xlane.f32.xlu0 %v398
  %v400 = vpop.xlane.xlu0 %399
  %v401 = vadd.f32 %v271, %v272
  %402 = vadd.xlane.f32.xlu0 %v401
  %v403 = vpop.xlane.xlu0 %402
  %v404 = vadd.f32 %v273, %v274
  %405 = vadd.xlane.f32.xlu0 %v404
  %v406 = vpop.xlane.xlu0 %405
  %v407 = vadd.f32 %v275, %v276
  %408 = vadd.xlane.f32.xlu0 %v407
  %v409 = vpop.xlane.xlu0 %408
  %v410 = vadd.f32 %v277, %v278
  %411 = vadd.xlane.f32.xlu0 %v410
  %v412 = vpop.xlane.xlu0 %411
  %v413 = vadd.f32 %v279, %v280
  %414 = vadd.xlane.f32.xlu0 %v413
  %v415 = vpop.xlane.xlu0 %414
  %v416 = vadd.f32 %v281, %v282
  %417 = vadd.xlane.f32.xlu0 %v416
  %v418 = vpop.xlane.xlu0 %417
  %v419 = vadd.f32 %v283, %v284
  %420 = vadd.xlane.f32.xlu0 %v419
  %v421 = vpop.xlane.xlu0 %420
  %v422 = vadd.f32 %v285, %v286
  %423 = vadd.xlane.f32.xlu0 %v422
  %v424 = vpop.xlane.xlu0 %423
  %v425 = vadd.f32 %v287, %v288
  %426 = vadd.xlane.f32.xlu0 %v425
  %v427 = vpop.xlane.xlu0 %426
  %v428 = vadd.f32 %v289, %v290
  %429 = vadd.xlane.f32.xlu0 %v428
  %v430 = vpop.xlane.xlu0 %429
  %v431 = vadd.f32 %v291, %v292
  %432 = vadd.xlane.f32.xlu0 %v431
  %v433 = vpop.xlane.xlu0 %432
  %v434 = vadd.f32 %v293, %v294
  %435 = vadd.xlane.f32.xlu0 %v434
  %v436 = vpop.xlane.xlu0 %435
  %v437 = vadd.f32 %v295, %v296
  %438 = vadd.xlane.f32.xlu0 %v437
  %v439 = vpop.xlane.xlu0 %438
  %v440 = vadd.f32 %v297, %v298
  %441 = vadd.xlane.f32.xlu0 %v440
  %v442 = vpop.xlane.xlu0 %441
  %v443 = vadd.f32 %v299, %v300
  %444 = vadd.xlane.f32.xlu0 %v443
  %v445 = vpop.xlane.xlu0 %444
  %v446 = vadd.f32 %v301, %v302
  %447 = vadd.xlane.f32.xlu0 %v446
  %v448 = vpop.xlane.xlu0 %447
  %v449 = vadd.f32 %v303, %v304
  %450 = vadd.xlane.f32.xlu0 %v449
  %v451 = vpop.xlane.xlu0 %450
  %v452 = vadd.f32 %v305, %v306
  %453 = vadd.xlane.f32.xlu0 %v452
  %v454 = vpop.xlane.xlu0 %453
  %v455 = vadd.f32 %v307, %v308
  %456 = vadd.xlane.f32.xlu0 %v455
  %v457 = vpop.xlane.xlu0 %456
  %v458 = vadd.f32 %v309, %v310
  %459 = vadd.xlane.f32.xlu0 %v458
  %v460 = vpop.xlane.xlu0 %459
  %v461 = vadd.f32 %v311, %v312
  %462 = vadd.xlane.f32.xlu0 %v461
  %v463 = vpop.xlane.xlu0 %462
  %v464 = vadd.f32 %v313, %v314
  %465 = vadd.xlane.f32.xlu0 %v464
  %v466 = vpop.xlane.xlu0 %465
  %v467 = vadd.f32 %v315, %v316
  %468 = vadd.xlane.f32.xlu0 %v467
  %v469 = vpop.xlane.xlu0 %468
  %v470 = vadd.f32 %v317, %v318
  %471 = vadd.xlane.f32.xlu0 %v470
  %v472 = vpop.xlane.xlu0 %471
  %v473 = vadd.f32 %v319, %v320
  %474 = vadd.xlane.f32.xlu0 %v473
  %v475 = vpop.xlane.xlu0 %474
  %v476 = vadd.f32 %v321, %v322
  %477 = vadd.xlane.f32.xlu0 %v476
  %v478 = vpop.xlane.xlu0 %477
  %v479 = vadd.f32 %v323, %v324
  %480 = vadd.xlane.f32.xlu0 %v479
  %v481 = vpop.xlane.xlu0 %480
  %v482 = vadd.f32 %v325, %v326
  %483 = vadd.xlane.f32.xlu0 %v482
  %v484 = vpop.xlane.xlu0 %483
  %v485 = vadd.f32 %v327, %v328
  %486 = vadd.xlane.f32.xlu0 %v485
  %v487 = vpop.xlane.xlu0 %486
  %v488 = vadd.f32 %v329, %v330
  %489 = vadd.xlane.f32.xlu0 %v488
  %v490 = vpop.xlane.xlu0 %489
  %v491 = vadd.f32 %v331, %v332
  %492 = vadd.xlane.f32.xlu0 %v491
  %v493 = vpop.xlane.xlu0 %492
  %v494 = vadd.f32 %v333, %v334
  %495 = vadd.xlane.f32.xlu0 %v494
  %v496 = vpop.xlane.xlu0 %495
  %v497 = vadd.f32 %v335, %v336
  %498 = vadd.xlane.f32.xlu0 %v497
  %v499 = vpop.xlane.xlu0 %498
  %v500 = vadd.f32 %v337, %v338
  %501 = vadd.xlane.f32.xlu0 %v500
  %v502 = vpop.xlane.xlu0 %501
  %v503 = vadd.f32 %v339, %v340
  %504 = vadd.xlane.f32.xlu0 %v503
  %v505 = vpop.xlane.xlu0 %504
  %v506 = vadd.f32 %v341, %v342
  %507 = vadd.xlane.f32.xlu0 %v506
  %v508 = vpop.xlane.xlu0 %507
  %v509 = vadd.f32 %v343, %v344
  %510 = vadd.xlane.f32.xlu0 %v509
  %v511 = vpop.xlane.xlu0 %510
  %v512 = vadd.f32 %v345, %v346
  %513 = vadd.xlane.f32.xlu0 %v512
  %v514 = vpop.xlane.xlu0 %513
  %v515 = vadd.f32 %v347, %v348
  %516 = vadd.xlane.f32.xlu0 %v515
  %v517 = vpop.xlane.xlu0 %516
  %v518 = vadd.f32 %v349, %v350
  %519 = vadd.xlane.f32.xlu0 %v518
  %v520 = vpop.xlane.xlu0 %519
  %v521 = vadd.f32 %v351, %v352
  %522 = vadd.xlane.f32.xlu0 %v521
  %v523 = vpop.xlane.xlu0 %522
  %v524 = vadd.f32 %v353, %v354
  %525 = vadd.xlane.f32.xlu0 %v524
  %v526 = vpop.xlane.xlu0 %525
  %v527 = vadd.f32 %v355, %v356
  %528 = vadd.xlane.f32.xlu0 %v527
  %v529 = vpop.xlane.xlu0 %528
  %v530 = vadd.f32 %v357, %v358
  %531 = vadd.xlane.f32.xlu0 %v530
  %v532 = vpop.xlane.xlu0 %531
  %v533 = vadd.f32 %v359, %v360
  %534 = vadd.xlane.f32.xlu0 %v533
  %v535 = vpop.xlane.xlu0 %534
  %v536 = vadd.f32 %v361, %v362
  %537 = vadd.xlane.f32.xlu0 %v536
  %v538 = vpop.xlane.xlu0 %537
  %v539 = vadd.f32 %v363, %v364
  %540 = vadd.xlane.f32.xlu0 %v539
  %v541 = vpop.xlane.xlu0 %540
  %v542 = vadd.f32 %v365, %v366
  %543 = vadd.xlane.f32.xlu0 %v542
  %v544 = vpop.xlane.xlu0 %543
  %v545 = vadd.f32 %v367, %v368
  %546 = vadd.xlane.f32.xlu0 %v545
  %v547 = vpop.xlane.xlu0 %546
  %v548 = vadd.f32 %v369, %v370
  %549 = vadd.xlane.f32.xlu0 %v548
  %v550 = vpop.xlane.xlu0 %549
  %v551 = vadd.f32 %v371, %v372
  %552 = vadd.xlane.f32.xlu0 %v551
  %v553 = vpop.xlane.xlu0 %552
  %v554 = vadd.f32 %v373, %v374
  %555 = vadd.xlane.f32.xlu0 %v554
  %v556 = vpop.xlane.xlu0 %555
  %v557 = vadd.f32 %v375, %v376
  %558 = vadd.xlane.f32.xlu0 %v557
  %v559 = vpop.xlane.xlu0 %558
  %v560 = vadd.f32 %v377, %v378
  %561 = vadd.xlane.f32.xlu0 %v560
  %v562 = vpop.xlane.xlu0 %561
  %v563 = vadd.f32 %v379, %v380
  %564 = vadd.xlane.f32.xlu0 %v563
  %v565 = vpop.xlane.xlu0 %564
  %v566 = vadd.f32 %v381, %v382
  %567 = vadd.xlane.f32.xlu0 %v566
  %v568 = vpop.xlane.xlu0 %567
  %v569 = vadd.f32 %v383, %v384
  %570 = vadd.xlane.f32.xlu0 %v569
  %v571 = vpop.xlane.xlu0 %570
  %v572 = vadd.f32 %v385, %v386
  %573 = vadd.xlane.f32.xlu0 %v572
  %v574 = vpop.xlane.xlu0 %573
  %v575 = vadd.f32 %v387, %v388
  %576 = vadd.xlane.f32.xlu0 %v575
  %v577 = vpop.xlane.xlu0 %576
  %v578 = vadd.f32 %v389, %v390
  %579 = vadd.xlane.f32.xlu0 %v578
  %v580 = vpop.xlane.xlu0 %579
  %v581 = vadd.f32 %v391, %v392
  %582 = vadd.xlane.f32.xlu0 %v581
  %v583 = vpop.xlane.xlu0 %582
  %v584 = vadd.f32 %v393, %v394
  %585 = vadd.xlane.f32.xlu0 %v584
  %v586 = vpop.xlane.xlu0 %585
  %v587 = vrcp.pop %v397
  %v588 = vrcp.pop %v400
  %v589 = vrcp.pop %v403
  %v590 = vrcp.pop %v406
  %v591 = vrcp.pop %v409
  %v592 = vrcp.pop %v412
  %v593 = vrcp.pop %v415
  %v594 = vrcp.pop %v418
  %v595 = vrcp.pop %v421
  %v596 = vrcp.pop %v424
  %v597 = vrcp.pop %v427
  %v598 = vrcp.pop %v430
  %v599 = vrcp.pop %v433
  %v600 = vrcp.pop %v436
  %v601 = vrcp.pop %v439
  %v602 = vrcp.pop %v442
  %v603 = vrcp.pop %v445
  %v604 = vrcp.pop %v448
  %v605 = vrcp.pop %v451
  %v606 = vrcp.pop %v454
  %v607 = vrcp.pop %v457
  %v608 = vrcp.pop %v460
  %v609 = vrcp.pop %v463
  %v610 = vrcp.pop %v466
  %v611 = vrcp.pop %v469
  %v612 = vrcp.pop %v472
  %v613 = vrcp.pop %v475
  %v614 = vrcp.pop %v478
  %v615 = vrcp.pop %v481
  %v616 = vrcp.pop %v484
  %v617 = vrcp.pop %v487
  %v618 = vrcp.pop %v490
  %v619 = vrcp.pop %v493
  %v620 = vrcp.pop %v496
  %v621 = vrcp.pop %v499
  %v622 = vrcp.pop %v502
  %v623 = vrcp.pop %v505
  %v624 = vrcp.pop %v508
  %v625 = vrcp.pop %v511
  %v626 = vrcp.pop %v514
  %v627 = vrcp.pop %v517
  %v628 = vrcp.pop %v520
  %v629 = vrcp.pop %v523
  %v630 = vrcp.pop %v526
  %v631 = vrcp.pop %v529
  %v632 = vrcp.pop %v532
  %v633 = vrcp.pop %v535
  %v634 = vrcp.pop %v538
  %v635 = vrcp.pop %v541
  %v636 = vrcp.pop %v544
  %v637 = vrcp.pop %v547
  %v638 = vrcp.pop %v550
  %v639 = vrcp.pop %v553
  %v640 = vrcp.pop %v556
  %v641 = vrcp.pop %v559
  %v642 = vrcp.pop %v562
  %v643 = vrcp.pop %v565
  %v644 = vrcp.pop %v568
  %v645 = vrcp.pop %v571
  %v646 = vrcp.pop %v574
  %v647 = vrcp.pop %v577
  %v648 = vrcp.pop %v580
  %v649 = vrcp.pop %v583
  %v650 = vrcp.pop %v586
  %v651 = vmul.f32 %v267, %v587
  %v652 = vmul.f32 %v268, %v587
  %v653 = vmul.f32 %v269, %v588
  %v654 = vmul.f32 %v270, %v588
  %v655 = vmul.f32 %v271, %v589
  %v656 = vmul.f32 %v272, %v589
  %v657 = vmul.f32 %v273, %v590
  %v658 = vmul.f32 %v274, %v590
  %v659 = vmul.f32 %v275, %v591
  %v660 = vmul.f32 %v276, %v591
  %v661 = vmul.f32 %v277, %v592
  %v662 = vmul.f32 %v278, %v592
  %v663 = vmul.f32 %v279, %v593
  %v664 = vmul.f32 %v280, %v593
  %v665 = vmul.f32 %v281, %v594
  %v666 = vmul.f32 %v282, %v594
  %v667 = vmul.f32 %v283, %v595
  %v668 = vmul.f32 %v284, %v595
  %v669 = vmul.f32 %v285, %v596
  %v670 = vmul.f32 %v286, %v596
  %v671 = vmul.f32 %v287, %v597
  %v672 = vmul.f32 %v288, %v597
  %v673 = vmul.f32 %v289, %v598
  %v674 = vmul.f32 %v290, %v598
  %v675 = vmul.f32 %v291, %v599
  %v676 = vmul.f32 %v292, %v599
  %v677 = vmul.f32 %v293, %v600
  %v678 = vmul.f32 %v294, %v600
  %v679 = vmul.f32 %v295, %v601
  %v680 = vmul.f32 %v296, %v601
  %v681 = vmul.f32 %v297, %v602
  %v682 = vmul.f32 %v298, %v602
  %v683 = vmul.f32 %v299, %v603
  %v684 = vmul.f32 %v300, %v603
  %v685 = vmul.f32 %v301, %v604
  %v686 = vmul.f32 %v302, %v604
  %v687 = vmul.f32 %v303, %v605
  %v688 = vmul.f32 %v304, %v605
  %v689 = vmul.f32 %v305, %v606
  %v690 = vmul.f32 %v306, %v606
  %v691 = vmul.f32 %v307, %v607
  %v692 = vmul.f32 %v308, %v607
  %v693 = vmul.f32 %v309, %v608
  %v694 = vmul.f32 %v310, %v608
  %v695 = vmul.f32 %v311, %v609
  %v696 = vmul.f32 %v312, %v609
  %v697 = vmul.f32 %v313, %v610
  %v698 = vmul.f32 %v314, %v610
  %v699 = vmul.f32 %v315, %v611
  %v700 = vmul.f32 %v316, %v611
  %v701 = vmul.f32 %v317, %v612
  %v702 = vmul.f32 %v318, %v612
  %v703 = vmul.f32 %v319, %v613
  %v704 = vmul.f32 %v320, %v613
  %v705 = vmul.f32 %v321, %v614
  %v706 = vmul.f32 %v322, %v614
  %v707 = vmul.f32 %v323, %v615
  %v708 = vmul.f32 %v324, %v615
  %v709 = vmul.f32 %v325, %v616
  %v710 = vmul.f32 %v326, %v616
  %v711 = vmul.f32 %v327, %v617
  %v712 = vmul.f32 %v328, %v617
  %v713 = vmul.f32 %v329, %v618
  %v714 = vmul.f32 %v330, %v618
  %v715 = vmul.f32 %v331, %v619
  %v716 = vmul.f32 %v332, %v619
  %v717 = vmul.f32 %v333, %v620
  %v718 = vmul.f32 %v334, %v620
  %v719 = vmul.f32 %v335, %v621
  %v720 = vmul.f32 %v336, %v621
  %v721 = vmul.f32 %v337, %v622
  %v722 = vmul.f32 %v338, %v622
  %v723 = vmul.f32 %v339, %v623
  %v724 = vmul.f32 %v340, %v623
  %v725 = vmul.f32 %v341, %v624
  %v726 = vmul.f32 %v342, %v624
  %v727 = vmul.f32 %v343, %v625
  %v728 = vmul.f32 %v344, %v625
  %v729 = vmul.f32 %v345, %v626
  %v730 = vmul.f32 %v346, %v626
  %v731 = vmul.f32 %v347, %v627
  %v732 = vmul.f32 %v348, %v627
  %v733 = vmul.f32 %v349, %v628
  %v734 = vmul.f32 %v350, %v628
  %v735 = vmul.f32 %v351, %v629
  %v736 = vmul.f32 %v352, %v629
  %v737 = vmul.f32 %v353, %v630
  %v738 = vmul.f32 %v354, %v630
  %v739 = vmul.f32 %v355, %v631
  %v740 = vmul.f32 %v356, %v631
  %v741 = vmul.f32 %v357, %v632
  %v742 = vmul.f32 %v358, %v632
  %v743 = vmul.f32 %v359, %v633
  %v744 = vmul.f32 %v360, %v633
  %v745 = vmul.f32 %v361, %v634
  %v746 = vmul.f32 %v362, %v634
  %v747 = vmul.f32 %v363, %v635
  %v748 = vmul.f32 %v364, %v635
  %v749 = vmul.f32 %v365, %v636
  %v750 = vmul.f32 %v366, %v636
  %v751 = vmul.f32 %v367, %v637
  %v752 = vmul.f32 %v368, %v637
  %v753 = vmul.f32 %v369, %v638
  %v754 = vmul.f32 %v370, %v638
  %v755 = vmul.f32 %v371, %v639
  %v756 = vmul.f32 %v372, %v639
  %v757 = vmul.f32 %v373, %v640
  %v758 = vmul.f32 %v374, %v640
  %v759 = vmul.f32 %v375, %v641
  %v760 = vmul.f32 %v376, %v641
  %v761 = vmul.f32 %v377, %v642
  %v762 = vmul.f32 %v378, %v642
  %v763 = vmul.f32 %v379, %v643
  %v764 = vmul.f32 %v380, %v643
  %v765 = vmul.f32 %v381, %v644
  %v766 = vmul.f32 %v382, %v644
  %v767 = vmul.f32 %v383, %v645
  %v768 = vmul.f32 %v384, %v645
  %v769 = vmul.f32 %v385, %v646
  %v770 = vmul.f32 %v386, %v646
  %v771 = vmul.f32 %v387, %v647
  %v772 = vmul.f32 %v388, %v647
  %v773 = vmul.f32 %v389, %v648
  %v774 = vmul.f32 %v390, %v648
  %v775 = vmul.f32 %v391, %v649
  %v776 = vmul.f32 %v392, %v649
  %v777 = vmul.f32 %v393, %v650
  %v778 = vmul.f32 %v394, %v650
  %v779 = vld [vmem:[%s1] sm:$0x3]
  %v781 = vlaneseq
  %v782 = vshrl.u32 %v781, 7
  %v783 = vsub.s32 0, %v782
  %v784 = vrot.slane %v779, %v783
  %v785 = vlaneseq
  %v786 = vshrl.u32 %v785, 7
  %v787 = vsub.s32 1, %v786
  %v788 = vrot.slane %v779, %v787
  %v791 = vmul.f32 %v651, %v784
  %v792 = vmul.f32 %v652, %v788
  %v793 = vmul.f32 %v653, %v784
  %v794 = vmul.f32 %v654, %v788
  %v795 = vmul.f32 %v655, %v784
  %v796 = vmul.f32 %v656, %v788
  %v797 = vmul.f32 %v657, %v784
  %v798 = vmul.f32 %v658, %v788
  %v799 = vmul.f32 %v659, %v784
  %v800 = vmul.f32 %v660, %v788
  %v801 = vmul.f32 %v661, %v784
  %v802 = vmul.f32 %v662, %v788
  %v803 = vmul.f32 %v663, %v784
  %v804 = vmul.f32 %v664, %v788
  %v805 = vmul.f32 %v665, %v784
  %v806 = vmul.f32 %v666, %v788
  %v807 = vmul.f32 %v667, %v784
  %v808 = vmul.f32 %v668, %v788
  %v809 = vmul.f32 %v669, %v784
  %v810 = vmul.f32 %v670, %v788
  %v811 = vmul.f32 %v671, %v784
  %v812 = vmul.f32 %v672, %v788
  %v813 = vmul.f32 %v673, %v784
  %v814 = vmul.f32 %v674, %v788
  %v815 = vmul.f32 %v675, %v784
  %v816 = vmul.f32 %v676, %v788
  %v817 = vmul.f32 %v677, %v784
  %v818 = vmul.f32 %v678, %v788
  %v819 = vmul.f32 %v679, %v784
  %v820 = vmul.f32 %v680, %v788
  %v821 = vmul.f32 %v681, %v784
  %v822 = vmul.f32 %v682, %v788
  %v823 = vmul.f32 %v683, %v784
  %v824 = vmul.f32 %v684, %v788
  %v825 = vmul.f32 %v685, %v784
  %v826 = vmul.f32 %v686, %v788
  %v827 = vmul.f32 %v687, %v784
  %v828 = vmul.f32 %v688, %v788
  %v829 = vmul.f32 %v689, %v784
  %v830 = vmul.f32 %v690, %v788
  %v831 = vmul.f32 %v691, %v784
  %v832 = vmul.f32 %v692, %v788
  %v833 = vmul.f32 %v693, %v784
  %v834 = vmul.f32 %v694, %v788
  %v835 = vmul.f32 %v695, %v784
  %v836 = vmul.f32 %v696, %v788
  %v837 = vmul.f32 %v697, %v784
  %v838 = vmul.f32 %v698, %v788
  %v839 = vmul.f32 %v699, %v784
  %v840 = vmul.f32 %v700, %v788
  %v841 = vmul.f32 %v701, %v784
  %v842 = vmul.f32 %v702, %v788
  %v843 = vmul.f32 %v703, %v784
  %v844 = vmul.f32 %v704, %v788
  %v845 = vmul.f32 %v705, %v784
  %v846 = vmul.f32 %v706, %v788
  %v847 = vmul.f32 %v707, %v784
  %v848 = vmul.f32 %v708, %v788
  %v849 = vmul.f32 %v709, %v784
  %v850 = vmul.f32 %v710, %v788
  %v851 = vmul.f32 %v711, %v784
  %v852 = vmul.f32 %v712, %v788
  %v853 = vmul.f32 %v713, %v784
  %v854 = vmul.f32 %v714, %v788
  %v855 = vmul.f32 %v715, %v784
  %v856 = vmul.f32 %v716, %v788
  %v857 = vmul.f32 %v717, %v784
  %v858 = vmul.f32 %v718, %v788
  %v859 = vmul.f32 %v719, %v784
  %v860 = vmul.f32 %v720, %v788
  %v861 = vmul.f32 %v721, %v784
  %v862 = vmul.f32 %v722, %v788
  %v863 = vmul.f32 %v723, %v784
  %v864 = vmul.f32 %v724, %v788
  %v865 = vmul.f32 %v725, %v784
  %v866 = vmul.f32 %v726, %v788
  %v867 = vmul.f32 %v727, %v784
  %v868 = vmul.f32 %v728, %v788
  %v869 = vmul.f32 %v729, %v784
  %v870 = vmul.f32 %v730, %v788
  %v871 = vmul.f32 %v731, %v784
  %v872 = vmul.f32 %v732, %v788
  %v873 = vmul.f32 %v733, %v784
  %v874 = vmul.f32 %v734, %v788
  %v875 = vmul.f32 %v735, %v784
  %v876 = vmul.f32 %v736, %v788
  %v877 = vmul.f32 %v737, %v784
  %v878 = vmul.f32 %v738, %v788
  %v879 = vmul.f32 %v739, %v784
  %v880 = vmul.f32 %v740, %v788
  %v881 = vmul.f32 %v741, %v784
  %v882 = vmul.f32 %v742, %v788
  %v883 = vmul.f32 %v743, %v784
  %v884 = vmul.f32 %v744, %v788
  %v885 = vmul.f32 %v745, %v784
  %v886 = vmul.f32 %v746, %v788
  %v887 = vmul.f32 %v747, %v784
  %v888 = vmul.f32 %v748, %v788
  %v889 = vmul.f32 %v749, %v784
  %v890 = vmul.f32 %v750, %v788
  %v891 = vmul.f32 %v751, %v784
  %v892 = vmul.f32 %v752, %v788
  %v893 = vmul.f32 %v753, %v784
  %v894 = vmul.f32 %v754, %v788
  %v895 = vmul.f32 %v755, %v784
  %v896 = vmul.f32 %v756, %v788
  %v897 = vmul.f32 %v757, %v784
  %v898 = vmul.f32 %v758, %v788
  %v899 = vmul.f32 %v759, %v784
  %v900 = vmul.f32 %v760, %v788
  %v901 = vmul.f32 %v761, %v784
  %v902 = vmul.f32 %v762, %v788
  %v903 = vmul.f32 %v763, %v784
  %v904 = vmul.f32 %v764, %v788
  %v905 = vmul.f32 %v765, %v784
  %v906 = vmul.f32 %v766, %v788
  %v907 = vmul.f32 %v767, %v784
  %v908 = vmul.f32 %v768, %v788
  %v909 = vmul.f32 %v769, %v784
  %v910 = vmul.f32 %v770, %v788
  %v911 = vmul.f32 %v771, %v784
  %v912 = vmul.f32 %v772, %v788
  %v913 = vmul.f32 %v773, %v784
  %v914 = vmul.f32 %v774, %v788
  %v915 = vmul.f32 %v775, %v784
  %v916 = vmul.f32 %v776, %v788
  %v917 = vmul.f32 %v777, %v784
  %v918 = vmul.f32 %v778, %v788
  %v919 = vadd.f32 %v791, %v792
  %920 = vadd.xlane.f32.xlu0 %v919
  %v921 = vpop.xlane.xlu0 %920
  %v922 = vadd.f32 %v793, %v794
  %923 = vadd.xlane.f32.xlu0 %v922
  %v924 = vpop.xlane.xlu0 %923
  %v925 = vadd.f32 %v795, %v796
  %926 = vadd.xlane.f32.xlu0 %v925
  %v927 = vpop.xlane.xlu0 %926
  %v928 = vadd.f32 %v797, %v798
  %929 = vadd.xlane.f32.xlu0 %v928
  %v930 = vpop.xlane.xlu0 %929
  %v931 = vadd.f32 %v799, %v800
  %932 = vadd.xlane.f32.xlu0 %v931
  %v933 = vpop.xlane.xlu0 %932
  %v934 = vadd.f32 %v801, %v802
  %935 = vadd.xlane.f32.xlu0 %v934
  %v936 = vpop.xlane.xlu0 %935
  %v937 = vadd.f32 %v803, %v804
  %938 = vadd.xlane.f32.xlu0 %v937
  %v939 = vpop.xlane.xlu0 %938
  %v940 = vadd.f32 %v805, %v806
  %941 = vadd.xlane.f32.xlu0 %v940
  %v942 = vpop.xlane.xlu0 %941
  %v943 = vadd.f32 %v807, %v808
  %944 = vadd.xlane.f32.xlu0 %v943
  %v945 = vpop.xlane.xlu0 %944
  %v946 = vadd.f32 %v809, %v810
  %947 = vadd.xlane.f32.xlu0 %v946
  %v948 = vpop.xlane.xlu0 %947
  %v949 = vadd.f32 %v811, %v812
  %950 = vadd.xlane.f32.xlu0 %v949
  %v951 = vpop.xlane.xlu0 %950
  %v952 = vadd.f32 %v813, %v814
  %953 = vadd.xlane.f32.xlu0 %v952
  %v954 = vpop.xlane.xlu0 %953
  %v955 = vadd.f32 %v815, %v816
  %956 = vadd.xlane.f32.xlu0 %v955
  %v957 = vpop.xlane.xlu0 %956
  %v958 = vadd.f32 %v817, %v818
  %959 = vadd.xlane.f32.xlu0 %v958
  %v960 = vpop.xlane.xlu0 %959
  %v961 = vadd.f32 %v819, %v820
  %962 = vadd.xlane.f32.xlu0 %v961
  %v963 = vpop.xlane.xlu0 %962
  %v964 = vadd.f32 %v821, %v822
  %965 = vadd.xlane.f32.xlu0 %v964
  %v966 = vpop.xlane.xlu0 %965
  %v967 = vadd.f32 %v823, %v824
  %968 = vadd.xlane.f32.xlu0 %v967
  %v969 = vpop.xlane.xlu0 %968
  %v970 = vadd.f32 %v825, %v826
  %971 = vadd.xlane.f32.xlu0 %v970
  %v972 = vpop.xlane.xlu0 %971
  %v973 = vadd.f32 %v827, %v828
  %974 = vadd.xlane.f32.xlu0 %v973
  %v975 = vpop.xlane.xlu0 %974
  %v976 = vadd.f32 %v829, %v830
  %977 = vadd.xlane.f32.xlu0 %v976
  %v978 = vpop.xlane.xlu0 %977
  %v979 = vadd.f32 %v831, %v832
  %980 = vadd.xlane.f32.xlu0 %v979
  %v981 = vpop.xlane.xlu0 %980
  %v982 = vadd.f32 %v833, %v834
  %983 = vadd.xlane.f32.xlu0 %v982
  %v984 = vpop.xlane.xlu0 %983
  %v985 = vadd.f32 %v835, %v836
  %986 = vadd.xlane.f32.xlu0 %v985
  %v987 = vpop.xlane.xlu0 %986
  %v988 = vadd.f32 %v837, %v838
  %989 = vadd.xlane.f32.xlu0 %v988
  %v990 = vpop.xlane.xlu0 %989
  %v991 = vadd.f32 %v839, %v840
  %992 = vadd.xlane.f32.xlu0 %v991
  %v993 = vpop.xlane.xlu0 %992
  %v994 = vadd.f32 %v841, %v842
  %995 = vadd.xlane.f32.xlu0 %v994
  %v996 = vpop.xlane.xlu0 %995
  %v997 = vadd.f32 %v843, %v844
  %998 = vadd.xlane.f32.xlu0 %v997
  %v999 = vpop.xlane.xlu0 %998
  %v1000 = vadd.f32 %v845, %v846
  %1001 = vadd.xlane.f32.xlu0 %v1000
  %v1002 = vpop.xlane.xlu0 %1001
  %v1003 = vadd.f32 %v847, %v848
  %1004 = vadd.xlane.f32.xlu0 %v1003
  %v1005 = vpop.xlane.xlu0 %1004
  %v1006 = vadd.f32 %v849, %v850
  %1007 = vadd.xlane.f32.xlu0 %v1006
  %v1008 = vpop.xlane.xlu0 %1007
  %v1009 = vadd.f32 %v851, %v852
  %1010 = vadd.xlane.f32.xlu0 %v1009
  %v1011 = vpop.xlane.xlu0 %1010
  %v1012 = vadd.f32 %v853, %v854
  %1013 = vadd.xlane.f32.xlu0 %v1012
  %v1014 = vpop.xlane.xlu0 %1013
  %v1015 = vadd.f32 %v855, %v856
  %1016 = vadd.xlane.f32.xlu0 %v1015
  %v1017 = vpop.xlane.xlu0 %1016
  %v1018 = vadd.f32 %v857, %v858
  %1019 = vadd.xlane.f32.xlu0 %v1018
  %v1020 = vpop.xlane.xlu0 %1019
  %v1021 = vadd.f32 %v859, %v860
  %1022 = vadd.xlane.f32.xlu0 %v1021
  %v1023 = vpop.xlane.xlu0 %1022
  %v1024 = vadd.f32 %v861, %v862
  %1025 = vadd.xlane.f32.xlu0 %v1024
  %v1026 = vpop.xlane.xlu0 %1025
  %v1027 = vadd.f32 %v863, %v864
  %1028 = vadd.xlane.f32.xlu0 %v1027
  %v1029 = vpop.xlane.xlu0 %1028
  %v1030 = vadd.f32 %v865, %v866
  %1031 = vadd.xlane.f32.xlu0 %v1030
  %v1032 = vpop.xlane.xlu0 %1031
  %v1033 = vadd.f32 %v867, %v868
  %1034 = vadd.xlane.f32.xlu0 %v1033
  %v1035 = vpop.xlane.xlu0 %1034
  %v1036 = vadd.f32 %v869, %v870
  %1037 = vadd.xlane.f32.xlu0 %v1036
  %v1038 = vpop.xlane.xlu0 %1037
  %v1039 = vadd.f32 %v871, %v872
  %1040 = vadd.xlane.f32.xlu0 %v1039
  %v1041 = vpop.xlane.xlu0 %1040
  %v1042 = vadd.f32 %v873, %v874
  %1043 = vadd.xlane.f32.xlu0 %v1042
  %v1044 = vpop.xlane.xlu0 %1043
  %v1045 = vadd.f32 %v875, %v876
  %1046 = vadd.xlane.f32.xlu0 %v1045
  %v1047 = vpop.xlane.xlu0 %1046
  %v1048 = vadd.f32 %v877, %v878
  %1049 = vadd.xlane.f32.xlu0 %v1048
  %v1050 = vpop.xlane.xlu0 %1049
  %v1051 = vadd.f32 %v879, %v880
  %1052 = vadd.xlane.f32.xlu0 %v1051
  %v1053 = vpop.xlane.xlu0 %1052
  %v1054 = vadd.f32 %v881, %v882
  %1055 = vadd.xlane.f32.xlu0 %v1054
  %v1056 = vpop.xlane.xlu0 %1055
  %v1057 = vadd.f32 %v883, %v884
  %1058 = vadd.xlane.f32.xlu0 %v1057
  %v1059 = vpop.xlane.xlu0 %1058
  %v1060 = vadd.f32 %v885, %v886
  %1061 = vadd.xlane.f32.xlu0 %v1060
  %v1062 = vpop.xlane.xlu0 %1061
  %v1063 = vadd.f32 %v887, %v888
  %1064 = vadd.xlane.f32.xlu0 %v1063
  %v1065 = vpop.xlane.xlu0 %1064
  %v1066 = vadd.f32 %v889, %v890
  %1067 = vadd.xlane.f32.xlu0 %v1066
  %v1068 = vpop.xlane.xlu0 %1067
  %v1069 = vadd.f32 %v891, %v892
  %1070 = vadd.xlane.f32.xlu0 %v1069
  %v1071 = vpop.xlane.xlu0 %1070
  %v1072 = vadd.f32 %v893, %v894
  %1073 = vadd.xlane.f32.xlu0 %v1072
  %v1074 = vpop.xlane.xlu0 %1073
  %v1075 = vadd.f32 %v895, %v896
  %1076 = vadd.xlane.f32.xlu0 %v1075
  %v1077 = vpop.xlane.xlu0 %1076
  %v1078 = vadd.f32 %v897, %v898
  %1079 = vadd.xlane.f32.xlu0 %v1078
  %v1080 = vpop.xlane.xlu0 %1079
  %v1081 = vadd.f32 %v899, %v900
  %1082 = vadd.xlane.f32.xlu0 %v1081
  %v1083 = vpop.xlane.xlu0 %1082
  %v1084 = vadd.f32 %v901, %v902
  %1085 = vadd.xlane.f32.xlu0 %v1084
  %v1086 = vpop.xlane.xlu0 %1085
  %v1087 = vadd.f32 %v903, %v904
  %1088 = vadd.xlane.f32.xlu0 %v1087
  %v1089 = vpop.xlane.xlu0 %1088
  %v1090 = vadd.f32 %v905, %v906
  %1091 = vadd.xlane.f32.xlu0 %v1090
  %v1092 = vpop.xlane.xlu0 %1091
  %v1093 = vadd.f32 %v907, %v908
  %1094 = vadd.xlane.f32.xlu0 %v1093
  %v1095 = vpop.xlane.xlu0 %1094
  %v1096 = vadd.f32 %v909, %v910
  %1097 = vadd.xlane.f32.xlu0 %v1096
  %v1098 = vpop.xlane.xlu0 %1097
  %v1099 = vadd.f32 %v911, %v912
  %1100 = vadd.xlane.f32.xlu0 %v1099
  %v1101 = vpop.xlane.xlu0 %1100
  %v1102 = vadd.f32 %v913, %v914
  %1103 = vadd.xlane.f32.xlu0 %v1102
  %v1104 = vpop.xlane.xlu0 %1103
  %v1105 = vadd.f32 %v915, %v916
  %1106 = vadd.xlane.f32.xlu0 %v1105
  %v1107 = vpop.xlane.xlu0 %1106
  %v1108 = vadd.f32 %v917, %v918
  %1109 = vadd.xlane.f32.xlu0 %v1108
  %v1110 = vpop.xlane.xlu0 %1109
  %vm1111 = vcmask 7168
  %1112 = vst.msk [vmem:[%s2] sm:$0xff] %vm1111, %v921
  %1113 = vst.msk [vmem:[%s2 + $0x8] sm:$0xff] %vm1111, %v924
  %1114 = vst.msk [vmem:[%s2 + $0x10] sm:$0xff] %vm1111, %v927
  %1115 = vst.msk [vmem:[%s2 + $0x18] sm:$0xff] %vm1111, %v930
  %1116 = vst.msk [vmem:[%s2 + $0x20] sm:$0xff] %vm1111, %v933
  %1117 = vst.msk [vmem:[%s2 + $0x28] sm:$0xff] %vm1111, %v936
  %1118 = vst.msk [vmem:[%s2 + $0x30] sm:$0xff] %vm1111, %v939
  %1119 = vst.msk [vmem:[%s2 + $0x38] sm:$0xff] %vm1111, %v942
  %1120 = vst.msk [vmem:[%s2 + $0x40] sm:$0xff] %vm1111, %v945
  %1121 = vst.msk [vmem:[%s2 + $0x48] sm:$0xff] %vm1111, %v948
  %1122 = vst.msk [vmem:[%s2 + $0x50] sm:$0xff] %vm1111, %v951
  %1123 = vst.msk [vmem:[%s2 + $0x58] sm:$0xff] %vm1111, %v954
  %1124 = vst.msk [vmem:[%s2 + $0x60] sm:$0xff] %vm1111, %v957
  %1125 = vst.msk [vmem:[%s2 + $0x68] sm:$0xff] %vm1111, %v960
  %1126 = vst.msk [vmem:[%s2 + $0x70] sm:$0xff] %vm1111, %v963
  %1127 = vst.msk [vmem:[%s2 + $0x78] sm:$0xff] %vm1111, %v966
  %1128 = vst.msk [vmem:[%s2 + $0x80] sm:$0xff] %vm1111, %v969
  %1129 = vst.msk [vmem:[%s2 + $0x88] sm:$0xff] %vm1111, %v972
  %1130 = vst.msk [vmem:[%s2 + $0x90] sm:$0xff] %vm1111, %v975
  %1131 = vst.msk [vmem:[%s2 + $0x98] sm:$0xff] %vm1111, %v978
  %1132 = vst.msk [vmem:[%s2 + $0xa0] sm:$0xff] %vm1111, %v981
  %1133 = vst.msk [vmem:[%s2 + $0xa8] sm:$0xff] %vm1111, %v984
  %1134 = vst.msk [vmem:[%s2 + $0xb0] sm:$0xff] %vm1111, %v987
  %1135 = vst.msk [vmem:[%s2 + $0xb8] sm:$0xff] %vm1111, %v990
  %1136 = vst.msk [vmem:[%s2 + $0xc0] sm:$0xff] %vm1111, %v993
  %1137 = vst.msk [vmem:[%s2 + $0xc8] sm:$0xff] %vm1111, %v996
  %1138 = vst.msk [vmem:[%s2 + $0xd0] sm:$0xff] %vm1111, %v999
  %1139 = vst.msk [vmem:[%s2 + $0xd8] sm:$0xff] %vm1111, %v1002
  %1140 = vst.msk [vmem:[%s2 + $0xe0] sm:$0xff] %vm1111, %v1005
  %1141 = vst.msk [vmem:[%s2 + $0xe8] sm:$0xff] %vm1111, %v1008
  %1142 = vst.msk [vmem:[%s2 + $0xf0] sm:$0xff] %vm1111, %v1011
  %1143 = vst.msk [vmem:[%s2 + $0xf8] sm:$0xff] %vm1111, %v1014
  %1144 = vst.msk [vmem:[%s2 + $0x100] sm:$0xff] %vm1111, %v1017
  %1145 = vst.msk [vmem:[%s2 + $0x108] sm:$0xff] %vm1111, %v1020
  %1146 = vst.msk [vmem:[%s2 + $0x110] sm:$0xff] %vm1111, %v1023
  %1147 = vst.msk [vmem:[%s2 + $0x118] sm:$0xff] %vm1111, %v1026
  %1148 = vst.msk [vmem:[%s2 + $0x120] sm:$0xff] %vm1111, %v1029
  %1149 = vst.msk [vmem:[%s2 + $0x128] sm:$0xff] %vm1111, %v1032
  %1150 = vst.msk [vmem:[%s2 + $0x130] sm:$0xff] %vm1111, %v1035
  %1151 = vst.msk [vmem:[%s2 + $0x138] sm:$0xff] %vm1111, %v1038
  %1152 = vst.msk [vmem:[%s2 + $0x140] sm:$0xff] %vm1111, %v1041
  %1153 = vst.msk [vmem:[%s2 + $0x148] sm:$0xff] %vm1111, %v1044
  %1154 = vst.msk [vmem:[%s2 + $0x150] sm:$0xff] %vm1111, %v1047
  %1155 = vst.msk [vmem:[%s2 + $0x158] sm:$0xff] %vm1111, %v1050
  %1156 = vst.msk [vmem:[%s2 + $0x160] sm:$0xff] %vm1111, %v1053
  %1157 = vst.msk [vmem:[%s2 + $0x168] sm:$0xff] %vm1111, %v1056
  %1158 = vst.msk [vmem:[%s2 + $0x170] sm:$0xff] %vm1111, %v1059
  %1159 = vst.msk [vmem:[%s2 + $0x178] sm:$0xff] %vm1111, %v1062
  %1160 = vst.msk [vmem:[%s2 + $0x180] sm:$0xff] %vm1111, %v1065
  %1161 = vst.msk [vmem:[%s2 + $0x188] sm:$0xff] %vm1111, %v1068
  %1162 = vst.msk [vmem:[%s2 + $0x190] sm:$0xff] %vm1111, %v1071
  %1163 = vst.msk [vmem:[%s2 + $0x198] sm:$0xff] %vm1111, %v1074
  %1164 = vst.msk [vmem:[%s2 + $0x1a0] sm:$0xff] %vm1111, %v1077
  %1165 = vst.msk [vmem:[%s2 + $0x1a8] sm:$0xff] %vm1111, %v1080
  %1166 = vst.msk [vmem:[%s2 + $0x1b0] sm:$0xff] %vm1111, %v1083
  %1167 = vst.msk [vmem:[%s2 + $0x1b8] sm:$0xff] %vm1111, %v1086
  %1168 = vst.msk [vmem:[%s2 + $0x1c0] sm:$0xff] %vm1111, %v1089
  %1169 = vst.msk [vmem:[%s2 + $0x1c8] sm:$0xff] %vm1111, %v1092
  %1170 = vst.msk [vmem:[%s2 + $0x1d0] sm:$0xff] %vm1111, %v1095
  %1171 = vst.msk [vmem:[%s2 + $0x1d8] sm:$0xff] %vm1111, %v1098
  %1172 = vst.msk [vmem:[%s2 + $0x1e0] sm:$0xff] %vm1111, %v1101
  %1173 = vst.msk [vmem:[%s2 + $0x1e8] sm:$0xff] %vm1111, %v1104
  %1174 = vst.msk [vmem:[%s2 + $0x1f0] sm:$0xff] %vm1111, %v1107
  %1175 = vst.msk [vmem:[%s2 + $0x1f8] sm:$0xff] %vm1111, %v1110
  // Predicated region
  $region10: #{mtl_dinov2_forward.126} parent=0 // pred_check
    _
  $region11: #{mtl_dinov2_forward.126} parent=0 // pred_check_branch
    %1177 = sbr.rel (0) target = $region13
  $region12: #{mtl_dinov2_forward.126} parent=0 // pred_region
    _
  $region13: #{mtl_dinov2_forward.126} parent=0 // pred_fallthru
    _
  // Predicated region
  $region14: #{mtl_dinov2_forward.126} parent=0 // pred_check
    _
  $region15: #{mtl_dinov2_forward.126} parent=0 // pred_check_branch
    %1179 = sbr.rel (0) target = $region17
  $region16: #{mtl_dinov2_forward.126} parent=0 // pred_region
    _
  $region17: #{mtl_dinov2_forward.126} parent=0 // pred_fallthru
    _

</llo_original>
